<compile_context>
chip_gen: v6e
topology: v6e:2x2x1
jax: 0.10.0
libtpu: 0.0.40
codegen_flags: <defaults>
</compile_context>

<pallas_src>
import math
import numpy as np
import jax
import jax.numpy as jnp
from jax.experimental import pallas as pl
from jax.experimental.pallas import tpu as pltpu

CAMERA_HEIGHT = 16   # image_size
CAMERA_DEPT = 4      # input channels
NUM_STAGES = 3
STAGE_DEPTHS = (16, 32, 32)


# ----------------------------------------------------------------------------
# Fused kernel: one batch element per grid step, everything resident in VMEM.
# ----------------------------------------------------------------------------
def _dot(a, b):
    return jnp.dot(a, b, preferred_element_type=jnp.float32)


def fused_impala_kernel(x_ref, *refs):
    o_ref = refs[-1]
    it = iter(refs[:-1])

    def conv_banded(x, dmat, umat, band, bias_row):
        # 3x3 "same" conv on an (H, W*Cin) slab as 3 banded MXU matmuls.
        # dmat/umat are exact 0/1 row-shift matrices (zero-row padding).
        xd = _dot(dmat, x)            # row h <- x[h-1]   (kh = 0 taps)
        xu = _dot(umat, x)            # row h <- x[h+1]   (kh = 2 taps)
        y = _dot(xd, band(0))
        y = y + _dot(x, band(1))
        y = y + _dot(xu, band(2))
        return y + bias_row

    def maxpool_3s2(y, s_ref, t_ref):
        # MaxPool2d(3, stride=2, padding=1) via exact 0/1 selection matmuls.
        r = jnp.maximum(jnp.maximum(_dot(s_ref[0], y), _dot(s_ref[1], y)),
                        _dot(s_ref[2], y))
        return jnp.maximum(jnp.maximum(_dot(r, t_ref[0]), _dot(r, t_ref[1])),
                           _dot(r, t_ref[2]))

    x = x_ref[0]                                    # (H, W*Cin) slab
    for _ in range(NUM_STAGES):
        shc = next(it)   # (2, H, H)        conv-resolution shift mats [D, U]
        cw = next(it)    # (3, W*Cin, W*Cout) banded conv0 weights (per kh)
        cb = next(it)    # (1, W*Cout)       tiled conv0 bias
        ps = next(it)    # (3, H/2, H)       pool row selectors
        pt = next(it)    # (3, W*C, (W/2)*C) pool col selectors
        shr = next(it)   # (2, H/2, H/2)     residual-resolution shift mats
        rw = next(it)    # (4, 3, Wp*C, Wp*C) banded residual conv weights
        rb = next(it)    # (4, 1, Wp*C)      tiled residual biases

        y = conv_banded(x, shc[0], shc[1], lambda j: cw[j], cb[...])
        x = maxpool_3s2(y, ps, pt)

        dmat, umat = shr[0], shr[1]
        for blk in range(2):                        # two ImpalaResidual blocks
            i1, i2 = 2 * blk, 2 * blk + 1
            h = jnp.maximum(x, 0.0)
            h = conv_banded(h, dmat, umat, lambda j, i=i1: rw[i, j], rb[i1])
            h = jnp.maximum(h, 0.0)
            h = conv_banded(h, dmat, umat, lambda j, i=i2: rw[i, j], rb[i2])
            x = h + x

    lw = next(it)        # (Hf, Wf*Cf, 256) -- NCHW flatten pre-folded
    lb = next(it)        # (1, 256)
    xr = jnp.maximum(x, 0.0)                        # (Hf, Wf*Cf)
    out = _dot(xr[0:1, :], lw[0])
    for h in range(1, xr.shape[0]):
        out = out + _dot(xr[h:h + 1, :], lw[h])
    o_ref[0] = jnp.maximum(out + lb[...], 0.0)      # (1, 256)


# ----------------------------------------------------------------------------
# Host-side packing of PyTorch-layout params into kernel-ready constants.
# ----------------------------------------------------------------------------
def _banded_conv_weight(w_hwio, W):
    """(3,3,Cin,Cout) HWIO -> (3, W*Cin, W*Cout) banded-per-kh weight."""
    Cin, Cout = int(w_hwio.shape[2]), int(w_hwio.shape[3])
    wb = np.zeros((3, W * Cin, W * Cout), np.float32)
    for kh in range(3):
        for wo in range(W):
            for kw in range(3):
                wi = wo + kw - 1                 # column padding folded in
                if 0 <= wi < W:
                    wb[kh, wi * Cin:(wi + 1) * Cin,
                       wo * Cout:(wo + 1) * Cout] = w_hwio[kh, kw]
    return wb


def _pool_row_select(H):
    """(3, H/2, H) 0/1 matrices picking rows 2*ho-1, 2*ho, 2*ho+1 (clamped)."""
    Ho = H // 2
    s = np.zeros((3, Ho, H), np.float32)
    for j in range(3):
        for ho in range(Ho):
            s[j, ho, max(2 * ho - 1 + j, 0)] = 1.0   # clamp = harmless dup
    return s


def _pool_col_select(W, C):
    """(3, W*C, (W/2)*C) 0/1 matrices picking column groups 2wo-1, 2wo, 2wo+1."""
    Wo = W // 2
    t = np.zeros((3, W * C, Wo * C), np.float32)
    eye = np.eye(C, dtype=np.float32)
    for k in range(3):
        for wo in range(Wo):
            q = max(2 * wo - 1 + k, 0)
            t[k, q * C:(q + 1) * C, wo * C:(wo + 1) * C] = eye
    return t


def _shift_mats(H):
    """[down-shift, up-shift] row matrices with zero fill (conv row padding)."""
    return np.stack([np.eye(H, k=-1, dtype=np.float32),
                     np.eye(H, k=1, dtype=np.float32)])


def pack_params(params, image_size=CAMERA_HEIGHT):
    packed = []
    H = image_size
    for st, cout in zip(params["stages"], STAGE_DEPTHS):
        W = H
        Hp, Wp = H // 2, W // 2
        packed.append(jnp.asarray(_shift_mats(H)))
        packed.append(jnp.asarray(_banded_conv_weight(np.asarray(st["conv_w"]), W)))
        packed.append(jnp.asarray(np.tile(np.asarray(st["conv_b"]), W)[None, :]))
        packed.append(jnp.asarray(_pool_row_select(H)))
        packed.append(jnp.asarray(_pool_col_select(W, cout)))
        packed.append(jnp.asarray(_shift_mats(Hp)))
        res_ws = [st["res1"]["w1"], st["res1"]["w2"], st["res2"]["w1"], st["res2"]["w2"]]
        res_bs = [st["res1"]["b1"], st["res1"]["b2"], st["res2"]["b1"], st["res2"]["b2"]]
        packed.append(jnp.asarray(np.stack(
            [_banded_conv_weight(np.asarray(w), Wp) for w in res_ws])))
        packed.append(jnp.asarray(np.stack(
            [np.tile(np.asarray(b), Wp)[None, :] for b in res_bs])))
        H = Hp
    # Linear: fold the NCHW flatten into the weight (row permutation).
    Hf = Wf = H
    Cf = STAGE_DEPTHS[-1]
    lw = np.asarray(params["lin_w"]).reshape(Cf, Hf, Wf, 256)       # PT order
    lw = lw.transpose(1, 2, 0, 3).reshape(Hf, Wf * Cf, 256)         # NHWC slab
    packed.append(jnp.asarray(lw))
    packed.append(jnp.asarray(np.asarray(params["lin_b"])[None, :]))
    return packed


# ----------------------------------------------------------------------------
# Parameters (deterministic synthetic init; shapes follow ImpalaCNN.__init__)
# conv weights are HWIO (== PyTorch OIHW transposed (2,3,1,0)); lin_w is
# (in_feat, 256) indexed in PyTorch's NCHW-flatten order.
# ----------------------------------------------------------------------------
def init_params(key, image_size=CAMERA_HEIGHT, depth_in=CAMERA_DEPT):
    def conv_p(k, cin, cout):
        kw, kb = jax.random.split(k)
        return (0.05 * jax.random.normal(kw, (3, 3, cin, cout), jnp.float32),
                0.01 * jax.random.normal(kb, (cout,), jnp.float32))

    params = {"stages": []}
    for depth_out in STAGE_DEPTHS:
        key, k0, k1, k2, k3, k4 = jax.random.split(key, 6)
        cw, cb = conv_p(k0, depth_in, depth_out)
        r1w1, r1b1 = conv_p(k1, depth_out, depth_out)
        r1w2, r1b2 = conv_p(k2, depth_out, depth_out)
        r2w1, r2b1 = conv_p(k3, depth_out, depth_out)
        r2w2, r2b2 = conv_p(k4, depth_out, depth_out)
        params["stages"].append({
            "conv_w": cw, "conv_b": cb,
            "res1": {"w1": r1w1, "b1": r1b1, "w2": r1w2, "b2": r1b2},
            "res2": {"w1": r2w1, "b1": r2b1, "w2": r2w2, "b2": r2b2},
        })
        depth_in = depth_out
    in_feat = math.ceil(image_size / 8) ** 2 * depth_in
    key, kw, kb = jax.random.split(key, 3)
    params["lin_w"] = 0.05 * jax.random.normal(kw, (in_feat, 256), jnp.float32)
    params["lin_b"] = 0.01 * jax.random.normal(kb, (256,), jnp.float32)
    return params


# ----------------------------------------------------------------------------
# Forward pass: Image.forward(obs) == ImpalaCNN(obs['image'])
# ----------------------------------------------------------------------------
def image_forward(packed, image_nhwc):
    B, H, W, C = image_nhwc.shape
    x = image_nhwc.astype(jnp.float32).reshape(B, H, W * C)  # free row-major collapse
    in_specs = [pl.BlockSpec((1, H, W * C), lambda b: (b, 0, 0))]
    for arr in packed:
        in_specs.append(pl.BlockSpec(arr.shape, lambda b, n=arr.ndim: (0,) * n))
    out = pl.pallas_call(
        fused_impala_kernel,
        out_shape=jax.ShapeDtypeStruct((B, 1, 256), jnp.float32),
        grid=(B,),
        in_specs=in_specs,
        out_specs=pl.BlockSpec((1, 1, 256), lambda b: (b, 0, 0)),
        compiler_params=pltpu.CompilerParams(dimension_semantics=("parallel",)),
    )(x, *packed)
    return out.reshape(B, 256)


# ----------------------------------------------------------------------------
# Pure-JAX reference (mirrors the PyTorch module) for validation.
# ----------------------------------------------------------------------------
def reference_forward(params, image_nhwc):
    hi = jax.lax.Precision.HIGHEST

    def conv(x, w, b):
        y = jax.lax.conv_general_dilated(
            x, w, (1, 1), ((1, 1), (1, 1)),
            dimension_numbers=("NHWC", "HWIO", "NHWC"), precision=hi)
        return y + b

    def pool(x):
        return jax.lax.reduce_window(
            x, -jnp.inf, jax.lax.max,
            (1, 3, 3, 1), (1, 2, 2, 1), ((0, 0), (1, 1), (1, 1), (0, 0)))

    x = image_nhwc.astype(jnp.float32)
    for st in params["stages"]:
        x = conv(x, st["conv_w"], st["conv_b"])
        x = pool(x)
        for res in (st["res1"], st["res2"]):
            h = conv(jax.nn.relu(x), res["w1"], res["b1"])
            h = conv(jax.nn.relu(h), res["w2"], res["b2"])
            x = h + x
    x = jax.nn.relu(x)
    B = x.shape[0]
    feat = jnp.transpose(x, (0, 3, 1, 2)).reshape(B, -1)   # NCHW flatten
    y = jnp.dot(feat, params["lin_w"], precision=hi) + params["lin_b"]
    return jax.nn.relu(y)


if __name__ == "__main__":
    key = jax.random.PRNGKey(0)
    pkey, dkey = jax.random.split(key)
    params = init_params(pkey)
    packed = pack_params(params)
    obs = {"image": jax.random.uniform(
        dkey, (2, CAMERA_HEIGHT, CAMERA_HEIGHT, CAMERA_DEPT), jnp.float32)}

    fwd = jax.jit(image_forward)
    out = jax.block_until_ready(fwd(packed, obs["image"]))
    assert out.shape == (2, 256) and out.dtype == jnp.float32

    ref = jax.block_until_ready(jax.jit(reference_forward)(params, obs["image"]))
    np.testing.assert_allclose(np.asarray(out), np.asarray(ref),
                               atol=1e-3, rtol=1e-3)
    print("KERNEL_OK")
</pallas_src>

<mosaic_0001>
module attributes {stable_mosaic.version = 11 : i64} {
  func.func @fused_impala_kernel(%arg0: i32, %arg1: memref<1x16x64xf32, #tpu.memory_space<vmem>>, %arg2: memref<2x16x16xf32, #tpu.memory_space<vmem>>, %arg3: memref<3x64x256xf32, #tpu.memory_space<vmem>>, %arg4: memref<1x256xf32, #tpu.memory_space<vmem>>, %arg5: memref<3x8x16xf32, #tpu.memory_space<vmem>>, %arg6: memref<3x256x128xf32, #tpu.memory_space<vmem>>, %arg7: memref<2x8x8xf32, #tpu.memory_space<vmem>>, %arg8: memref<4x3x128x128xf32, #tpu.memory_space<vmem>>, %arg9: memref<4x1x128xf32, #tpu.memory_space<vmem>>, %arg10: memref<2x8x8xf32, #tpu.memory_space<vmem>>, %arg11: memref<3x128x256xf32, #tpu.memory_space<vmem>>, %arg12: memref<1x256xf32, #tpu.memory_space<vmem>>, %arg13: memref<3x4x8xf32, #tpu.memory_space<vmem>>, %arg14: memref<3x256x128xf32, #tpu.memory_space<vmem>>, %arg15: memref<2x4x4xf32, #tpu.memory_space<vmem>>, %arg16: memref<4x3x128x128xf32, #tpu.memory_space<vmem>>, %arg17: memref<4x1x128xf32, #tpu.memory_space<vmem>>, %arg18: memref<2x4x4xf32, #tpu.memory_space<vmem>>, %arg19: memref<3x128x128xf32, #tpu.memory_space<vmem>>, %arg20: memref<1x128xf32, #tpu.memory_space<vmem>>, %arg21: memref<3x2x4xf32, #tpu.memory_space<vmem>>, %arg22: memref<3x128x64xf32, #tpu.memory_space<vmem>>, %arg23: memref<2x2x2xf32, #tpu.memory_space<vmem>>, %arg24: memref<4x3x64x64xf32, #tpu.memory_space<vmem>>, %arg25: memref<4x1x64xf32, #tpu.memory_space<vmem>>, %arg26: memref<2x64x256xf32, #tpu.memory_space<vmem>>, %arg27: memref<1x256xf32, #tpu.memory_space<vmem>>, %arg28: memref<1x1x256xf32, #tpu.memory_space<vmem>>) attributes {dimension_semantics = [#tpu.dimension_semantics<parallel>], iteration_bounds = array<i64: 2>, scalar_prefetch = 0 : i64, scratch_operands = 0 : i64, tpu.core_type = #tpu.core_type<tc>, window_params = [{transform_indices = @transform_0, window_bounds = array<i64: 1, 16, 64>}, {pipeline_mode = #tpu.pipeline_mode<synchronous>, transform_indices = @transform_1, window_bounds = array<i64: 2, 16, 16>}, {pipeline_mode = #tpu.pipeline_mode<synchronous>, transform_indices = @transform_2, window_bounds = array<i64: 3, 64, 256>}, {pipeline_mode = #tpu.pipeline_mode<synchronous>, transform_indices = @transform_3, window_bounds = array<i64: 1, 256>}, {pipeline_mode = #tpu.pipeline_mode<synchronous>, transform_indices = @transform_4, window_bounds = array<i64: 3, 8, 16>}, {pipeline_mode = #tpu.pipeline_mode<synchronous>, transform_indices = @transform_5, window_bounds = array<i64: 3, 256, 128>}, {pipeline_mode = #tpu.pipeline_mode<synchronous>, transform_indices = @transform_6, window_bounds = array<i64: 2, 8, 8>}, {pipeline_mode = #tpu.pipeline_mode<synchronous>, transform_indices = @transform_7, window_bounds = array<i64: 4, 3, 128, 128>}, {pipeline_mode = #tpu.pipeline_mode<synchronous>, transform_indices = @transform_8, window_bounds = array<i64: 4, 1, 128>}, {pipeline_mode = #tpu.pipeline_mode<synchronous>, transform_indices = @transform_9, window_bounds = array<i64: 2, 8, 8>}, {pipeline_mode = #tpu.pipeline_mode<synchronous>, transform_indices = @transform_10, window_bounds = array<i64: 3, 128, 256>}, {pipeline_mode = #tpu.pipeline_mode<synchronous>, transform_indices = @transform_11, window_bounds = array<i64: 1, 256>}, {pipeline_mode = #tpu.pipeline_mode<synchronous>, transform_indices = @transform_12, window_bounds = array<i64: 3, 4, 8>}, {pipeline_mode = #tpu.pipeline_mode<synchronous>, transform_indices = @transform_13, window_bounds = array<i64: 3, 256, 128>}, {pipeline_mode = #tpu.pipeline_mode<synchronous>, transform_indices = @transform_14, window_bounds = array<i64: 2, 4, 4>}, {pipeline_mode = #tpu.pipeline_mode<synchronous>, transform_indices = @transform_15, window_bounds = array<i64: 4, 3, 128, 128>}, {pipeline_mode = #tpu.pipeline_mode<synchronous>, transform_indices = @transform_16, window_bounds = array<i64: 4, 1, 128>}, {pipeline_mode = #tpu.pipeline_mode<synchronous>, transform_indices = @transform_17, window_bounds = array<i64: 2, 4, 4>}, {pipeline_mode = #tpu.pipeline_mode<synchronous>, transform_indices = @transform_18, window_bounds = array<i64: 3, 128, 128>}, {pipeline_mode = #tpu.pipeline_mode<synchronous>, transform_indices = @transform_19, window_bounds = array<i64: 1, 128>}, {pipeline_mode = #tpu.pipeline_mode<synchronous>, transform_indices = @transform_20, window_bounds = array<i64: 3, 2, 4>}, {pipeline_mode = #tpu.pipeline_mode<synchronous>, transform_indices = @transform_21, window_bounds = array<i64: 3, 128, 64>}, {pipeline_mode = #tpu.pipeline_mode<synchronous>, transform_indices = @transform_22, window_bounds = array<i64: 2, 2, 2>}, {pipeline_mode = #tpu.pipeline_mode<synchronous>, transform_indices = @transform_23, window_bounds = array<i64: 4, 3, 64, 64>}, {pipeline_mode = #tpu.pipeline_mode<synchronous>, transform_indices = @transform_24, window_bounds = array<i64: 4, 1, 64>}, {pipeline_mode = #tpu.pipeline_mode<synchronous>, transform_indices = @transform_25, window_bounds = array<i64: 2, 64, 256>}, {pipeline_mode = #tpu.pipeline_mode<synchronous>, transform_indices = @transform_26, window_bounds = array<i64: 1, 256>}, {transform_indices = @transform_27, window_bounds = array<i64: 1, 1, 256>}]} {
    %c0 = arith.constant 0 : index
    %c0_0 = arith.constant 0 : index
    %c0_1 = arith.constant 0 : index
    %0 = vector.load %arg1[%c0, %c0_0, %c0_1] : memref<1x16x64xf32, #tpu.memory_space<vmem>>, vector<1x16x64xf32>
    %1 = vector.shape_cast %0 : vector<1x16x64xf32> to vector<16x64xf32>
    %c0_2 = arith.constant 0 : index
    %c0_3 = arith.constant 0 : index
    %c0_4 = arith.constant 0 : index
    %2 = vector.load %arg2[%c0_2, %c0_3, %c0_4] : memref<2x16x16xf32, #tpu.memory_space<vmem>>, vector<1x16x16xf32>
    %3 = vector.shape_cast %2 : vector<1x16x16xf32> to vector<16x16xf32>
    %c1 = arith.constant 1 : index
    %c0_5 = arith.constant 0 : index
    %c0_6 = arith.constant 0 : index
    %4 = vector.load %arg2[%c1, %c0_5, %c0_6] : memref<2x16x16xf32, #tpu.memory_space<vmem>>, vector<1x16x16xf32>
    %5 = vector.shape_cast %4 : vector<1x16x16xf32> to vector<16x16xf32>
    %c0_7 = arith.constant 0 : index
    %c0_8 = arith.constant 0 : index
    %6 = vector.load %arg4[%c0_7, %c0_8] : memref<1x256xf32, #tpu.memory_space<vmem>>, vector<1x256xf32>
    %cst = arith.constant dense<0.000000e+00> : vector<16x64xf32>
    %7 = tpu.matmul %3, %1, %cst {dimension_numbers = #tpu.dot_dimension_numbers<[1], [0], [0], [1], [0, 0, 1, 1], [], []>} : vector<16x16xf32>, vector<16x64xf32>, vector<16x64xf32> -> vector<16x64xf32>
    %cst_9 = arith.constant dense<0.000000e+00> : vector<16x64xf32>
    %8 = tpu.matmul %5, %1, %cst_9 {dimension_numbers = #tpu.dot_dimension_numbers<[1], [0], [0], [1], [0, 0, 1, 1], [], []>} : vector<16x16xf32>, vector<16x64xf32>, vector<16x64xf32> -> vector<16x64xf32>
    %c0_10 = arith.constant 0 : index
    %c0_11 = arith.constant 0 : index
    %c0_12 = arith.constant 0 : index
    %9 = vector.load %arg3[%c0_10, %c0_11, %c0_12] : memref<3x64x256xf32, #tpu.memory_space<vmem>>, vector<1x64x256xf32>
    %10 = vector.shape_cast %9 : vector<1x64x256xf32> to vector<64x256xf32>
    %cst_13 = arith.constant dense<0.000000e+00> : vector<16x256xf32>
    %11 = tpu.matmul %7, %10, %cst_13 {dimension_numbers = #tpu.dot_dimension_numbers<[1], [0], [0], [1], [0, 0, 1, 1], [], []>} : vector<16x64xf32>, vector<64x256xf32>, vector<16x256xf32> -> vector<16x256xf32>
    %c1_14 = arith.constant 1 : index
    %c0_15 = arith.constant 0 : index
    %c0_16 = arith.constant 0 : index
    %12 = vector.load %arg3[%c1_14, %c0_15, %c0_16] : memref<3x64x256xf32, #tpu.memory_space<vmem>>, vector<1x64x256xf32>
    %13 = vector.shape_cast %12 : vector<1x64x256xf32> to vector<64x256xf32>
    %cst_17 = arith.constant dense<0.000000e+00> : vector<16x256xf32>
    %14 = tpu.matmul %1, %13, %cst_17 {dimension_numbers = #tpu.dot_dimension_numbers<[1], [0], [0], [1], [0, 0, 1, 1], [], []>} : vector<16x64xf32>, vector<64x256xf32>, vector<16x256xf32> -> vector<16x256xf32>
    %15 = arith.addf %11, %14 : vector<16x256xf32>
    %c2 = arith.constant 2 : index
    %c0_18 = arith.constant 0 : index
    %c0_19 = arith.constant 0 : index
    %16 = vector.load %arg3[%c2, %c0_18, %c0_19] : memref<3x64x256xf32, #tpu.memory_space<vmem>>, vector<1x64x256xf32>
    %17 = vector.shape_cast %16 : vector<1x64x256xf32> to vector<64x256xf32>
    %cst_20 = arith.constant dense<0.000000e+00> : vector<16x256xf32>
    %18 = tpu.matmul %8, %17, %cst_20 {dimension_numbers = #tpu.dot_dimension_numbers<[1], [0], [0], [1], [0, 0, 1, 1], [], []>} : vector<16x64xf32>, vector<64x256xf32>, vector<16x256xf32> -> vector<16x256xf32>
    %19 = arith.addf %15, %18 : vector<16x256xf32>
    %20 = vector.broadcast %6 : vector<1x256xf32> to vector<16x256xf32>
    %21 = arith.addf %19, %20 : vector<16x256xf32>
    %c0_21 = arith.constant 0 : index
    %c0_22 = arith.constant 0 : index
    %c0_23 = arith.constant 0 : index
    %22 = vector.load %arg5[%c0_21, %c0_22, %c0_23] : memref<3x8x16xf32, #tpu.memory_space<vmem>>, vector<1x8x16xf32>
    %23 = vector.shape_cast %22 : vector<1x8x16xf32> to vector<8x16xf32>
    %cst_24 = arith.constant dense<0.000000e+00> : vector<8x256xf32>
    %24 = tpu.matmul %23, %21, %cst_24 {dimension_numbers = #tpu.dot_dimension_numbers<[1], [0], [0], [1], [0, 0, 1, 1], [], []>} : vector<8x16xf32>, vector<16x256xf32>, vector<8x256xf32> -> vector<8x256xf32>
    %c1_25 = arith.constant 1 : index
    %c0_26 = arith.constant 0 : index
    %c0_27 = arith.constant 0 : index
    %25 = vector.load %arg5[%c1_25, %c0_26, %c0_27] : memref<3x8x16xf32, #tpu.memory_space<vmem>>, vector<1x8x16xf32>
    %26 = vector.shape_cast %25 : vector<1x8x16xf32> to vector<8x16xf32>
    %cst_28 = arith.constant dense<0.000000e+00> : vector<8x256xf32>
    %27 = tpu.matmul %26, %21, %cst_28 {dimension_numbers = #tpu.dot_dimension_numbers<[1], [0], [0], [1], [0, 0, 1, 1], [], []>} : vector<8x16xf32>, vector<16x256xf32>, vector<8x256xf32> -> vector<8x256xf32>
    %28 = arith.maximumf %24, %27 : vector<8x256xf32>
    %c2_29 = arith.constant 2 : index
    %c0_30 = arith.constant 0 : index
    %c0_31 = arith.constant 0 : index
    %29 = vector.load %arg5[%c2_29, %c0_30, %c0_31] : memref<3x8x16xf32, #tpu.memory_space<vmem>>, vector<1x8x16xf32>
    %30 = vector.shape_cast %29 : vector<1x8x16xf32> to vector<8x16xf32>
    %cst_32 = arith.constant dense<0.000000e+00> : vector<8x256xf32>
    %31 = tpu.matmul %30, %21, %cst_32 {dimension_numbers = #tpu.dot_dimension_numbers<[1], [0], [0], [1], [0, 0, 1, 1], [], []>} : vector<8x16xf32>, vector<16x256xf32>, vector<8x256xf32> -> vector<8x256xf32>
    %32 = arith.maximumf %28, %31 : vector<8x256xf32>
    %c0_33 = arith.constant 0 : index
    %c0_34 = arith.constant 0 : index
    %c0_35 = arith.constant 0 : index
    %33 = vector.load %arg6[%c0_33, %c0_34, %c0_35] : memref<3x256x128xf32, #tpu.memory_space<vmem>>, vector<1x256x128xf32>
    %34 = vector.shape_cast %33 : vector<1x256x128xf32> to vector<256x128xf32>
    %cst_36 = arith.constant dense<0.000000e+00> : vector<8x128xf32>
    %35 = tpu.matmul %32, %34, %cst_36 {dimension_numbers = #tpu.dot_dimension_numbers<[1], [0], [0], [1], [0, 0, 1, 1], [], []>} : vector<8x256xf32>, vector<256x128xf32>, vector<8x128xf32> -> vector<8x128xf32>
    %c1_37 = arith.constant 1 : index
    %c0_38 = arith.constant 0 : index
    %c0_39 = arith.constant 0 : index
    %36 = vector.load %arg6[%c1_37, %c0_38, %c0_39] : memref<3x256x128xf32, #tpu.memory_space<vmem>>, vector<1x256x128xf32>
    %37 = vector.shape_cast %36 : vector<1x256x128xf32> to vector<256x128xf32>
    %cst_40 = arith.constant dense<0.000000e+00> : vector<8x128xf32>
    %38 = tpu.matmul %32, %37, %cst_40 {dimension_numbers = #tpu.dot_dimension_numbers<[1], [0], [0], [1], [0, 0, 1, 1], [], []>} : vector<8x256xf32>, vector<256x128xf32>, vector<8x128xf32> -> vector<8x128xf32>
    %39 = arith.maximumf %35, %38 : vector<8x128xf32>
    %c2_41 = arith.constant 2 : index
    %c0_42 = arith.constant 0 : index
    %c0_43 = arith.constant 0 : index
    %40 = vector.load %arg6[%c2_41, %c0_42, %c0_43] : memref<3x256x128xf32, #tpu.memory_space<vmem>>, vector<1x256x128xf32>
    %41 = vector.shape_cast %40 : vector<1x256x128xf32> to vector<256x128xf32>
    %cst_44 = arith.constant dense<0.000000e+00> : vector<8x128xf32>
    %42 = tpu.matmul %32, %41, %cst_44 {dimension_numbers = #tpu.dot_dimension_numbers<[1], [0], [0], [1], [0, 0, 1, 1], [], []>} : vector<8x256xf32>, vector<256x128xf32>, vector<8x128xf32> -> vector<8x128xf32>
    %43 = arith.maximumf %39, %42 : vector<8x128xf32>
    %c0_45 = arith.constant 0 : index
    %c0_46 = arith.constant 0 : index
    %c0_47 = arith.constant 0 : index
    %44 = vector.load %arg7[%c0_45, %c0_46, %c0_47] : memref<2x8x8xf32, #tpu.memory_space<vmem>>, vector<1x8x8xf32>
    %45 = vector.shape_cast %44 : vector<1x8x8xf32> to vector<8x8xf32>
    %c1_48 = arith.constant 1 : index
    %c0_49 = arith.constant 0 : index
    %c0_50 = arith.constant 0 : index
    %46 = vector.load %arg7[%c1_48, %c0_49, %c0_50] : memref<2x8x8xf32, #tpu.memory_space<vmem>>, vector<1x8x8xf32>
    %47 = vector.shape_cast %46 : vector<1x8x8xf32> to vector<8x8xf32>
    %cst_51 = arith.constant 0.000000e+00 : f32
    %48 = vector.broadcast %cst_51 : f32 to vector<8x128xf32>
    %49 = arith.maximumf %43, %48 : vector<8x128xf32>
    %c0_52 = arith.constant 0 : index
    %c0_53 = arith.constant 0 : index
    %c0_54 = arith.constant 0 : index
    %50 = vector.load %arg9[%c0_52, %c0_53, %c0_54] : memref<4x1x128xf32, #tpu.memory_space<vmem>>, vector<1x1x128xf32>
    %51 = vector.shape_cast %50 : vector<1x1x128xf32> to vector<1x128xf32>
    %cst_55 = arith.constant dense<0.000000e+00> : vector<8x128xf32>
    %52 = tpu.matmul %45, %49, %cst_55 {dimension_numbers = #tpu.dot_dimension_numbers<[1], [0], [0], [1], [0, 0, 1, 1], [], []>} : vector<8x8xf32>, vector<8x128xf32>, vector<8x128xf32> -> vector<8x128xf32>
    %cst_56 = arith.constant dense<0.000000e+00> : vector<8x128xf32>
    %53 = tpu.matmul %47, %49, %cst_56 {dimension_numbers = #tpu.dot_dimension_numbers<[1], [0], [0], [1], [0, 0, 1, 1], [], []>} : vector<8x8xf32>, vector<8x128xf32>, vector<8x128xf32> -> vector<8x128xf32>
    %c0_57 = arith.constant 0 : index
    %c0_58 = arith.constant 0 : index
    %c0_59 = arith.constant 0 : index
    %c0_60 = arith.constant 0 : index
    %54 = vector.load %arg8[%c0_57, %c0_58, %c0_59, %c0_60] : memref<4x3x128x128xf32, #tpu.memory_space<vmem>>, vector<1x1x128x128xf32>
    %55 = vector.shape_cast %54 : vector<1x1x128x128xf32> to vector<128x128xf32>
    %cst_61 = arith.constant dense<0.000000e+00> : vector<8x128xf32>
    %56 = tpu.matmul %52, %55, %cst_61 {dimension_numbers = #tpu.dot_dimension_numbers<[1], [0], [0], [1], [0, 0, 1, 1], [], []>} : vector<8x128xf32>, vector<128x128xf32>, vector<8x128xf32> -> vector<8x128xf32>
    %c0_62 = arith.constant 0 : index
    %c1_63 = arith.constant 1 : index
    %c0_64 = arith.constant 0 : index
    %c0_65 = arith.constant 0 : index
    %57 = vector.load %arg8[%c0_62, %c1_63, %c0_64, %c0_65] : memref<4x3x128x128xf32, #tpu.memory_space<vmem>>, vector<1x1x128x128xf32>
    %58 = vector.shape_cast %57 : vector<1x1x128x128xf32> to vector<128x128xf32>
    %cst_66 = arith.constant dense<0.000000e+00> : vector<8x128xf32>
    %59 = tpu.matmul %49, %58, %cst_66 {dimension_numbers = #tpu.dot_dimension_numbers<[1], [0], [0], [1], [0, 0, 1, 1], [], []>} : vector<8x128xf32>, vector<128x128xf32>, vector<8x128xf32> -> vector<8x128xf32>
    %60 = arith.addf %56, %59 : vector<8x128xf32>
    %c0_67 = arith.constant 0 : index
    %c2_68 = arith.constant 2 : index
    %c0_69 = arith.constant 0 : index
    %c0_70 = arith.constant 0 : index
    %61 = vector.load %arg8[%c0_67, %c2_68, %c0_69, %c0_70] : memref<4x3x128x128xf32, #tpu.memory_space<vmem>>, vector<1x1x128x128xf32>
    %62 = vector.shape_cast %61 : vector<1x1x128x128xf32> to vector<128x128xf32>
    %cst_71 = arith.constant dense<0.000000e+00> : vector<8x128xf32>
    %63 = tpu.matmul %53, %62, %cst_71 {dimension_numbers = #tpu.dot_dimension_numbers<[1], [0], [0], [1], [0, 0, 1, 1], [], []>} : vector<8x128xf32>, vector<128x128xf32>, vector<8x128xf32> -> vector<8x128xf32>
    %64 = arith.addf %60, %63 : vector<8x128xf32>
    %65 = vector.broadcast %51 : vector<1x128xf32> to vector<8x128xf32>
    %66 = arith.addf %64, %65 : vector<8x128xf32>
    %cst_72 = arith.constant 0.000000e+00 : f32
    %67 = vector.broadcast %cst_72 : f32 to vector<8x128xf32>
    %68 = arith.maximumf %66, %67 : vector<8x128xf32>
    %c1_73 = arith.constant 1 : index
    %c0_74 = arith.constant 0 : index
    %c0_75 = arith.constant 0 : index
    %69 = vector.load %arg9[%c1_73, %c0_74, %c0_75] : memref<4x1x128xf32, #tpu.memory_space<vmem>>, vector<1x1x128xf32>
    %70 = vector.shape_cast %69 : vector<1x1x128xf32> to vector<1x128xf32>
    %cst_76 = arith.constant dense<0.000000e+00> : vector<8x128xf32>
    %71 = tpu.matmul %45, %68, %cst_76 {dimension_numbers = #tpu.dot_dimension_numbers<[1], [0], [0], [1], [0, 0, 1, 1], [], []>} : vector<8x8xf32>, vector<8x128xf32>, vector<8x128xf32> -> vector<8x128xf32>
    %cst_77 = arith.constant dense<0.000000e+00> : vector<8x128xf32>
    %72 = tpu.matmul %47, %68, %cst_77 {dimension_numbers = #tpu.dot_dimension_numbers<[1], [0], [0], [1], [0, 0, 1, 1], [], []>} : vector<8x8xf32>, vector<8x128xf32>, vector<8x128xf32> -> vector<8x128xf32>
    %c1_78 = arith.constant 1 : index
    %c0_79 = arith.constant 0 : index
    %c0_80 = arith.constant 0 : index
    %c0_81 = arith.constant 0 : index
    %73 = vector.load %arg8[%c1_78, %c0_79, %c0_80, %c0_81] : memref<4x3x128x128xf32, #tpu.memory_space<vmem>>, vector<1x1x128x128xf32>
    %74 = vector.shape_cast %73 : vector<1x1x128x128xf32> to vector<128x128xf32>
    %cst_82 = arith.constant dense<0.000000e+00> : vector<8x128xf32>
    %75 = tpu.matmul %71, %74, %cst_82 {dimension_numbers = #tpu.dot_dimension_numbers<[1], [0], [0], [1], [0, 0, 1, 1], [], []>} : vector<8x128xf32>, vector<128x128xf32>, vector<8x128xf32> -> vector<8x128xf32>
    %c1_83 = arith.constant 1 : index
    %c1_84 = arith.constant 1 : index
    %c0_85 = arith.constant 0 : index
    %c0_86 = arith.constant 0 : index
    %76 = vector.load %arg8[%c1_83, %c1_84, %c0_85, %c0_86] : memref<4x3x128x128xf32, #tpu.memory_space<vmem>>, vector<1x1x128x128xf32>
    %77 = vector.shape_cast %76 : vector<1x1x128x128xf32> to vector<128x128xf32>
    %cst_87 = arith.constant dense<0.000000e+00> : vector<8x128xf32>
    %78 = tpu.matmul %68, %77, %cst_87 {dimension_numbers = #tpu.dot_dimension_numbers<[1], [0], [0], [1], [0, 0, 1, 1], [], []>} : vector<8x128xf32>, vector<128x128xf32>, vector<8x128xf32> -> vector<8x128xf32>
    %79 = arith.addf %75, %78 : vector<8x128xf32>
    %c1_88 = arith.constant 1 : index
    %c2_89 = arith.constant 2 : index
    %c0_90 = arith.constant 0 : index
    %c0_91 = arith.constant 0 : index
    %80 = vector.load %arg8[%c1_88, %c2_89, %c0_90, %c0_91] : memref<4x3x128x128xf32, #tpu.memory_space<vmem>>, vector<1x1x128x128xf32>
    %81 = vector.shape_cast %80 : vector<1x1x128x128xf32> to vector<128x128xf32>
    %cst_92 = arith.constant dense<0.000000e+00> : vector<8x128xf32>
    %82 = tpu.matmul %72, %81, %cst_92 {dimension_numbers = #tpu.dot_dimension_numbers<[1], [0], [0], [1], [0, 0, 1, 1], [], []>} : vector<8x128xf32>, vector<128x128xf32>, vector<8x128xf32> -> vector<8x128xf32>
    %83 = arith.addf %79, %82 : vector<8x128xf32>
    %84 = vector.broadcast %70 : vector<1x128xf32> to vector<8x128xf32>
    %85 = arith.addf %83, %84 : vector<8x128xf32>
    %86 = arith.addf %85, %43 : vector<8x128xf32>
    %cst_93 = arith.constant 0.000000e+00 : f32
    %87 = vector.broadcast %cst_93 : f32 to vector<8x128xf32>
    %88 = arith.maximumf %86, %87 : vector<8x128xf32>
    %c2_94 = arith.constant 2 : index
    %c0_95 = arith.constant 0 : index
    %c0_96 = arith.constant 0 : index
    %89 = vector.load %arg9[%c2_94, %c0_95, %c0_96] : memref<4x1x128xf32, #tpu.memory_space<vmem>>, vector<1x1x128xf32>
    %90 = vector.shape_cast %89 : vector<1x1x128xf32> to vector<1x128xf32>
    %cst_97 = arith.constant dense<0.000000e+00> : vector<8x128xf32>
    %91 = tpu.matmul %45, %88, %cst_97 {dimension_numbers = #tpu.dot_dimension_numbers<[1], [0], [0], [1], [0, 0, 1, 1], [], []>} : vector<8x8xf32>, vector<8x128xf32>, vector<8x128xf32> -> vector<8x128xf32>
    %cst_98 = arith.constant dense<0.000000e+00> : vector<8x128xf32>
    %92 = tpu.matmul %47, %88, %cst_98 {dimension_numbers = #tpu.dot_dimension_numbers<[1], [0], [0], [1], [0, 0, 1, 1], [], []>} : vector<8x8xf32>, vector<8x128xf32>, vector<8x128xf32> -> vector<8x128xf32>
    %c2_99 = arith.constant 2 : index
    %c0_100 = arith.constant 0 : index
    %c0_101 = arith.constant 0 : index
    %c0_102 = arith.constant 0 : index
    %93 = vector.load %arg8[%c2_99, %c0_100, %c0_101, %c0_102] : memref<4x3x128x128xf32, #tpu.memory_space<vmem>>, vector<1x1x128x128xf32>
    %94 = vector.shape_cast %93 : vector<1x1x128x128xf32> to vector<128x128xf32>
    %cst_103 = arith.constant dense<0.000000e+00> : vector<8x128xf32>
    %95 = tpu.matmul %91, %94, %cst_103 {dimension_numbers = #tpu.dot_dimension_numbers<[1], [0], [0], [1], [0, 0, 1, 1], [], []>} : vector<8x128xf32>, vector<128x128xf32>, vector<8x128xf32> -> vector<8x128xf32>
    %c2_104 = arith.constant 2 : index
    %c1_105 = arith.constant 1 : index
    %c0_106 = arith.constant 0 : index
    %c0_107 = arith.constant 0 : index
    %96 = vector.load %arg8[%c2_104, %c1_105, %c0_106, %c0_107] : memref<4x3x128x128xf32, #tpu.memory_space<vmem>>, vector<1x1x128x128xf32>
    %97 = vector.shape_cast %96 : vector<1x1x128x128xf32> to vector<128x128xf32>
    %cst_108 = arith.constant dense<0.000000e+00> : vector<8x128xf32>
    %98 = tpu.matmul %88, %97, %cst_108 {dimension_numbers = #tpu.dot_dimension_numbers<[1], [0], [0], [1], [0, 0, 1, 1], [], []>} : vector<8x128xf32>, vector<128x128xf32>, vector<8x128xf32> -> vector<8x128xf32>
    %99 = arith.addf %95, %98 : vector<8x128xf32>
    %c2_109 = arith.constant 2 : index
    %c2_110 = arith.constant 2 : index
    %c0_111 = arith.constant 0 : index
    %c0_112 = arith.constant 0 : index
    %100 = vector.load %arg8[%c2_109, %c2_110, %c0_111, %c0_112] : memref<4x3x128x128xf32, #tpu.memory_space<vmem>>, vector<1x1x128x128xf32>
    %101 = vector.shape_cast %100 : vector<1x1x128x128xf32> to vector<128x128xf32>
    %cst_113 = arith.constant dense<0.000000e+00> : vector<8x128xf32>
    %102 = tpu.matmul %92, %101, %cst_113 {dimension_numbers = #tpu.dot_dimension_numbers<[1], [0], [0], [1], [0, 0, 1, 1], [], []>} : vector<8x128xf32>, vector<128x128xf32>, vector<8x128xf32> -> vector<8x128xf32>
    %103 = arith.addf %99, %102 : vector<8x128xf32>
    %104 = vector.broadcast %90 : vector<1x128xf32> to vector<8x128xf32>
    %105 = arith.addf %103, %104 : vector<8x128xf32>
    %cst_114 = arith.constant 0.000000e+00 : f32
    %106 = vector.broadcast %cst_114 : f32 to vector<8x128xf32>
    %107 = arith.maximumf %105, %106 : vector<8x128xf32>
    %c3 = arith.constant 3 : index
    %c0_115 = arith.constant 0 : index
    %c0_116 = arith.constant 0 : index
    %108 = vector.load %arg9[%c3, %c0_115, %c0_116] : memref<4x1x128xf32, #tpu.memory_space<vmem>>, vector<1x1x128xf32>
    %109 = vector.shape_cast %108 : vector<1x1x128xf32> to vector<1x128xf32>
    %cst_117 = arith.constant dense<0.000000e+00> : vector<8x128xf32>
    %110 = tpu.matmul %45, %107, %cst_117 {dimension_numbers = #tpu.dot_dimension_numbers<[1], [0], [0], [1], [0, 0, 1, 1], [], []>} : vector<8x8xf32>, vector<8x128xf32>, vector<8x128xf32> -> vector<8x128xf32>
    %cst_118 = arith.constant dense<0.000000e+00> : vector<8x128xf32>
    %111 = tpu.matmul %47, %107, %cst_118 {dimension_numbers = #tpu.dot_dimension_numbers<[1], [0], [0], [1], [0, 0, 1, 1], [], []>} : vector<8x8xf32>, vector<8x128xf32>, vector<8x128xf32> -> vector<8x128xf32>
    %c3_119 = arith.constant 3 : index
    %c0_120 = arith.constant 0 : index
    %c0_121 = arith.constant 0 : index
    %c0_122 = arith.constant 0 : index
    %112 = vector.load %arg8[%c3_119, %c0_120, %c0_121, %c0_122] : memref<4x3x128x128xf32, #tpu.memory_space<vmem>>, vector<1x1x128x128xf32>
    %113 = vector.shape_cast %112 : vector<1x1x128x128xf32> to vector<128x128xf32>
    %cst_123 = arith.constant dense<0.000000e+00> : vector<8x128xf32>
    %114 = tpu.matmul %110, %113, %cst_123 {dimension_numbers = #tpu.dot_dimension_numbers<[1], [0], [0], [1], [0, 0, 1, 1], [], []>} : vector<8x128xf32>, vector<128x128xf32>, vector<8x128xf32> -> vector<8x128xf32>
    %c3_124 = arith.constant 3 : index
    %c1_125 = arith.constant 1 : index
    %c0_126 = arith.constant 0 : index
    %c0_127 = arith.constant 0 : index
    %115 = vector.load %arg8[%c3_124, %c1_125, %c0_126, %c0_127] : memref<4x3x128x128xf32, #tpu.memory_space<vmem>>, vector<1x1x128x128xf32>
    %116 = vector.shape_cast %115 : vector<1x1x128x128xf32> to vector<128x128xf32>
    %cst_128 = arith.constant dense<0.000000e+00> : vector<8x128xf32>
    %117 = tpu.matmul %107, %116, %cst_128 {dimension_numbers = #tpu.dot_dimension_numbers<[1], [0], [0], [1], [0, 0, 1, 1], [], []>} : vector<8x128xf32>, vector<128x128xf32>, vector<8x128xf32> -> vector<8x128xf32>
    %118 = arith.addf %114, %117 : vector<8x128xf32>
    %c3_129 = arith.constant 3 : index
    %c2_130 = arith.constant 2 : index
    %c0_131 = arith.constant 0 : index
    %c0_132 = arith.constant 0 : index
    %119 = vector.load %arg8[%c3_129, %c2_130, %c0_131, %c0_132] : memref<4x3x128x128xf32, #tpu.memory_space<vmem>>, vector<1x1x128x128xf32>
    %120 = vector.shape_cast %119 : vector<1x1x128x128xf32> to vector<128x128xf32>
    %cst_133 = arith.constant dense<0.000000e+00> : vector<8x128xf32>
    %121 = tpu.matmul %111, %120, %cst_133 {dimension_numbers = #tpu.dot_dimension_numbers<[1], [0], [0], [1], [0, 0, 1, 1], [], []>} : vector<8x128xf32>, vector<128x128xf32>, vector<8x128xf32> -> vector<8x128xf32>
    %122 = arith.addf %118, %121 : vector<8x128xf32>
    %123 = vector.broadcast %109 : vector<1x128xf32> to vector<8x128xf32>
    %124 = arith.addf %122, %123 : vector<8x128xf32>
    %125 = arith.addf %124, %86 : vector<8x128xf32>
    %c0_134 = arith.constant 0 : index
    %c0_135 = arith.constant 0 : index
    %c0_136 = arith.constant 0 : index
    %126 = vector.load %arg10[%c0_134, %c0_135, %c0_136] : memref<2x8x8xf32, #tpu.memory_space<vmem>>, vector<1x8x8xf32>
    %127 = vector.shape_cast %126 : vector<1x8x8xf32> to vector<8x8xf32>
    %c1_137 = arith.constant 1 : index
    %c0_138 = arith.constant 0 : index
    %c0_139 = arith.constant 0 : index
    %128 = vector.load %arg10[%c1_137, %c0_138, %c0_139] : memref<2x8x8xf32, #tpu.memory_space<vmem>>, vector<1x8x8xf32>
    %129 = vector.shape_cast %128 : vector<1x8x8xf32> to vector<8x8xf32>
    %c0_140 = arith.constant 0 : index
    %c0_141 = arith.constant 0 : index
    %130 = vector.load %arg12[%c0_140, %c0_141] : memref<1x256xf32, #tpu.memory_space<vmem>>, vector<1x256xf32>
    %cst_142 = arith.constant dense<0.000000e+00> : vector<8x128xf32>
    %131 = tpu.matmul %127, %125, %cst_142 {dimension_numbers = #tpu.dot_dimension_numbers<[1], [0], [0], [1], [0, 0, 1, 1], [], []>} : vector<8x8xf32>, vector<8x128xf32>, vector<8x128xf32> -> vector<8x128xf32>
    %cst_143 = arith.constant dense<0.000000e+00> : vector<8x128xf32>
    %132 = tpu.matmul %129, %125, %cst_143 {dimension_numbers = #tpu.dot_dimension_numbers<[1], [0], [0], [1], [0, 0, 1, 1], [], []>} : vector<8x8xf32>, vector<8x128xf32>, vector<8x128xf32> -> vector<8x128xf32>
    %c0_144 = arith.constant 0 : index
    %c0_145 = arith.constant 0 : index
    %c0_146 = arith.constant 0 : index
    %133 = vector.load %arg11[%c0_144, %c0_145, %c0_146] : memref<3x128x256xf32, #tpu.memory_space<vmem>>, vector<1x128x256xf32>
    %134 = vector.shape_cast %133 : vector<1x128x256xf32> to vector<128x256xf32>
    %cst_147 = arith.constant dense<0.000000e+00> : vector<8x256xf32>
    %135 = tpu.matmul %131, %134, %cst_147 {dimension_numbers = #tpu.dot_dimension_numbers<[1], [0], [0], [1], [0, 0, 1, 1], [], []>} : vector<8x128xf32>, vector<128x256xf32>, vector<8x256xf32> -> vector<8x256xf32>
    %c1_148 = arith.constant 1 : index
    %c0_149 = arith.constant 0 : index
    %c0_150 = arith.constant 0 : index
    %136 = vector.load %arg11[%c1_148, %c0_149, %c0_150] : memref<3x128x256xf32, #tpu.memory_space<vmem>>, vector<1x128x256xf32>
    %137 = vector.shape_cast %136 : vector<1x128x256xf32> to vector<128x256xf32>
    %cst_151 = arith.constant dense<0.000000e+00> : vector<8x256xf32>
    %138 = tpu.matmul %125, %137, %cst_151 {dimension_numbers = #tpu.dot_dimension_numbers<[1], [0], [0], [1], [0, 0, 1, 1], [], []>} : vector<8x128xf32>, vector<128x256xf32>, vector<8x256xf32> -> vector<8x256xf32>
    %139 = arith.addf %135, %138 : vector<8x256xf32>
    %c2_152 = arith.constant 2 : index
    %c0_153 = arith.constant 0 : index
    %c0_154 = arith.constant 0 : index
    %140 = vector.load %arg11[%c2_152, %c0_153, %c0_154] : memref<3x128x256xf32, #tpu.memory_space<vmem>>, vector<1x128x256xf32>
    %141 = vector.shape_cast %140 : vector<1x128x256xf32> to vector<128x256xf32>
    %cst_155 = arith.constant dense<0.000000e+00> : vector<8x256xf32>
    %142 = tpu.matmul %132, %141, %cst_155 {dimension_numbers = #tpu.dot_dimension_numbers<[1], [0], [0], [1], [0, 0, 1, 1], [], []>} : vector<8x128xf32>, vector<128x256xf32>, vector<8x256xf32> -> vector<8x256xf32>
    %143 = arith.addf %139, %142 : vector<8x256xf32>
    %144 = vector.broadcast %130 : vector<1x256xf32> to vector<8x256xf32>
    %145 = arith.addf %143, %144 : vector<8x256xf32>
    %c0_156 = arith.constant 0 : index
    %c0_157 = arith.constant 0 : index
    %c0_158 = arith.constant 0 : index
    %146 = vector.load %arg13[%c0_156, %c0_157, %c0_158] : memref<3x4x8xf32, #tpu.memory_space<vmem>>, vector<1x4x8xf32>
    %147 = vector.shape_cast %146 : vector<1x4x8xf32> to vector<4x8xf32>
    %cst_159 = arith.constant dense<0.000000e+00> : vector<4x256xf32>
    %148 = tpu.matmul %147, %145, %cst_159 {dimension_numbers = #tpu.dot_dimension_numbers<[1], [0], [0], [1], [0, 0, 1, 1], [], []>} : vector<4x8xf32>, vector<8x256xf32>, vector<4x256xf32> -> vector<4x256xf32>
    %c1_160 = arith.constant 1 : index
    %c0_161 = arith.constant 0 : index
    %c0_162 = arith.constant 0 : index
    %149 = vector.load %arg13[%c1_160, %c0_161, %c0_162] : memref<3x4x8xf32, #tpu.memory_space<vmem>>, vector<1x4x8xf32>
    %150 = vector.shape_cast %149 : vector<1x4x8xf32> to vector<4x8xf32>
    %cst_163 = arith.constant dense<0.000000e+00> : vector<4x256xf32>
    %151 = tpu.matmul %150, %145, %cst_163 {dimension_numbers = #tpu.dot_dimension_numbers<[1], [0], [0], [1], [0, 0, 1, 1], [], []>} : vector<4x8xf32>, vector<8x256xf32>, vector<4x256xf32> -> vector<4x256xf32>
    %152 = arith.maximumf %148, %151 : vector<4x256xf32>
    %c2_164 = arith.constant 2 : index
    %c0_165 = arith.constant 0 : index
    %c0_166 = arith.constant 0 : index
    %153 = vector.load %arg13[%c2_164, %c0_165, %c0_166] : memref<3x4x8xf32, #tpu.memory_space<vmem>>, vector<1x4x8xf32>
    %154 = vector.shape_cast %153 : vector<1x4x8xf32> to vector<4x8xf32>
    %cst_167 = arith.constant dense<0.000000e+00> : vector<4x256xf32>
    %155 = tpu.matmul %154, %145, %cst_167 {dimension_numbers = #tpu.dot_dimension_numbers<[1], [0], [0], [1], [0, 0, 1, 1], [], []>} : vector<4x8xf32>, vector<8x256xf32>, vector<4x256xf32> -> vector<4x256xf32>
    %156 = arith.maximumf %152, %155 : vector<4x256xf32>
    %c0_168 = arith.constant 0 : index
    %c0_169 = arith.constant 0 : index
    %c0_170 = arith.constant 0 : index
    %157 = vector.load %arg14[%c0_168, %c0_169, %c0_170] : memref<3x256x128xf32, #tpu.memory_space<vmem>>, vector<1x256x128xf32>
    %158 = vector.shape_cast %157 : vector<1x256x128xf32> to vector<256x128xf32>
    %cst_171 = arith.constant dense<0.000000e+00> : vector<4x128xf32>
    %159 = tpu.matmul %156, %158, %cst_171 {dimension_numbers = #tpu.dot_dimension_numbers<[1], [0], [0], [1], [0, 0, 1, 1], [], []>} : vector<4x256xf32>, vector<256x128xf32>, vector<4x128xf32> -> vector<4x128xf32>
    %c1_172 = arith.constant 1 : index
    %c0_173 = arith.constant 0 : index
    %c0_174 = arith.constant 0 : index
    %160 = vector.load %arg14[%c1_172, %c0_173, %c0_174] : memref<3x256x128xf32, #tpu.memory_space<vmem>>, vector<1x256x128xf32>
    %161 = vector.shape_cast %160 : vector<1x256x128xf32> to vector<256x128xf32>
    %cst_175 = arith.constant dense<0.000000e+00> : vector<4x128xf32>
    %162 = tpu.matmul %156, %161, %cst_175 {dimension_numbers = #tpu.dot_dimension_numbers<[1], [0], [0], [1], [0, 0, 1, 1], [], []>} : vector<4x256xf32>, vector<256x128xf32>, vector<4x128xf32> -> vector<4x128xf32>
    %163 = arith.maximumf %159, %162 : vector<4x128xf32>
    %c2_176 = arith.constant 2 : index
    %c0_177 = arith.constant 0 : index
    %c0_178 = arith.constant 0 : index
    %164 = vector.load %arg14[%c2_176, %c0_177, %c0_178] : memref<3x256x128xf32, #tpu.memory_space<vmem>>, vector<1x256x128xf32>
    %165 = vector.shape_cast %164 : vector<1x256x128xf32> to vector<256x128xf32>
    %cst_179 = arith.constant dense<0.000000e+00> : vector<4x128xf32>
    %166 = tpu.matmul %156, %165, %cst_179 {dimension_numbers = #tpu.dot_dimension_numbers<[1], [0], [0], [1], [0, 0, 1, 1], [], []>} : vector<4x256xf32>, vector<256x128xf32>, vector<4x128xf32> -> vector<4x128xf32>
    %167 = arith.maximumf %163, %166 : vector<4x128xf32>
    %c0_180 = arith.constant 0 : index
    %c0_181 = arith.constant 0 : index
    %c0_182 = arith.constant 0 : index
    %168 = vector.load %arg15[%c0_180, %c0_181, %c0_182] : memref<2x4x4xf32, #tpu.memory_space<vmem>>, vector<1x4x4xf32>
    %169 = vector.shape_cast %168 : vector<1x4x4xf32> to vector<4x4xf32>
    %c1_183 = arith.constant 1 : index
    %c0_184 = arith.constant 0 : index
    %c0_185 = arith.constant 0 : index
    %170 = vector.load %arg15[%c1_183, %c0_184, %c0_185] : memref<2x4x4xf32, #tpu.memory_space<vmem>>, vector<1x4x4xf32>
    %171 = vector.shape_cast %170 : vector<1x4x4xf32> to vector<4x4xf32>
    %cst_186 = arith.constant 0.000000e+00 : f32
    %172 = vector.broadcast %cst_186 : f32 to vector<4x128xf32>
    %173 = arith.maximumf %167, %172 : vector<4x128xf32>
    %c0_187 = arith.constant 0 : index
    %c0_188 = arith.constant 0 : index
    %c0_189 = arith.constant 0 : index
    %174 = vector.load %arg17[%c0_187, %c0_188, %c0_189] : memref<4x1x128xf32, #tpu.memory_space<vmem>>, vector<1x1x128xf32>
    %175 = vector.shape_cast %174 : vector<1x1x128xf32> to vector<1x128xf32>
    %cst_190 = arith.constant dense<0.000000e+00> : vector<4x128xf32>
    %176 = tpu.matmul %169, %173, %cst_190 {dimension_numbers = #tpu.dot_dimension_numbers<[1], [0], [0], [1], [0, 0, 1, 1], [], []>} : vector<4x4xf32>, vector<4x128xf32>, vector<4x128xf32> -> vector<4x128xf32>
    %cst_191 = arith.constant dense<0.000000e+00> : vector<4x128xf32>
    %177 = tpu.matmul %171, %173, %cst_191 {dimension_numbers = #tpu.dot_dimension_numbers<[1], [0], [0], [1], [0, 0, 1, 1], [], []>} : vector<4x4xf32>, vector<4x128xf32>, vector<4x128xf32> -> vector<4x128xf32>
    %c0_192 = arith.constant 0 : index
    %c0_193 = arith.constant 0 : index
    %c0_194 = arith.constant 0 : index
    %c0_195 = arith.constant 0 : index
    %178 = vector.load %arg16[%c0_192, %c0_193, %c0_194, %c0_195] : memref<4x3x128x128xf32, #tpu.memory_space<vmem>>, vector<1x1x128x128xf32>
    %179 = vector.shape_cast %178 : vector<1x1x128x128xf32> to vector<128x128xf32>
    %cst_196 = arith.constant dense<0.000000e+00> : vector<4x128xf32>
    %180 = tpu.matmul %176, %179, %cst_196 {dimension_numbers = #tpu.dot_dimension_numbers<[1], [0], [0], [1], [0, 0, 1, 1], [], []>} : vector<4x128xf32>, vector<128x128xf32>, vector<4x128xf32> -> vector<4x128xf32>
    %c0_197 = arith.constant 0 : index
    %c1_198 = arith.constant 1 : index
    %c0_199 = arith.constant 0 : index
    %c0_200 = arith.constant 0 : index
    %181 = vector.load %arg16[%c0_197, %c1_198, %c0_199, %c0_200] : memref<4x3x128x128xf32, #tpu.memory_space<vmem>>, vector<1x1x128x128xf32>
    %182 = vector.shape_cast %181 : vector<1x1x128x128xf32> to vector<128x128xf32>
    %cst_201 = arith.constant dense<0.000000e+00> : vector<4x128xf32>
    %183 = tpu.matmul %173, %182, %cst_201 {dimension_numbers = #tpu.dot_dimension_numbers<[1], [0], [0], [1], [0, 0, 1, 1], [], []>} : vector<4x128xf32>, vector<128x128xf32>, vector<4x128xf32> -> vector<4x128xf32>
    %184 = arith.addf %180, %183 : vector<4x128xf32>
    %c0_202 = arith.constant 0 : index
    %c2_203 = arith.constant 2 : index
    %c0_204 = arith.constant 0 : index
    %c0_205 = arith.constant 0 : index
    %185 = vector.load %arg16[%c0_202, %c2_203, %c0_204, %c0_205] : memref<4x3x128x128xf32, #tpu.memory_space<vmem>>, vector<1x1x128x128xf32>
    %186 = vector.shape_cast %185 : vector<1x1x128x128xf32> to vector<128x128xf32>
    %cst_206 = arith.constant dense<0.000000e+00> : vector<4x128xf32>
    %187 = tpu.matmul %177, %186, %cst_206 {dimension_numbers = #tpu.dot_dimension_numbers<[1], [0], [0], [1], [0, 0, 1, 1], [], []>} : vector<4x128xf32>, vector<128x128xf32>, vector<4x128xf32> -> vector<4x128xf32>
    %188 = arith.addf %184, %187 : vector<4x128xf32>
    %189 = vector.broadcast %175 : vector<1x128xf32> to vector<4x128xf32>
    %190 = arith.addf %188, %189 : vector<4x128xf32>
    %cst_207 = arith.constant 0.000000e+00 : f32
    %191 = vector.broadcast %cst_207 : f32 to vector<4x128xf32>
    %192 = arith.maximumf %190, %191 : vector<4x128xf32>
    %c1_208 = arith.constant 1 : index
    %c0_209 = arith.constant 0 : index
    %c0_210 = arith.constant 0 : index
    %193 = vector.load %arg17[%c1_208, %c0_209, %c0_210] : memref<4x1x128xf32, #tpu.memory_space<vmem>>, vector<1x1x128xf32>
    %194 = vector.shape_cast %193 : vector<1x1x128xf32> to vector<1x128xf32>
    %cst_211 = arith.constant dense<0.000000e+00> : vector<4x128xf32>
    %195 = tpu.matmul %169, %192, %cst_211 {dimension_numbers = #tpu.dot_dimension_numbers<[1], [0], [0], [1], [0, 0, 1, 1], [], []>} : vector<4x4xf32>, vector<4x128xf32>, vector<4x128xf32> -> vector<4x128xf32>
    %cst_212 = arith.constant dense<0.000000e+00> : vector<4x128xf32>
    %196 = tpu.matmul %171, %192, %cst_212 {dimension_numbers = #tpu.dot_dimension_numbers<[1], [0], [0], [1], [0, 0, 1, 1], [], []>} : vector<4x4xf32>, vector<4x128xf32>, vector<4x128xf32> -> vector<4x128xf32>
    %c1_213 = arith.constant 1 : index
    %c0_214 = arith.constant 0 : index
    %c0_215 = arith.constant 0 : index
    %c0_216 = arith.constant 0 : index
    %197 = vector.load %arg16[%c1_213, %c0_214, %c0_215, %c0_216] : memref<4x3x128x128xf32, #tpu.memory_space<vmem>>, vector<1x1x128x128xf32>
    %198 = vector.shape_cast %197 : vector<1x1x128x128xf32> to vector<128x128xf32>
    %cst_217 = arith.constant dense<0.000000e+00> : vector<4x128xf32>
    %199 = tpu.matmul %195, %198, %cst_217 {dimension_numbers = #tpu.dot_dimension_numbers<[1], [0], [0], [1], [0, 0, 1, 1], [], []>} : vector<4x128xf32>, vector<128x128xf32>, vector<4x128xf32> -> vector<4x128xf32>
    %c1_218 = arith.constant 1 : index
    %c1_219 = arith.constant 1 : index
    %c0_220 = arith.constant 0 : index
    %c0_221 = arith.constant 0 : index
    %200 = vector.load %arg16[%c1_218, %c1_219, %c0_220, %c0_221] : memref<4x3x128x128xf32, #tpu.memory_space<vmem>>, vector<1x1x128x128xf32>
    %201 = vector.shape_cast %200 : vector<1x1x128x128xf32> to vector<128x128xf32>
    %cst_222 = arith.constant dense<0.000000e+00> : vector<4x128xf32>
    %202 = tpu.matmul %192, %201, %cst_222 {dimension_numbers = #tpu.dot_dimension_numbers<[1], [0], [0], [1], [0, 0, 1, 1], [], []>} : vector<4x128xf32>, vector<128x128xf32>, vector<4x128xf32> -> vector<4x128xf32>
    %203 = arith.addf %199, %202 : vector<4x128xf32>
    %c1_223 = arith.constant 1 : index
    %c2_224 = arith.constant 2 : index
    %c0_225 = arith.constant 0 : index
    %c0_226 = arith.constant 0 : index
    %204 = vector.load %arg16[%c1_223, %c2_224, %c0_225, %c0_226] : memref<4x3x128x128xf32, #tpu.memory_space<vmem>>, vector<1x1x128x128xf32>
    %205 = vector.shape_cast %204 : vector<1x1x128x128xf32> to vector<128x128xf32>
    %cst_227 = arith.constant dense<0.000000e+00> : vector<4x128xf32>
    %206 = tpu.matmul %196, %205, %cst_227 {dimension_numbers = #tpu.dot_dimension_numbers<[1], [0], [0], [1], [0, 0, 1, 1], [], []>} : vector<4x128xf32>, vector<128x128xf32>, vector<4x128xf32> -> vector<4x128xf32>
    %207 = arith.addf %203, %206 : vector<4x128xf32>
    %208 = vector.broadcast %194 : vector<1x128xf32> to vector<4x128xf32>
    %209 = arith.addf %207, %208 : vector<4x128xf32>
    %210 = arith.addf %209, %167 : vector<4x128xf32>
    %cst_228 = arith.constant 0.000000e+00 : f32
    %211 = vector.broadcast %cst_228 : f32 to vector<4x128xf32>
    %212 = arith.maximumf %210, %211 : vector<4x128xf32>
    %c2_229 = arith.constant 2 : index
    %c0_230 = arith.constant 0 : index
    %c0_231 = arith.constant 0 : index
    %213 = vector.load %arg17[%c2_229, %c0_230, %c0_231] : memref<4x1x128xf32, #tpu.memory_space<vmem>>, vector<1x1x128xf32>
    %214 = vector.shape_cast %213 : vector<1x1x128xf32> to vector<1x128xf32>
    %cst_232 = arith.constant dense<0.000000e+00> : vector<4x128xf32>
    %215 = tpu.matmul %169, %212, %cst_232 {dimension_numbers = #tpu.dot_dimension_numbers<[1], [0], [0], [1], [0, 0, 1, 1], [], []>} : vector<4x4xf32>, vector<4x128xf32>, vector<4x128xf32> -> vector<4x128xf32>
    %cst_233 = arith.constant dense<0.000000e+00> : vector<4x128xf32>
    %216 = tpu.matmul %171, %212, %cst_233 {dimension_numbers = #tpu.dot_dimension_numbers<[1], [0], [0], [1], [0, 0, 1, 1], [], []>} : vector<4x4xf32>, vector<4x128xf32>, vector<4x128xf32> -> vector<4x128xf32>
    %c2_234 = arith.constant 2 : index
    %c0_235 = arith.constant 0 : index
    %c0_236 = arith.constant 0 : index
    %c0_237 = arith.constant 0 : index
    %217 = vector.load %arg16[%c2_234, %c0_235, %c0_236, %c0_237] : memref<4x3x128x128xf32, #tpu.memory_space<vmem>>, vector<1x1x128x128xf32>
    %218 = vector.shape_cast %217 : vector<1x1x128x128xf32> to vector<128x128xf32>
    %cst_238 = arith.constant dense<0.000000e+00> : vector<4x128xf32>
    %219 = tpu.matmul %215, %218, %cst_238 {dimension_numbers = #tpu.dot_dimension_numbers<[1], [0], [0], [1], [0, 0, 1, 1], [], []>} : vector<4x128xf32>, vector<128x128xf32>, vector<4x128xf32> -> vector<4x128xf32>
    %c2_239 = arith.constant 2 : index
    %c1_240 = arith.constant 1 : index
    %c0_241 = arith.constant 0 : index
    %c0_242 = arith.constant 0 : index
    %220 = vector.load %arg16[%c2_239, %c1_240, %c0_241, %c0_242] : memref<4x3x128x128xf32, #tpu.memory_space<vmem>>, vector<1x1x128x128xf32>
    %221 = vector.shape_cast %220 : vector<1x1x128x128xf32> to vector<128x128xf32>
    %cst_243 = arith.constant dense<0.000000e+00> : vector<4x128xf32>
    %222 = tpu.matmul %212, %221, %cst_243 {dimension_numbers = #tpu.dot_dimension_numbers<[1], [0], [0], [1], [0, 0, 1, 1], [], []>} : vector<4x128xf32>, vector<128x128xf32>, vector<4x128xf32> -> vector<4x128xf32>
    %223 = arith.addf %219, %222 : vector<4x128xf32>
    %c2_244 = arith.constant 2 : index
    %c2_245 = arith.constant 2 : index
    %c0_246 = arith.constant 0 : index
    %c0_247 = arith.constant 0 : index
    %224 = vector.load %arg16[%c2_244, %c2_245, %c0_246, %c0_247] : memref<4x3x128x128xf32, #tpu.memory_space<vmem>>, vector<1x1x128x128xf32>
    %225 = vector.shape_cast %224 : vector<1x1x128x128xf32> to vector<128x128xf32>
    %cst_248 = arith.constant dense<0.000000e+00> : vector<4x128xf32>
    %226 = tpu.matmul %216, %225, %cst_248 {dimension_numbers = #tpu.dot_dimension_numbers<[1], [0], [0], [1], [0, 0, 1, 1], [], []>} : vector<4x128xf32>, vector<128x128xf32>, vector<4x128xf32> -> vector<4x128xf32>
    %227 = arith.addf %223, %226 : vector<4x128xf32>
    %228 = vector.broadcast %214 : vector<1x128xf32> to vector<4x128xf32>
    %229 = arith.addf %227, %228 : vector<4x128xf32>
    %cst_249 = arith.constant 0.000000e+00 : f32
    %230 = vector.broadcast %cst_249 : f32 to vector<4x128xf32>
    %231 = arith.maximumf %229, %230 : vector<4x128xf32>
    %c3_250 = arith.constant 3 : index
    %c0_251 = arith.constant 0 : index
    %c0_252 = arith.constant 0 : index
    %232 = vector.load %arg17[%c3_250, %c0_251, %c0_252] : memref<4x1x128xf32, #tpu.memory_space<vmem>>, vector<1x1x128xf32>
    %233 = vector.shape_cast %232 : vector<1x1x128xf32> to vector<1x128xf32>
    %cst_253 = arith.constant dense<0.000000e+00> : vector<4x128xf32>
    %234 = tpu.matmul %169, %231, %cst_253 {dimension_numbers = #tpu.dot_dimension_numbers<[1], [0], [0], [1], [0, 0, 1, 1], [], []>} : vector<4x4xf32>, vector<4x128xf32>, vector<4x128xf32> -> vector<4x128xf32>
    %cst_254 = arith.constant dense<0.000000e+00> : vector<4x128xf32>
    %235 = tpu.matmul %171, %231, %cst_254 {dimension_numbers = #tpu.dot_dimension_numbers<[1], [0], [0], [1], [0, 0, 1, 1], [], []>} : vector<4x4xf32>, vector<4x128xf32>, vector<4x128xf32> -> vector<4x128xf32>
    %c3_255 = arith.constant 3 : index
    %c0_256 = arith.constant 0 : index
    %c0_257 = arith.constant 0 : index
    %c0_258 = arith.constant 0 : index
    %236 = vector.load %arg16[%c3_255, %c0_256, %c0_257, %c0_258] : memref<4x3x128x128xf32, #tpu.memory_space<vmem>>, vector<1x1x128x128xf32>
    %237 = vector.shape_cast %236 : vector<1x1x128x128xf32> to vector<128x128xf32>
    %cst_259 = arith.constant dense<0.000000e+00> : vector<4x128xf32>
    %238 = tpu.matmul %234, %237, %cst_259 {dimension_numbers = #tpu.dot_dimension_numbers<[1], [0], [0], [1], [0, 0, 1, 1], [], []>} : vector<4x128xf32>, vector<128x128xf32>, vector<4x128xf32> -> vector<4x128xf32>
    %c3_260 = arith.constant 3 : index
    %c1_261 = arith.constant 1 : index
    %c0_262 = arith.constant 0 : index
    %c0_263 = arith.constant 0 : index
    %239 = vector.load %arg16[%c3_260, %c1_261, %c0_262, %c0_263] : memref<4x3x128x128xf32, #tpu.memory_space<vmem>>, vector<1x1x128x128xf32>
    %240 = vector.shape_cast %239 : vector<1x1x128x128xf32> to vector<128x128xf32>
    %cst_264 = arith.constant dense<0.000000e+00> : vector<4x128xf32>
    %241 = tpu.matmul %231, %240, %cst_264 {dimension_numbers = #tpu.dot_dimension_numbers<[1], [0], [0], [1], [0, 0, 1, 1], [], []>} : vector<4x128xf32>, vector<128x128xf32>, vector<4x128xf32> -> vector<4x128xf32>
    %242 = arith.addf %238, %241 : vector<4x128xf32>
    %c3_265 = arith.constant 3 : index
    %c2_266 = arith.constant 2 : index
    %c0_267 = arith.constant 0 : index
    %c0_268 = arith.constant 0 : index
    %243 = vector.load %arg16[%c3_265, %c2_266, %c0_267, %c0_268] : memref<4x3x128x128xf32, #tpu.memory_space<vmem>>, vector<1x1x128x128xf32>
    %244 = vector.shape_cast %243 : vector<1x1x128x128xf32> to vector<128x128xf32>
    %cst_269 = arith.constant dense<0.000000e+00> : vector<4x128xf32>
    %245 = tpu.matmul %235, %244, %cst_269 {dimension_numbers = #tpu.dot_dimension_numbers<[1], [0], [0], [1], [0, 0, 1, 1], [], []>} : vector<4x128xf32>, vector<128x128xf32>, vector<4x128xf32> -> vector<4x128xf32>
    %246 = arith.addf %242, %245 : vector<4x128xf32>
    %247 = vector.broadcast %233 : vector<1x128xf32> to vector<4x128xf32>
    %248 = arith.addf %246, %247 : vector<4x128xf32>
    %249 = arith.addf %248, %210 : vector<4x128xf32>
    %c0_270 = arith.constant 0 : index
    %c0_271 = arith.constant 0 : index
    %c0_272 = arith.constant 0 : index
    %250 = vector.load %arg18[%c0_270, %c0_271, %c0_272] : memref<2x4x4xf32, #tpu.memory_space<vmem>>, vector<1x4x4xf32>
    %251 = vector.shape_cast %250 : vector<1x4x4xf32> to vector<4x4xf32>
    %c1_273 = arith.constant 1 : index
    %c0_274 = arith.constant 0 : index
    %c0_275 = arith.constant 0 : index
    %252 = vector.load %arg18[%c1_273, %c0_274, %c0_275] : memref<2x4x4xf32, #tpu.memory_space<vmem>>, vector<1x4x4xf32>
    %253 = vector.shape_cast %252 : vector<1x4x4xf32> to vector<4x4xf32>
    %c0_276 = arith.constant 0 : index
    %c0_277 = arith.constant 0 : index
    %254 = vector.load %arg20[%c0_276, %c0_277] : memref<1x128xf32, #tpu.memory_space<vmem>>, vector<1x128xf32>
    %cst_278 = arith.constant dense<0.000000e+00> : vector<4x128xf32>
    %255 = tpu.matmul %251, %249, %cst_278 {dimension_numbers = #tpu.dot_dimension_numbers<[1], [0], [0], [1], [0, 0, 1, 1], [], []>} : vector<4x4xf32>, vector<4x128xf32>, vector<4x128xf32> -> vector<4x128xf32>
    %cst_279 = arith.constant dense<0.000000e+00> : vector<4x128xf32>
    %256 = tpu.matmul %253, %249, %cst_279 {dimension_numbers = #tpu.dot_dimension_numbers<[1], [0], [0], [1], [0, 0, 1, 1], [], []>} : vector<4x4xf32>, vector<4x128xf32>, vector<4x128xf32> -> vector<4x128xf32>
    %c0_280 = arith.constant 0 : index
    %c0_281 = arith.constant 0 : index
    %c0_282 = arith.constant 0 : index
    %257 = vector.load %arg19[%c0_280, %c0_281, %c0_282] : memref<3x128x128xf32, #tpu.memory_space<vmem>>, vector<1x128x128xf32>
    %258 = vector.shape_cast %257 : vector<1x128x128xf32> to vector<128x128xf32>
    %cst_283 = arith.constant dense<0.000000e+00> : vector<4x128xf32>
    %259 = tpu.matmul %255, %258, %cst_283 {dimension_numbers = #tpu.dot_dimension_numbers<[1], [0], [0], [1], [0, 0, 1, 1], [], []>} : vector<4x128xf32>, vector<128x128xf32>, vector<4x128xf32> -> vector<4x128xf32>
    %c1_284 = arith.constant 1 : index
    %c0_285 = arith.constant 0 : index
    %c0_286 = arith.constant 0 : index
    %260 = vector.load %arg19[%c1_284, %c0_285, %c0_286] : memref<3x128x128xf32, #tpu.memory_space<vmem>>, vector<1x128x128xf32>
    %261 = vector.shape_cast %260 : vector<1x128x128xf32> to vector<128x128xf32>
    %cst_287 = arith.constant dense<0.000000e+00> : vector<4x128xf32>
    %262 = tpu.matmul %249, %261, %cst_287 {dimension_numbers = #tpu.dot_dimension_numbers<[1], [0], [0], [1], [0, 0, 1, 1], [], []>} : vector<4x128xf32>, vector<128x128xf32>, vector<4x128xf32> -> vector<4x128xf32>
    %263 = arith.addf %259, %262 : vector<4x128xf32>
    %c2_288 = arith.constant 2 : index
    %c0_289 = arith.constant 0 : index
    %c0_290 = arith.constant 0 : index
    %264 = vector.load %arg19[%c2_288, %c0_289, %c0_290] : memref<3x128x128xf32, #tpu.memory_space<vmem>>, vector<1x128x128xf32>
    %265 = vector.shape_cast %264 : vector<1x128x128xf32> to vector<128x128xf32>
    %cst_291 = arith.constant dense<0.000000e+00> : vector<4x128xf32>
    %266 = tpu.matmul %256, %265, %cst_291 {dimension_numbers = #tpu.dot_dimension_numbers<[1], [0], [0], [1], [0, 0, 1, 1], [], []>} : vector<4x128xf32>, vector<128x128xf32>, vector<4x128xf32> -> vector<4x128xf32>
    %267 = arith.addf %263, %266 : vector<4x128xf32>
    %268 = vector.broadcast %254 : vector<1x128xf32> to vector<4x128xf32>
    %269 = arith.addf %267, %268 : vector<4x128xf32>
    %c0_292 = arith.constant 0 : index
    %c0_293 = arith.constant 0 : index
    %c0_294 = arith.constant 0 : index
    %270 = vector.load %arg21[%c0_292, %c0_293, %c0_294] : memref<3x2x4xf32, #tpu.memory_space<vmem>>, vector<1x2x4xf32>
    %271 = vector.shape_cast %270 : vector<1x2x4xf32> to vector<2x4xf32>
    %cst_295 = arith.constant dense<0.000000e+00> : vector<2x128xf32>
    %272 = tpu.matmul %271, %269, %cst_295 {dimension_numbers = #tpu.dot_dimension_numbers<[1], [0], [0], [1], [0, 0, 1, 1], [], []>} : vector<2x4xf32>, vector<4x128xf32>, vector<2x128xf32> -> vector<2x128xf32>
    %c1_296 = arith.constant 1 : index
    %c0_297 = arith.constant 0 : index
    %c0_298 = arith.constant 0 : index
    %273 = vector.load %arg21[%c1_296, %c0_297, %c0_298] : memref<3x2x4xf32, #tpu.memory_space<vmem>>, vector<1x2x4xf32>
    %274 = vector.shape_cast %273 : vector<1x2x4xf32> to vector<2x4xf32>
    %cst_299 = arith.constant dense<0.000000e+00> : vector<2x128xf32>
    %275 = tpu.matmul %274, %269, %cst_299 {dimension_numbers = #tpu.dot_dimension_numbers<[1], [0], [0], [1], [0, 0, 1, 1], [], []>} : vector<2x4xf32>, vector<4x128xf32>, vector<2x128xf32> -> vector<2x128xf32>
    %276 = arith.maximumf %272, %275 : vector<2x128xf32>
    %c2_300 = arith.constant 2 : index
    %c0_301 = arith.constant 0 : index
    %c0_302 = arith.constant 0 : index
    %277 = vector.load %arg21[%c2_300, %c0_301, %c0_302] : memref<3x2x4xf32, #tpu.memory_space<vmem>>, vector<1x2x4xf32>
    %278 = vector.shape_cast %277 : vector<1x2x4xf32> to vector<2x4xf32>
    %cst_303 = arith.constant dense<0.000000e+00> : vector<2x128xf32>
    %279 = tpu.matmul %278, %269, %cst_303 {dimension_numbers = #tpu.dot_dimension_numbers<[1], [0], [0], [1], [0, 0, 1, 1], [], []>} : vector<2x4xf32>, vector<4x128xf32>, vector<2x128xf32> -> vector<2x128xf32>
    %280 = arith.maximumf %276, %279 : vector<2x128xf32>
    %c0_304 = arith.constant 0 : index
    %c0_305 = arith.constant 0 : index
    %c0_306 = arith.constant 0 : index
    %281 = vector.load %arg22[%c0_304, %c0_305, %c0_306] : memref<3x128x64xf32, #tpu.memory_space<vmem>>, vector<1x128x64xf32>
    %282 = vector.shape_cast %281 : vector<1x128x64xf32> to vector<128x64xf32>
    %cst_307 = arith.constant dense<0.000000e+00> : vector<2x64xf32>
    %283 = tpu.matmul %280, %282, %cst_307 {dimension_numbers = #tpu.dot_dimension_numbers<[1], [0], [0], [1], [0, 0, 1, 1], [], []>} : vector<2x128xf32>, vector<128x64xf32>, vector<2x64xf32> -> vector<2x64xf32>
    %c1_308 = arith.constant 1 : index
    %c0_309 = arith.constant 0 : index
    %c0_310 = arith.constant 0 : index
    %284 = vector.load %arg22[%c1_308, %c0_309, %c0_310] : memref<3x128x64xf32, #tpu.memory_space<vmem>>, vector<1x128x64xf32>
    %285 = vector.shape_cast %284 : vector<1x128x64xf32> to vector<128x64xf32>
    %cst_311 = arith.constant dense<0.000000e+00> : vector<2x64xf32>
    %286 = tpu.matmul %280, %285, %cst_311 {dimension_numbers = #tpu.dot_dimension_numbers<[1], [0], [0], [1], [0, 0, 1, 1], [], []>} : vector<2x128xf32>, vector<128x64xf32>, vector<2x64xf32> -> vector<2x64xf32>
    %287 = arith.maximumf %283, %286 : vector<2x64xf32>
    %c2_312 = arith.constant 2 : index
    %c0_313 = arith.constant 0 : index
    %c0_314 = arith.constant 0 : index
    %288 = vector.load %arg22[%c2_312, %c0_313, %c0_314] : memref<3x128x64xf32, #tpu.memory_space<vmem>>, vector<1x128x64xf32>
    %289 = vector.shape_cast %288 : vector<1x128x64xf32> to vector<128x64xf32>
    %cst_315 = arith.constant dense<0.000000e+00> : vector<2x64xf32>
    %290 = tpu.matmul %280, %289, %cst_315 {dimension_numbers = #tpu.dot_dimension_numbers<[1], [0], [0], [1], [0, 0, 1, 1], [], []>} : vector<2x128xf32>, vector<128x64xf32>, vector<2x64xf32> -> vector<2x64xf32>
    %291 = arith.maximumf %287, %290 : vector<2x64xf32>
    %c0_316 = arith.constant 0 : index
    %c0_317 = arith.constant 0 : index
    %c0_318 = arith.constant 0 : index
    %292 = vector.load %arg23[%c0_316, %c0_317, %c0_318] : memref<2x2x2xf32, #tpu.memory_space<vmem>>, vector<1x2x2xf32>
    %293 = vector.shape_cast %292 : vector<1x2x2xf32> to vector<2x2xf32>
    %c1_319 = arith.constant 1 : index
    %c0_320 = arith.constant 0 : index
    %c0_321 = arith.constant 0 : index
    %294 = vector.load %arg23[%c1_319, %c0_320, %c0_321] : memref<2x2x2xf32, #tpu.memory_space<vmem>>, vector<1x2x2xf32>
    %295 = vector.shape_cast %294 : vector<1x2x2xf32> to vector<2x2xf32>
    %cst_322 = arith.constant 0.000000e+00 : f32
    %296 = vector.broadcast %cst_322 : f32 to vector<2x64xf32>
    %297 = arith.maximumf %291, %296 : vector<2x64xf32>
    %c0_323 = arith.constant 0 : index
    %c0_324 = arith.constant 0 : index
    %c0_325 = arith.constant 0 : index
    %298 = vector.load %arg25[%c0_323, %c0_324, %c0_325] : memref<4x1x64xf32, #tpu.memory_space<vmem>>, vector<1x1x64xf32>
    %299 = vector.shape_cast %298 : vector<1x1x64xf32> to vector<1x64xf32>
    %cst_326 = arith.constant dense<0.000000e+00> : vector<2x64xf32>
    %300 = tpu.matmul %293, %297, %cst_326 {dimension_numbers = #tpu.dot_dimension_numbers<[1], [0], [0], [1], [0, 0, 1, 1], [], []>} : vector<2x2xf32>, vector<2x64xf32>, vector<2x64xf32> -> vector<2x64xf32>
    %cst_327 = arith.constant dense<0.000000e+00> : vector<2x64xf32>
    %301 = tpu.matmul %295, %297, %cst_327 {dimension_numbers = #tpu.dot_dimension_numbers<[1], [0], [0], [1], [0, 0, 1, 1], [], []>} : vector<2x2xf32>, vector<2x64xf32>, vector<2x64xf32> -> vector<2x64xf32>
    %c0_328 = arith.constant 0 : index
    %c0_329 = arith.constant 0 : index
    %c0_330 = arith.constant 0 : index
    %c0_331 = arith.constant 0 : index
    %302 = vector.load %arg24[%c0_328, %c0_329, %c0_330, %c0_331] : memref<4x3x64x64xf32, #tpu.memory_space<vmem>>, vector<1x1x64x64xf32>
    %303 = vector.shape_cast %302 : vector<1x1x64x64xf32> to vector<64x64xf32>
    %cst_332 = arith.constant dense<0.000000e+00> : vector<2x64xf32>
    %304 = tpu.matmul %300, %303, %cst_332 {dimension_numbers = #tpu.dot_dimension_numbers<[1], [0], [0], [1], [0, 0, 1, 1], [], []>} : vector<2x64xf32>, vector<64x64xf32>, vector<2x64xf32> -> vector<2x64xf32>
    %c0_333 = arith.constant 0 : index
    %c1_334 = arith.constant 1 : index
    %c0_335 = arith.constant 0 : index
    %c0_336 = arith.constant 0 : index
    %305 = vector.load %arg24[%c0_333, %c1_334, %c0_335, %c0_336] : memref<4x3x64x64xf32, #tpu.memory_space<vmem>>, vector<1x1x64x64xf32>
    %306 = vector.shape_cast %305 : vector<1x1x64x64xf32> to vector<64x64xf32>
    %cst_337 = arith.constant dense<0.000000e+00> : vector<2x64xf32>
    %307 = tpu.matmul %297, %306, %cst_337 {dimension_numbers = #tpu.dot_dimension_numbers<[1], [0], [0], [1], [0, 0, 1, 1], [], []>} : vector<2x64xf32>, vector<64x64xf32>, vector<2x64xf32> -> vector<2x64xf32>
    %308 = arith.addf %304, %307 : vector<2x64xf32>
    %c0_338 = arith.constant 0 : index
    %c2_339 = arith.constant 2 : index
    %c0_340 = arith.constant 0 : index
    %c0_341 = arith.constant 0 : index
    %309 = vector.load %arg24[%c0_338, %c2_339, %c0_340, %c0_341] : memref<4x3x64x64xf32, #tpu.memory_space<vmem>>, vector<1x1x64x64xf32>
    %310 = vector.shape_cast %309 : vector<1x1x64x64xf32> to vector<64x64xf32>
    %cst_342 = arith.constant dense<0.000000e+00> : vector<2x64xf32>
    %311 = tpu.matmul %301, %310, %cst_342 {dimension_numbers = #tpu.dot_dimension_numbers<[1], [0], [0], [1], [0, 0, 1, 1], [], []>} : vector<2x64xf32>, vector<64x64xf32>, vector<2x64xf32> -> vector<2x64xf32>
    %312 = arith.addf %308, %311 : vector<2x64xf32>
    %313 = vector.broadcast %299 : vector<1x64xf32> to vector<2x64xf32>
    %314 = arith.addf %312, %313 : vector<2x64xf32>
    %cst_343 = arith.constant 0.000000e+00 : f32
    %315 = vector.broadcast %cst_343 : f32 to vector<2x64xf32>
    %316 = arith.maximumf %314, %315 : vector<2x64xf32>
    %c1_344 = arith.constant 1 : index
    %c0_345 = arith.constant 0 : index
    %c0_346 = arith.constant 0 : index
    %317 = vector.load %arg25[%c1_344, %c0_345, %c0_346] : memref<4x1x64xf32, #tpu.memory_space<vmem>>, vector<1x1x64xf32>
    %318 = vector.shape_cast %317 : vector<1x1x64xf32> to vector<1x64xf32>
    %cst_347 = arith.constant dense<0.000000e+00> : vector<2x64xf32>
    %319 = tpu.matmul %293, %316, %cst_347 {dimension_numbers = #tpu.dot_dimension_numbers<[1], [0], [0], [1], [0, 0, 1, 1], [], []>} : vector<2x2xf32>, vector<2x64xf32>, vector<2x64xf32> -> vector<2x64xf32>
    %cst_348 = arith.constant dense<0.000000e+00> : vector<2x64xf32>
    %320 = tpu.matmul %295, %316, %cst_348 {dimension_numbers = #tpu.dot_dimension_numbers<[1], [0], [0], [1], [0, 0, 1, 1], [], []>} : vector<2x2xf32>, vector<2x64xf32>, vector<2x64xf32> -> vector<2x64xf32>
    %c1_349 = arith.constant 1 : index
    %c0_350 = arith.constant 0 : index
    %c0_351 = arith.constant 0 : index
    %c0_352 = arith.constant 0 : index
    %321 = vector.load %arg24[%c1_349, %c0_350, %c0_351, %c0_352] : memref<4x3x64x64xf32, #tpu.memory_space<vmem>>, vector<1x1x64x64xf32>
    %322 = vector.shape_cast %321 : vector<1x1x64x64xf32> to vector<64x64xf32>
    %cst_353 = arith.constant dense<0.000000e+00> : vector<2x64xf32>
    %323 = tpu.matmul %319, %322, %cst_353 {dimension_numbers = #tpu.dot_dimension_numbers<[1], [0], [0], [1], [0, 0, 1, 1], [], []>} : vector<2x64xf32>, vector<64x64xf32>, vector<2x64xf32> -> vector<2x64xf32>
    %c1_354 = arith.constant 1 : index
    %c1_355 = arith.constant 1 : index
    %c0_356 = arith.constant 0 : index
    %c0_357 = arith.constant 0 : index
    %324 = vector.load %arg24[%c1_354, %c1_355, %c0_356, %c0_357] : memref<4x3x64x64xf32, #tpu.memory_space<vmem>>, vector<1x1x64x64xf32>
    %325 = vector.shape_cast %324 : vector<1x1x64x64xf32> to vector<64x64xf32>
    %cst_358 = arith.constant dense<0.000000e+00> : vector<2x64xf32>
    %326 = tpu.matmul %316, %325, %cst_358 {dimension_numbers = #tpu.dot_dimension_numbers<[1], [0], [0], [1], [0, 0, 1, 1], [], []>} : vector<2x64xf32>, vector<64x64xf32>, vector<2x64xf32> -> vector<2x64xf32>
    %327 = arith.addf %323, %326 : vector<2x64xf32>
    %c1_359 = arith.constant 1 : index
    %c2_360 = arith.constant 2 : index
    %c0_361 = arith.constant 0 : index
    %c0_362 = arith.constant 0 : index
    %328 = vector.load %arg24[%c1_359, %c2_360, %c0_361, %c0_362] : memref<4x3x64x64xf32, #tpu.memory_space<vmem>>, vector<1x1x64x64xf32>
    %329 = vector.shape_cast %328 : vector<1x1x64x64xf32> to vector<64x64xf32>
    %cst_363 = arith.constant dense<0.000000e+00> : vector<2x64xf32>
    %330 = tpu.matmul %320, %329, %cst_363 {dimension_numbers = #tpu.dot_dimension_numbers<[1], [0], [0], [1], [0, 0, 1, 1], [], []>} : vector<2x64xf32>, vector<64x64xf32>, vector<2x64xf32> -> vector<2x64xf32>
    %331 = arith.addf %327, %330 : vector<2x64xf32>
    %332 = vector.broadcast %318 : vector<1x64xf32> to vector<2x64xf32>
    %333 = arith.addf %331, %332 : vector<2x64xf32>
    %334 = arith.addf %333, %291 : vector<2x64xf32>
    %cst_364 = arith.constant 0.000000e+00 : f32
    %335 = vector.broadcast %cst_364 : f32 to vector<2x64xf32>
    %336 = arith.maximumf %334, %335 : vector<2x64xf32>
    %c2_365 = arith.constant 2 : index
    %c0_366 = arith.constant 0 : index
    %c0_367 = arith.constant 0 : index
    %337 = vector.load %arg25[%c2_365, %c0_366, %c0_367] : memref<4x1x64xf32, #tpu.memory_space<vmem>>, vector<1x1x64xf32>
    %338 = vector.shape_cast %337 : vector<1x1x64xf32> to vector<1x64xf32>
    %cst_368 = arith.constant dense<0.000000e+00> : vector<2x64xf32>
    %339 = tpu.matmul %293, %336, %cst_368 {dimension_numbers = #tpu.dot_dimension_numbers<[1], [0], [0], [1], [0, 0, 1, 1], [], []>} : vector<2x2xf32>, vector<2x64xf32>, vector<2x64xf32> -> vector<2x64xf32>
    %cst_369 = arith.constant dense<0.000000e+00> : vector<2x64xf32>
    %340 = tpu.matmul %295, %336, %cst_369 {dimension_numbers = #tpu.dot_dimension_numbers<[1], [0], [0], [1], [0, 0, 1, 1], [], []>} : vector<2x2xf32>, vector<2x64xf32>, vector<2x64xf32> -> vector<2x64xf32>
    %c2_370 = arith.constant 2 : index
    %c0_371 = arith.constant 0 : index
    %c0_372 = arith.constant 0 : index
    %c0_373 = arith.constant 0 : index
    %341 = vector.load %arg24[%c2_370, %c0_371, %c0_372, %c0_373] : memref<4x3x64x64xf32, #tpu.memory_space<vmem>>, vector<1x1x64x64xf32>
    %342 = vector.shape_cast %341 : vector<1x1x64x64xf32> to vector<64x64xf32>
    %cst_374 = arith.constant dense<0.000000e+00> : vector<2x64xf32>
    %343 = tpu.matmul %339, %342, %cst_374 {dimension_numbers = #tpu.dot_dimension_numbers<[1], [0], [0], [1], [0, 0, 1, 1], [], []>} : vector<2x64xf32>, vector<64x64xf32>, vector<2x64xf32> -> vector<2x64xf32>
    %c2_375 = arith.constant 2 : index
    %c1_376 = arith.constant 1 : index
    %c0_377 = arith.constant 0 : index
    %c0_378 = arith.constant 0 : index
    %344 = vector.load %arg24[%c2_375, %c1_376, %c0_377, %c0_378] : memref<4x3x64x64xf32, #tpu.memory_space<vmem>>, vector<1x1x64x64xf32>
    %345 = vector.shape_cast %344 : vector<1x1x64x64xf32> to vector<64x64xf32>
    %cst_379 = arith.constant dense<0.000000e+00> : vector<2x64xf32>
    %346 = tpu.matmul %336, %345, %cst_379 {dimension_numbers = #tpu.dot_dimension_numbers<[1], [0], [0], [1], [0, 0, 1, 1], [], []>} : vector<2x64xf32>, vector<64x64xf32>, vector<2x64xf32> -> vector<2x64xf32>
    %347 = arith.addf %343, %346 : vector<2x64xf32>
    %c2_380 = arith.constant 2 : index
    %c2_381 = arith.constant 2 : index
    %c0_382 = arith.constant 0 : index
    %c0_383 = arith.constant 0 : index
    %348 = vector.load %arg24[%c2_380, %c2_381, %c0_382, %c0_383] : memref<4x3x64x64xf32, #tpu.memory_space<vmem>>, vector<1x1x64x64xf32>
    %349 = vector.shape_cast %348 : vector<1x1x64x64xf32> to vector<64x64xf32>
    %cst_384 = arith.constant dense<0.000000e+00> : vector<2x64xf32>
    %350 = tpu.matmul %340, %349, %cst_384 {dimension_numbers = #tpu.dot_dimension_numbers<[1], [0], [0], [1], [0, 0, 1, 1], [], []>} : vector<2x64xf32>, vector<64x64xf32>, vector<2x64xf32> -> vector<2x64xf32>
    %351 = arith.addf %347, %350 : vector<2x64xf32>
    %352 = vector.broadcast %338 : vector<1x64xf32> to vector<2x64xf32>
    %353 = arith.addf %351, %352 : vector<2x64xf32>
    %cst_385 = arith.constant 0.000000e+00 : f32
    %354 = vector.broadcast %cst_385 : f32 to vector<2x64xf32>
    %355 = arith.maximumf %353, %354 : vector<2x64xf32>
    %c3_386 = arith.constant 3 : index
    %c0_387 = arith.constant 0 : index
    %c0_388 = arith.constant 0 : index
    %356 = vector.load %arg25[%c3_386, %c0_387, %c0_388] : memref<4x1x64xf32, #tpu.memory_space<vmem>>, vector<1x1x64xf32>
    %357 = vector.shape_cast %356 : vector<1x1x64xf32> to vector<1x64xf32>
    %cst_389 = arith.constant dense<0.000000e+00> : vector<2x64xf32>
    %358 = tpu.matmul %293, %355, %cst_389 {dimension_numbers = #tpu.dot_dimension_numbers<[1], [0], [0], [1], [0, 0, 1, 1], [], []>} : vector<2x2xf32>, vector<2x64xf32>, vector<2x64xf32> -> vector<2x64xf32>
    %cst_390 = arith.constant dense<0.000000e+00> : vector<2x64xf32>
    %359 = tpu.matmul %295, %355, %cst_390 {dimension_numbers = #tpu.dot_dimension_numbers<[1], [0], [0], [1], [0, 0, 1, 1], [], []>} : vector<2x2xf32>, vector<2x64xf32>, vector<2x64xf32> -> vector<2x64xf32>
    %c3_391 = arith.constant 3 : index
    %c0_392 = arith.constant 0 : index
    %c0_393 = arith.constant 0 : index
    %c0_394 = arith.constant 0 : index
    %360 = vector.load %arg24[%c3_391, %c0_392, %c0_393, %c0_394] : memref<4x3x64x64xf32, #tpu.memory_space<vmem>>, vector<1x1x64x64xf32>
    %361 = vector.shape_cast %360 : vector<1x1x64x64xf32> to vector<64x64xf32>
    %cst_395 = arith.constant dense<0.000000e+00> : vector<2x64xf32>
    %362 = tpu.matmul %358, %361, %cst_395 {dimension_numbers = #tpu.dot_dimension_numbers<[1], [0], [0], [1], [0, 0, 1, 1], [], []>} : vector<2x64xf32>, vector<64x64xf32>, vector<2x64xf32> -> vector<2x64xf32>
    %c3_396 = arith.constant 3 : index
    %c1_397 = arith.constant 1 : index
    %c0_398 = arith.constant 0 : index
    %c0_399 = arith.constant 0 : index
    %363 = vector.load %arg24[%c3_396, %c1_397, %c0_398, %c0_399] : memref<4x3x64x64xf32, #tpu.memory_space<vmem>>, vector<1x1x64x64xf32>
    %364 = vector.shape_cast %363 : vector<1x1x64x64xf32> to vector<64x64xf32>
    %cst_400 = arith.constant dense<0.000000e+00> : vector<2x64xf32>
    %365 = tpu.matmul %355, %364, %cst_400 {dimension_numbers = #tpu.dot_dimension_numbers<[1], [0], [0], [1], [0, 0, 1, 1], [], []>} : vector<2x64xf32>, vector<64x64xf32>, vector<2x64xf32> -> vector<2x64xf32>
    %366 = arith.addf %362, %365 : vector<2x64xf32>
    %c3_401 = arith.constant 3 : index
    %c2_402 = arith.constant 2 : index
    %c0_403 = arith.constant 0 : index
    %c0_404 = arith.constant 0 : index
    %367 = vector.load %arg24[%c3_401, %c2_402, %c0_403, %c0_404] : memref<4x3x64x64xf32, #tpu.memory_space<vmem>>, vector<1x1x64x64xf32>
    %368 = vector.shape_cast %367 : vector<1x1x64x64xf32> to vector<64x64xf32>
    %cst_405 = arith.constant dense<0.000000e+00> : vector<2x64xf32>
    %369 = tpu.matmul %359, %368, %cst_405 {dimension_numbers = #tpu.dot_dimension_numbers<[1], [0], [0], [1], [0, 0, 1, 1], [], []>} : vector<2x64xf32>, vector<64x64xf32>, vector<2x64xf32> -> vector<2x64xf32>
    %370 = arith.addf %366, %369 : vector<2x64xf32>
    %371 = vector.broadcast %357 : vector<1x64xf32> to vector<2x64xf32>
    %372 = arith.addf %370, %371 : vector<2x64xf32>
    %373 = arith.addf %372, %334 : vector<2x64xf32>
    %cst_406 = arith.constant 0.000000e+00 : f32
    %374 = vector.broadcast %cst_406 : f32 to vector<2x64xf32>
    %375 = arith.maximumf %373, %374 : vector<2x64xf32>
    %376 = vector.extract_strided_slice %375 {offsets = [0, 0], sizes = [1, 64], strides = [1, 1]} : vector<2x64xf32> to vector<1x64xf32>
    %c0_407 = arith.constant 0 : index
    %c0_408 = arith.constant 0 : index
    %c0_409 = arith.constant 0 : index
    %377 = vector.load %arg26[%c0_407, %c0_408, %c0_409] : memref<2x64x256xf32, #tpu.memory_space<vmem>>, vector<1x64x256xf32>
    %378 = vector.shape_cast %377 : vector<1x64x256xf32> to vector<64x256xf32>
    %cst_410 = arith.constant dense<0.000000e+00> : vector<1x256xf32>
    %379 = tpu.matmul %376, %378, %cst_410 {dimension_numbers = #tpu.dot_dimension_numbers<[1], [0], [0], [1], [0, 0, 1, 1], [], []>} : vector<1x64xf32>, vector<64x256xf32>, vector<1x256xf32> -> vector<1x256xf32>
    %380 = vector.extract_strided_slice %375 {offsets = [1, 0], sizes = [1, 64], strides = [1, 1]} : vector<2x64xf32> to vector<1x64xf32>
    %c1_411 = arith.constant 1 : index
    %c0_412 = arith.constant 0 : index
    %c0_413 = arith.constant 0 : index
    %381 = vector.load %arg26[%c1_411, %c0_412, %c0_413] : memref<2x64x256xf32, #tpu.memory_space<vmem>>, vector<1x64x256xf32>
    %382 = vector.shape_cast %381 : vector<1x64x256xf32> to vector<64x256xf32>
    %cst_414 = arith.constant dense<0.000000e+00> : vector<1x256xf32>
    %383 = tpu.matmul %380, %382, %cst_414 {dimension_numbers = #tpu.dot_dimension_numbers<[1], [0], [0], [1], [0, 0, 1, 1], [], []>} : vector<1x64xf32>, vector<64x256xf32>, vector<1x256xf32> -> vector<1x256xf32>
    %384 = arith.addf %379, %383 : vector<1x256xf32>
    %c0_415 = arith.constant 0 : index
    %c0_416 = arith.constant 0 : index
    %385 = vector.load %arg27[%c0_415, %c0_416] : memref<1x256xf32, #tpu.memory_space<vmem>>, vector<1x256xf32>
    %386 = arith.addf %384, %385 : vector<1x256xf32>
    %cst_417 = arith.constant 0.000000e+00 : f32
    %387 = vector.broadcast %cst_417 : f32 to vector<1x256xf32>
    %388 = arith.maximumf %386, %387 : vector<1x256xf32>
    %c0_418 = arith.constant 0 : index
    %c0_419 = arith.constant 0 : index
    %c0_420 = arith.constant 0 : index
    %389 = vector.load %arg28[%c0_418, %c0_419, %c0_420] : memref<1x1x256xf32, #tpu.memory_space<vmem>>, vector<1x1x256xf32>
    %390 = vector.shape_cast %389 : vector<1x1x256xf32> to vector<1x256xf32>
    %391 = vector.shape_cast %388 : vector<1x256xf32> to vector<1x1x256xf32>
    tpu.vector_store %arg28[%c0_418, %c0_419, %c0_420], %391 {strides = array<i32>} : memref<1x1x256xf32, #tpu.memory_space<vmem>>, vector<1x1x256xf32>,
    return
  }
  func.func @transform_0(%arg0: i32) -> (i32, i32, i32) {
    %c0_i32 = arith.constant 0 : i32
    %c0_i32_0 = arith.constant 0 : i32
    %c0_i32_1 = arith.constant 0 : i32
    return %arg0, %c0_i32, %c0_i32_0 : i32, i32, i32
  }
  func.func @transform_1(%arg0: i32) -> (i32, i32, i32) {
    %c0_i32 = arith.constant 0 : i32
    %c0_i32_0 = arith.constant 0 : i32
    %c0_i32_1 = arith.constant 0 : i32
    %c0_i32_2 = arith.constant 0 : i32
    return %c0_i32, %c0_i32_0, %c0_i32_1 : i32, i32, i32
  }
  func.func @transform_2(%arg0: i32) -> (i32, i32, i32) {
    %c0_i32 = arith.constant 0 : i32
    %c0_i32_0 = arith.constant 0 : i32
    %c0_i32_1 = arith.constant 0 : i32
    %c0_i32_2 = arith.constant 0 : i32
    return %c0_i32, %c0_i32_0, %c0_i32_1 : i32, i32, i32
  }
  func.func @transform_3(%arg0: i32) -> (i32, i32) {
    %c0_i32 = arith.constant 0 : i32
    %c0_i32_0 = arith.constant 0 : i32
    %c0_i32_1 = arith.constant 0 : i32
    return %c0_i32, %c0_i32_0 : i32, i32
  }
  func.func @transform_4(%arg0: i32) -> (i32, i32, i32) {
    %c0_i32 = arith.constant 0 : i32
    %c0_i32_0 = arith.constant 0 : i32
    %c0_i32_1 = arith.constant 0 : i32
    %c0_i32_2 = arith.constant 0 : i32
    return %c0_i32, %c0_i32_0, %c0_i32_1 : i32, i32, i32
  }
  func.func @transform_5(%arg0: i32) -> (i32, i32, i32) {
    %c0_i32 = arith.constant 0 : i32
    %c0_i32_0 = arith.constant 0 : i32
    %c0_i32_1 = arith.constant 0 : i32
    %c0_i32_2 = arith.constant 0 : i32
    return %c0_i32, %c0_i32_0, %c0_i32_1 : i32, i32, i32
  }
  func.func @transform_6(%arg0: i32) -> (i32, i32, i32) {
    %c0_i32 = arith.constant 0 : i32
    %c0_i32_0 = arith.constant 0 : i32
    %c0_i32_1 = arith.constant 0 : i32
    %c0_i32_2 = arith.constant 0 : i32
    return %c0_i32, %c0_i32_0, %c0_i32_1 : i32, i32, i32
  }
  func.func @transform_7(%arg0: i32) -> (i32, i32, i32, i32) {
    %c0_i32 = arith.constant 0 : i32
    %c0_i32_0 = arith.constant 0 : i32
    %c0_i32_1 = arith.constant 0 : i32
    %c0_i32_2 = arith.constant 0 : i32
    %c0_i32_3 = arith.constant 0 : i32
    return %c0_i32, %c0_i32_0, %c0_i32_1, %c0_i32_2 : i32, i32, i32, i32
  }
  func.func @transform_8(%arg0: i32) -> (i32, i32, i32) {
    %c0_i32 = arith.constant 0 : i32
    %c0_i32_0 = arith.constant 0 : i32
    %c0_i32_1 = arith.constant 0 : i32
    %c0_i32_2 = arith.constant 0 : i32
    return %c0_i32, %c0_i32_0, %c0_i32_1 : i32, i32, i32
  }
  func.func @transform_9(%arg0: i32) -> (i32, i32, i32) {
    %c0_i32 = arith.constant 0 : i32
    %c0_i32_0 = arith.constant 0 : i32
    %c0_i32_1 = arith.constant 0 : i32
    %c0_i32_2 = arith.constant 0 : i32
    return %c0_i32, %c0_i32_0, %c0_i32_1 : i32, i32, i32
  }
  func.func @transform_10(%arg0: i32) -> (i32, i32, i32) {
    %c0_i32 = arith.constant 0 : i32
    %c0_i32_0 = arith.constant 0 : i32
    %c0_i32_1 = arith.constant 0 : i32
    %c0_i32_2 = arith.constant 0 : i32
    return %c0_i32, %c0_i32_0, %c0_i32_1 : i32, i32, i32
  }
  func.func @transform_11(%arg0: i32) -> (i32, i32) {
    %c0_i32 = arith.constant 0 : i32
    %c0_i32_0 = arith.constant 0 : i32
    %c0_i32_1 = arith.constant 0 : i32
    return %c0_i32, %c0_i32_0 : i32, i32
  }
  func.func @transform_12(%arg0: i32) -> (i32, i32, i32) {
    %c0_i32 = arith.constant 0 : i32
    %c0_i32_0 = arith.constant 0 : i32
    %c0_i32_1 = arith.constant 0 : i32
    %c0_i32_2 = arith.constant 0 : i32
    return %c0_i32, %c0_i32_0, %c0_i32_1 : i32, i32, i32
  }
  func.func @transform_13(%arg0: i32) -> (i32, i32, i32) {
    %c0_i32 = arith.constant 0 : i32
    %c0_i32_0 = arith.constant 0 : i32
    %c0_i32_1 = arith.constant 0 : i32
    %c0_i32_2 = arith.constant 0 : i32
    return %c0_i32, %c0_i32_0, %c0_i32_1 : i32, i32, i32
  }
  func.func @transform_14(%arg0: i32) -> (i32, i32, i32) {
    %c0_i32 = arith.constant 0 : i32
    %c0_i32_0 = arith.constant 0 : i32
    %c0_i32_1 = arith.constant 0 : i32
    %c0_i32_2 = arith.constant 0 : i32
    return %c0_i32, %c0_i32_0, %c0_i32_1 : i32, i32, i32
  }
  func.func @transform_15(%arg0: i32) -> (i32, i32, i32, i32) {
    %c0_i32 = arith.constant 0 : i32
    %c0_i32_0 = arith.constant 0 : i32
    %c0_i32_1 = arith.constant 0 : i32
    %c0_i32_2 = arith.constant 0 : i32
    %c0_i32_3 = arith.constant 0 : i32
    return %c0_i32, %c0_i32_0, %c0_i32_1, %c0_i32_2 : i32, i32, i32, i32
  }
  func.func @transform_16(%arg0: i32) -> (i32, i32, i32) {
    %c0_i32 = arith.constant 0 : i32
    %c0_i32_0 = arith.constant 0 : i32
    %c0_i32_1 = arith.constant 0 : i32
    %c0_i32_2 = arith.constant 0 : i32
    return %c0_i32, %c0_i32_0, %c0_i32_1 : i32, i32, i32
  }
  func.func @transform_17(%arg0: i32) -> (i32, i32, i32) {
    %c0_i32 = arith.constant 0 : i32
    %c0_i32_0 = arith.constant 0 : i32
    %c0_i32_1 = arith.constant 0 : i32
    %c0_i32_2 = arith.constant 0 : i32
    return %c0_i32, %c0_i32_0, %c0_i32_1 : i32, i32, i32
  }
  func.func @transform_18(%arg0: i32) -> (i32, i32, i32) {
    %c0_i32 = arith.constant 0 : i32
    %c0_i32_0 = arith.constant 0 : i32
    %c0_i32_1 = arith.constant 0 : i32
    %c0_i32_2 = arith.constant 0 : i32
    return %c0_i32, %c0_i32_0, %c0_i32_1 : i32, i32, i32
  }
  func.func @transform_19(%arg0: i32) -> (i32, i32) {
    %c0_i32 = arith.constant 0 : i32
    %c0_i32_0 = arith.constant 0 : i32
    %c0_i32_1 = arith.constant 0 : i32
    return %c0_i32, %c0_i32_0 : i32, i32
  }
  func.func @transform_20(%arg0: i32) -> (i32, i32, i32) {
    %c0_i32 = arith.constant 0 : i32
    %c0_i32_0 = arith.constant 0 : i32
    %c0_i32_1 = arith.constant 0 : i32
    %c0_i32_2 = arith.constant 0 : i32
    return %c0_i32, %c0_i32_0, %c0_i32_1 : i32, i32, i32
  }
  func.func @transform_21(%arg0: i32) -> (i32, i32, i32) {
    %c0_i32 = arith.constant 0 : i32
    %c0_i32_0 = arith.constant 0 : i32
    %c0_i32_1 = arith.constant 0 : i32
    %c0_i32_2 = arith.constant 0 : i32
    return %c0_i32, %c0_i32_0, %c0_i32_1 : i32, i32, i32
  }
  func.func @transform_22(%arg0: i32) -> (i32, i32, i32) {
    %c0_i32 = arith.constant 0 : i32
    %c0_i32_0 = arith.constant 0 : i32
    %c0_i32_1 = arith.constant 0 : i32
    %c0_i32_2 = arith.constant 0 : i32
    return %c0_i32, %c0_i32_0, %c0_i32_1 : i32, i32, i32
  }
  func.func @transform_23(%arg0: i32) -> (i32, i32, i32, i32) {
    %c0_i32 = arith.constant 0 : i32
    %c0_i32_0 = arith.constant 0 : i32
    %c0_i32_1 = arith.constant 0 : i32
    %c0_i32_2 = arith.constant 0 : i32
    %c0_i32_3 = arith.constant 0 : i32
    return %c0_i32, %c0_i32_0, %c0_i32_1, %c0_i32_2 : i32, i32, i32, i32
  }
  func.func @transform_24(%arg0: i32) -> (i32, i32, i32) {
    %c0_i32 = arith.constant 0 : i32
    %c0_i32_0 = arith.constant 0 : i32
    %c0_i32_1 = arith.constant 0 : i32
    %c0_i32_2 = arith.constant 0 : i32
    return %c0_i32, %c0_i32_0, %c0_i32_1 : i32, i32, i32
  }
  func.func @transform_25(%arg0: i32) -> (i32, i32, i32) {
    %c0_i32 = arith.constant 0 : i32
    %c0_i32_0 = arith.constant 0 : i32
    %c0_i32_1 = arith.constant 0 : i32
    %c0_i32_2 = arith.constant 0 : i32
    return %c0_i32, %c0_i32_0, %c0_i32_1 : i32, i32, i32
  }
  func.func @transform_26(%arg0: i32) -> (i32, i32) {
    %c0_i32 = arith.constant 0 : i32
    %c0_i32_0 = arith.constant 0 : i32
    %c0_i32_1 = arith.constant 0 : i32
    return %c0_i32, %c0_i32_0 : i32, i32
  }
  func.func @transform_27(%arg0: i32) -> (i32, i32, i32) {
    %c0_i32 = arith.constant 0 : i32
    %c0_i32_0 = arith.constant 0 : i32
    %c0_i32_1 = arith.constant 0 : i32
    return %arg0, %c0_i32, %c0_i32_0 : i32, i32, i32
  }
}

</mosaic_0001>

<llo_original>
// kernel: image_forward.1
$region0: #{image_forward.1}
  #allocation0 [shape = 'u32[]', space=smem, size = 0x4, offset = 0x4, fixed_abs, tag = 'smem constant byte address 0x4 - core index']
  #allocation1 [shape = 'u32[144,128]{1,0:T(1,128)}', space=vmem, size = 0x12000, scoped, tag = 'internal scratch']
  %s0 = inlined_call_operand.vmem [shape: f32[2,16,64], index: 0, kind: input, shape index: {}]
  %s1 = inlined_call_operand.hbm [shape: f32[2,16,16], index: 1, kind: input, shape index: {}]
  %s2 = inlined_call_operand.hbm [shape: f32[3,64,256], index: 2, kind: input, shape index: {}]
  %s3 = inlined_call_operand.vmem [shape: f32[1,256], index: 3, kind: input, shape index: {}]
  %s4 = inlined_call_operand.hbm [shape: f32[3,8,16], index: 4, kind: input, shape index: {}]
  %s5 = inlined_call_operand.vmem [shape: f32[3,256,128], index: 5, kind: input, shape index: {}]
  %s6 = inlined_call_operand.hbm [shape: f32[2,8,8], index: 6, kind: input, shape index: {}]
  %s7 = inlined_call_operand.hbm [shape: f32[4,3,128,128], index: 7, kind: input, shape index: {}]
  %s8 = inlined_call_operand.hbm [shape: f32[4,1,128], index: 8, kind: input, shape index: {}]
  %s9 = inlined_call_operand.hbm [shape: f32[2,8,8], index: 9, kind: input, shape index: {}]
  %s10 = inlined_call_operand.hbm [shape: f32[3,128,256], index: 10, kind: input, shape index: {}]
  %s11 = inlined_call_operand.hbm [shape: f32[1,256], index: 11, kind: input, shape index: {}]
  %s12 = inlined_call_operand.hbm [shape: f32[3,4,8], index: 12, kind: input, shape index: {}]
  %s13 = inlined_call_operand.hbm [shape: f32[3,256,128], index: 13, kind: input, shape index: {}]
  %s14 = inlined_call_operand.hbm [shape: f32[2,4,4], index: 14, kind: input, shape index: {}]
  %s15 = inlined_call_operand.hbm [shape: f32[4,3,128,128], index: 15, kind: input, shape index: {}]
  %s16 = inlined_call_operand.hbm [shape: f32[4,1,128], index: 16, kind: input, shape index: {}]
  %s17 = inlined_call_operand.hbm [shape: f32[2,4,4], index: 17, kind: input, shape index: {}]
  %s18 = inlined_call_operand.hbm [shape: f32[3,128,128], index: 18, kind: input, shape index: {}]
  %s19 = inlined_call_operand.hbm [shape: f32[1,128], index: 19, kind: input, shape index: {}]
  %s20 = inlined_call_operand.hbm [shape: f32[3,2,4], index: 20, kind: input, shape index: {}]
  %s21 = inlined_call_operand.vmem [shape: f32[3,128,64], index: 21, kind: input, shape index: {}]
  %s22 = inlined_call_operand.hbm [shape: f32[2,2,2], index: 22, kind: input, shape index: {}]
  %s23 = inlined_call_operand.hbm [shape: f32[4,3,64,64], index: 23, kind: input, shape index: {}]
  %s24 = inlined_call_operand.hbm [shape: f32[4,1,64], index: 24, kind: input, shape index: {}]
  %s25 = inlined_call_operand.vmem [shape: f32[2,64,256], index: 25, kind: input, shape index: {}]
  %s26 = inlined_call_operand.vmem [shape: f32[1,256], index: 26, kind: input, shape index: {}]
  %s27 = inlined_call_operand.vmem [shape: f32[2,1,256], index: 27, kind: output, shape index: {}]
  %s28 = sld [smem:[#allocation0]]
  $region225: #{image_forward.1} parent=0
    _
  %s30 = ssub.s32 1, %s28
  %s31 = scalar_select 0, %s30, %s28
  $region1: #{image_forward.1} parent=0
    #allocation2 [shape = 'u8[16384]{0}', space=vmem, size = 0x4000, scoped, tag = 'input window, operand 1, single buffered']
    #allocation3 [shape = 's32[2]{0}', space=sflag, size = 0x8, scoped, tag = 'scoped memory for image_forward.1']
    #allocation4 [shape = 'u8[196608]{0}', space=vmem, size = 0x30000, scoped, tag = 'input window, operand 2, single buffered']
    #allocation5 [shape = 's32[1]{0}', space=sflag, size = 0x4, scoped, tag = 'scoped memory for image_forward.1']
    #allocation6 [shape = 'u8[12288]{0}', space=vmem, size = 0x3000, scoped, tag = 'input window, operand 4, single buffered']
    #allocation7 [shape = 'u8[8192]{0}', space=vmem, size = 0x2000, scoped, tag = 'input window, operand 6, single buffered']
    #allocation8 [shape = 's32[1]{0}', space=sflag, size = 0x4, scoped, tag = 'scoped memory for image_forward.1']
    #allocation9 [shape = 'u8[786432]{0}', space=vmem, size = 0xc0000, scoped, tag = 'input window, operand 7, single buffered']
    #allocation10 [shape = 'u8[2048]{0}', space=vmem, size = 0x800, scoped, tag = 'input window, operand 8, single buffered']
    #allocation11 [shape = 's32[1]{0}', space=sflag, size = 0x4, scoped, tag = 'scoped memory for image_forward.1']
    #allocation12 [shape = 'u8[8192]{0}', space=vmem, size = 0x2000, scoped, tag = 'input window, operand 9, single buffered']
    #allocation13 [shape = 'u8[393216]{0}', space=vmem, size = 0x60000, scoped, tag = 'input window, operand 10, single buffered']
    #allocation14 [shape = 's32[1]{0}', space=sflag, size = 0x4, scoped, tag = 'scoped memory for image_forward.1']
    #allocation15 [shape = 'u8[1024]{0}', space=vmem, size = 0x400, scoped, tag = 'input window, operand 11, single buffered']
    #allocation16 [shape = 'u8[6144]{0}', space=vmem, size = 0x1800, scoped, tag = 'input window, operand 12, single buffered']
    #allocation17 [shape = 's32[1]{0}', space=sflag, size = 0x4, scoped, tag = 'scoped memory for image_forward.1']
    #allocation18 [shape = 'u8[393216]{0}', space=vmem, size = 0x60000, scoped, tag = 'input window, operand 13, single buffered']
    #allocation19 [shape = 'u8[4096]{0}', space=vmem, size = 0x1000, scoped, tag = 'input window, operand 14, single buffered']
    #allocation20 [shape = 's32[1]{0}', space=sflag, size = 0x4, scoped, tag = 'scoped memory for image_forward.1']
    #allocation21 [shape = 'u8[786432]{0}', space=vmem, size = 0xc0000, scoped, tag = 'input window, operand 15, single buffered']
    #allocation22 [shape = 'u8[2048]{0}', space=vmem, size = 0x800, scoped, tag = 'input window, operand 16, single buffered']
    #allocation23 [shape = 's32[1]{0}', space=sflag, size = 0x4, scoped, tag = 'scoped memory for image_forward.1']
    #allocation24 [shape = 'u8[4096]{0}', space=vmem, size = 0x1000, scoped, tag = 'input window, operand 17, single buffered']
    #allocation25 [shape = 'u8[196608]{0}', space=vmem, size = 0x30000, scoped, tag = 'input window, operand 18, single buffered']
    #allocation26 [shape = 's32[1]{0}', space=sflag, size = 0x4, scoped, tag = 'scoped memory for image_forward.1']
    #allocation27 [shape = 'u8[512]{0}', space=vmem, size = 0x400, scoped, tag = 'input window, operand 19, single buffered']
    #allocation28 [shape = 'u8[3072]{0}', space=vmem, size = 0xc00, scoped, tag = 'input window, operand 20, single buffered']
    #allocation29 [shape = 's32[1]{0}', space=sflag, size = 0x4, scoped, tag = 'scoped memory for image_forward.1']
    #allocation30 [shape = 'u8[2048]{0}', space=vmem, size = 0x800, scoped, tag = 'input window, operand 22, single buffered']
    #allocation31 [shape = 'u8[393216]{0}', space=vmem, size = 0x60000, scoped, tag = 'input window, operand 23, single buffered']
    #allocation32 [shape = 's32[1]{0}', space=sflag, size = 0x4, scoped, tag = 'scoped memory for image_forward.1']
    #allocation33 [shape = 'u8[2048]{0}', space=vmem, size = 0x800, scoped, tag = 'input window, operand 24, single buffered']
    %32 = vsyncpa [#allocation3], 0
    %33 = vsyncpa [#allocation5], 0
    %34 = vsyncpa [#allocation8], 0
    %35 = vsyncpa [#allocation11], 0
    %36 = vsyncpa [#allocation14], 0
    %37 = vsyncpa [#allocation17], 0
    %38 = vsyncpa [#allocation20], 0
    %39 = vsyncpa [#allocation23], 0
    %40 = vsyncpa [#allocation26], 0
    %41 = vsyncpa [#allocation29], 0
    %42 = vsyncpa [#allocation32], 0
    loop: start=0, step=1, limit=4
    $region2: #{image_forward.1} parent=1 // loop_pre_header
      _
    $region3: #{image_forward.1} parent=1 // loop_header
      %s44 = sphi 0, %s48
      %p45 = scmp.ge.s32.totalorder %s44, 4
      %s54 = sphi 0, %s56
      %s57 = sphi 0, %s54
      %s58 = sphi 0, %s57
      %s74 = sphi 0, %s58
      %s78 = sphi 0, %s78
      %s80 = sphi 0, %s78
      %s81 = sphi 0, %s80
      %s95 = sphi 0, %s81
      %s99 = sphi 0, %s99
      %s101 = sphi 0, %s99
      %s102 = sphi 0, %s101
      %s116 = sphi 0, %s102
      %s120 = sphi 0, %s120
      %s122 = sphi 0, %s120
      %s123 = sphi 0, %s122
      %s137 = sphi 0, %s123
      %s141 = sphi 0, %s141
      %s143 = sphi 0, %s141
      %s144 = sphi 0, %s143
      %s158 = sphi 0, %s144
      %s162 = sphi 0, %s162
      %s164 = sphi 0, %s162
      %s165 = sphi 0, %s164
      %s179 = sphi 0, %s165
      %s183 = sphi 0, %s183
      %s185 = sphi 0, %s183
      %s186 = sphi 0, %s185
      %s200 = sphi 0, %s186
      %s204 = sphi 0, %s204
      %s206 = sphi 0, %s204
      %s207 = sphi 0, %s206
      %s221 = sphi 0, %s207
      %s225 = sphi 0, %s225
      %s227 = sphi 0, %s225
      %s228 = sphi 0, %s227
      %s242 = sphi 0, %s228
      %s246 = sphi 0, %s246
      %s248 = sphi 0, %s246
      %s249 = sphi 0, %s248
      %s263 = sphi 0, %s249
      %s267 = sphi 0, %s267
      %s269 = sphi 0, %s267
      %s270 = sphi 0, %s269
      %s284 = sphi 0, %s270
      %s288 = sphi 0, %s288
      %s290 = sphi 0, %s288
      %s291 = sphi 0, %s290
      %s305 = sphi 0, %s291
      %s309 = sphi 0, %s309
      %s311 = sphi 0, %s309
      %s312 = sphi 0, %s311
      %s326 = sphi 0, %s312
      %s330 = sphi 0, %s330
      %s332 = sphi 0, %s330
      %s333 = sphi 0, %s332
      %s347 = sphi 0, %s333
      %s351 = sphi 0, %s351
      %s353 = sphi 0, %s351
      %s354 = sphi 0, %s353
      %s368 = sphi 0, %s354
      %s372 = sphi 0, %s372
      %s374 = sphi 0, %s372
      %s375 = sphi 0, %s374
      %s389 = sphi 0, %s375
      %s393 = sphi 0, %s393
      %s395 = sphi 0, %s393
      %s396 = sphi 0, %s395
      %s410 = sphi 0, %s396
      %s414 = sphi 0, %s414
      %s416 = sphi 0, %s414
      %s417 = sphi 0, %s416
      %s431 = sphi 0, %s417
      %s435 = sphi 0, %s435
      %s437 = sphi 0, %s435
      %s438 = sphi 0, %s437
      %s452 = sphi 0, %s438
      %s456 = sphi 0, %s456
      %s458 = sphi 0, %s456
      %s459 = sphi 0, %s458
      %s473 = sphi 0, %s459
      %s477 = sphi 0, %s477
      %s479 = sphi 0, %s477
      %s480 = sphi 0, %s479
      %s494 = sphi 0, %s480
      %s498 = sphi 0, %s498
      %s500 = sphi 0, %s498
      %s501 = sphi 0, %s500
      %s515 = sphi 0, %s501
      %s519 = sphi 0, %s519
      %s521 = sphi 0, %s519
      %s522 = sphi 0, %s521
      %s536 = sphi 0, %s522
      %s540 = sphi 0, %s540
      %s542 = sphi 0, %s540
      %s543 = sphi 0, %s542
      %s557 = sphi 0, %s543
      %s561 = sphi 0, %s561
      %s563 = sphi 0, %s561
      %s564 = sphi 0, %s563
      %s578 = sphi 0, %s564
      %s582 = sphi 0, %s582
      %s584 = sphi 0, %s582
      %s585 = sphi 0, %s584
      %s599 = sphi 0, %s585
      %s603 = sphi 0, %s603
      %s605 = sphi 0, %s603
      %s606 = sphi 0, %s605
      %s620 = sphi 0, %s606
      %s626 = sphi 0, %s628
      %s629 = sphi 0, %s626
      %s630 = sphi 0, %s629
      %s646 = sphi 0, %s630
    $region4: #{image_forward.1} parent=1 // loop_header_branch
      %47 = sbr.rel (%p45) target = $region8
    $region5: #{image_forward.1} parent=1 // loop_body
      %s49 = ssub.s32 %s44, 1
      %s50 = ssub.s32 %s44, 2
      %s51 = sadd.s32 %s44, 1
      %s52 = ssub.s32 %s44, %s51
      %p53 = scmp.eq.s32.totalorder %s52, 0
      %s55 = sadd.s32 %s54, 1
      %s56 = scalar_select %p53, %s54, %s55
      %p59 = pneg %p53
      %p60 = scmp.eq.s32.totalorder %s44, 1
      %p61 = por %p59, %p60
      %p62 = scmp.ne.s32.totalorder %s54, %s57
      %p63 = scmp.eq.s32.totalorder %s44, 0
      %p64 = por %p62, %p63
      %p65 = scmp.ne.s32.totalorder %s54, %s57
      %p66 = scmp.eq.s32.totalorder %s49, 1
      %p67 = por %p65, %p66
      %p68 = scmp.ne.s32.totalorder %s57, %s58
      %p69 = scmp.eq.s32.totalorder %s49, 0
      %p70 = por %p68, %p69
      %p71 = scmp.ne.s32.totalorder %s57, %s58
      %p72 = scmp.eq.s32.totalorder %s50, 1
      %p73 = por %p71, %p72
      %p75 = scmp.ne.s32.totalorder %s58, %s74
      %p76 = scmp.eq.s32.totalorder %s50, 0
      %p77 = por %p75, %p76
      %s79 = sadd.s32 %s78, 1
      %p82 = scmp.eq.s32.totalorder %s44, 1
      %p83 = scmp.ne.s32.totalorder %s78, %s80
      %p84 = scmp.eq.s32.totalorder %s44, 0
      %p85 = por %p83, %p84
      %p86 = scmp.ne.s32.totalorder %s78, %s80
      %p87 = scmp.eq.s32.totalorder %s49, 1
      %p88 = por %p86, %p87
      %p89 = scmp.ne.s32.totalorder %s80, %s81
      %p90 = scmp.eq.s32.totalorder %s49, 0
      %p91 = por %p89, %p90
      %p92 = scmp.ne.s32.totalorder %s80, %s81
      %p93 = scmp.eq.s32.totalorder %s50, 1
      %p94 = por %p92, %p93
      %p96 = scmp.ne.s32.totalorder %s81, %s95
      %p97 = scmp.eq.s32.totalorder %s50, 0
      %p98 = por %p96, %p97
      %s100 = sadd.s32 %s99, 1
      %p103 = scmp.eq.s32.totalorder %s44, 1
      %p104 = scmp.ne.s32.totalorder %s99, %s101
      %p105 = scmp.eq.s32.totalorder %s44, 0
      %p106 = por %p104, %p105
      %p107 = scmp.ne.s32.totalorder %s99, %s101
      %p108 = scmp.eq.s32.totalorder %s49, 1
      %p109 = por %p107, %p108
      %p110 = scmp.ne.s32.totalorder %s101, %s102
      %p111 = scmp.eq.s32.totalorder %s49, 0
      %p112 = por %p110, %p111
      %p113 = scmp.ne.s32.totalorder %s101, %s102
      %p114 = scmp.eq.s32.totalorder %s50, 1
      %p115 = por %p113, %p114
      %p117 = scmp.ne.s32.totalorder %s102, %s116
      %p118 = scmp.eq.s32.totalorder %s50, 0
      %p119 = por %p117, %p118
      %s121 = sadd.s32 %s120, 1
      %p124 = scmp.eq.s32.totalorder %s44, 1
      %p125 = scmp.ne.s32.totalorder %s120, %s122
      %p126 = scmp.eq.s32.totalorder %s44, 0
      %p127 = por %p125, %p126
      %p128 = scmp.ne.s32.totalorder %s120, %s122
      %p129 = scmp.eq.s32.totalorder %s49, 1
      %p130 = por %p128, %p129
      %p131 = scmp.ne.s32.totalorder %s122, %s123
      %p132 = scmp.eq.s32.totalorder %s49, 0
      %p133 = por %p131, %p132
      %p134 = scmp.ne.s32.totalorder %s122, %s123
      %p135 = scmp.eq.s32.totalorder %s50, 1
      %p136 = por %p134, %p135
      %p138 = scmp.ne.s32.totalorder %s123, %s137
      %p139 = scmp.eq.s32.totalorder %s50, 0
      %p140 = por %p138, %p139
      %s142 = sadd.s32 %s141, 1
      %p145 = scmp.eq.s32.totalorder %s44, 1
      %p146 = scmp.ne.s32.totalorder %s141, %s143
      %p147 = scmp.eq.s32.totalorder %s44, 0
      %p148 = por %p146, %p147
      %p149 = scmp.ne.s32.totalorder %s141, %s143
      %p150 = scmp.eq.s32.totalorder %s49, 1
      %p151 = por %p149, %p150
      %p152 = scmp.ne.s32.totalorder %s143, %s144
      %p153 = scmp.eq.s32.totalorder %s49, 0
      %p154 = por %p152, %p153
      %p155 = scmp.ne.s32.totalorder %s143, %s144
      %p156 = scmp.eq.s32.totalorder %s50, 1
      %p157 = por %p155, %p156
      %p159 = scmp.ne.s32.totalorder %s144, %s158
      %p160 = scmp.eq.s32.totalorder %s50, 0
      %p161 = por %p159, %p160
      %s163 = sadd.s32 %s162, 1
      %p166 = scmp.eq.s32.totalorder %s44, 1
      %p167 = scmp.ne.s32.totalorder %s162, %s164
      %p168 = scmp.eq.s32.totalorder %s44, 0
      %p169 = por %p167, %p168
      %p170 = scmp.ne.s32.totalorder %s162, %s164
      %p171 = scmp.eq.s32.totalorder %s49, 1
      %p172 = por %p170, %p171
      %p173 = scmp.ne.s32.totalorder %s164, %s165
      %p174 = scmp.eq.s32.totalorder %s49, 0
      %p175 = por %p173, %p174
      %p176 = scmp.ne.s32.totalorder %s164, %s165
      %p177 = scmp.eq.s32.totalorder %s50, 1
      %p178 = por %p176, %p177
      %p180 = scmp.ne.s32.totalorder %s165, %s179
      %p181 = scmp.eq.s32.totalorder %s50, 0
      %p182 = por %p180, %p181
      %s184 = sadd.s32 %s183, 1
      %p187 = scmp.eq.s32.totalorder %s44, 1
      %p188 = scmp.ne.s32.totalorder %s183, %s185
      %p189 = scmp.eq.s32.totalorder %s44, 0
      %p190 = por %p188, %p189
      %p191 = scmp.ne.s32.totalorder %s183, %s185
      %p192 = scmp.eq.s32.totalorder %s49, 1
      %p193 = por %p191, %p192
      %p194 = scmp.ne.s32.totalorder %s185, %s186
      %p195 = scmp.eq.s32.totalorder %s49, 0
      %p196 = por %p194, %p195
      %p197 = scmp.ne.s32.totalorder %s185, %s186
      %p198 = scmp.eq.s32.totalorder %s50, 1
      %p199 = por %p197, %p198
      %p201 = scmp.ne.s32.totalorder %s186, %s200
      %p202 = scmp.eq.s32.totalorder %s50, 0
      %p203 = por %p201, %p202
      %s205 = sadd.s32 %s204, 1
      %p208 = scmp.eq.s32.totalorder %s44, 1
      %p209 = scmp.ne.s32.totalorder %s204, %s206
      %p210 = scmp.eq.s32.totalorder %s44, 0
      %p211 = por %p209, %p210
      %p212 = scmp.ne.s32.totalorder %s204, %s206
      %p213 = scmp.eq.s32.totalorder %s49, 1
      %p214 = por %p212, %p213
      %p215 = scmp.ne.s32.totalorder %s206, %s207
      %p216 = scmp.eq.s32.totalorder %s49, 0
      %p217 = por %p215, %p216
      %p218 = scmp.ne.s32.totalorder %s206, %s207
      %p219 = scmp.eq.s32.totalorder %s50, 1
      %p220 = por %p218, %p219
      %p222 = scmp.ne.s32.totalorder %s207, %s221
      %p223 = scmp.eq.s32.totalorder %s50, 0
      %p224 = por %p222, %p223
      %s226 = sadd.s32 %s225, 1
      %p229 = scmp.eq.s32.totalorder %s44, 1
      %p230 = scmp.ne.s32.totalorder %s225, %s227
      %p231 = scmp.eq.s32.totalorder %s44, 0
      %p232 = por %p230, %p231
      %p233 = scmp.ne.s32.totalorder %s225, %s227
      %p234 = scmp.eq.s32.totalorder %s49, 1
      %p235 = por %p233, %p234
      %p236 = scmp.ne.s32.totalorder %s227, %s228
      %p237 = scmp.eq.s32.totalorder %s49, 0
      %p238 = por %p236, %p237
      %p239 = scmp.ne.s32.totalorder %s227, %s228
      %p240 = scmp.eq.s32.totalorder %s50, 1
      %p241 = por %p239, %p240
      %p243 = scmp.ne.s32.totalorder %s228, %s242
      %p244 = scmp.eq.s32.totalorder %s50, 0
      %p245 = por %p243, %p244
      %s247 = sadd.s32 %s246, 1
      %p250 = scmp.eq.s32.totalorder %s44, 1
      %p251 = scmp.ne.s32.totalorder %s246, %s248
      %p252 = scmp.eq.s32.totalorder %s44, 0
      %p253 = por %p251, %p252
      %p254 = scmp.ne.s32.totalorder %s246, %s248
      %p255 = scmp.eq.s32.totalorder %s49, 1
      %p256 = por %p254, %p255
      %p257 = scmp.ne.s32.totalorder %s248, %s249
      %p258 = scmp.eq.s32.totalorder %s49, 0
      %p259 = por %p257, %p258
      %p260 = scmp.ne.s32.totalorder %s248, %s249
      %p261 = scmp.eq.s32.totalorder %s50, 1
      %p262 = por %p260, %p261
      %p264 = scmp.ne.s32.totalorder %s249, %s263
      %p265 = scmp.eq.s32.totalorder %s50, 0
      %p266 = por %p264, %p265
      %s268 = sadd.s32 %s267, 1
      %p271 = scmp.eq.s32.totalorder %s44, 1
      %p272 = scmp.ne.s32.totalorder %s267, %s269
      %p273 = scmp.eq.s32.totalorder %s44, 0
      %p274 = por %p272, %p273
      %p275 = scmp.ne.s32.totalorder %s267, %s269
      %p276 = scmp.eq.s32.totalorder %s49, 1
      %p277 = por %p275, %p276
      %p278 = scmp.ne.s32.totalorder %s269, %s270
      %p279 = scmp.eq.s32.totalorder %s49, 0
      %p280 = por %p278, %p279
      %p281 = scmp.ne.s32.totalorder %s269, %s270
      %p282 = scmp.eq.s32.totalorder %s50, 1
      %p283 = por %p281, %p282
      %p285 = scmp.ne.s32.totalorder %s270, %s284
      %p286 = scmp.eq.s32.totalorder %s50, 0
      %p287 = por %p285, %p286
      %s289 = sadd.s32 %s288, 1
      %p292 = scmp.eq.s32.totalorder %s44, 1
      %p293 = scmp.ne.s32.totalorder %s288, %s290
      %p294 = scmp.eq.s32.totalorder %s44, 0
      %p295 = por %p293, %p294
      %p296 = scmp.ne.s32.totalorder %s288, %s290
      %p297 = scmp.eq.s32.totalorder %s49, 1
      %p298 = por %p296, %p297
      %p299 = scmp.ne.s32.totalorder %s290, %s291
      %p300 = scmp.eq.s32.totalorder %s49, 0
      %p301 = por %p299, %p300
      %p302 = scmp.ne.s32.totalorder %s290, %s291
      %p303 = scmp.eq.s32.totalorder %s50, 1
      %p304 = por %p302, %p303
      %p306 = scmp.ne.s32.totalorder %s291, %s305
      %p307 = scmp.eq.s32.totalorder %s50, 0
      %p308 = por %p306, %p307
      %s310 = sadd.s32 %s309, 1
      %p313 = scmp.eq.s32.totalorder %s44, 1
      %p314 = scmp.ne.s32.totalorder %s309, %s311
      %p315 = scmp.eq.s32.totalorder %s44, 0
      %p316 = por %p314, %p315
      %p317 = scmp.ne.s32.totalorder %s309, %s311
      %p318 = scmp.eq.s32.totalorder %s49, 1
      %p319 = por %p317, %p318
      %p320 = scmp.ne.s32.totalorder %s311, %s312
      %p321 = scmp.eq.s32.totalorder %s49, 0
      %p322 = por %p320, %p321
      %p323 = scmp.ne.s32.totalorder %s311, %s312
      %p324 = scmp.eq.s32.totalorder %s50, 1
      %p325 = por %p323, %p324
      %p327 = scmp.ne.s32.totalorder %s312, %s326
      %p328 = scmp.eq.s32.totalorder %s50, 0
      %p329 = por %p327, %p328
      %s331 = sadd.s32 %s330, 1
      %p334 = scmp.eq.s32.totalorder %s44, 1
      %p335 = scmp.ne.s32.totalorder %s330, %s332
      %p336 = scmp.eq.s32.totalorder %s44, 0
      %p337 = por %p335, %p336
      %p338 = scmp.ne.s32.totalorder %s330, %s332
      %p339 = scmp.eq.s32.totalorder %s49, 1
      %p340 = por %p338, %p339
      %p341 = scmp.ne.s32.totalorder %s332, %s333
      %p342 = scmp.eq.s32.totalorder %s49, 0
      %p343 = por %p341, %p342
      %p344 = scmp.ne.s32.totalorder %s332, %s333
      %p345 = scmp.eq.s32.totalorder %s50, 1
      %p346 = por %p344, %p345
      %p348 = scmp.ne.s32.totalorder %s333, %s347
      %p349 = scmp.eq.s32.totalorder %s50, 0
      %p350 = por %p348, %p349
      %s352 = sadd.s32 %s351, 1
      %p355 = scmp.eq.s32.totalorder %s44, 1
      %p356 = scmp.ne.s32.totalorder %s351, %s353
      %p357 = scmp.eq.s32.totalorder %s44, 0
      %p358 = por %p356, %p357
      %p359 = scmp.ne.s32.totalorder %s351, %s353
      %p360 = scmp.eq.s32.totalorder %s49, 1
      %p361 = por %p359, %p360
      %p362 = scmp.ne.s32.totalorder %s353, %s354
      %p363 = scmp.eq.s32.totalorder %s49, 0
      %p364 = por %p362, %p363
      %p365 = scmp.ne.s32.totalorder %s353, %s354
      %p366 = scmp.eq.s32.totalorder %s50, 1
      %p367 = por %p365, %p366
      %p369 = scmp.ne.s32.totalorder %s354, %s368
      %p370 = scmp.eq.s32.totalorder %s50, 0
      %p371 = por %p369, %p370
      %s373 = sadd.s32 %s372, 1
      %p376 = scmp.eq.s32.totalorder %s44, 1
      %p377 = scmp.ne.s32.totalorder %s372, %s374
      %p378 = scmp.eq.s32.totalorder %s44, 0
      %p379 = por %p377, %p378
      %p380 = scmp.ne.s32.totalorder %s372, %s374
      %p381 = scmp.eq.s32.totalorder %s49, 1
      %p382 = por %p380, %p381
      %p383 = scmp.ne.s32.totalorder %s374, %s375
      %p384 = scmp.eq.s32.totalorder %s49, 0
      %p385 = por %p383, %p384
      %p386 = scmp.ne.s32.totalorder %s374, %s375
      %p387 = scmp.eq.s32.totalorder %s50, 1
      %p388 = por %p386, %p387
      %p390 = scmp.ne.s32.totalorder %s375, %s389
      %p391 = scmp.eq.s32.totalorder %s50, 0
      %p392 = por %p390, %p391
      %s394 = sadd.s32 %s393, 1
      %p397 = scmp.eq.s32.totalorder %s44, 1
      %p398 = scmp.ne.s32.totalorder %s393, %s395
      %p399 = scmp.eq.s32.totalorder %s44, 0
      %p400 = por %p398, %p399
      %p401 = scmp.ne.s32.totalorder %s393, %s395
      %p402 = scmp.eq.s32.totalorder %s49, 1
      %p403 = por %p401, %p402
      %p404 = scmp.ne.s32.totalorder %s395, %s396
      %p405 = scmp.eq.s32.totalorder %s49, 0
      %p406 = por %p404, %p405
      %p407 = scmp.ne.s32.totalorder %s395, %s396
      %p408 = scmp.eq.s32.totalorder %s50, 1
      %p409 = por %p407, %p408
      %p411 = scmp.ne.s32.totalorder %s396, %s410
      %p412 = scmp.eq.s32.totalorder %s50, 0
      %p413 = por %p411, %p412
      %s415 = sadd.s32 %s414, 1
      %p418 = scmp.eq.s32.totalorder %s44, 1
      %p419 = scmp.ne.s32.totalorder %s414, %s416
      %p420 = scmp.eq.s32.totalorder %s44, 0
      %p421 = por %p419, %p420
      %p422 = scmp.ne.s32.totalorder %s414, %s416
      %p423 = scmp.eq.s32.totalorder %s49, 1
      %p424 = por %p422, %p423
      %p425 = scmp.ne.s32.totalorder %s416, %s417
      %p426 = scmp.eq.s32.totalorder %s49, 0
      %p427 = por %p425, %p426
      %p428 = scmp.ne.s32.totalorder %s416, %s417
      %p429 = scmp.eq.s32.totalorder %s50, 1
      %p430 = por %p428, %p429
      %p432 = scmp.ne.s32.totalorder %s417, %s431
      %p433 = scmp.eq.s32.totalorder %s50, 0
      %p434 = por %p432, %p433
      %s436 = sadd.s32 %s435, 1
      %p439 = scmp.eq.s32.totalorder %s44, 1
      %p440 = scmp.ne.s32.totalorder %s435, %s437
      %p441 = scmp.eq.s32.totalorder %s44, 0
      %p442 = por %p440, %p441
      %p443 = scmp.ne.s32.totalorder %s435, %s437
      %p444 = scmp.eq.s32.totalorder %s49, 1
      %p445 = por %p443, %p444
      %p446 = scmp.ne.s32.totalorder %s437, %s438
      %p447 = scmp.eq.s32.totalorder %s49, 0
      %p448 = por %p446, %p447
      %p449 = scmp.ne.s32.totalorder %s437, %s438
      %p450 = scmp.eq.s32.totalorder %s50, 1
      %p451 = por %p449, %p450
      %p453 = scmp.ne.s32.totalorder %s438, %s452
      %p454 = scmp.eq.s32.totalorder %s50, 0
      %p455 = por %p453, %p454
      %s457 = sadd.s32 %s456, 1
      %p460 = scmp.eq.s32.totalorder %s44, 1
      %p461 = scmp.ne.s32.totalorder %s456, %s458
      %p462 = scmp.eq.s32.totalorder %s44, 0
      %p463 = por %p461, %p462
      %p464 = scmp.ne.s32.totalorder %s456, %s458
      %p465 = scmp.eq.s32.totalorder %s49, 1
      %p466 = por %p464, %p465
      %p467 = scmp.ne.s32.totalorder %s458, %s459
      %p468 = scmp.eq.s32.totalorder %s49, 0
      %p469 = por %p467, %p468
      %p470 = scmp.ne.s32.totalorder %s458, %s459
      %p471 = scmp.eq.s32.totalorder %s50, 1
      %p472 = por %p470, %p471
      %p474 = scmp.ne.s32.totalorder %s459, %s473
      %p475 = scmp.eq.s32.totalorder %s50, 0
      %p476 = por %p474, %p475
      %s478 = sadd.s32 %s477, 1
      %p481 = scmp.eq.s32.totalorder %s44, 1
      %p482 = scmp.ne.s32.totalorder %s477, %s479
      %p483 = scmp.eq.s32.totalorder %s44, 0
      %p484 = por %p482, %p483
      %p485 = scmp.ne.s32.totalorder %s477, %s479
      %p486 = scmp.eq.s32.totalorder %s49, 1
      %p487 = por %p485, %p486
      %p488 = scmp.ne.s32.totalorder %s479, %s480
      %p489 = scmp.eq.s32.totalorder %s49, 0
      %p490 = por %p488, %p489
      %p491 = scmp.ne.s32.totalorder %s479, %s480
      %p492 = scmp.eq.s32.totalorder %s50, 1
      %p493 = por %p491, %p492
      %p495 = scmp.ne.s32.totalorder %s480, %s494
      %p496 = scmp.eq.s32.totalorder %s50, 0
      %p497 = por %p495, %p496
      %s499 = sadd.s32 %s498, 1
      %p502 = scmp.eq.s32.totalorder %s44, 1
      %p503 = scmp.ne.s32.totalorder %s498, %s500
      %p504 = scmp.eq.s32.totalorder %s44, 0
      %p505 = por %p503, %p504
      %p506 = scmp.ne.s32.totalorder %s498, %s500
      %p507 = scmp.eq.s32.totalorder %s49, 1
      %p508 = por %p506, %p507
      %p509 = scmp.ne.s32.totalorder %s500, %s501
      %p510 = scmp.eq.s32.totalorder %s49, 0
      %p511 = por %p509, %p510
      %p512 = scmp.ne.s32.totalorder %s500, %s501
      %p513 = scmp.eq.s32.totalorder %s50, 1
      %p514 = por %p512, %p513
      %p516 = scmp.ne.s32.totalorder %s501, %s515
      %p517 = scmp.eq.s32.totalorder %s50, 0
      %p518 = por %p516, %p517
      %s520 = sadd.s32 %s519, 1
      %p523 = scmp.eq.s32.totalorder %s44, 1
      %p524 = scmp.ne.s32.totalorder %s519, %s521
      %p525 = scmp.eq.s32.totalorder %s44, 0
      %p526 = por %p524, %p525
      %p527 = scmp.ne.s32.totalorder %s519, %s521
      %p528 = scmp.eq.s32.totalorder %s49, 1
      %p529 = por %p527, %p528
      %p530 = scmp.ne.s32.totalorder %s521, %s522
      %p531 = scmp.eq.s32.totalorder %s49, 0
      %p532 = por %p530, %p531
      %p533 = scmp.ne.s32.totalorder %s521, %s522
      %p534 = scmp.eq.s32.totalorder %s50, 1
      %p535 = por %p533, %p534
      %p537 = scmp.ne.s32.totalorder %s522, %s536
      %p538 = scmp.eq.s32.totalorder %s50, 0
      %p539 = por %p537, %p538
      %s541 = sadd.s32 %s540, 1
      %p544 = scmp.eq.s32.totalorder %s44, 1
      %p545 = scmp.ne.s32.totalorder %s540, %s542
      %p546 = scmp.eq.s32.totalorder %s44, 0
      %p547 = por %p545, %p546
      %p548 = scmp.ne.s32.totalorder %s540, %s542
      %p549 = scmp.eq.s32.totalorder %s49, 1
      %p550 = por %p548, %p549
      %p551 = scmp.ne.s32.totalorder %s542, %s543
      %p552 = scmp.eq.s32.totalorder %s49, 0
      %p553 = por %p551, %p552
      %p554 = scmp.ne.s32.totalorder %s542, %s543
      %p555 = scmp.eq.s32.totalorder %s50, 1
      %p556 = por %p554, %p555
      %p558 = scmp.ne.s32.totalorder %s543, %s557
      %p559 = scmp.eq.s32.totalorder %s50, 0
      %p560 = por %p558, %p559
      %s562 = sadd.s32 %s561, 1
      %p565 = scmp.eq.s32.totalorder %s44, 1
      %p566 = scmp.ne.s32.totalorder %s561, %s563
      %p567 = scmp.eq.s32.totalorder %s44, 0
      %p568 = por %p566, %p567
      %p569 = scmp.ne.s32.totalorder %s561, %s563
      %p570 = scmp.eq.s32.totalorder %s49, 1
      %p571 = por %p569, %p570
      %p572 = scmp.ne.s32.totalorder %s563, %s564
      %p573 = scmp.eq.s32.totalorder %s49, 0
      %p574 = por %p572, %p573
      %p575 = scmp.ne.s32.totalorder %s563, %s564
      %p576 = scmp.eq.s32.totalorder %s50, 1
      %p577 = por %p575, %p576
      %p579 = scmp.ne.s32.totalorder %s564, %s578
      %p580 = scmp.eq.s32.totalorder %s50, 0
      %p581 = por %p579, %p580
      %s583 = sadd.s32 %s582, 1
      %p586 = scmp.eq.s32.totalorder %s44, 1
      %p587 = scmp.ne.s32.totalorder %s582, %s584
      %p588 = scmp.eq.s32.totalorder %s44, 0
      %p589 = por %p587, %p588
      %p590 = scmp.ne.s32.totalorder %s582, %s584
      %p591 = scmp.eq.s32.totalorder %s49, 1
      %p592 = por %p590, %p591
      %p593 = scmp.ne.s32.totalorder %s584, %s585
      %p594 = scmp.eq.s32.totalorder %s49, 0
      %p595 = por %p593, %p594
      %p596 = scmp.ne.s32.totalorder %s584, %s585
      %p597 = scmp.eq.s32.totalorder %s50, 1
      %p598 = por %p596, %p597
      %p600 = scmp.ne.s32.totalorder %s585, %s599
      %p601 = scmp.eq.s32.totalorder %s50, 0
      %p602 = por %p600, %p601
      %s604 = sadd.s32 %s603, 1
      %p607 = scmp.eq.s32.totalorder %s44, 1
      %p608 = scmp.ne.s32.totalorder %s603, %s605
      %p609 = scmp.eq.s32.totalorder %s44, 0
      %p610 = por %p608, %p609
      %p611 = scmp.ne.s32.totalorder %s603, %s605
      %p612 = scmp.eq.s32.totalorder %s49, 1
      %p613 = por %p611, %p612
      %p614 = scmp.ne.s32.totalorder %s605, %s606
      %p615 = scmp.eq.s32.totalorder %s49, 0
      %p616 = por %p614, %p615
      %p617 = scmp.ne.s32.totalorder %s605, %s606
      %p618 = scmp.eq.s32.totalorder %s50, 1
      %p619 = por %p617, %p618
      %p621 = scmp.ne.s32.totalorder %s606, %s620
      %p622 = scmp.eq.s32.totalorder %s50, 0
      %p623 = por %p621, %p622
      %s624 = ssub.s32 %s44, %s51
      %p625 = scmp.eq.s32.totalorder %s624, 0
      %s627 = sadd.s32 %s626, 1
      %s628 = scalar_select %p625, %s626, %s627
      %p631 = pneg %p625
      %p632 = scmp.eq.s32.totalorder %s44, 1
      %p633 = por %p631, %p632
      %p634 = scmp.ne.s32.totalorder %s626, %s629
      %p635 = scmp.eq.s32.totalorder %s44, 0
      %p636 = por %p634, %p635
      %p637 = scmp.ne.s32.totalorder %s626, %s629
      %p638 = scmp.eq.s32.totalorder %s49, 1
      %p639 = por %p637, %p638
      %p640 = scmp.ne.s32.totalorder %s629, %s630
      %p641 = scmp.eq.s32.totalorder %s49, 0
      %p642 = por %p640, %p641
      %p643 = scmp.ne.s32.totalorder %s629, %s630
      %p644 = scmp.eq.s32.totalorder %s50, 1
      %p645 = por %p643, %p644
      %p647 = scmp.ne.s32.totalorder %s630, %s646
      %p648 = scmp.eq.s32.totalorder %s50, 0
      %p649 = por %p647, %p648
      %p650 = scmp.le.s32.totalorder 1, %s44
      %p651 = scmp.lt.s32.totalorder %s44, 3
      %p652 = pnand %p650, %p651
      %p653 = pneg %p652
      // Predicated region
      $region9: #{image_forward.1} parent=5 // pred_check
        _
      $region10: #{image_forward.1} parent=5 // pred_check_branch
        %655 = sbr.rel (%p652) target = $region12
      $region11: #{image_forward.1} parent=5 // pred_region
        %s656 = ssub.s32 %s44, 1
        // Predicated region
        $region13: #{image_forward.1} parent=11 // pred_check
          %p657 = pneg %p91
        $region14: #{image_forward.1} parent=11 // pred_check_branch
          %659 = sbr.rel (%p657) target = $region16
        $region15: #{image_forward.1} parent=11 // pred_region
          %s661 = ssub.s32 512, 512
          %662 = vsyncadd [#allocation3], %s661
          %s663 = sshll.u32 [#allocation2], 4
          %s664 = int_to_ptr.vmem [resolvable:$true] %s663
          %669 = dma.hbm_to_vmem [thread:$0]  %s1, 512, %s664, [#allocation3], 128, 128, 8
        $region16: #{image_forward.1} parent=11 // pred_fallthru
          _
        // Predicated region
        $region17: #{image_forward.1} parent=11 // pred_check
          %p670 = pneg %p112
        $region18: #{image_forward.1} parent=11 // pred_check_branch
          %672 = sbr.rel (%p670) target = $region20
        $region19: #{image_forward.1} parent=11 // pred_region
          %s674 = ssub.s32 6144, 6144
          %675 = vsyncadd [#allocation5], %s674
          %s676 = sshll.u32 [#allocation4], 4
          %s677 = int_to_ptr.vmem [resolvable:$true] %s676
          %682 = dma.hbm_to_vmem [thread:$0]  %s2, 6144, %s677, [#allocation5], 256, 256, 16
        $region20: #{image_forward.1} parent=11 // pred_fallthru
          _
        // Predicated region
        $region21: #{image_forward.1} parent=11 // pred_check
          %p683 = pneg %p133
        $region22: #{image_forward.1} parent=11 // pred_check_branch
          %685 = sbr.rel (%p683) target = $region24
        $region23: #{image_forward.1} parent=11 // pred_region
          _
        $region24: #{image_forward.1} parent=11 // pred_fallthru
          _
        // Predicated region
        $region25: #{image_forward.1} parent=11 // pred_check
          %p686 = pneg %p154
        $region26: #{image_forward.1} parent=11 // pred_check_branch
          %688 = sbr.rel (%p686) target = $region28
        $region27: #{image_forward.1} parent=11 // pred_region
          %s690 = ssub.s32 384, 384
          %691 = vsyncadd [#allocation5], %s690
          %s692 = sshll.u32 [#allocation6], 4
          %s693 = int_to_ptr.vmem [resolvable:$true] %s692
          %698 = dma.hbm_to_vmem [thread:$0]  %s4, 384, %s693, [#allocation5], 128, 128, 8
        $region28: #{image_forward.1} parent=11 // pred_fallthru
          _
        // Predicated region
        $region29: #{image_forward.1} parent=11 // pred_check
          %p699 = pneg %p175
        $region30: #{image_forward.1} parent=11 // pred_check_branch
          %701 = sbr.rel (%p699) target = $region32
        $region31: #{image_forward.1} parent=11 // pred_region
          _
        $region32: #{image_forward.1} parent=11 // pred_fallthru
          _
        // Predicated region
        $region33: #{image_forward.1} parent=11 // pred_check
          %p702 = pneg %p196
        $region34: #{image_forward.1} parent=11 // pred_check_branch
          %704 = sbr.rel (%p702) target = $region36
        $region35: #{image_forward.1} parent=11 // pred_region
          %s706 = ssub.s32 256, 256
          %707 = vsyncadd [#allocation8], %s706
          %s708 = sshll.u32 [#allocation7], 4
          %s709 = int_to_ptr.vmem [resolvable:$true] %s708
          %714 = dma.hbm_to_vmem [thread:$0]  %s6, 256, %s709, [#allocation8], 128, 128, 8
        $region36: #{image_forward.1} parent=11 // pred_fallthru
          _
        // Predicated region
        $region37: #{image_forward.1} parent=11 // pred_check
          %p715 = pneg %p217
        $region38: #{image_forward.1} parent=11 // pred_check_branch
          %717 = sbr.rel (%p715) target = $region40
        $region39: #{image_forward.1} parent=11 // pred_region
          %s719 = ssub.s32 24576, 24576
          %720 = vsyncadd [#allocation8], %s719
          %s721 = sshll.u32 [#allocation9], 4
          %s722 = int_to_ptr.vmem [resolvable:$true] %s721
          %727 = dma.hbm_to_vmem [thread:$0]  %s7, 24576, %s722, [#allocation8], 128, 128, 8
        $region40: #{image_forward.1} parent=11 // pred_fallthru
          _
        // Predicated region
        $region41: #{image_forward.1} parent=11 // pred_check
          %p728 = pneg %p238
        $region42: #{image_forward.1} parent=11 // pred_check_branch
          %730 = sbr.rel (%p728) target = $region44
        $region43: #{image_forward.1} parent=11 // pred_region
          %s732 = ssub.s32 64, 64
          %733 = vsyncadd [#allocation11], %s732
          %s734 = sshll.u32 [#allocation10], 4
          %s735 = int_to_ptr.vmem [resolvable:$true] %s734
          %740 = dma.hbm_to_vmem [thread:$0]  %s8, 64, %s735, [#allocation11], 16, 16, 1
        $region44: #{image_forward.1} parent=11 // pred_fallthru
          _
        // Predicated region
        $region45: #{image_forward.1} parent=11 // pred_check
          %p741 = pneg %p259
        $region46: #{image_forward.1} parent=11 // pred_check_branch
          %743 = sbr.rel (%p741) target = $region48
        $region47: #{image_forward.1} parent=11 // pred_region
          %s745 = ssub.s32 256, 256
          %746 = vsyncadd [#allocation11], %s745
          %s747 = sshll.u32 [#allocation12], 4
          %s748 = int_to_ptr.vmem [resolvable:$true] %s747
          %753 = dma.hbm_to_vmem [thread:$0]  %s9, 256, %s748, [#allocation11], 128, 128, 8
        $region48: #{image_forward.1} parent=11 // pred_fallthru
          _
        // Predicated region
        $region49: #{image_forward.1} parent=11 // pred_check
          %p754 = pneg %p280
        $region50: #{image_forward.1} parent=11 // pred_check_branch
          %756 = sbr.rel (%p754) target = $region52
        $region51: #{image_forward.1} parent=11 // pred_region
          %s758 = ssub.s32 12288, 12288
          %759 = vsyncadd [#allocation14], %s758
          %s760 = sshll.u32 [#allocation13], 4
          %s761 = int_to_ptr.vmem [resolvable:$true] %s760
          %766 = dma.hbm_to_vmem [thread:$0]  %s10, 12288, %s761, [#allocation14], 256, 256, 16
        $region52: #{image_forward.1} parent=11 // pred_fallthru
          _
        // Predicated region
        $region53: #{image_forward.1} parent=11 // pred_check
          %p767 = pneg %p301
        $region54: #{image_forward.1} parent=11 // pred_check_branch
          %769 = sbr.rel (%p767) target = $region56
        $region55: #{image_forward.1} parent=11 // pred_region
          %s771 = ssub.s32 32, 32
          %772 = vsyncadd [#allocation14], %s771
          %s774 = sshll.u32 [#allocation15], 4
          %s775 = int_to_ptr.vmem [resolvable:$true] %s774
          %777 = dma.hbm_to_vmem [thread:$0]  %s11, 32, %s775, [#allocation14]
        $region56: #{image_forward.1} parent=11 // pred_fallthru
          _
        // Predicated region
        $region57: #{image_forward.1} parent=11 // pred_check
          %p778 = pneg %p322
        $region58: #{image_forward.1} parent=11 // pred_check_branch
          %780 = sbr.rel (%p778) target = $region60
        $region59: #{image_forward.1} parent=11 // pred_region
          %s782 = ssub.s32 192, 192
          %783 = vsyncadd [#allocation17], %s782
          %s784 = sshll.u32 [#allocation16], 4
          %s785 = int_to_ptr.vmem [resolvable:$true] %s784
          %790 = dma.hbm_to_vmem [thread:$0]  %s12, 192, %s785, [#allocation17], 64, 64, 4
        $region60: #{image_forward.1} parent=11 // pred_fallthru
          _
        // Predicated region
        $region61: #{image_forward.1} parent=11 // pred_check
          %p791 = pneg %p343
        $region62: #{image_forward.1} parent=11 // pred_check_branch
          %793 = sbr.rel (%p791) target = $region64
        $region63: #{image_forward.1} parent=11 // pred_region
          %s795 = ssub.s32 12288, 12288
          %796 = vsyncadd [#allocation17], %s795
          %s797 = sshll.u32 [#allocation18], 4
          %s798 = int_to_ptr.vmem [resolvable:$true] %s797
          %803 = dma.hbm_to_vmem [thread:$0]  %s13, 12288, %s798, [#allocation17], 128, 128, 8
        $region64: #{image_forward.1} parent=11 // pred_fallthru
          _
        // Predicated region
        $region65: #{image_forward.1} parent=11 // pred_check
          %p804 = pneg %p364
        $region66: #{image_forward.1} parent=11 // pred_check_branch
          %806 = sbr.rel (%p804) target = $region68
        $region67: #{image_forward.1} parent=11 // pred_region
          %s808 = ssub.s32 128, 128
          %809 = vsyncadd [#allocation20], %s808
          %s810 = sshll.u32 [#allocation19], 4
          %s811 = int_to_ptr.vmem [resolvable:$true] %s810
          %816 = dma.hbm_to_vmem [thread:$0]  %s14, 128, %s811, [#allocation20], 64, 64, 4
        $region68: #{image_forward.1} parent=11 // pred_fallthru
          _
        // Predicated region
        $region69: #{image_forward.1} parent=11 // pred_check
          %p817 = pneg %p385
        $region70: #{image_forward.1} parent=11 // pred_check_branch
          %819 = sbr.rel (%p817) target = $region72
        $region71: #{image_forward.1} parent=11 // pred_region
          %s821 = ssub.s32 24576, 24576
          %822 = vsyncadd [#allocation20], %s821
          %s823 = sshll.u32 [#allocation21], 4
          %s824 = int_to_ptr.vmem [resolvable:$true] %s823
          %829 = dma.hbm_to_vmem [thread:$0]  %s15, 24576, %s824, [#allocation20], 128, 128, 8
        $region72: #{image_forward.1} parent=11 // pred_fallthru
          _
        // Predicated region
        $region73: #{image_forward.1} parent=11 // pred_check
          %p830 = pneg %p406
        $region74: #{image_forward.1} parent=11 // pred_check_branch
          %832 = sbr.rel (%p830) target = $region76
        $region75: #{image_forward.1} parent=11 // pred_region
          %s834 = ssub.s32 64, 64
          %835 = vsyncadd [#allocation23], %s834
          %s836 = sshll.u32 [#allocation22], 4
          %s837 = int_to_ptr.vmem [resolvable:$true] %s836
          %842 = dma.hbm_to_vmem [thread:$0]  %s16, 64, %s837, [#allocation23], 16, 16, 1
        $region76: #{image_forward.1} parent=11 // pred_fallthru
          _
        // Predicated region
        $region77: #{image_forward.1} parent=11 // pred_check
          %p843 = pneg %p427
        $region78: #{image_forward.1} parent=11 // pred_check_branch
          %845 = sbr.rel (%p843) target = $region80
        $region79: #{image_forward.1} parent=11 // pred_region
          %s847 = ssub.s32 128, 128
          %848 = vsyncadd [#allocation23], %s847
          %s849 = sshll.u32 [#allocation24], 4
          %s850 = int_to_ptr.vmem [resolvable:$true] %s849
          %855 = dma.hbm_to_vmem [thread:$0]  %s17, 128, %s850, [#allocation23], 64, 64, 4
        $region80: #{image_forward.1} parent=11 // pred_fallthru
          _
        // Predicated region
        $region81: #{image_forward.1} parent=11 // pred_check
          %p856 = pneg %p448
        $region82: #{image_forward.1} parent=11 // pred_check_branch
          %858 = sbr.rel (%p856) target = $region84
        $region83: #{image_forward.1} parent=11 // pred_region
          %s860 = ssub.s32 6144, 6144
          %861 = vsyncadd [#allocation26], %s860
          %s862 = sshll.u32 [#allocation25], 4
          %s863 = int_to_ptr.vmem [resolvable:$true] %s862
          %868 = dma.hbm_to_vmem [thread:$0]  %s18, 6144, %s863, [#allocation26], 128, 128, 8
        $region84: #{image_forward.1} parent=11 // pred_fallthru
          _
        // Predicated region
        $region85: #{image_forward.1} parent=11 // pred_check
          %p869 = pneg %p469
        $region86: #{image_forward.1} parent=11 // pred_check_branch
          %871 = sbr.rel (%p869) target = $region88
        $region87: #{image_forward.1} parent=11 // pred_region
          %s873 = ssub.s32 16, 16
          %874 = vsyncadd [#allocation26], %s873
          %s876 = sshll.u32 [#allocation27], 4
          %s877 = int_to_ptr.vmem [resolvable:$true] %s876
          %879 = dma.hbm_to_vmem [thread:$0]  %s19, 16, %s877, [#allocation26]
        $region88: #{image_forward.1} parent=11 // pred_fallthru
          _
        // Predicated region
        $region89: #{image_forward.1} parent=11 // pred_check
          %p880 = pneg %p490
        $region90: #{image_forward.1} parent=11 // pred_check_branch
          %882 = sbr.rel (%p880) target = $region92
        $region91: #{image_forward.1} parent=11 // pred_region
          %s884 = ssub.s32 96, 96
          %885 = vsyncadd [#allocation29], %s884
          %s886 = sshll.u32 [#allocation28], 4
          %s887 = int_to_ptr.vmem [resolvable:$true] %s886
          %892 = dma.hbm_to_vmem [thread:$0]  %s20, 96, %s887, [#allocation29], 32, 32, 2
        $region92: #{image_forward.1} parent=11 // pred_fallthru
          _
        // Predicated region
        $region93: #{image_forward.1} parent=11 // pred_check
          %p893 = pneg %p511
        $region94: #{image_forward.1} parent=11 // pred_check_branch
          %895 = sbr.rel (%p893) target = $region96
        $region95: #{image_forward.1} parent=11 // pred_region
          _
        $region96: #{image_forward.1} parent=11 // pred_fallthru
          _
        // Predicated region
        $region97: #{image_forward.1} parent=11 // pred_check
          %p896 = pneg %p532
        $region98: #{image_forward.1} parent=11 // pred_check_branch
          %898 = sbr.rel (%p896) target = $region100
        $region99: #{image_forward.1} parent=11 // pred_region
          %s900 = ssub.s32 64, 64
          %901 = vsyncadd [#allocation29], %s900
          %s902 = sshll.u32 [#allocation30], 4
          %s903 = int_to_ptr.vmem [resolvable:$true] %s902
          %908 = dma.hbm_to_vmem [thread:$0]  %s22, 64, %s903, [#allocation29], 32, 32, 2
        $region100: #{image_forward.1} parent=11 // pred_fallthru
          _
        // Predicated region
        $region101: #{image_forward.1} parent=11 // pred_check
          %p909 = pneg %p553
        $region102: #{image_forward.1} parent=11 // pred_check_branch
          %911 = sbr.rel (%p909) target = $region104
        $region103: #{image_forward.1} parent=11 // pred_region
          %s913 = ssub.s32 12288, 12288
          %914 = vsyncadd [#allocation32], %s913
          %s915 = sshll.u32 [#allocation31], 4
          %s916 = int_to_ptr.vmem [resolvable:$true] %s915
          %921 = dma.hbm_to_vmem [thread:$0]  %s23, 12288, %s916, [#allocation32], 128, 128, 8
        $region104: #{image_forward.1} parent=11 // pred_fallthru
          _
        // Predicated region
        $region105: #{image_forward.1} parent=11 // pred_check
          %p922 = pneg %p574
        $region106: #{image_forward.1} parent=11 // pred_check_branch
          %924 = sbr.rel (%p922) target = $region108
        $region107: #{image_forward.1} parent=11 // pred_region
          %s926 = ssub.s32 64, 64
          %927 = vsyncadd [#allocation32], %s926
          %s928 = sshll.u32 [#allocation33], 4
          %s929 = int_to_ptr.vmem [resolvable:$true] %s928
          %934 = dma.hbm_to_vmem [thread:$0]  %s24, 64, %s929, [#allocation32], 16, 16, 1
        $region108: #{image_forward.1} parent=11 // pred_fallthru
          _
        // Predicated region
        $region109: #{image_forward.1} parent=11 // pred_check
          %p935 = pneg %p595
        $region110: #{image_forward.1} parent=11 // pred_check_branch
          %937 = sbr.rel (%p935) target = $region112
        $region111: #{image_forward.1} parent=11 // pred_region
          _
        $region112: #{image_forward.1} parent=11 // pred_fallthru
          _
        // Predicated region
        $region113: #{image_forward.1} parent=11 // pred_check
          %p938 = pneg %p616
        $region114: #{image_forward.1} parent=11 // pred_check_branch
          %940 = sbr.rel (%p938) target = $region116
        $region115: #{image_forward.1} parent=11 // pred_region
          _
        $region116: #{image_forward.1} parent=11 // pred_fallthru
          _
      $region12: #{image_forward.1} parent=5 // pred_fallthru
        _
      %p941 = scmp.lt.s32.totalorder %s44, 2
      // Predicated region
      $region117: #{image_forward.1} parent=5 // pred_check
        %p942 = pneg %p941
      $region118: #{image_forward.1} parent=5 // pred_check_branch
        %944 = sbr.rel (%p942) target = $region120
      $region119: #{image_forward.1} parent=5 // pred_region
        // Predicated region
        $region121: #{image_forward.1} parent=119 // pred_check
          %p945 = pneg %p64
        $region122: #{image_forward.1} parent=119 // pred_check_branch
          %947 = sbr.rel (%p945) target = $region124
        $region123: #{image_forward.1} parent=119 // pred_region
          %p948 = scmp.lt.s32.totalorder %s44, 1
          %s949 = scalar_select %p948, %s44, 1
          %s950 = smul.addr %s949, 2
          %s951 = smul.addr %s950, 8
          %s952 = scalar_lea.vmem %s0, %s951
        $region124: #{image_forward.1} parent=119 // pred_fallthru
          _
      $region120: #{image_forward.1} parent=5 // pred_fallthru
        _
      %p953 = scmp.le.s32.totalorder 1, %s44
      %p954 = scmp.lt.s32.totalorder %s44, 3
      %p955 = pnand %p953, %p954
      %p956 = pneg %p955
      // Predicated region
      $region125: #{image_forward.1} parent=5 // pred_check
        _
      $region126: #{image_forward.1} parent=5 // pred_check_branch
        %958 = sbr.rel (%p955) target = $region128
      $region127: #{image_forward.1} parent=5 // pred_region
        %s959 = ssub.s32 %s44, 1
        // Predicated region
        $region129: #{image_forward.1} parent=127 // pred_check
          %p960 = pneg %p91
        $region130: #{image_forward.1} parent=127 // pred_check_branch
          %962 = sbr.rel (%p960) target = $region132
        $region131: #{image_forward.1} parent=127 // pred_region
          %963 = dma.done [#allocation3], 512
        $region132: #{image_forward.1} parent=127 // pred_fallthru
          _
        // Predicated region
        $region133: #{image_forward.1} parent=127 // pred_check
          %p964 = pneg %p112
        $region134: #{image_forward.1} parent=127 // pred_check_branch
          %966 = sbr.rel (%p964) target = $region136
        $region135: #{image_forward.1} parent=127 // pred_region
          %967 = dma.done [#allocation5], 6144
        $region136: #{image_forward.1} parent=127 // pred_fallthru
          _
        // Predicated region
        $region137: #{image_forward.1} parent=127 // pred_check
          %p968 = pneg %p154
        $region138: #{image_forward.1} parent=127 // pred_check_branch
          %970 = sbr.rel (%p968) target = $region140
        $region139: #{image_forward.1} parent=127 // pred_region
          %971 = dma.done [#allocation5], 384
        $region140: #{image_forward.1} parent=127 // pred_fallthru
          _
        // Predicated region
        $region141: #{image_forward.1} parent=127 // pred_check
          %p972 = pneg %p196
        $region142: #{image_forward.1} parent=127 // pred_check_branch
          %974 = sbr.rel (%p972) target = $region144
        $region143: #{image_forward.1} parent=127 // pred_region
          %975 = dma.done [#allocation8], 256
        $region144: #{image_forward.1} parent=127 // pred_fallthru
          _
        // Predicated region
        $region145: #{image_forward.1} parent=127 // pred_check
          %p976 = pneg %p217
        $region146: #{image_forward.1} parent=127 // pred_check_branch
          %978 = sbr.rel (%p976) target = $region148
        $region147: #{image_forward.1} parent=127 // pred_region
          %979 = dma.done [#allocation8], 24576
        $region148: #{image_forward.1} parent=127 // pred_fallthru
          _
        // Predicated region
        $region149: #{image_forward.1} parent=127 // pred_check
          %p980 = pneg %p238
        $region150: #{image_forward.1} parent=127 // pred_check_branch
          %982 = sbr.rel (%p980) target = $region152
        $region151: #{image_forward.1} parent=127 // pred_region
          %983 = dma.done [#allocation11], 64
        $region152: #{image_forward.1} parent=127 // pred_fallthru
          _
        // Predicated region
        $region153: #{image_forward.1} parent=127 // pred_check
          %p984 = pneg %p259
        $region154: #{image_forward.1} parent=127 // pred_check_branch
          %986 = sbr.rel (%p984) target = $region156
        $region155: #{image_forward.1} parent=127 // pred_region
          %987 = dma.done [#allocation11], 256
        $region156: #{image_forward.1} parent=127 // pred_fallthru
          _
        // Predicated region
        $region157: #{image_forward.1} parent=127 // pred_check
          %p988 = pneg %p280
        $region158: #{image_forward.1} parent=127 // pred_check_branch
          %990 = sbr.rel (%p988) target = $region160
        $region159: #{image_forward.1} parent=127 // pred_region
          %991 = dma.done [#allocation14], 12288
        $region160: #{image_forward.1} parent=127 // pred_fallthru
          _
        // Predicated region
        $region161: #{image_forward.1} parent=127 // pred_check
          %p992 = pneg %p301
        $region162: #{image_forward.1} parent=127 // pred_check_branch
          %994 = sbr.rel (%p992) target = $region164
        $region163: #{image_forward.1} parent=127 // pred_region
          %995 = dma.done [#allocation14], 32
        $region164: #{image_forward.1} parent=127 // pred_fallthru
          _
        // Predicated region
        $region165: #{image_forward.1} parent=127 // pred_check
          %p996 = pneg %p322
        $region166: #{image_forward.1} parent=127 // pred_check_branch
          %998 = sbr.rel (%p996) target = $region168
        $region167: #{image_forward.1} parent=127 // pred_region
          %999 = dma.done [#allocation17], 192
        $region168: #{image_forward.1} parent=127 // pred_fallthru
          _
        // Predicated region
        $region169: #{image_forward.1} parent=127 // pred_check
          %p1000 = pneg %p343
        $region170: #{image_forward.1} parent=127 // pred_check_branch
          %1002 = sbr.rel (%p1000) target = $region172
        $region171: #{image_forward.1} parent=127 // pred_region
          %1003 = dma.done [#allocation17], 12288
        $region172: #{image_forward.1} parent=127 // pred_fallthru
          _
        // Predicated region
        $region173: #{image_forward.1} parent=127 // pred_check
          %p1004 = pneg %p364
        $region174: #{image_forward.1} parent=127 // pred_check_branch
          %1006 = sbr.rel (%p1004) target = $region176
        $region175: #{image_forward.1} parent=127 // pred_region
          %1007 = dma.done [#allocation20], 128
        $region176: #{image_forward.1} parent=127 // pred_fallthru
          _
        // Predicated region
        $region177: #{image_forward.1} parent=127 // pred_check
          %p1008 = pneg %p385
        $region178: #{image_forward.1} parent=127 // pred_check_branch
          %1010 = sbr.rel (%p1008) target = $region180
        $region179: #{image_forward.1} parent=127 // pred_region
          %1011 = dma.done [#allocation20], 24576
        $region180: #{image_forward.1} parent=127 // pred_fallthru
          _
        // Predicated region
        $region181: #{image_forward.1} parent=127 // pred_check
          %p1012 = pneg %p406
        $region182: #{image_forward.1} parent=127 // pred_check_branch
          %1014 = sbr.rel (%p1012) target = $region184
        $region183: #{image_forward.1} parent=127 // pred_region
          %1015 = dma.done [#allocation23], 64
        $region184: #{image_forward.1} parent=127 // pred_fallthru
          _
        // Predicated region
        $region185: #{image_forward.1} parent=127 // pred_check
          %p1016 = pneg %p427
        $region186: #{image_forward.1} parent=127 // pred_check_branch
          %1018 = sbr.rel (%p1016) target = $region188
        $region187: #{image_forward.1} parent=127 // pred_region
          %1019 = dma.done [#allocation23], 128
        $region188: #{image_forward.1} parent=127 // pred_fallthru
          _
        // Predicated region
        $region189: #{image_forward.1} parent=127 // pred_check
          %p1020 = pneg %p448
        $region190: #{image_forward.1} parent=127 // pred_check_branch
          %1022 = sbr.rel (%p1020) target = $region192
        $region191: #{image_forward.1} parent=127 // pred_region
          %1023 = dma.done [#allocation26], 6144
        $region192: #{image_forward.1} parent=127 // pred_fallthru
          _
        // Predicated region
        $region193: #{image_forward.1} parent=127 // pred_check
          %p1024 = pneg %p469
        $region194: #{image_forward.1} parent=127 // pred_check_branch
          %1026 = sbr.rel (%p1024) target = $region196
        $region195: #{image_forward.1} parent=127 // pred_region
          %1027 = dma.done [#allocation26], 16
        $region196: #{image_forward.1} parent=127 // pred_fallthru
          _
        // Predicated region
        $region197: #{image_forward.1} parent=127 // pred_check
          %p1028 = pneg %p490
        $region198: #{image_forward.1} parent=127 // pred_check_branch
          %1030 = sbr.rel (%p1028) target = $region200
        $region199: #{image_forward.1} parent=127 // pred_region
          %1031 = dma.done [#allocation29], 96
        $region200: #{image_forward.1} parent=127 // pred_fallthru
          _
        // Predicated region
        $region201: #{image_forward.1} parent=127 // pred_check
          %p1032 = pneg %p532
        $region202: #{image_forward.1} parent=127 // pred_check_branch
          %1034 = sbr.rel (%p1032) target = $region204
        $region203: #{image_forward.1} parent=127 // pred_region
          %1035 = dma.done [#allocation29], 64
        $region204: #{image_forward.1} parent=127 // pred_fallthru
          _
        // Predicated region
        $region205: #{image_forward.1} parent=127 // pred_check
          %p1036 = pneg %p553
        $region206: #{image_forward.1} parent=127 // pred_check_branch
          %1038 = sbr.rel (%p1036) target = $region208
        $region207: #{image_forward.1} parent=127 // pred_region
          %1039 = dma.done [#allocation32], 12288
        $region208: #{image_forward.1} parent=127 // pred_fallthru
          _
        // Predicated region
        $region209: #{image_forward.1} parent=127 // pred_check
          %p1040 = pneg %p574
        $region210: #{image_forward.1} parent=127 // pred_check_branch
          %1042 = sbr.rel (%p1040) target = $region212
        $region211: #{image_forward.1} parent=127 // pred_region
          %1043 = dma.done [#allocation32], 64
        $region212: #{image_forward.1} parent=127 // pred_fallthru
          _
        %p1044 = scmp.lt.s32.totalorder %s49, 1
        %s1045 = scalar_select %p1044, %s49, 1
        %s1046 = smul.addr %s1045, 2
        %s1047 = smul.addr %s1046, 8
        %s1048 = scalar_lea.vmem %s0, %s1047
        %p1049 = pneg %p70
        %p1050 = pneg %p67
        %p1051 = pneg %p91
        %p1052 = pneg %p88
        %p1053 = pneg %p112
        %p1054 = pneg %p109
        %p1055 = pneg %p133
        %p1056 = pneg %p130
        %p1057 = pneg %p154
        %p1058 = pneg %p151
        %p1059 = pneg %p175
        %p1060 = pneg %p172
        %p1061 = pneg %p196
        %p1062 = pneg %p193
        %p1063 = pneg %p217
        %p1064 = pneg %p214
        %p1065 = pneg %p238
        %p1066 = pneg %p235
        %p1067 = pneg %p259
        %p1068 = pneg %p256
        %p1069 = pneg %p280
        %p1070 = pneg %p277
        %p1071 = pneg %p301
        %p1072 = pneg %p298
        %p1073 = pneg %p322
        %p1074 = pneg %p319
        %p1075 = pneg %p343
        %p1076 = pneg %p340
        %p1077 = pneg %p364
        %p1078 = pneg %p361
        %p1079 = pneg %p385
        %p1080 = pneg %p382
        %p1081 = pneg %p406
        %p1082 = pneg %p403
        %p1083 = pneg %p427
        %p1084 = pneg %p424
        %p1085 = pneg %p448
        %p1086 = pneg %p445
        %p1087 = pneg %p469
        %p1088 = pneg %p466
        %p1089 = pneg %p490
        %p1090 = pneg %p487
        %p1091 = pneg %p511
        %p1092 = pneg %p508
        %p1093 = pneg %p532
        %p1094 = pneg %p529
        %p1095 = pneg %p553
        %p1096 = pneg %p550
        %p1097 = pneg %p574
        %p1098 = pneg %p571
        %p1099 = pneg %p595
        %p1100 = pneg %p592
        %p1101 = pneg %p616
        %p1102 = pneg %p613
        %p1103 = pneg %p642
        %p1104 = pneg %p639
        %p1105 = scmp.lt.s32.totalorder %s49, 1
        %s1106 = scalar_select %p1105, %s49, 1
        %s1107 = smul.addr %s1106, 2
        %s1108 = scalar_lea.vmem %s27, %s1107
        %p1109 = scmp.lt.s32.totalorder %s49, 1
        %s1110 = scalar_select %p1109, %s49, 1
        %s1111 = smul.addr %s1110, 2
        %s1112 = smul.addr %s1111, 8
        %s1113 = scalar_lea.vmem %s0, %s1112
        %p1114 = scmp.lt.s32.totalorder %s49, 1
        %s1115 = scalar_select %p1114, %s49, 1
        %s1116 = smul.addr %s1115, 2
        %s1117 = scalar_lea.vmem %s27, %s1116
        %v1118 = vld [vmem:[%s1113] sm:$0xff]
        %v1119 = vld [vmem:[%s1113 + $0x8] sm:$0xff]
        %v1120 = vld [vmem:[#allocation2] sm:$0xff]
        %v1121 = vld [vmem:[#allocation2 + $0x8] sm:$0xff]
        %s1122 = scalar_lea.vmem [#allocation2], 16
        %v1123 = vld [vmem:[%s1122] sm:$0xff]
        %v1124 = vld [vmem:[%s1122 + $0x8] sm:$0xff]
        %v1125 = vld [vmem:[%s3] sm:$0x3]
        %vm1126 = vcmask 130048
        %v1128 = vsel %vm1126, %v1120, 0
        %v1131 = vsel %vm1126, %v1121, 0
        %1133 = vmatprep.subr.mxu0 0.0
        %1134 = vmatpush1.msra.mxu0 0.0
        %1135 = vmatprep.subr.mxu0 0.0
        %1136 = vmatpush1.msra.mxu0 0.0
        %1137 = vmatprep.subr.mxu0 0.0
        %1138 = vmatpush1.msra.mxu0 0.0
        %1139 = vmatprep.subr.mxu0 0.0
        %1140 = vmatpush1.msra.mxu0 0.0
        %1141 = vmatprep.subr.mxu0 0.0
        %1142 = vmatpush1.msra.mxu0 0.0
        %1143 = vmatprep.subr.mxu0 0.0
        %1144 = vmatpush1.msra.mxu0 0.0
        %1145 = vmatprep.subr.mxu0 0.0
        %1146 = vmatpush1.msra.mxu0 0.0
        %1147 = vmatprep.subr.mxu0 0.0
        %1148 = vmatpush1.msra.mxu0 0.0
        %1149 = vmatprep.subr.mxu0 0.0
        %1150 = vmatpush1.msra.mxu0 0.0
        %1151 = vmatprep.subr.mxu0 0.0
        %1152 = vmatpush1.msra.mxu0 0.0
        %1153 = vmatprep.subr.mxu0 0.0
        %1154 = vmatpush1.msra.mxu0 0.0
        %1155 = vmatprep.subr.mxu0 0.0
        %1156 = vmatpush1.msra.mxu0 0.0
        %1157 = vmatprep.subr.mxu0 0.0
        %1158 = vmatpush1.msra.mxu0 0.0
        %1159 = vmatprep.subr.mxu0 0.0
        %1160 = vmatpush1.msra.mxu0 0.0
        %1161 = vmatprep.subr.mxu0 0.0
        %1162 = vmatpush1.msra.mxu0 %v1119
        %1163 = vmatprep.subr.mxu0 0.0
        %1164 = vmatpush1.msra.mxu0 %v1118
        %1165 = vmatprep.subr.mxu0 0.0
        %1166 = vmatpush2.msra.mxu0 0.0
        %1167 = vmatprep.subr.mxu0 0.0
        %1168 = vmatpush2.msra.mxu0 0.0
        %1169 = vmatprep.subr.mxu0 0.0
        %1170 = vmatpush2.msra.mxu0 0.0
        %1171 = vmatprep.subr.mxu0 0.0
        %1172 = vmatpush2.msra.mxu0 0.0
        %1173 = vmatprep.subr.mxu0 0.0
        %1174 = vmatpush2.msra.mxu0 0.0
        %1175 = vmatprep.subr.mxu0 0.0
        %1176 = vmatpush2.msra.mxu0 0.0
        %1177 = vmatprep.subr.mxu0 0.0
        %1178 = vmatpush2.msra.mxu0 0.0
        %1179 = vmatprep.subr.mxu0 0.0
        %1180 = vmatpush2.msra.mxu0 0.0
        %1181 = vmatprep.subr.mxu0 0.0
        %1182 = vmatpush2.msra.mxu0 0.0
        %1183 = vmatprep.subr.mxu0 0.0
        %1184 = vmatpush2.msra.mxu0 0.0
        %1185 = vmatprep.subr.mxu0 0.0
        %1186 = vmatpush2.msra.mxu0 0.0
        %1187 = vmatprep.subr.mxu0 0.0
        %1188 = vmatpush2.msra.mxu0 0.0
        %1189 = vmatprep.subr.mxu0 0.0
        %1190 = vmatpush2.msra.mxu0 0.0
        %1191 = vmatprep.subr.mxu0 0.0
        %1192 = vmatpush2.msra.mxu0 0.0
        %1193 = vmatprep.subr.mxu0 0.0
        %1194 = vmatpush2.msra.mxu0 0.0
        %1195 = vmatprep.subr.mxu0 0.0
        %1196 = vmatpush2.msra.mxu0 0.0
        %1197 = vmatprep.mubr.f32.mxu0 0.0
        %1198 = vmatmul.mubr.f32.gmra.mxu0 %v1128
        %v1199 = vpop.f32.mrf.mxu0
        %v1200 = vadd.f32 0.0, %v1199
        %v1201 = vpop.f32.mrf.mxu0
        %1202 = vmatprep.mubr.f32.mxu0 0.0
        %1203 = vmatmul.mubr.f32.gmra.mxu0 %v1131
        %v1204 = vpop.f32.mrf.mxu0
        %v1205 = vadd.f32 0.0, %v1204
        %v1206 = vpop.f32.mrf.mxu0
        %1207 = vdwg.mxu0
        %v1209 = vsel %vm1126, %v1123, 0
        %v1212 = vsel %vm1126, %v1124, 0
        %1214 = vmatprep.subr.mxu0 0.0
        %1215 = vmatpush1.msra.mxu0 0.0
        %1216 = vmatprep.subr.mxu0 0.0
        %1217 = vmatpush1.msra.mxu0 0.0
        %1218 = vmatprep.subr.mxu0 0.0
        %1219 = vmatpush1.msra.mxu0 0.0
        %1220 = vmatprep.subr.mxu0 0.0
        %1221 = vmatpush1.msra.mxu0 0.0
        %1222 = vmatprep.subr.mxu0 0.0
        %1223 = vmatpush1.msra.mxu0 0.0
        %1224 = vmatprep.subr.mxu0 0.0
        %1225 = vmatpush1.msra.mxu0 0.0
        %1226 = vmatprep.subr.mxu0 0.0
        %1227 = vmatpush1.msra.mxu0 0.0
        %1228 = vmatprep.subr.mxu0 0.0
        %1229 = vmatpush1.msra.mxu0 0.0
        %1230 = vmatprep.subr.mxu0 0.0
        %1231 = vmatpush1.msra.mxu0 0.0
        %1232 = vmatprep.subr.mxu0 0.0
        %1233 = vmatpush1.msra.mxu0 0.0
        %1234 = vmatprep.subr.mxu0 0.0
        %1235 = vmatpush1.msra.mxu0 0.0
        %1236 = vmatprep.subr.mxu0 0.0
        %1237 = vmatpush1.msra.mxu0 0.0
        %1238 = vmatprep.subr.mxu0 0.0
        %1239 = vmatpush1.msra.mxu0 0.0
        %1240 = vmatprep.subr.mxu0 0.0
        %1241 = vmatpush1.msra.mxu0 0.0
        %1242 = vmatprep.subr.mxu0 0.0
        %1243 = vmatpush1.msra.mxu0 %v1119
        %1244 = vmatprep.subr.mxu0 0.0
        %1245 = vmatpush1.msra.mxu0 %v1118
        %1246 = vmatprep.subr.mxu0 0.0
        %1247 = vmatpush2.msra.mxu0 0.0
        %1248 = vmatprep.subr.mxu0 0.0
        %1249 = vmatpush2.msra.mxu0 0.0
        %1250 = vmatprep.subr.mxu0 0.0
        %1251 = vmatpush2.msra.mxu0 0.0
        %1252 = vmatprep.subr.mxu0 0.0
        %1253 = vmatpush2.msra.mxu0 0.0
        %1254 = vmatprep.subr.mxu0 0.0
        %1255 = vmatpush2.msra.mxu0 0.0
        %1256 = vmatprep.subr.mxu0 0.0
        %1257 = vmatpush2.msra.mxu0 0.0
        %1258 = vmatprep.subr.mxu0 0.0
        %1259 = vmatpush2.msra.mxu0 0.0
        %1260 = vmatprep.subr.mxu0 0.0
        %1261 = vmatpush2.msra.mxu0 0.0
        %1262 = vmatprep.subr.mxu0 0.0
        %1263 = vmatpush2.msra.mxu0 0.0
        %1264 = vmatprep.subr.mxu0 0.0
        %1265 = vmatpush2.msra.mxu0 0.0
        %1266 = vmatprep.subr.mxu0 0.0
        %1267 = vmatpush2.msra.mxu0 0.0
        %1268 = vmatprep.subr.mxu0 0.0
        %1269 = vmatpush2.msra.mxu0 0.0
        %1270 = vmatprep.subr.mxu0 0.0
        %1271 = vmatpush2.msra.mxu0 0.0
        %1272 = vmatprep.subr.mxu0 0.0
        %1273 = vmatpush2.msra.mxu0 0.0
        %1274 = vmatprep.subr.mxu0 0.0
        %1275 = vmatpush2.msra.mxu0 0.0
        %1276 = vmatprep.subr.mxu0 0.0
        %1277 = vmatpush2.msra.mxu0 0.0
        %1278 = vmatprep.mubr.f32.mxu0 0.0
        %1279 = vmatmul.mubr.f32.gmra.mxu0 %v1209
        %v1280 = vpop.f32.mrf.mxu0
        %v1281 = vadd.f32 0.0, %v1280
        %v1282 = vpop.f32.mrf.mxu0
        %1283 = vmatprep.mubr.f32.mxu0 0.0
        %1284 = vmatmul.mubr.f32.gmra.mxu0 %v1212
        %v1285 = vpop.f32.mrf.mxu0
        %v1286 = vadd.f32 0.0, %v1285
        %v1287 = vpop.f32.mrf.mxu0
        %1288 = vdwg.mxu0
        %v1289 = vld [vmem:[#allocation4] sm:$0xff]
        %v1290 = vld [vmem:[#allocation4 + $0x8] sm:$0xff]
        %v1291 = vld [vmem:[#allocation4 + $0x10] sm:$0xff]
        %v1292 = vld [vmem:[#allocation4 + $0x18] sm:$0xff]
        %v1293 = vld [vmem:[#allocation4 + $0x20] sm:$0xff]
        %v1294 = vld [vmem:[#allocation4 + $0x28] sm:$0xff]
        %v1295 = vld [vmem:[#allocation4 + $0x30] sm:$0xff]
        %v1296 = vld [vmem:[#allocation4 + $0x38] sm:$0xff]
        %v1297 = vld [vmem:[#allocation4 + $0x40] sm:$0xff]
        %v1298 = vld [vmem:[#allocation4 + $0x48] sm:$0xff]
        %v1299 = vld [vmem:[#allocation4 + $0x50] sm:$0xff]
        %v1300 = vld [vmem:[#allocation4 + $0x58] sm:$0xff]
        %v1301 = vld [vmem:[#allocation4 + $0x60] sm:$0xff]
        %v1302 = vld [vmem:[#allocation4 + $0x68] sm:$0xff]
        %v1303 = vld [vmem:[#allocation4 + $0x70] sm:$0xff]
        %v1304 = vld [vmem:[#allocation4 + $0x78] sm:$0xff]
        %s1305 = scalar_lea.vmem [#allocation4], 128
        %v1306 = vld [vmem:[%s1305] sm:$0xff]
        %v1307 = vld [vmem:[%s1305 + $0x8] sm:$0xff]
        %v1308 = vld [vmem:[%s1305 + $0x10] sm:$0xff]
        %v1309 = vld [vmem:[%s1305 + $0x18] sm:$0xff]
        %v1310 = vld [vmem:[%s1305 + $0x20] sm:$0xff]
        %v1311 = vld [vmem:[%s1305 + $0x28] sm:$0xff]
        %v1312 = vld [vmem:[%s1305 + $0x30] sm:$0xff]
        %v1313 = vld [vmem:[%s1305 + $0x38] sm:$0xff]
        %v1314 = vld [vmem:[%s1305 + $0x40] sm:$0xff]
        %v1315 = vld [vmem:[%s1305 + $0x48] sm:$0xff]
        %v1316 = vld [vmem:[%s1305 + $0x50] sm:$0xff]
        %v1317 = vld [vmem:[%s1305 + $0x58] sm:$0xff]
        %v1318 = vld [vmem:[%s1305 + $0x60] sm:$0xff]
        %v1319 = vld [vmem:[%s1305 + $0x68] sm:$0xff]
        %v1320 = vld [vmem:[%s1305 + $0x70] sm:$0xff]
        %v1321 = vld [vmem:[%s1305 + $0x78] sm:$0xff]
        %vm1322 = vcmask 523264
        %v1324 = vsel %vm1322, %v1118, 0
        %v1327 = vsel %vm1322, %v1119, 0
        %1329 = vmatprep.subr.mxu0 0.0
        %1330 = vmatpush1.msra.mxu0 0.0
        %1331 = vmatprep.subr.mxu0 0.0
        %1332 = vmatpush1.msra.mxu0 0.0
        %1333 = vmatprep.subr.mxu0 0.0
        %1334 = vmatpush1.msra.mxu0 0.0
        %1335 = vmatprep.subr.mxu0 0.0
        %1336 = vmatpush1.msra.mxu0 0.0
        %1337 = vmatprep.subr.mxu0 0.0
        %1338 = vmatpush1.msra.mxu0 0.0
        %1339 = vmatprep.subr.mxu0 0.0
        %1340 = vmatpush1.msra.mxu0 0.0
        %1341 = vmatprep.subr.mxu0 0.0
        %1342 = vmatpush1.msra.mxu0 0.0
        %1343 = vmatprep.subr.mxu0 0.0
        %1344 = vmatpush1.msra.mxu0 0.0
        %1345 = vmatprep.subr.mxu0 %v1321
        %1346 = vmatpush1.msra.mxu0 %v1320
        %1347 = vmatprep.subr.mxu0 %v1319
        %1348 = vmatpush1.msra.mxu0 %v1318
        %1349 = vmatprep.subr.mxu0 %v1317
        %1350 = vmatpush1.msra.mxu0 %v1316
        %1351 = vmatprep.subr.mxu0 %v1315
        %1352 = vmatpush1.msra.mxu0 %v1314
        %1353 = vmatprep.subr.mxu0 %v1313
        %1354 = vmatpush1.msra.mxu0 %v1312
        %1355 = vmatprep.subr.mxu0 %v1311
        %1356 = vmatpush1.msra.mxu0 %v1310
        %1357 = vmatprep.subr.mxu0 %v1309
        %1358 = vmatpush1.msra.mxu0 %v1308
        %1359 = vmatprep.subr.mxu0 %v1307
        %1360 = vmatpush1.msra.mxu0 %v1306
        %1361 = vmatprep.subr.mxu0 0.0
        %1362 = vmatpush2.msra.mxu0 0.0
        %1363 = vmatprep.subr.mxu0 0.0
        %1364 = vmatpush2.msra.mxu0 0.0
        %1365 = vmatprep.subr.mxu0 0.0
        %1366 = vmatpush2.msra.mxu0 0.0
        %1367 = vmatprep.subr.mxu0 0.0
        %1368 = vmatpush2.msra.mxu0 0.0
        %1369 = vmatprep.subr.mxu0 0.0
        %1370 = vmatpush2.msra.mxu0 0.0
        %1371 = vmatprep.subr.mxu0 0.0
        %1372 = vmatpush2.msra.mxu0 0.0
        %1373 = vmatprep.subr.mxu0 0.0
        %1374 = vmatpush2.msra.mxu0 0.0
        %1375 = vmatprep.subr.mxu0 0.0
        %1376 = vmatpush2.msra.mxu0 0.0
        %1377 = vmatprep.subr.mxu0 0.0
        %1378 = vmatpush2.msra.mxu0 0.0
        %1379 = vmatprep.subr.mxu0 0.0
        %1380 = vmatpush2.msra.mxu0 0.0
        %1381 = vmatprep.subr.mxu0 0.0
        %1382 = vmatpush2.msra.mxu0 0.0
        %1383 = vmatprep.subr.mxu0 0.0
        %1384 = vmatpush2.msra.mxu0 0.0
        %1385 = vmatprep.subr.mxu0 0.0
        %1386 = vmatpush2.msra.mxu0 0.0
        %1387 = vmatprep.subr.mxu0 0.0
        %1388 = vmatpush2.msra.mxu0 0.0
        %1389 = vmatprep.subr.mxu0 0.0
        %1390 = vmatpush2.msra.mxu0 0.0
        %1391 = vmatprep.subr.mxu0 0.0
        %1392 = vmatpush2.msra.mxu0 0.0
        %1393 = vmatprep.mubr.f32.mxu0 0.0
        %1394 = vmatmul.mubr.f32.gmra.mxu0 %v1324
        %v1395 = vpop.f32.mrf.mxu0
        %v1396 = vadd.f32 0.0, %v1395
        %v1397 = vpop.f32.mrf.mxu0
        %v1398 = vadd.f32 0.0, %v1397
        %1399 = vmatprep.mubr.f32.mxu0 0.0
        %1400 = vmatmul.mubr.f32.gmra.mxu0 %v1327
        %v1401 = vpop.f32.mrf.mxu0
        %v1402 = vadd.f32 0.0, %v1401
        %v1403 = vpop.f32.mrf.mxu0
        %v1404 = vadd.f32 0.0, %v1403
        %1405 = vdwg.mxu0
        %v1407 = vsel %vm1322, %v1200, 0
        %v1410 = vsel %vm1322, %v1205, 0
        %1412 = vmatprep.subr.mxu0 0.0
        %1413 = vmatpush1.msra.mxu0 0.0
        %1414 = vmatprep.subr.mxu0 0.0
        %1415 = vmatpush1.msra.mxu0 0.0
        %1416 = vmatprep.subr.mxu0 0.0
        %1417 = vmatpush1.msra.mxu0 0.0
        %1418 = vmatprep.subr.mxu0 0.0
        %1419 = vmatpush1.msra.mxu0 0.0
        %1420 = vmatprep.subr.mxu0 0.0
        %1421 = vmatpush1.msra.mxu0 0.0
        %1422 = vmatprep.subr.mxu0 0.0
        %1423 = vmatpush1.msra.mxu0 0.0
        %1424 = vmatprep.subr.mxu0 0.0
        %1425 = vmatpush1.msra.mxu0 0.0
        %1426 = vmatprep.subr.mxu0 0.0
        %1427 = vmatpush1.msra.mxu0 0.0
        %1428 = vmatprep.subr.mxu0 %v1304
        %1429 = vmatpush1.msra.mxu0 %v1303
        %1430 = vmatprep.subr.mxu0 %v1302
        %1431 = vmatpush1.msra.mxu0 %v1301
        %1432 = vmatprep.subr.mxu0 %v1300
        %1433 = vmatpush1.msra.mxu0 %v1299
        %1434 = vmatprep.subr.mxu0 %v1298
        %1435 = vmatpush1.msra.mxu0 %v1297
        %1436 = vmatprep.subr.mxu0 %v1296
        %1437 = vmatpush1.msra.mxu0 %v1295
        %1438 = vmatprep.subr.mxu0 %v1294
        %1439 = vmatpush1.msra.mxu0 %v1293
        %1440 = vmatprep.subr.mxu0 %v1292
        %1441 = vmatpush1.msra.mxu0 %v1291
        %1442 = vmatprep.subr.mxu0 %v1290
        %1443 = vmatpush1.msra.mxu0 %v1289
        %1444 = vmatprep.subr.mxu0 0.0
        %1445 = vmatpush2.msra.mxu0 0.0
        %1446 = vmatprep.subr.mxu0 0.0
        %1447 = vmatpush2.msra.mxu0 0.0
        %1448 = vmatprep.subr.mxu0 0.0
        %1449 = vmatpush2.msra.mxu0 0.0
        %1450 = vmatprep.subr.mxu0 0.0
        %1451 = vmatpush2.msra.mxu0 0.0
        %1452 = vmatprep.subr.mxu0 0.0
        %1453 = vmatpush2.msra.mxu0 0.0
        %1454 = vmatprep.subr.mxu0 0.0
        %1455 = vmatpush2.msra.mxu0 0.0
        %1456 = vmatprep.subr.mxu0 0.0
        %1457 = vmatpush2.msra.mxu0 0.0
        %1458 = vmatprep.subr.mxu0 0.0
        %1459 = vmatpush2.msra.mxu0 0.0
        %1460 = vmatprep.subr.mxu0 0.0
        %1461 = vmatpush2.msra.mxu0 0.0
        %1462 = vmatprep.subr.mxu0 0.0
        %1463 = vmatpush2.msra.mxu0 0.0
        %1464 = vmatprep.subr.mxu0 0.0
        %1465 = vmatpush2.msra.mxu0 0.0
        %1466 = vmatprep.subr.mxu0 0.0
        %1467 = vmatpush2.msra.mxu0 0.0
        %1468 = vmatprep.subr.mxu0 0.0
        %1469 = vmatpush2.msra.mxu0 0.0
        %1470 = vmatprep.subr.mxu0 0.0
        %1471 = vmatpush2.msra.mxu0 0.0
        %1472 = vmatprep.subr.mxu0 0.0
        %1473 = vmatpush2.msra.mxu0 0.0
        %1474 = vmatprep.subr.mxu0 0.0
        %1475 = vmatpush2.msra.mxu0 0.0
        %1476 = vmatprep.mubr.f32.mxu0 0.0
        %1477 = vmatmul.mubr.f32.gmra.mxu0 %v1407
        %v1478 = vpop.f32.mrf.mxu0
        %v1479 = vadd.f32 %v1396, %v1478
        %v1480 = vpop.f32.mrf.mxu0
        %v1481 = vadd.f32 %v1398, %v1480
        %1482 = vmatprep.mubr.f32.mxu0 0.0
        %1483 = vmatmul.mubr.f32.gmra.mxu0 %v1410
        %v1484 = vpop.f32.mrf.mxu0
        %v1485 = vadd.f32 %v1402, %v1484
        %v1486 = vpop.f32.mrf.mxu0
        %v1487 = vadd.f32 %v1404, %v1486
        %1488 = vdwg.mxu0
        %s1489 = scalar_lea.vmem [#allocation4], 256
        %v1490 = vld [vmem:[%s1489] sm:$0xff]
        %v1491 = vld [vmem:[%s1489 + $0x8] sm:$0xff]
        %v1492 = vld [vmem:[%s1489 + $0x10] sm:$0xff]
        %v1493 = vld [vmem:[%s1489 + $0x18] sm:$0xff]
        %v1494 = vld [vmem:[%s1489 + $0x20] sm:$0xff]
        %v1495 = vld [vmem:[%s1489 + $0x28] sm:$0xff]
        %v1496 = vld [vmem:[%s1489 + $0x30] sm:$0xff]
        %v1497 = vld [vmem:[%s1489 + $0x38] sm:$0xff]
        %v1498 = vld [vmem:[%s1489 + $0x40] sm:$0xff]
        %v1499 = vld [vmem:[%s1489 + $0x48] sm:$0xff]
        %v1500 = vld [vmem:[%s1489 + $0x50] sm:$0xff]
        %v1501 = vld [vmem:[%s1489 + $0x58] sm:$0xff]
        %v1502 = vld [vmem:[%s1489 + $0x60] sm:$0xff]
        %v1503 = vld [vmem:[%s1489 + $0x68] sm:$0xff]
        %v1504 = vld [vmem:[%s1489 + $0x70] sm:$0xff]
        %v1505 = vld [vmem:[%s1489 + $0x78] sm:$0xff]
        %v1507 = vsel %vm1322, %v1281, 0
        %v1510 = vsel %vm1322, %v1286, 0
        %1512 = vmatprep.subr.mxu0 0.0
        %1513 = vmatpush1.msra.mxu0 0.0
        %1514 = vmatprep.subr.mxu0 0.0
        %1515 = vmatpush1.msra.mxu0 0.0
        %1516 = vmatprep.subr.mxu0 0.0
        %1517 = vmatpush1.msra.mxu0 0.0
        %1518 = vmatprep.subr.mxu0 0.0
        %1519 = vmatpush1.msra.mxu0 0.0
        %1520 = vmatprep.subr.mxu0 0.0
        %1521 = vmatpush1.msra.mxu0 0.0
        %1522 = vmatprep.subr.mxu0 0.0
        %1523 = vmatpush1.msra.mxu0 0.0
        %1524 = vmatprep.subr.mxu0 0.0
        %1525 = vmatpush1.msra.mxu0 0.0
        %1526 = vmatprep.subr.mxu0 0.0
        %1527 = vmatpush1.msra.mxu0 0.0
        %1528 = vmatprep.subr.mxu0 %v1505
        %1529 = vmatpush1.msra.mxu0 %v1504
        %1530 = vmatprep.subr.mxu0 %v1503
        %1531 = vmatpush1.msra.mxu0 %v1502
        %1532 = vmatprep.subr.mxu0 %v1501
        %1533 = vmatpush1.msra.mxu0 %v1500
        %1534 = vmatprep.subr.mxu0 %v1499
        %1535 = vmatpush1.msra.mxu0 %v1498
        %1536 = vmatprep.subr.mxu0 %v1497
        %1537 = vmatpush1.msra.mxu0 %v1496
        %1538 = vmatprep.subr.mxu0 %v1495
        %1539 = vmatpush1.msra.mxu0 %v1494
        %1540 = vmatprep.subr.mxu0 %v1493
        %1541 = vmatpush1.msra.mxu0 %v1492
        %1542 = vmatprep.subr.mxu0 %v1491
        %1543 = vmatpush1.msra.mxu0 %v1490
        %1544 = vmatprep.subr.mxu0 0.0
        %1545 = vmatpush2.msra.mxu0 0.0
        %1546 = vmatprep.subr.mxu0 0.0
        %1547 = vmatpush2.msra.mxu0 0.0
        %1548 = vmatprep.subr.mxu0 0.0
        %1549 = vmatpush2.msra.mxu0 0.0
        %1550 = vmatprep.subr.mxu0 0.0
        %1551 = vmatpush2.msra.mxu0 0.0
        %1552 = vmatprep.subr.mxu0 0.0
        %1553 = vmatpush2.msra.mxu0 0.0
        %1554 = vmatprep.subr.mxu0 0.0
        %1555 = vmatpush2.msra.mxu0 0.0
        %1556 = vmatprep.subr.mxu0 0.0
        %1557 = vmatpush2.msra.mxu0 0.0
        %1558 = vmatprep.subr.mxu0 0.0
        %1559 = vmatpush2.msra.mxu0 0.0
        %1560 = vmatprep.subr.mxu0 0.0
        %1561 = vmatpush2.msra.mxu0 0.0
        %1562 = vmatprep.subr.mxu0 0.0
        %1563 = vmatpush2.msra.mxu0 0.0
        %1564 = vmatprep.subr.mxu0 0.0
        %1565 = vmatpush2.msra.mxu0 0.0
        %1566 = vmatprep.subr.mxu0 0.0
        %1567 = vmatpush2.msra.mxu0 0.0
        %1568 = vmatprep.subr.mxu0 0.0
        %1569 = vmatpush2.msra.mxu0 0.0
        %1570 = vmatprep.subr.mxu0 0.0
        %1571 = vmatpush2.msra.mxu0 0.0
        %1572 = vmatprep.subr.mxu0 0.0
        %1573 = vmatpush2.msra.mxu0 0.0
        %1574 = vmatprep.subr.mxu0 0.0
        %1575 = vmatpush2.msra.mxu0 0.0
        %1576 = vmatprep.mubr.f32.mxu0 0.0
        %1577 = vmatmul.mubr.f32.gmra.mxu0 %v1507
        %v1578 = vpop.f32.mrf.mxu0
        %v1579 = vadd.f32 0.0, %v1578
        %v1580 = vpop.f32.mrf.mxu0
        %v1581 = vadd.f32 0.0, %v1580
        %1582 = vmatprep.mubr.f32.mxu0 0.0
        %1583 = vmatmul.mubr.f32.gmra.mxu0 %v1510
        %v1584 = vpop.f32.mrf.mxu0
        %v1585 = vadd.f32 0.0, %v1584
        %v1586 = vpop.f32.mrf.mxu0
        %v1587 = vadd.f32 0.0, %v1586
        %1588 = vdwg.mxu0
        %v1589 = vadd.f32 %v1479, %v1579
        %v1590 = vadd.f32 %v1481, %v1581
        %v1591 = vadd.f32 %v1485, %v1585
        %v1592 = vadd.f32 %v1487, %v1587
        %v1594 = vlaneseq
        %v1595 = vshrl.u32 %v1594, 7
        %v1596 = vsub.s32 0, %v1595
        %v1597 = vrot.slane %v1125, %v1596
        %v1598 = vlaneseq
        %v1599 = vshrl.u32 %v1598, 7
        %v1600 = vsub.s32 1, %v1599
        %v1601 = vrot.slane %v1125, %v1600
        %v1604 = vadd.f32 %v1589, %v1597
        %v1605 = vadd.f32 %v1590, %v1601
        %v1606 = vadd.f32 %v1591, %v1597
        %v1607 = vadd.f32 %v1592, %v1601
        %v1608 = vld [vmem:[#allocation6] sm:$0xff]
        %v1610 = vsel %vm1126, %v1608, 0
        %1612 = vmatprep.subr.mxu0 0.0
        %1613 = vmatpush1.msra.mxu0 0.0
        %1614 = vmatprep.subr.mxu0 0.0
        %1615 = vmatpush1.msra.mxu0 0.0
        %1616 = vmatprep.subr.mxu0 0.0
        %1617 = vmatpush1.msra.mxu0 0.0
        %1618 = vmatprep.subr.mxu0 0.0
        %1619 = vmatpush1.msra.mxu0 0.0
        %1620 = vmatprep.subr.mxu0 0.0
        %1621 = vmatpush1.msra.mxu0 0.0
        %1622 = vmatprep.subr.mxu0 0.0
        %1623 = vmatpush1.msra.mxu0 0.0
        %1624 = vmatprep.subr.mxu0 0.0
        %1625 = vmatpush1.msra.mxu0 0.0
        %1626 = vmatprep.subr.mxu0 0.0
        %1627 = vmatpush1.msra.mxu0 0.0
        %1628 = vmatprep.subr.mxu0 0.0
        %1629 = vmatpush1.msra.mxu0 0.0
        %1630 = vmatprep.subr.mxu0 0.0
        %1631 = vmatpush1.msra.mxu0 0.0
        %1632 = vmatprep.subr.mxu0 0.0
        %1633 = vmatpush1.msra.mxu0 0.0
        %1634 = vmatprep.subr.mxu0 0.0
        %1635 = vmatpush1.msra.mxu0 0.0
        %1636 = vmatprep.subr.mxu0 0.0
        %1637 = vmatpush1.msra.mxu0 0.0
        %1638 = vmatprep.subr.mxu0 0.0
        %1639 = vmatpush1.msra.mxu0 0.0
        %1640 = vmatprep.subr.mxu0 %v1607
        %1641 = vmatpush1.msra.mxu0 %v1606
        %1642 = vmatprep.subr.mxu0 %v1605
        %1643 = vmatpush1.msra.mxu0 %v1604
        %1644 = vmatprep.subr.mxu0 0.0
        %1645 = vmatpush2.msra.mxu0 0.0
        %1646 = vmatprep.subr.mxu0 0.0
        %1647 = vmatpush2.msra.mxu0 0.0
        %1648 = vmatprep.subr.mxu0 0.0
        %1649 = vmatpush2.msra.mxu0 0.0
        %1650 = vmatprep.subr.mxu0 0.0
        %1651 = vmatpush2.msra.mxu0 0.0
        %1652 = vmatprep.subr.mxu0 0.0
        %1653 = vmatpush2.msra.mxu0 0.0
        %1654 = vmatprep.subr.mxu0 0.0
        %1655 = vmatpush2.msra.mxu0 0.0
        %1656 = vmatprep.subr.mxu0 0.0
        %1657 = vmatpush2.msra.mxu0 0.0
        %1658 = vmatprep.subr.mxu0 0.0
        %1659 = vmatpush2.msra.mxu0 0.0
        %1660 = vmatprep.subr.mxu0 0.0
        %1661 = vmatpush2.msra.mxu0 0.0
        %1662 = vmatprep.subr.mxu0 0.0
        %1663 = vmatpush2.msra.mxu0 0.0
        %1664 = vmatprep.subr.mxu0 0.0
        %1665 = vmatpush2.msra.mxu0 0.0
        %1666 = vmatprep.subr.mxu0 0.0
        %1667 = vmatpush2.msra.mxu0 0.0
        %1668 = vmatprep.subr.mxu0 0.0
        %1669 = vmatpush2.msra.mxu0 0.0
        %1670 = vmatprep.subr.mxu0 0.0
        %1671 = vmatpush2.msra.mxu0 0.0
        %1672 = vmatprep.subr.mxu0 0.0
        %1673 = vmatpush2.msra.mxu0 0.0
        %1674 = vmatprep.subr.mxu0 0.0
        %1675 = vmatpush2.msra.mxu0 0.0
        %1676 = vmatprep.mubr.f32.mxu0 0.0
        %1677 = vmatmul.mubr.f32.gmra.mxu0 %v1610
        %v1678 = vpop.f32.mrf.mxu0
        %v1679 = vadd.f32 0.0, %v1678
        %v1680 = vpop.f32.mrf.mxu0
        %v1681 = vadd.f32 0.0, %v1680
        %1682 = vdwg.mxu0
        %s1683 = scalar_lea.vmem [#allocation6], 8
        %v1684 = vld [vmem:[%s1683] sm:$0xff]
        %v1686 = vsel %vm1126, %v1684, 0
        %1688 = vmatprep.subr.mxu0 0.0
        %1689 = vmatpush1.msra.mxu0 0.0
        %1690 = vmatprep.subr.mxu0 0.0
        %1691 = vmatpush1.msra.mxu0 0.0
        %1692 = vmatprep.subr.mxu0 0.0
        %1693 = vmatpush1.msra.mxu0 0.0
        %1694 = vmatprep.subr.mxu0 0.0
        %1695 = vmatpush1.msra.mxu0 0.0
        %1696 = vmatprep.subr.mxu0 0.0
        %1697 = vmatpush1.msra.mxu0 0.0
        %1698 = vmatprep.subr.mxu0 0.0
        %1699 = vmatpush1.msra.mxu0 0.0
        %1700 = vmatprep.subr.mxu0 0.0
        %1701 = vmatpush1.msra.mxu0 0.0
        %1702 = vmatprep.subr.mxu0 0.0
        %1703 = vmatpush1.msra.mxu0 0.0
        %1704 = vmatprep.subr.mxu0 0.0
        %1705 = vmatpush1.msra.mxu0 0.0
        %1706 = vmatprep.subr.mxu0 0.0
        %1707 = vmatpush1.msra.mxu0 0.0
        %1708 = vmatprep.subr.mxu0 0.0
        %1709 = vmatpush1.msra.mxu0 0.0
        %1710 = vmatprep.subr.mxu0 0.0
        %1711 = vmatpush1.msra.mxu0 0.0
        %1712 = vmatprep.subr.mxu0 0.0
        %1713 = vmatpush1.msra.mxu0 0.0
        %1714 = vmatprep.subr.mxu0 0.0
        %1715 = vmatpush1.msra.mxu0 0.0
        %1716 = vmatprep.subr.mxu0 %v1607
        %1717 = vmatpush1.msra.mxu0 %v1606
        %1718 = vmatprep.subr.mxu0 %v1605
        %1719 = vmatpush1.msra.mxu0 %v1604
        %1720 = vmatprep.subr.mxu0 0.0
        %1721 = vmatpush2.msra.mxu0 0.0
        %1722 = vmatprep.subr.mxu0 0.0
        %1723 = vmatpush2.msra.mxu0 0.0
        %1724 = vmatprep.subr.mxu0 0.0
        %1725 = vmatpush2.msra.mxu0 0.0
        %1726 = vmatprep.subr.mxu0 0.0
        %1727 = vmatpush2.msra.mxu0 0.0
        %1728 = vmatprep.subr.mxu0 0.0
        %1729 = vmatpush2.msra.mxu0 0.0
        %1730 = vmatprep.subr.mxu0 0.0
        %1731 = vmatpush2.msra.mxu0 0.0
        %1732 = vmatprep.subr.mxu0 0.0
        %1733 = vmatpush2.msra.mxu0 0.0
        %1734 = vmatprep.subr.mxu0 0.0
        %1735 = vmatpush2.msra.mxu0 0.0
        %1736 = vmatprep.subr.mxu0 0.0
        %1737 = vmatpush2.msra.mxu0 0.0
        %1738 = vmatprep.subr.mxu0 0.0
        %1739 = vmatpush2.msra.mxu0 0.0
        %1740 = vmatprep.subr.mxu0 0.0
        %1741 = vmatpush2.msra.mxu0 0.0
        %1742 = vmatprep.subr.mxu0 0.0
        %1743 = vmatpush2.msra.mxu0 0.0
        %1744 = vmatprep.subr.mxu0 0.0
        %1745 = vmatpush2.msra.mxu0 0.0
        %1746 = vmatprep.subr.mxu0 0.0
        %1747 = vmatpush2.msra.mxu0 0.0
        %1748 = vmatprep.subr.mxu0 0.0
        %1749 = vmatpush2.msra.mxu0 0.0
        %1750 = vmatprep.subr.mxu0 0.0
        %1751 = vmatpush2.msra.mxu0 0.0
        %1752 = vmatprep.mubr.f32.mxu0 0.0
        %1753 = vmatmul.mubr.f32.gmra.mxu0 %v1686
        %v1754 = vpop.f32.mrf.mxu0
        %v1755 = vadd.f32 0.0, %v1754
        %v1756 = vpop.f32.mrf.mxu0
        %v1757 = vadd.f32 0.0, %v1756
        %1758 = vdwg.mxu0
        %v1759 = vmax.f32 %v1679, %v1755
        %v1760 = vmax.f32 %v1681, %v1757
        %s1761 = scalar_lea.vmem [#allocation6], 16
        %v1762 = vld [vmem:[%s1761] sm:$0xff]
        %v1764 = vsel %vm1126, %v1762, 0
        %1766 = vmatprep.subr.mxu0 0.0
        %1767 = vmatpush1.msra.mxu0 0.0
        %1768 = vmatprep.subr.mxu0 0.0
        %1769 = vmatpush1.msra.mxu0 0.0
        %1770 = vmatprep.subr.mxu0 0.0
        %1771 = vmatpush1.msra.mxu0 0.0
        %1772 = vmatprep.subr.mxu0 0.0
        %1773 = vmatpush1.msra.mxu0 0.0
        %1774 = vmatprep.subr.mxu0 0.0
        %1775 = vmatpush1.msra.mxu0 0.0
        %1776 = vmatprep.subr.mxu0 0.0
        %1777 = vmatpush1.msra.mxu0 0.0
        %1778 = vmatprep.subr.mxu0 0.0
        %1779 = vmatpush1.msra.mxu0 0.0
        %1780 = vmatprep.subr.mxu0 0.0
        %1781 = vmatpush1.msra.mxu0 0.0
        %1782 = vmatprep.subr.mxu0 0.0
        %1783 = vmatpush1.msra.mxu0 0.0
        %1784 = vmatprep.subr.mxu0 0.0
        %1785 = vmatpush1.msra.mxu0 0.0
        %1786 = vmatprep.subr.mxu0 0.0
        %1787 = vmatpush1.msra.mxu0 0.0
        %1788 = vmatprep.subr.mxu0 0.0
        %1789 = vmatpush1.msra.mxu0 0.0
        %1790 = vmatprep.subr.mxu0 0.0
        %1791 = vmatpush1.msra.mxu0 0.0
        %1792 = vmatprep.subr.mxu0 0.0
        %1793 = vmatpush1.msra.mxu0 0.0
        %1794 = vmatprep.subr.mxu0 %v1607
        %1795 = vmatpush1.msra.mxu0 %v1606
        %1796 = vmatprep.subr.mxu0 %v1605
        %1797 = vmatpush1.msra.mxu0 %v1604
        %1798 = vmatprep.subr.mxu0 0.0
        %1799 = vmatpush2.msra.mxu0 0.0
        %1800 = vmatprep.subr.mxu0 0.0
        %1801 = vmatpush2.msra.mxu0 0.0
        %1802 = vmatprep.subr.mxu0 0.0
        %1803 = vmatpush2.msra.mxu0 0.0
        %1804 = vmatprep.subr.mxu0 0.0
        %1805 = vmatpush2.msra.mxu0 0.0
        %1806 = vmatprep.subr.mxu0 0.0
        %1807 = vmatpush2.msra.mxu0 0.0
        %1808 = vmatprep.subr.mxu0 0.0
        %1809 = vmatpush2.msra.mxu0 0.0
        %1810 = vmatprep.subr.mxu0 0.0
        %1811 = vmatpush2.msra.mxu0 0.0
        %1812 = vmatprep.subr.mxu0 0.0
        %1813 = vmatpush2.msra.mxu0 0.0
        %1814 = vmatprep.subr.mxu0 0.0
        %1815 = vmatpush2.msra.mxu0 0.0
        %1816 = vmatprep.subr.mxu0 0.0
        %1817 = vmatpush2.msra.mxu0 0.0
        %1818 = vmatprep.subr.mxu0 0.0
        %1819 = vmatpush2.msra.mxu0 0.0
        %1820 = vmatprep.subr.mxu0 0.0
        %1821 = vmatpush2.msra.mxu0 0.0
        %1822 = vmatprep.subr.mxu0 0.0
        %1823 = vmatpush2.msra.mxu0 0.0
        %1824 = vmatprep.subr.mxu0 0.0
        %1825 = vmatpush2.msra.mxu0 0.0
        %1826 = vmatprep.subr.mxu0 0.0
        %1827 = vmatpush2.msra.mxu0 0.0
        %1828 = vmatprep.subr.mxu0 0.0
        %1829 = vmatpush2.msra.mxu0 0.0
        %1830 = vmatprep.mubr.f32.mxu0 0.0
        %1831 = vmatmul.mubr.f32.gmra.mxu0 %v1764
        %v1832 = vpop.f32.mrf.mxu0
        %v1833 = vadd.f32 0.0, %v1832
        %v1834 = vpop.f32.mrf.mxu0
        %v1835 = vadd.f32 0.0, %v1834
        %1836 = vdwg.mxu0
        %v1837 = vmax.f32 %v1759, %v1833
        %v1838 = vmax.f32 %v1760, %v1835
        %v1839 = vld [vmem:[%s5] sm:$0xff]
        %v1840 = vld [vmem:[%s5 + $0x8] sm:$0xff]
        %v1841 = vld [vmem:[%s5 + $0x10] sm:$0xff]
        %v1842 = vld [vmem:[%s5 + $0x18] sm:$0xff]
        %v1843 = vld [vmem:[%s5 + $0x20] sm:$0xff]
        %v1844 = vld [vmem:[%s5 + $0x28] sm:$0xff]
        %v1845 = vld [vmem:[%s5 + $0x30] sm:$0xff]
        %v1846 = vld [vmem:[%s5 + $0x38] sm:$0xff]
        %v1847 = vld [vmem:[%s5 + $0x40] sm:$0xff]
        %v1848 = vld [vmem:[%s5 + $0x48] sm:$0xff]
        %v1849 = vld [vmem:[%s5 + $0x50] sm:$0xff]
        %v1850 = vld [vmem:[%s5 + $0x58] sm:$0xff]
        %v1851 = vld [vmem:[%s5 + $0x60] sm:$0xff]
        %v1852 = vld [vmem:[%s5 + $0x68] sm:$0xff]
        %v1853 = vld [vmem:[%s5 + $0x70] sm:$0xff]
        %v1854 = vld [vmem:[%s5 + $0x78] sm:$0xff]
        %v1855 = vld [vmem:[%s5 + $0x80] sm:$0xff]
        %v1856 = vld [vmem:[%s5 + $0x88] sm:$0xff]
        %v1857 = vld [vmem:[%s5 + $0x90] sm:$0xff]
        %v1858 = vld [vmem:[%s5 + $0x98] sm:$0xff]
        %v1859 = vld [vmem:[%s5 + $0xa0] sm:$0xff]
        %v1860 = vld [vmem:[%s5 + $0xa8] sm:$0xff]
        %v1861 = vld [vmem:[%s5 + $0xb0] sm:$0xff]
        %v1862 = vld [vmem:[%s5 + $0xb8] sm:$0xff]
        %v1863 = vld [vmem:[%s5 + $0xc0] sm:$0xff]
        %v1864 = vld [vmem:[%s5 + $0xc8] sm:$0xff]
        %v1865 = vld [vmem:[%s5 + $0xd0] sm:$0xff]
        %v1866 = vld [vmem:[%s5 + $0xd8] sm:$0xff]
        %v1867 = vld [vmem:[%s5 + $0xe0] sm:$0xff]
        %v1868 = vld [vmem:[%s5 + $0xe8] sm:$0xff]
        %v1869 = vld [vmem:[%s5 + $0xf0] sm:$0xff]
        %v1870 = vld [vmem:[%s5 + $0xf8] sm:$0xff]
        %1871 = vmatprep.subr.mxu0 0.0
        %1872 = vmatpush1.msra.mxu0 %v1854
        %1873 = vmatprep.subr.mxu0 0.0
        %1874 = vmatpush1.msra.mxu0 %v1853
        %1875 = vmatprep.subr.mxu0 0.0
        %1876 = vmatpush1.msra.mxu0 %v1852
        %1877 = vmatprep.subr.mxu0 0.0
        %1878 = vmatpush1.msra.mxu0 %v1851
        %1879 = vmatprep.subr.mxu0 0.0
        %1880 = vmatpush1.msra.mxu0 %v1850
        %1881 = vmatprep.subr.mxu0 0.0
        %1882 = vmatpush1.msra.mxu0 %v1849
        %1883 = vmatprep.subr.mxu0 0.0
        %1884 = vmatpush1.msra.mxu0 %v1848
        %1885 = vmatprep.subr.mxu0 0.0
        %1886 = vmatpush1.msra.mxu0 %v1847
        %1887 = vmatprep.subr.mxu0 0.0
        %1888 = vmatpush1.msra.mxu0 %v1846
        %1889 = vmatprep.subr.mxu0 0.0
        %1890 = vmatpush1.msra.mxu0 %v1845
        %1891 = vmatprep.subr.mxu0 0.0
        %1892 = vmatpush1.msra.mxu0 %v1844
        %1893 = vmatprep.subr.mxu0 0.0
        %1894 = vmatpush1.msra.mxu0 %v1843
        %1895 = vmatprep.subr.mxu0 0.0
        %1896 = vmatpush1.msra.mxu0 %v1842
        %1897 = vmatprep.subr.mxu0 0.0
        %1898 = vmatpush1.msra.mxu0 %v1841
        %1899 = vmatprep.subr.mxu0 0.0
        %1900 = vmatpush1.msra.mxu0 %v1840
        %1901 = vmatprep.subr.mxu0 0.0
        %1902 = vmatpush1.msra.mxu0 %v1839
        %1903 = vmatprep.subr.mxu0 0.0
        %1904 = vmatpush2.msra.mxu0 %v1870
        %1905 = vmatprep.subr.mxu0 0.0
        %1906 = vmatpush2.msra.mxu0 %v1869
        %1907 = vmatprep.subr.mxu0 0.0
        %1908 = vmatpush2.msra.mxu0 %v1868
        %1909 = vmatprep.subr.mxu0 0.0
        %1910 = vmatpush2.msra.mxu0 %v1867
        %1911 = vmatprep.subr.mxu0 0.0
        %1912 = vmatpush2.msra.mxu0 %v1866
        %1913 = vmatprep.subr.mxu0 0.0
        %1914 = vmatpush2.msra.mxu0 %v1865
        %1915 = vmatprep.subr.mxu0 0.0
        %1916 = vmatpush2.msra.mxu0 %v1864
        %1917 = vmatprep.subr.mxu0 0.0
        %1918 = vmatpush2.msra.mxu0 %v1863
        %1919 = vmatprep.subr.mxu0 0.0
        %1920 = vmatpush2.msra.mxu0 %v1862
        %1921 = vmatprep.subr.mxu0 0.0
        %1922 = vmatpush2.msra.mxu0 %v1861
        %1923 = vmatprep.subr.mxu0 0.0
        %1924 = vmatpush2.msra.mxu0 %v1860
        %1925 = vmatprep.subr.mxu0 0.0
        %1926 = vmatpush2.msra.mxu0 %v1859
        %1927 = vmatprep.subr.mxu0 0.0
        %1928 = vmatpush2.msra.mxu0 %v1858
        %1929 = vmatprep.subr.mxu0 0.0
        %1930 = vmatpush2.msra.mxu0 %v1857
        %1931 = vmatprep.subr.mxu0 0.0
        %1932 = vmatpush2.msra.mxu0 %v1856
        %1933 = vmatprep.subr.mxu0 0.0
        %1934 = vmatpush2.msra.mxu0 %v1855
        %1935 = vmatprep.mubr.f32.mxu0 %v1838
        %1936 = vmatmul.mubr.f32.gmra.mxu0 %v1837
        %v1937 = vpop.f32.mrf.mxu0
        %v1938 = vadd.f32 0.0, %v1937
        %v1939 = vpop.f32.mrf.mxu0
        %1940 = vdwg.mxu0
        %s1941 = scalar_lea.vmem %s5, 256
        %v1942 = vld [vmem:[%s1941] sm:$0xff]
        %v1943 = vld [vmem:[%s1941 + $0x8] sm:$0xff]
        %v1944 = vld [vmem:[%s1941 + $0x10] sm:$0xff]
        %v1945 = vld [vmem:[%s1941 + $0x18] sm:$0xff]
        %v1946 = vld [vmem:[%s1941 + $0x20] sm:$0xff]
        %v1947 = vld [vmem:[%s1941 + $0x28] sm:$0xff]
        %v1948 = vld [vmem:[%s1941 + $0x30] sm:$0xff]
        %v1949 = vld [vmem:[%s1941 + $0x38] sm:$0xff]
        %v1950 = vld [vmem:[%s1941 + $0x40] sm:$0xff]
        %v1951 = vld [vmem:[%s1941 + $0x48] sm:$0xff]
        %v1952 = vld [vmem:[%s1941 + $0x50] sm:$0xff]
        %v1953 = vld [vmem:[%s1941 + $0x58] sm:$0xff]
        %v1954 = vld [vmem:[%s1941 + $0x60] sm:$0xff]
        %v1955 = vld [vmem:[%s1941 + $0x68] sm:$0xff]
        %v1956 = vld [vmem:[%s1941 + $0x70] sm:$0xff]
        %v1957 = vld [vmem:[%s1941 + $0x78] sm:$0xff]
        %v1958 = vld [vmem:[%s1941 + $0x80] sm:$0xff]
        %v1959 = vld [vmem:[%s1941 + $0x88] sm:$0xff]
        %v1960 = vld [vmem:[%s1941 + $0x90] sm:$0xff]
        %v1961 = vld [vmem:[%s1941 + $0x98] sm:$0xff]
        %v1962 = vld [vmem:[%s1941 + $0xa0] sm:$0xff]
        %v1963 = vld [vmem:[%s1941 + $0xa8] sm:$0xff]
        %v1964 = vld [vmem:[%s1941 + $0xb0] sm:$0xff]
        %v1965 = vld [vmem:[%s1941 + $0xb8] sm:$0xff]
        %v1966 = vld [vmem:[%s1941 + $0xc0] sm:$0xff]
        %v1967 = vld [vmem:[%s1941 + $0xc8] sm:$0xff]
        %v1968 = vld [vmem:[%s1941 + $0xd0] sm:$0xff]
        %v1969 = vld [vmem:[%s1941 + $0xd8] sm:$0xff]
        %v1970 = vld [vmem:[%s1941 + $0xe0] sm:$0xff]
        %v1971 = vld [vmem:[%s1941 + $0xe8] sm:$0xff]
        %v1972 = vld [vmem:[%s1941 + $0xf0] sm:$0xff]
        %v1973 = vld [vmem:[%s1941 + $0xf8] sm:$0xff]
        %1974 = vmatprep.subr.mxu0 0.0
        %1975 = vmatpush1.msra.mxu0 %v1957
        %1976 = vmatprep.subr.mxu0 0.0
        %1977 = vmatpush1.msra.mxu0 %v1956
        %1978 = vmatprep.subr.mxu0 0.0
        %1979 = vmatpush1.msra.mxu0 %v1955
        %1980 = vmatprep.subr.mxu0 0.0
        %1981 = vmatpush1.msra.mxu0 %v1954
        %1982 = vmatprep.subr.mxu0 0.0
        %1983 = vmatpush1.msra.mxu0 %v1953
        %1984 = vmatprep.subr.mxu0 0.0
        %1985 = vmatpush1.msra.mxu0 %v1952
        %1986 = vmatprep.subr.mxu0 0.0
        %1987 = vmatpush1.msra.mxu0 %v1951
        %1988 = vmatprep.subr.mxu0 0.0
        %1989 = vmatpush1.msra.mxu0 %v1950
        %1990 = vmatprep.subr.mxu0 0.0
        %1991 = vmatpush1.msra.mxu0 %v1949
        %1992 = vmatprep.subr.mxu0 0.0
        %1993 = vmatpush1.msra.mxu0 %v1948
        %1994 = vmatprep.subr.mxu0 0.0
        %1995 = vmatpush1.msra.mxu0 %v1947
        %1996 = vmatprep.subr.mxu0 0.0
        %1997 = vmatpush1.msra.mxu0 %v1946
        %1998 = vmatprep.subr.mxu0 0.0
        %1999 = vmatpush1.msra.mxu0 %v1945
        %2000 = vmatprep.subr.mxu0 0.0
        %2001 = vmatpush1.msra.mxu0 %v1944
        %2002 = vmatprep.subr.mxu0 0.0
        %2003 = vmatpush1.msra.mxu0 %v1943
        %2004 = vmatprep.subr.mxu0 0.0
        %2005 = vmatpush1.msra.mxu0 %v1942
        %2006 = vmatprep.subr.mxu0 0.0
        %2007 = vmatpush2.msra.mxu0 %v1973
        %2008 = vmatprep.subr.mxu0 0.0
        %2009 = vmatpush2.msra.mxu0 %v1972
        %2010 = vmatprep.subr.mxu0 0.0
        %2011 = vmatpush2.msra.mxu0 %v1971
        %2012 = vmatprep.subr.mxu0 0.0
        %2013 = vmatpush2.msra.mxu0 %v1970
        %2014 = vmatprep.subr.mxu0 0.0
        %2015 = vmatpush2.msra.mxu0 %v1969
        %2016 = vmatprep.subr.mxu0 0.0
        %2017 = vmatpush2.msra.mxu0 %v1968
        %2018 = vmatprep.subr.mxu0 0.0
        %2019 = vmatpush2.msra.mxu0 %v1967
        %2020 = vmatprep.subr.mxu0 0.0
        %2021 = vmatpush2.msra.mxu0 %v1966
        %2022 = vmatprep.subr.mxu0 0.0
        %2023 = vmatpush2.msra.mxu0 %v1965
        %2024 = vmatprep.subr.mxu0 0.0
        %2025 = vmatpush2.msra.mxu0 %v1964
        %2026 = vmatprep.subr.mxu0 0.0
        %2027 = vmatpush2.msra.mxu0 %v1963
        %2028 = vmatprep.subr.mxu0 0.0
        %2029 = vmatpush2.msra.mxu0 %v1962
        %2030 = vmatprep.subr.mxu0 0.0
        %2031 = vmatpush2.msra.mxu0 %v1961
        %2032 = vmatprep.subr.mxu0 0.0
        %2033 = vmatpush2.msra.mxu0 %v1960
        %2034 = vmatprep.subr.mxu0 0.0
        %2035 = vmatpush2.msra.mxu0 %v1959
        %2036 = vmatprep.subr.mxu0 0.0
        %2037 = vmatpush2.msra.mxu0 %v1958
        %2038 = vmatprep.mubr.f32.mxu0 %v1838
        %2039 = vmatmul.mubr.f32.gmra.mxu0 %v1837
        %v2040 = vpop.f32.mrf.mxu0
        %v2041 = vadd.f32 0.0, %v2040
        %v2042 = vpop.f32.mrf.mxu0
        %2043 = vdwg.mxu0
        %v2044 = vmax.f32 %v1938, %v2041
        %s2045 = scalar_lea.vmem %s5, 512
        %v2046 = vld [vmem:[%s2045] sm:$0xff]
        %v2047 = vld [vmem:[%s2045 + $0x8] sm:$0xff]
        %v2048 = vld [vmem:[%s2045 + $0x10] sm:$0xff]
        %v2049 = vld [vmem:[%s2045 + $0x18] sm:$0xff]
        %v2050 = vld [vmem:[%s2045 + $0x20] sm:$0xff]
        %v2051 = vld [vmem:[%s2045 + $0x28] sm:$0xff]
        %v2052 = vld [vmem:[%s2045 + $0x30] sm:$0xff]
        %v2053 = vld [vmem:[%s2045 + $0x38] sm:$0xff]
        %v2054 = vld [vmem:[%s2045 + $0x40] sm:$0xff]
        %v2055 = vld [vmem:[%s2045 + $0x48] sm:$0xff]
        %v2056 = vld [vmem:[%s2045 + $0x50] sm:$0xff]
        %v2057 = vld [vmem:[%s2045 + $0x58] sm:$0xff]
        %v2058 = vld [vmem:[%s2045 + $0x60] sm:$0xff]
        %v2059 = vld [vmem:[%s2045 + $0x68] sm:$0xff]
        %v2060 = vld [vmem:[%s2045 + $0x70] sm:$0xff]
        %v2061 = vld [vmem:[%s2045 + $0x78] sm:$0xff]
        %v2062 = vld [vmem:[%s2045 + $0x80] sm:$0xff]
        %v2063 = vld [vmem:[%s2045 + $0x88] sm:$0xff]
        %v2064 = vld [vmem:[%s2045 + $0x90] sm:$0xff]
        %v2065 = vld [vmem:[%s2045 + $0x98] sm:$0xff]
        %v2066 = vld [vmem:[%s2045 + $0xa0] sm:$0xff]
        %v2067 = vld [vmem:[%s2045 + $0xa8] sm:$0xff]
        %v2068 = vld [vmem:[%s2045 + $0xb0] sm:$0xff]
        %v2069 = vld [vmem:[%s2045 + $0xb8] sm:$0xff]
        %v2070 = vld [vmem:[%s2045 + $0xc0] sm:$0xff]
        %v2071 = vld [vmem:[%s2045 + $0xc8] sm:$0xff]
        %v2072 = vld [vmem:[%s2045 + $0xd0] sm:$0xff]
        %v2073 = vld [vmem:[%s2045 + $0xd8] sm:$0xff]
        %v2074 = vld [vmem:[%s2045 + $0xe0] sm:$0xff]
        %v2075 = vld [vmem:[%s2045 + $0xe8] sm:$0xff]
        %v2076 = vld [vmem:[%s2045 + $0xf0] sm:$0xff]
        %v2077 = vld [vmem:[%s2045 + $0xf8] sm:$0xff]
        %2078 = vmatprep.subr.mxu0 0.0
        %2079 = vmatpush1.msra.mxu0 %v2061
        %2080 = vmatprep.subr.mxu0 0.0
        %2081 = vmatpush1.msra.mxu0 %v2060
        %2082 = vmatprep.subr.mxu0 0.0
        %2083 = vmatpush1.msra.mxu0 %v2059
        %2084 = vmatprep.subr.mxu0 0.0
        %2085 = vmatpush1.msra.mxu0 %v2058
        %2086 = vmatprep.subr.mxu0 0.0
        %2087 = vmatpush1.msra.mxu0 %v2057
        %2088 = vmatprep.subr.mxu0 0.0
        %2089 = vmatpush1.msra.mxu0 %v2056
        %2090 = vmatprep.subr.mxu0 0.0
        %2091 = vmatpush1.msra.mxu0 %v2055
        %2092 = vmatprep.subr.mxu0 0.0
        %2093 = vmatpush1.msra.mxu0 %v2054
        %2094 = vmatprep.subr.mxu0 0.0
        %2095 = vmatpush1.msra.mxu0 %v2053
        %2096 = vmatprep.subr.mxu0 0.0
        %2097 = vmatpush1.msra.mxu0 %v2052
        %2098 = vmatprep.subr.mxu0 0.0
        %2099 = vmatpush1.msra.mxu0 %v2051
        %2100 = vmatprep.subr.mxu0 0.0
        %2101 = vmatpush1.msra.mxu0 %v2050
        %2102 = vmatprep.subr.mxu0 0.0
        %2103 = vmatpush1.msra.mxu0 %v2049
        %2104 = vmatprep.subr.mxu0 0.0
        %2105 = vmatpush1.msra.mxu0 %v2048
        %2106 = vmatprep.subr.mxu0 0.0
        %2107 = vmatpush1.msra.mxu0 %v2047
        %2108 = vmatprep.subr.mxu0 0.0
        %2109 = vmatpush1.msra.mxu0 %v2046
        %2110 = vmatprep.subr.mxu0 0.0
        %2111 = vmatpush2.msra.mxu0 %v2077
        %2112 = vmatprep.subr.mxu0 0.0
        %2113 = vmatpush2.msra.mxu0 %v2076
        %2114 = vmatprep.subr.mxu0 0.0
        %2115 = vmatpush2.msra.mxu0 %v2075
        %2116 = vmatprep.subr.mxu0 0.0
        %2117 = vmatpush2.msra.mxu0 %v2074
        %2118 = vmatprep.subr.mxu0 0.0
        %2119 = vmatpush2.msra.mxu0 %v2073
        %2120 = vmatprep.subr.mxu0 0.0
        %2121 = vmatpush2.msra.mxu0 %v2072
        %2122 = vmatprep.subr.mxu0 0.0
        %2123 = vmatpush2.msra.mxu0 %v2071
        %2124 = vmatprep.subr.mxu0 0.0
        %2125 = vmatpush2.msra.mxu0 %v2070
        %2126 = vmatprep.subr.mxu0 0.0
        %2127 = vmatpush2.msra.mxu0 %v2069
        %2128 = vmatprep.subr.mxu0 0.0
        %2129 = vmatpush2.msra.mxu0 %v2068
        %2130 = vmatprep.subr.mxu0 0.0
        %2131 = vmatpush2.msra.mxu0 %v2067
        %2132 = vmatprep.subr.mxu0 0.0
        %2133 = vmatpush2.msra.mxu0 %v2066
        %2134 = vmatprep.subr.mxu0 0.0
        %2135 = vmatpush2.msra.mxu0 %v2065
        %2136 = vmatprep.subr.mxu0 0.0
        %2137 = vmatpush2.msra.mxu0 %v2064
        %2138 = vmatprep.subr.mxu0 0.0
        %2139 = vmatpush2.msra.mxu0 %v2063
        %2140 = vmatprep.subr.mxu0 0.0
        %2141 = vmatpush2.msra.mxu0 %v2062
        %2142 = vmatprep.mubr.f32.mxu0 %v1838
        %2143 = vmatmul.mubr.f32.gmra.mxu0 %v1837
        %v2144 = vpop.f32.mrf.mxu0
        %v2145 = vadd.f32 0.0, %v2144
        %v2146 = vpop.f32.mrf.mxu0
        %2147 = vdwg.mxu0
        %v2148 = vmax.f32 %v2044, %v2145
        %v2149 = vld [vmem:[#allocation7] sm:$0xff]
        %s2150 = scalar_lea.vmem [#allocation7], 8
        %v2151 = vld [vmem:[%s2150] sm:$0xff]
        %v2152 = vmax.f32 %v2148, 0.0
        %v2153 = vld [vmem:[#allocation10] sm:$0x1]
        %vm2154 = vcmask 64512
        %v2156 = vsel %vm2154, %v2149, 0
        %2158 = vmatprep.subr.mxu0 0.0
        %2159 = vmatpush1.msra.mxu0 0.0
        %2160 = vmatprep.subr.mxu0 0.0
        %2161 = vmatpush1.msra.mxu0 0.0
        %2162 = vmatprep.subr.mxu0 0.0
        %2163 = vmatpush1.msra.mxu0 0.0
        %2164 = vmatprep.subr.mxu0 0.0
        %2165 = vmatpush1.msra.mxu0 0.0
        %2166 = vmatprep.subr.mxu0 0.0
        %2167 = vmatpush1.msra.mxu0 0.0
        %2168 = vmatprep.subr.mxu0 0.0
        %2169 = vmatpush1.msra.mxu0 0.0
        %2170 = vmatprep.subr.mxu0 0.0
        %2171 = vmatpush1.msra.mxu0 0.0
        %2172 = vmatprep.subr.mxu0 0.0
        %2173 = vmatpush1.msra.mxu0 0.0
        %2174 = vmatprep.subr.mxu0 0.0
        %2175 = vmatpush1.msra.mxu0 0.0
        %2176 = vmatprep.subr.mxu0 0.0
        %2177 = vmatpush1.msra.mxu0 0.0
        %2178 = vmatprep.subr.mxu0 0.0
        %2179 = vmatpush1.msra.mxu0 0.0
        %2180 = vmatprep.subr.mxu0 0.0
        %2181 = vmatpush1.msra.mxu0 0.0
        %2182 = vmatprep.subr.mxu0 0.0
        %2183 = vmatpush1.msra.mxu0 0.0
        %2184 = vmatprep.subr.mxu0 0.0
        %2185 = vmatpush1.msra.mxu0 0.0
        %2186 = vmatprep.subr.mxu0 0.0
        %2187 = vmatpush1.msra.mxu0 0.0
        %2188 = vmatprep.subr.mxu0 0.0
        %2189 = vmatpush1.msra.mxu0 %v2152
        %2190 = vmatprep.subr.mxu0 0.0
        %2191 = vmatpush2.msra.mxu0 0.0
        %2192 = vmatprep.subr.mxu0 0.0
        %2193 = vmatpush2.msra.mxu0 0.0
        %2194 = vmatprep.subr.mxu0 0.0
        %2195 = vmatpush2.msra.mxu0 0.0
        %2196 = vmatprep.subr.mxu0 0.0
        %2197 = vmatpush2.msra.mxu0 0.0
        %2198 = vmatprep.subr.mxu0 0.0
        %2199 = vmatpush2.msra.mxu0 0.0
        %2200 = vmatprep.subr.mxu0 0.0
        %2201 = vmatpush2.msra.mxu0 0.0
        %2202 = vmatprep.subr.mxu0 0.0
        %2203 = vmatpush2.msra.mxu0 0.0
        %2204 = vmatprep.subr.mxu0 0.0
        %2205 = vmatpush2.msra.mxu0 0.0
        %2206 = vmatprep.subr.mxu0 0.0
        %2207 = vmatpush2.msra.mxu0 0.0
        %2208 = vmatprep.subr.mxu0 0.0
        %2209 = vmatpush2.msra.mxu0 0.0
        %2210 = vmatprep.subr.mxu0 0.0
        %2211 = vmatpush2.msra.mxu0 0.0
        %2212 = vmatprep.subr.mxu0 0.0
        %2213 = vmatpush2.msra.mxu0 0.0
        %2214 = vmatprep.subr.mxu0 0.0
        %2215 = vmatpush2.msra.mxu0 0.0
        %2216 = vmatprep.subr.mxu0 0.0
        %2217 = vmatpush2.msra.mxu0 0.0
        %2218 = vmatprep.subr.mxu0 0.0
        %2219 = vmatpush2.msra.mxu0 0.0
        %2220 = vmatprep.subr.mxu0 0.0
        %2221 = vmatpush2.msra.mxu0 0.0
        %2222 = vmatprep.mubr.f32.mxu0 0.0
        %2223 = vmatmul.mubr.f32.gmra.mxu0 %v2156
        %v2224 = vpop.f32.mrf.mxu0
        %v2225 = vadd.f32 0.0, %v2224
        %v2226 = vpop.f32.mrf.mxu0
        %2227 = vdwg.mxu0
        %v2229 = vsel %vm2154, %v2151, 0
        %2231 = vmatprep.subr.mxu0 0.0
        %2232 = vmatpush1.msra.mxu0 0.0
        %2233 = vmatprep.subr.mxu0 0.0
        %2234 = vmatpush1.msra.mxu0 0.0
        %2235 = vmatprep.subr.mxu0 0.0
        %2236 = vmatpush1.msra.mxu0 0.0
        %2237 = vmatprep.subr.mxu0 0.0
        %2238 = vmatpush1.msra.mxu0 0.0
        %2239 = vmatprep.subr.mxu0 0.0
        %2240 = vmatpush1.msra.mxu0 0.0
        %2241 = vmatprep.subr.mxu0 0.0
        %2242 = vmatpush1.msra.mxu0 0.0
        %2243 = vmatprep.subr.mxu0 0.0
        %2244 = vmatpush1.msra.mxu0 0.0
        %2245 = vmatprep.subr.mxu0 0.0
        %2246 = vmatpush1.msra.mxu0 0.0
        %2247 = vmatprep.subr.mxu0 0.0
        %2248 = vmatpush1.msra.mxu0 0.0
        %2249 = vmatprep.subr.mxu0 0.0
        %2250 = vmatpush1.msra.mxu0 0.0
        %2251 = vmatprep.subr.mxu0 0.0
        %2252 = vmatpush1.msra.mxu0 0.0
        %2253 = vmatprep.subr.mxu0 0.0
        %2254 = vmatpush1.msra.mxu0 0.0
        %2255 = vmatprep.subr.mxu0 0.0
        %2256 = vmatpush1.msra.mxu0 0.0
        %2257 = vmatprep.subr.mxu0 0.0
        %2258 = vmatpush1.msra.mxu0 0.0
        %2259 = vmatprep.subr.mxu0 0.0
        %2260 = vmatpush1.msra.mxu0 0.0
        %2261 = vmatprep.subr.mxu0 0.0
        %2262 = vmatpush1.msra.mxu0 %v2152
        %2263 = vmatprep.subr.mxu0 0.0
        %2264 = vmatpush2.msra.mxu0 0.0
        %2265 = vmatprep.subr.mxu0 0.0
        %2266 = vmatpush2.msra.mxu0 0.0
        %2267 = vmatprep.subr.mxu0 0.0
        %2268 = vmatpush2.msra.mxu0 0.0
        %2269 = vmatprep.subr.mxu0 0.0
        %2270 = vmatpush2.msra.mxu0 0.0
        %2271 = vmatprep.subr.mxu0 0.0
        %2272 = vmatpush2.msra.mxu0 0.0
        %2273 = vmatprep.subr.mxu0 0.0
        %2274 = vmatpush2.msra.mxu0 0.0
        %2275 = vmatprep.subr.mxu0 0.0
        %2276 = vmatpush2.msra.mxu0 0.0
        %2277 = vmatprep.subr.mxu0 0.0
        %2278 = vmatpush2.msra.mxu0 0.0
        %2279 = vmatprep.subr.mxu0 0.0
        %2280 = vmatpush2.msra.mxu0 0.0
        %2281 = vmatprep.subr.mxu0 0.0
        %2282 = vmatpush2.msra.mxu0 0.0
        %2283 = vmatprep.subr.mxu0 0.0
        %2284 = vmatpush2.msra.mxu0 0.0
        %2285 = vmatprep.subr.mxu0 0.0
        %2286 = vmatpush2.msra.mxu0 0.0
        %2287 = vmatprep.subr.mxu0 0.0
        %2288 = vmatpush2.msra.mxu0 0.0
        %2289 = vmatprep.subr.mxu0 0.0
        %2290 = vmatpush2.msra.mxu0 0.0
        %2291 = vmatprep.subr.mxu0 0.0
        %2292 = vmatpush2.msra.mxu0 0.0
        %2293 = vmatprep.subr.mxu0 0.0
        %2294 = vmatpush2.msra.mxu0 0.0
        %2295 = vmatprep.mubr.f32.mxu0 0.0
        %2296 = vmatmul.mubr.f32.gmra.mxu0 %v2229
        %v2297 = vpop.f32.mrf.mxu0
        %v2298 = vadd.f32 0.0, %v2297
        %v2299 = vpop.f32.mrf.mxu0
        %2300 = vdwg.mxu0
        %v2301 = vld [vmem:[#allocation9] sm:$0xff]
        %v2302 = vld [vmem:[#allocation9 + $0x8] sm:$0xff]
        %v2303 = vld [vmem:[#allocation9 + $0x10] sm:$0xff]
        %v2304 = vld [vmem:[#allocation9 + $0x18] sm:$0xff]
        %v2305 = vld [vmem:[#allocation9 + $0x20] sm:$0xff]
        %v2306 = vld [vmem:[#allocation9 + $0x28] sm:$0xff]
        %v2307 = vld [vmem:[#allocation9 + $0x30] sm:$0xff]
        %v2308 = vld [vmem:[#allocation9 + $0x38] sm:$0xff]
        %v2309 = vld [vmem:[#allocation9 + $0x40] sm:$0xff]
        %v2310 = vld [vmem:[#allocation9 + $0x48] sm:$0xff]
        %v2311 = vld [vmem:[#allocation9 + $0x50] sm:$0xff]
        %v2312 = vld [vmem:[#allocation9 + $0x58] sm:$0xff]
        %v2313 = vld [vmem:[#allocation9 + $0x60] sm:$0xff]
        %v2314 = vld [vmem:[#allocation9 + $0x68] sm:$0xff]
        %v2315 = vld [vmem:[#allocation9 + $0x70] sm:$0xff]
        %v2316 = vld [vmem:[#allocation9 + $0x78] sm:$0xff]
        %s2317 = scalar_lea.vmem [#allocation9], 128
        %v2318 = vld [vmem:[%s2317] sm:$0xff]
        %v2319 = vld [vmem:[%s2317 + $0x8] sm:$0xff]
        %v2320 = vld [vmem:[%s2317 + $0x10] sm:$0xff]
        %v2321 = vld [vmem:[%s2317 + $0x18] sm:$0xff]
        %v2322 = vld [vmem:[%s2317 + $0x20] sm:$0xff]
        %v2323 = vld [vmem:[%s2317 + $0x28] sm:$0xff]
        %v2324 = vld [vmem:[%s2317 + $0x30] sm:$0xff]
        %v2325 = vld [vmem:[%s2317 + $0x38] sm:$0xff]
        %v2326 = vld [vmem:[%s2317 + $0x40] sm:$0xff]
        %v2327 = vld [vmem:[%s2317 + $0x48] sm:$0xff]
        %v2328 = vld [vmem:[%s2317 + $0x50] sm:$0xff]
        %v2329 = vld [vmem:[%s2317 + $0x58] sm:$0xff]
        %v2330 = vld [vmem:[%s2317 + $0x60] sm:$0xff]
        %v2331 = vld [vmem:[%s2317 + $0x68] sm:$0xff]
        %v2332 = vld [vmem:[%s2317 + $0x70] sm:$0xff]
        %v2333 = vld [vmem:[%s2317 + $0x78] sm:$0xff]
        %2334 = vmatprep.subr.mxu0 0.0
        %2335 = vmatpush1.msra.mxu0 %v2333
        %2336 = vmatprep.subr.mxu0 0.0
        %2337 = vmatpush1.msra.mxu0 %v2332
        %2338 = vmatprep.subr.mxu0 0.0
        %2339 = vmatpush1.msra.mxu0 %v2331
        %2340 = vmatprep.subr.mxu0 0.0
        %2341 = vmatpush1.msra.mxu0 %v2330
        %2342 = vmatprep.subr.mxu0 0.0
        %2343 = vmatpush1.msra.mxu0 %v2329
        %2344 = vmatprep.subr.mxu0 0.0
        %2345 = vmatpush1.msra.mxu0 %v2328
        %2346 = vmatprep.subr.mxu0 0.0
        %2347 = vmatpush1.msra.mxu0 %v2327
        %2348 = vmatprep.subr.mxu0 0.0
        %2349 = vmatpush1.msra.mxu0 %v2326
        %2350 = vmatprep.subr.mxu0 0.0
        %2351 = vmatpush1.msra.mxu0 %v2325
        %2352 = vmatprep.subr.mxu0 0.0
        %2353 = vmatpush1.msra.mxu0 %v2324
        %2354 = vmatprep.subr.mxu0 0.0
        %2355 = vmatpush1.msra.mxu0 %v2323
        %2356 = vmatprep.subr.mxu0 0.0
        %2357 = vmatpush1.msra.mxu0 %v2322
        %2358 = vmatprep.subr.mxu0 0.0
        %2359 = vmatpush1.msra.mxu0 %v2321
        %2360 = vmatprep.subr.mxu0 0.0
        %2361 = vmatpush1.msra.mxu0 %v2320
        %2362 = vmatprep.subr.mxu0 0.0
        %2363 = vmatpush1.msra.mxu0 %v2319
        %2364 = vmatprep.subr.mxu0 0.0
        %2365 = vmatpush1.msra.mxu0 %v2318
        %2366 = vmatprep.subr.mxu0 0.0
        %2367 = vmatpush2.msra.mxu0 0.0
        %2368 = vmatprep.subr.mxu0 0.0
        %2369 = vmatpush2.msra.mxu0 0.0
        %2370 = vmatprep.subr.mxu0 0.0
        %2371 = vmatpush2.msra.mxu0 0.0
        %2372 = vmatprep.subr.mxu0 0.0
        %2373 = vmatpush2.msra.mxu0 0.0
        %2374 = vmatprep.subr.mxu0 0.0
        %2375 = vmatpush2.msra.mxu0 0.0
        %2376 = vmatprep.subr.mxu0 0.0
        %2377 = vmatpush2.msra.mxu0 0.0
        %2378 = vmatprep.subr.mxu0 0.0
        %2379 = vmatpush2.msra.mxu0 0.0
        %2380 = vmatprep.subr.mxu0 0.0
        %2381 = vmatpush2.msra.mxu0 0.0
        %2382 = vmatprep.subr.mxu0 0.0
        %2383 = vmatpush2.msra.mxu0 0.0
        %2384 = vmatprep.subr.mxu0 0.0
        %2385 = vmatpush2.msra.mxu0 0.0
        %2386 = vmatprep.subr.mxu0 0.0
        %2387 = vmatpush2.msra.mxu0 0.0
        %2388 = vmatprep.subr.mxu0 0.0
        %2389 = vmatpush2.msra.mxu0 0.0
        %2390 = vmatprep.subr.mxu0 0.0
        %2391 = vmatpush2.msra.mxu0 0.0
        %2392 = vmatprep.subr.mxu0 0.0
        %2393 = vmatpush2.msra.mxu0 0.0
        %2394 = vmatprep.subr.mxu0 0.0
        %2395 = vmatpush2.msra.mxu0 0.0
        %2396 = vmatprep.subr.mxu0 0.0
        %2397 = vmatpush2.msra.mxu0 0.0
        %2398 = vmatprep.mubr.f32.mxu0 0.0
        %2399 = vmatmul.mubr.f32.gmra.mxu0 %v2152
        %v2400 = vpop.f32.mrf.mxu0
        %v2401 = vadd.f32 0.0, %v2400
        %v2402 = vpop.f32.mrf.mxu0
        %2403 = vdwg.mxu0
        %2404 = vmatprep.subr.mxu0 0.0
        %2405 = vmatpush1.msra.mxu0 %v2316
        %2406 = vmatprep.subr.mxu0 0.0
        %2407 = vmatpush1.msra.mxu0 %v2315
        %2408 = vmatprep.subr.mxu0 0.0
        %2409 = vmatpush1.msra.mxu0 %v2314
        %2410 = vmatprep.subr.mxu0 0.0
        %2411 = vmatpush1.msra.mxu0 %v2313
        %2412 = vmatprep.subr.mxu0 0.0
        %2413 = vmatpush1.msra.mxu0 %v2312
        %2414 = vmatprep.subr.mxu0 0.0
        %2415 = vmatpush1.msra.mxu0 %v2311
        %2416 = vmatprep.subr.mxu0 0.0
        %2417 = vmatpush1.msra.mxu0 %v2310
        %2418 = vmatprep.subr.mxu0 0.0
        %2419 = vmatpush1.msra.mxu0 %v2309
        %2420 = vmatprep.subr.mxu0 0.0
        %2421 = vmatpush1.msra.mxu0 %v2308
        %2422 = vmatprep.subr.mxu0 0.0
        %2423 = vmatpush1.msra.mxu0 %v2307
        %2424 = vmatprep.subr.mxu0 0.0
        %2425 = vmatpush1.msra.mxu0 %v2306
        %2426 = vmatprep.subr.mxu0 0.0
        %2427 = vmatpush1.msra.mxu0 %v2305
        %2428 = vmatprep.subr.mxu0 0.0
        %2429 = vmatpush1.msra.mxu0 %v2304
        %2430 = vmatprep.subr.mxu0 0.0
        %2431 = vmatpush1.msra.mxu0 %v2303
        %2432 = vmatprep.subr.mxu0 0.0
        %2433 = vmatpush1.msra.mxu0 %v2302
        %2434 = vmatprep.subr.mxu0 0.0
        %2435 = vmatpush1.msra.mxu0 %v2301
        %2436 = vmatprep.subr.mxu0 0.0
        %2437 = vmatpush2.msra.mxu0 0.0
        %2438 = vmatprep.subr.mxu0 0.0
        %2439 = vmatpush2.msra.mxu0 0.0
        %2440 = vmatprep.subr.mxu0 0.0
        %2441 = vmatpush2.msra.mxu0 0.0
        %2442 = vmatprep.subr.mxu0 0.0
        %2443 = vmatpush2.msra.mxu0 0.0
        %2444 = vmatprep.subr.mxu0 0.0
        %2445 = vmatpush2.msra.mxu0 0.0
        %2446 = vmatprep.subr.mxu0 0.0
        %2447 = vmatpush2.msra.mxu0 0.0
        %2448 = vmatprep.subr.mxu0 0.0
        %2449 = vmatpush2.msra.mxu0 0.0
        %2450 = vmatprep.subr.mxu0 0.0
        %2451 = vmatpush2.msra.mxu0 0.0
        %2452 = vmatprep.subr.mxu0 0.0
        %2453 = vmatpush2.msra.mxu0 0.0
        %2454 = vmatprep.subr.mxu0 0.0
        %2455 = vmatpush2.msra.mxu0 0.0
        %2456 = vmatprep.subr.mxu0 0.0
        %2457 = vmatpush2.msra.mxu0 0.0
        %2458 = vmatprep.subr.mxu0 0.0
        %2459 = vmatpush2.msra.mxu0 0.0
        %2460 = vmatprep.subr.mxu0 0.0
        %2461 = vmatpush2.msra.mxu0 0.0
        %2462 = vmatprep.subr.mxu0 0.0
        %2463 = vmatpush2.msra.mxu0 0.0
        %2464 = vmatprep.subr.mxu0 0.0
        %2465 = vmatpush2.msra.mxu0 0.0
        %2466 = vmatprep.subr.mxu0 0.0
        %2467 = vmatpush2.msra.mxu0 0.0
        %2468 = vmatprep.mubr.f32.mxu0 0.0
        %2469 = vmatmul.mubr.f32.gmra.mxu0 %v2225
        %v2470 = vpop.f32.mrf.mxu0
        %v2471 = vadd.f32 %v2401, %v2470
        %v2472 = vpop.f32.mrf.mxu0
        %2473 = vdwg.mxu0
        %s2474 = scalar_lea.vmem [#allocation9], 256
        %v2475 = vld [vmem:[%s2474] sm:$0xff]
        %v2476 = vld [vmem:[%s2474 + $0x8] sm:$0xff]
        %v2477 = vld [vmem:[%s2474 + $0x10] sm:$0xff]
        %v2478 = vld [vmem:[%s2474 + $0x18] sm:$0xff]
        %v2479 = vld [vmem:[%s2474 + $0x20] sm:$0xff]
        %v2480 = vld [vmem:[%s2474 + $0x28] sm:$0xff]
        %v2481 = vld [vmem:[%s2474 + $0x30] sm:$0xff]
        %v2482 = vld [vmem:[%s2474 + $0x38] sm:$0xff]
        %v2483 = vld [vmem:[%s2474 + $0x40] sm:$0xff]
        %v2484 = vld [vmem:[%s2474 + $0x48] sm:$0xff]
        %v2485 = vld [vmem:[%s2474 + $0x50] sm:$0xff]
        %v2486 = vld [vmem:[%s2474 + $0x58] sm:$0xff]
        %v2487 = vld [vmem:[%s2474 + $0x60] sm:$0xff]
        %v2488 = vld [vmem:[%s2474 + $0x68] sm:$0xff]
        %v2489 = vld [vmem:[%s2474 + $0x70] sm:$0xff]
        %v2490 = vld [vmem:[%s2474 + $0x78] sm:$0xff]
        %2491 = vmatprep.subr.mxu0 0.0
        %2492 = vmatpush1.msra.mxu0 %v2490
        %2493 = vmatprep.subr.mxu0 0.0
        %2494 = vmatpush1.msra.mxu0 %v2489
        %2495 = vmatprep.subr.mxu0 0.0
        %2496 = vmatpush1.msra.mxu0 %v2488
        %2497 = vmatprep.subr.mxu0 0.0
        %2498 = vmatpush1.msra.mxu0 %v2487
        %2499 = vmatprep.subr.mxu0 0.0
        %2500 = vmatpush1.msra.mxu0 %v2486
        %2501 = vmatprep.subr.mxu0 0.0
        %2502 = vmatpush1.msra.mxu0 %v2485
        %2503 = vmatprep.subr.mxu0 0.0
        %2504 = vmatpush1.msra.mxu0 %v2484
        %2505 = vmatprep.subr.mxu0 0.0
        %2506 = vmatpush1.msra.mxu0 %v2483
        %2507 = vmatprep.subr.mxu0 0.0
        %2508 = vmatpush1.msra.mxu0 %v2482
        %2509 = vmatprep.subr.mxu0 0.0
        %2510 = vmatpush1.msra.mxu0 %v2481
        %2511 = vmatprep.subr.mxu0 0.0
        %2512 = vmatpush1.msra.mxu0 %v2480
        %2513 = vmatprep.subr.mxu0 0.0
        %2514 = vmatpush1.msra.mxu0 %v2479
        %2515 = vmatprep.subr.mxu0 0.0
        %2516 = vmatpush1.msra.mxu0 %v2478
        %2517 = vmatprep.subr.mxu0 0.0
        %2518 = vmatpush1.msra.mxu0 %v2477
        %2519 = vmatprep.subr.mxu0 0.0
        %2520 = vmatpush1.msra.mxu0 %v2476
        %2521 = vmatprep.subr.mxu0 0.0
        %2522 = vmatpush1.msra.mxu0 %v2475
        %2523 = vmatprep.subr.mxu0 0.0
        %2524 = vmatpush2.msra.mxu0 0.0
        %2525 = vmatprep.subr.mxu0 0.0
        %2526 = vmatpush2.msra.mxu0 0.0
        %2527 = vmatprep.subr.mxu0 0.0
        %2528 = vmatpush2.msra.mxu0 0.0
        %2529 = vmatprep.subr.mxu0 0.0
        %2530 = vmatpush2.msra.mxu0 0.0
        %2531 = vmatprep.subr.mxu0 0.0
        %2532 = vmatpush2.msra.mxu0 0.0
        %2533 = vmatprep.subr.mxu0 0.0
        %2534 = vmatpush2.msra.mxu0 0.0
        %2535 = vmatprep.subr.mxu0 0.0
        %2536 = vmatpush2.msra.mxu0 0.0
        %2537 = vmatprep.subr.mxu0 0.0
        %2538 = vmatpush2.msra.mxu0 0.0
        %2539 = vmatprep.subr.mxu0 0.0
        %2540 = vmatpush2.msra.mxu0 0.0
        %2541 = vmatprep.subr.mxu0 0.0
        %2542 = vmatpush2.msra.mxu0 0.0
        %2543 = vmatprep.subr.mxu0 0.0
        %2544 = vmatpush2.msra.mxu0 0.0
        %2545 = vmatprep.subr.mxu0 0.0
        %2546 = vmatpush2.msra.mxu0 0.0
        %2547 = vmatprep.subr.mxu0 0.0
        %2548 = vmatpush2.msra.mxu0 0.0
        %2549 = vmatprep.subr.mxu0 0.0
        %2550 = vmatpush2.msra.mxu0 0.0
        %2551 = vmatprep.subr.mxu0 0.0
        %2552 = vmatpush2.msra.mxu0 0.0
        %2553 = vmatprep.subr.mxu0 0.0
        %2554 = vmatpush2.msra.mxu0 0.0
        %2555 = vmatprep.mubr.f32.mxu0 0.0
        %2556 = vmatmul.mubr.f32.gmra.mxu0 %v2298
        %v2557 = vpop.f32.mrf.mxu0
        %v2558 = vadd.f32 0.0, %v2557
        %v2559 = vpop.f32.mrf.mxu0
        %2560 = vdwg.mxu0
        %v2561 = vadd.f32 %v2471, %v2558
        %v2563 = vlaneseq
        %v2564 = vshrl.u32 %v2563, 7
        %v2565 = vsub.s32 0, %v2564
        %v2566 = vrot.slane %v2153, %v2565
        %v2568 = vadd.f32 %v2561, %v2566
        %v2569 = vmax.f32 %v2568, 0.0
        %s2570 = scalar_lea.vmem [#allocation10], 1
        %v2571 = vld [vmem:[%s2570] sm:$0x1]
        %2572 = vmatprep.subr.mxu0 0.0
        %2573 = vmatpush1.msra.mxu0 0.0
        %2574 = vmatprep.subr.mxu0 0.0
        %2575 = vmatpush1.msra.mxu0 0.0
        %2576 = vmatprep.subr.mxu0 0.0
        %2577 = vmatpush1.msra.mxu0 0.0
        %2578 = vmatprep.subr.mxu0 0.0
        %2579 = vmatpush1.msra.mxu0 0.0
        %2580 = vmatprep.subr.mxu0 0.0
        %2581 = vmatpush1.msra.mxu0 0.0
        %2582 = vmatprep.subr.mxu0 0.0
        %2583 = vmatpush1.msra.mxu0 0.0
        %2584 = vmatprep.subr.mxu0 0.0
        %2585 = vmatpush1.msra.mxu0 0.0
        %2586 = vmatprep.subr.mxu0 0.0
        %2587 = vmatpush1.msra.mxu0 0.0
        %2588 = vmatprep.subr.mxu0 0.0
        %2589 = vmatpush1.msra.mxu0 0.0
        %2590 = vmatprep.subr.mxu0 0.0
        %2591 = vmatpush1.msra.mxu0 0.0
        %2592 = vmatprep.subr.mxu0 0.0
        %2593 = vmatpush1.msra.mxu0 0.0
        %2594 = vmatprep.subr.mxu0 0.0
        %2595 = vmatpush1.msra.mxu0 0.0
        %2596 = vmatprep.subr.mxu0 0.0
        %2597 = vmatpush1.msra.mxu0 0.0
        %2598 = vmatprep.subr.mxu0 0.0
        %2599 = vmatpush1.msra.mxu0 0.0
        %2600 = vmatprep.subr.mxu0 0.0
        %2601 = vmatpush1.msra.mxu0 0.0
        %2602 = vmatprep.subr.mxu0 0.0
        %2603 = vmatpush1.msra.mxu0 %v2569
        %2604 = vmatprep.subr.mxu0 0.0
        %2605 = vmatpush2.msra.mxu0 0.0
        %2606 = vmatprep.subr.mxu0 0.0
        %2607 = vmatpush2.msra.mxu0 0.0
        %2608 = vmatprep.subr.mxu0 0.0
        %2609 = vmatpush2.msra.mxu0 0.0
        %2610 = vmatprep.subr.mxu0 0.0
        %2611 = vmatpush2.msra.mxu0 0.0
        %2612 = vmatprep.subr.mxu0 0.0
        %2613 = vmatpush2.msra.mxu0 0.0
        %2614 = vmatprep.subr.mxu0 0.0
        %2615 = vmatpush2.msra.mxu0 0.0
        %2616 = vmatprep.subr.mxu0 0.0
        %2617 = vmatpush2.msra.mxu0 0.0
        %2618 = vmatprep.subr.mxu0 0.0
        %2619 = vmatpush2.msra.mxu0 0.0
        %2620 = vmatprep.subr.mxu0 0.0
        %2621 = vmatpush2.msra.mxu0 0.0
        %2622 = vmatprep.subr.mxu0 0.0
        %2623 = vmatpush2.msra.mxu0 0.0
        %2624 = vmatprep.subr.mxu0 0.0
        %2625 = vmatpush2.msra.mxu0 0.0
        %2626 = vmatprep.subr.mxu0 0.0
        %2627 = vmatpush2.msra.mxu0 0.0
        %2628 = vmatprep.subr.mxu0 0.0
        %2629 = vmatpush2.msra.mxu0 0.0
        %2630 = vmatprep.subr.mxu0 0.0
        %2631 = vmatpush2.msra.mxu0 0.0
        %2632 = vmatprep.subr.mxu0 0.0
        %2633 = vmatpush2.msra.mxu0 0.0
        %2634 = vmatprep.subr.mxu0 0.0
        %2635 = vmatpush2.msra.mxu0 0.0
        %2636 = vmatprep.mubr.f32.mxu0 0.0
        %2637 = vmatmul.mubr.f32.gmra.mxu0 %v2156
        %v2638 = vpop.f32.mrf.mxu0
        %v2639 = vadd.f32 0.0, %v2638
        %v2640 = vpop.f32.mrf.mxu0
        %2641 = vdwg.mxu0
        %2642 = vmatprep.subr.mxu0 0.0
        %2643 = vmatpush1.msra.mxu0 0.0
        %2644 = vmatprep.subr.mxu0 0.0
        %2645 = vmatpush1.msra.mxu0 0.0
        %2646 = vmatprep.subr.mxu0 0.0
        %2647 = vmatpush1.msra.mxu0 0.0
        %2648 = vmatprep.subr.mxu0 0.0
        %2649 = vmatpush1.msra.mxu0 0.0
        %2650 = vmatprep.subr.mxu0 0.0
        %2651 = vmatpush1.msra.mxu0 0.0
        %2652 = vmatprep.subr.mxu0 0.0
        %2653 = vmatpush1.msra.mxu0 0.0
        %2654 = vmatprep.subr.mxu0 0.0
        %2655 = vmatpush1.msra.mxu0 0.0
        %2656 = vmatprep.subr.mxu0 0.0
        %2657 = vmatpush1.msra.mxu0 0.0
        %2658 = vmatprep.subr.mxu0 0.0
        %2659 = vmatpush1.msra.mxu0 0.0
        %2660 = vmatprep.subr.mxu0 0.0
        %2661 = vmatpush1.msra.mxu0 0.0
        %2662 = vmatprep.subr.mxu0 0.0
        %2663 = vmatpush1.msra.mxu0 0.0
        %2664 = vmatprep.subr.mxu0 0.0
        %2665 = vmatpush1.msra.mxu0 0.0
        %2666 = vmatprep.subr.mxu0 0.0
        %2667 = vmatpush1.msra.mxu0 0.0
        %2668 = vmatprep.subr.mxu0 0.0
        %2669 = vmatpush1.msra.mxu0 0.0
        %2670 = vmatprep.subr.mxu0 0.0
        %2671 = vmatpush1.msra.mxu0 0.0
        %2672 = vmatprep.subr.mxu0 0.0
        %2673 = vmatpush1.msra.mxu0 %v2569
        %2674 = vmatprep.subr.mxu0 0.0
        %2675 = vmatpush2.msra.mxu0 0.0
        %2676 = vmatprep.subr.mxu0 0.0
        %2677 = vmatpush2.msra.mxu0 0.0
        %2678 = vmatprep.subr.mxu0 0.0
        %2679 = vmatpush2.msra.mxu0 0.0
        %2680 = vmatprep.subr.mxu0 0.0
        %2681 = vmatpush2.msra.mxu0 0.0
        %2682 = vmatprep.subr.mxu0 0.0
        %2683 = vmatpush2.msra.mxu0 0.0
        %2684 = vmatprep.subr.mxu0 0.0
        %2685 = vmatpush2.msra.mxu0 0.0
        %2686 = vmatprep.subr.mxu0 0.0
        %2687 = vmatpush2.msra.mxu0 0.0
        %2688 = vmatprep.subr.mxu0 0.0
        %2689 = vmatpush2.msra.mxu0 0.0
        %2690 = vmatprep.subr.mxu0 0.0
        %2691 = vmatpush2.msra.mxu0 0.0
        %2692 = vmatprep.subr.mxu0 0.0
        %2693 = vmatpush2.msra.mxu0 0.0
        %2694 = vmatprep.subr.mxu0 0.0
        %2695 = vmatpush2.msra.mxu0 0.0
        %2696 = vmatprep.subr.mxu0 0.0
        %2697 = vmatpush2.msra.mxu0 0.0
        %2698 = vmatprep.subr.mxu0 0.0
        %2699 = vmatpush2.msra.mxu0 0.0
        %2700 = vmatprep.subr.mxu0 0.0
        %2701 = vmatpush2.msra.mxu0 0.0
        %2702 = vmatprep.subr.mxu0 0.0
        %2703 = vmatpush2.msra.mxu0 0.0
        %2704 = vmatprep.subr.mxu0 0.0
        %2705 = vmatpush2.msra.mxu0 0.0
        %2706 = vmatprep.mubr.f32.mxu0 0.0
        %2707 = vmatmul.mubr.f32.gmra.mxu0 %v2229
        %v2708 = vpop.f32.mrf.mxu0
        %v2709 = vadd.f32 0.0, %v2708
        %v2710 = vpop.f32.mrf.mxu0
        %2711 = vdwg.mxu0
        %s2712 = scalar_lea.vmem [#allocation9], 384
        %v2713 = vld [vmem:[%s2712] sm:$0xff]
        %v2714 = vld [vmem:[%s2712 + $0x8] sm:$0xff]
        %v2715 = vld [vmem:[%s2712 + $0x10] sm:$0xff]
        %v2716 = vld [vmem:[%s2712 + $0x18] sm:$0xff]
        %v2717 = vld [vmem:[%s2712 + $0x20] sm:$0xff]
        %v2718 = vld [vmem:[%s2712 + $0x28] sm:$0xff]
        %v2719 = vld [vmem:[%s2712 + $0x30] sm:$0xff]
        %v2720 = vld [vmem:[%s2712 + $0x38] sm:$0xff]
        %v2721 = vld [vmem:[%s2712 + $0x40] sm:$0xff]
        %v2722 = vld [vmem:[%s2712 + $0x48] sm:$0xff]
        %v2723 = vld [vmem:[%s2712 + $0x50] sm:$0xff]
        %v2724 = vld [vmem:[%s2712 + $0x58] sm:$0xff]
        %v2725 = vld [vmem:[%s2712 + $0x60] sm:$0xff]
        %v2726 = vld [vmem:[%s2712 + $0x68] sm:$0xff]
        %v2727 = vld [vmem:[%s2712 + $0x70] sm:$0xff]
        %v2728 = vld [vmem:[%s2712 + $0x78] sm:$0xff]
        %s2729 = scalar_lea.vmem [#allocation9], 512
        %v2730 = vld [vmem:[%s2729] sm:$0xff]
        %v2731 = vld [vmem:[%s2729 + $0x8] sm:$0xff]
        %v2732 = vld [vmem:[%s2729 + $0x10] sm:$0xff]
        %v2733 = vld [vmem:[%s2729 + $0x18] sm:$0xff]
        %v2734 = vld [vmem:[%s2729 + $0x20] sm:$0xff]
        %v2735 = vld [vmem:[%s2729 + $0x28] sm:$0xff]
        %v2736 = vld [vmem:[%s2729 + $0x30] sm:$0xff]
        %v2737 = vld [vmem:[%s2729 + $0x38] sm:$0xff]
        %v2738 = vld [vmem:[%s2729 + $0x40] sm:$0xff]
        %v2739 = vld [vmem:[%s2729 + $0x48] sm:$0xff]
        %v2740 = vld [vmem:[%s2729 + $0x50] sm:$0xff]
        %v2741 = vld [vmem:[%s2729 + $0x58] sm:$0xff]
        %v2742 = vld [vmem:[%s2729 + $0x60] sm:$0xff]
        %v2743 = vld [vmem:[%s2729 + $0x68] sm:$0xff]
        %v2744 = vld [vmem:[%s2729 + $0x70] sm:$0xff]
        %v2745 = vld [vmem:[%s2729 + $0x78] sm:$0xff]
        %2746 = vmatprep.subr.mxu0 0.0
        %2747 = vmatpush1.msra.mxu0 %v2745
        %2748 = vmatprep.subr.mxu0 0.0
        %2749 = vmatpush1.msra.mxu0 %v2744
        %2750 = vmatprep.subr.mxu0 0.0
        %2751 = vmatpush1.msra.mxu0 %v2743
        %2752 = vmatprep.subr.mxu0 0.0
        %2753 = vmatpush1.msra.mxu0 %v2742
        %2754 = vmatprep.subr.mxu0 0.0
        %2755 = vmatpush1.msra.mxu0 %v2741
        %2756 = vmatprep.subr.mxu0 0.0
        %2757 = vmatpush1.msra.mxu0 %v2740
        %2758 = vmatprep.subr.mxu0 0.0
        %2759 = vmatpush1.msra.mxu0 %v2739
        %2760 = vmatprep.subr.mxu0 0.0
        %2761 = vmatpush1.msra.mxu0 %v2738
        %2762 = vmatprep.subr.mxu0 0.0
        %2763 = vmatpush1.msra.mxu0 %v2737
        %2764 = vmatprep.subr.mxu0 0.0
        %2765 = vmatpush1.msra.mxu0 %v2736
        %2766 = vmatprep.subr.mxu0 0.0
        %2767 = vmatpush1.msra.mxu0 %v2735
        %2768 = vmatprep.subr.mxu0 0.0
        %2769 = vmatpush1.msra.mxu0 %v2734
        %2770 = vmatprep.subr.mxu0 0.0
        %2771 = vmatpush1.msra.mxu0 %v2733
        %2772 = vmatprep.subr.mxu0 0.0
        %2773 = vmatpush1.msra.mxu0 %v2732
        %2774 = vmatprep.subr.mxu0 0.0
        %2775 = vmatpush1.msra.mxu0 %v2731
        %2776 = vmatprep.subr.mxu0 0.0
        %2777 = vmatpush1.msra.mxu0 %v2730
        %2778 = vmatprep.subr.mxu0 0.0
        %2779 = vmatpush2.msra.mxu0 0.0
        %2780 = vmatprep.subr.mxu0 0.0
        %2781 = vmatpush2.msra.mxu0 0.0
        %2782 = vmatprep.subr.mxu0 0.0
        %2783 = vmatpush2.msra.mxu0 0.0
        %2784 = vmatprep.subr.mxu0 0.0
        %2785 = vmatpush2.msra.mxu0 0.0
        %2786 = vmatprep.subr.mxu0 0.0
        %2787 = vmatpush2.msra.mxu0 0.0
        %2788 = vmatprep.subr.mxu0 0.0
        %2789 = vmatpush2.msra.mxu0 0.0
        %2790 = vmatprep.subr.mxu0 0.0
        %2791 = vmatpush2.msra.mxu0 0.0
        %2792 = vmatprep.subr.mxu0 0.0
        %2793 = vmatpush2.msra.mxu0 0.0
        %2794 = vmatprep.subr.mxu0 0.0
        %2795 = vmatpush2.msra.mxu0 0.0
        %2796 = vmatprep.subr.mxu0 0.0
        %2797 = vmatpush2.msra.mxu0 0.0
        %2798 = vmatprep.subr.mxu0 0.0
        %2799 = vmatpush2.msra.mxu0 0.0
        %2800 = vmatprep.subr.mxu0 0.0
        %2801 = vmatpush2.msra.mxu0 0.0
        %2802 = vmatprep.subr.mxu0 0.0
        %2803 = vmatpush2.msra.mxu0 0.0
        %2804 = vmatprep.subr.mxu0 0.0
        %2805 = vmatpush2.msra.mxu0 0.0
        %2806 = vmatprep.subr.mxu0 0.0
        %2807 = vmatpush2.msra.mxu0 0.0
        %2808 = vmatprep.subr.mxu0 0.0
        %2809 = vmatpush2.msra.mxu0 0.0
        %2810 = vmatprep.mubr.f32.mxu0 0.0
        %2811 = vmatmul.mubr.f32.gmra.mxu0 %v2569
        %v2812 = vpop.f32.mrf.mxu0
        %v2813 = vadd.f32 0.0, %v2812
        %v2814 = vpop.f32.mrf.mxu0
        %2815 = vdwg.mxu0
        %2816 = vmatprep.subr.mxu0 0.0
        %2817 = vmatpush1.msra.mxu0 %v2728
        %2818 = vmatprep.subr.mxu0 0.0
        %2819 = vmatpush1.msra.mxu0 %v2727
        %2820 = vmatprep.subr.mxu0 0.0
        %2821 = vmatpush1.msra.mxu0 %v2726
        %2822 = vmatprep.subr.mxu0 0.0
        %2823 = vmatpush1.msra.mxu0 %v2725
        %2824 = vmatprep.subr.mxu0 0.0
        %2825 = vmatpush1.msra.mxu0 %v2724
        %2826 = vmatprep.subr.mxu0 0.0
        %2827 = vmatpush1.msra.mxu0 %v2723
        %2828 = vmatprep.subr.mxu0 0.0
        %2829 = vmatpush1.msra.mxu0 %v2722
        %2830 = vmatprep.subr.mxu0 0.0
        %2831 = vmatpush1.msra.mxu0 %v2721
        %2832 = vmatprep.subr.mxu0 0.0
        %2833 = vmatpush1.msra.mxu0 %v2720
        %2834 = vmatprep.subr.mxu0 0.0
        %2835 = vmatpush1.msra.mxu0 %v2719
        %2836 = vmatprep.subr.mxu0 0.0
        %2837 = vmatpush1.msra.mxu0 %v2718
        %2838 = vmatprep.subr.mxu0 0.0
        %2839 = vmatpush1.msra.mxu0 %v2717
        %2840 = vmatprep.subr.mxu0 0.0
        %2841 = vmatpush1.msra.mxu0 %v2716
        %2842 = vmatprep.subr.mxu0 0.0
        %2843 = vmatpush1.msra.mxu0 %v2715
        %2844 = vmatprep.subr.mxu0 0.0
        %2845 = vmatpush1.msra.mxu0 %v2714
        %2846 = vmatprep.subr.mxu0 0.0
        %2847 = vmatpush1.msra.mxu0 %v2713
        %2848 = vmatprep.subr.mxu0 0.0
        %2849 = vmatpush2.msra.mxu0 0.0
        %2850 = vmatprep.subr.mxu0 0.0
        %2851 = vmatpush2.msra.mxu0 0.0
        %2852 = vmatprep.subr.mxu0 0.0
        %2853 = vmatpush2.msra.mxu0 0.0
        %2854 = vmatprep.subr.mxu0 0.0
        %2855 = vmatpush2.msra.mxu0 0.0
        %2856 = vmatprep.subr.mxu0 0.0
        %2857 = vmatpush2.msra.mxu0 0.0
        %2858 = vmatprep.subr.mxu0 0.0
        %2859 = vmatpush2.msra.mxu0 0.0
        %2860 = vmatprep.subr.mxu0 0.0
        %2861 = vmatpush2.msra.mxu0 0.0
        %2862 = vmatprep.subr.mxu0 0.0
        %2863 = vmatpush2.msra.mxu0 0.0
        %2864 = vmatprep.subr.mxu0 0.0
        %2865 = vmatpush2.msra.mxu0 0.0
        %2866 = vmatprep.subr.mxu0 0.0
        %2867 = vmatpush2.msra.mxu0 0.0
        %2868 = vmatprep.subr.mxu0 0.0
        %2869 = vmatpush2.msra.mxu0 0.0
        %2870 = vmatprep.subr.mxu0 0.0
        %2871 = vmatpush2.msra.mxu0 0.0
        %2872 = vmatprep.subr.mxu0 0.0
        %2873 = vmatpush2.msra.mxu0 0.0
        %2874 = vmatprep.subr.mxu0 0.0
        %2875 = vmatpush2.msra.mxu0 0.0
        %2876 = vmatprep.subr.mxu0 0.0
        %2877 = vmatpush2.msra.mxu0 0.0
        %2878 = vmatprep.subr.mxu0 0.0
        %2879 = vmatpush2.msra.mxu0 0.0
        %2880 = vmatprep.mubr.f32.mxu0 0.0
        %2881 = vmatmul.mubr.f32.gmra.mxu0 %v2639
        %v2882 = vpop.f32.mrf.mxu0
        %v2883 = vadd.f32 %v2813, %v2882
        %v2884 = vpop.f32.mrf.mxu0
        %2885 = vdwg.mxu0
        %s2886 = scalar_lea.vmem [#allocation9], 640
        %v2887 = vld [vmem:[%s2886] sm:$0xff]
        %v2888 = vld [vmem:[%s2886 + $0x8] sm:$0xff]
        %v2889 = vld [vmem:[%s2886 + $0x10] sm:$0xff]
        %v2890 = vld [vmem:[%s2886 + $0x18] sm:$0xff]
        %v2891 = vld [vmem:[%s2886 + $0x20] sm:$0xff]
        %v2892 = vld [vmem:[%s2886 + $0x28] sm:$0xff]
        %v2893 = vld [vmem:[%s2886 + $0x30] sm:$0xff]
        %v2894 = vld [vmem:[%s2886 + $0x38] sm:$0xff]
        %v2895 = vld [vmem:[%s2886 + $0x40] sm:$0xff]
        %v2896 = vld [vmem:[%s2886 + $0x48] sm:$0xff]
        %v2897 = vld [vmem:[%s2886 + $0x50] sm:$0xff]
        %v2898 = vld [vmem:[%s2886 + $0x58] sm:$0xff]
        %v2899 = vld [vmem:[%s2886 + $0x60] sm:$0xff]
        %v2900 = vld [vmem:[%s2886 + $0x68] sm:$0xff]
        %v2901 = vld [vmem:[%s2886 + $0x70] sm:$0xff]
        %v2902 = vld [vmem:[%s2886 + $0x78] sm:$0xff]
        %2903 = vmatprep.subr.mxu0 0.0
        %2904 = vmatpush1.msra.mxu0 %v2902
        %2905 = vmatprep.subr.mxu0 0.0
        %2906 = vmatpush1.msra.mxu0 %v2901
        %2907 = vmatprep.subr.mxu0 0.0
        %2908 = vmatpush1.msra.mxu0 %v2900
        %2909 = vmatprep.subr.mxu0 0.0
        %2910 = vmatpush1.msra.mxu0 %v2899
        %2911 = vmatprep.subr.mxu0 0.0
        %2912 = vmatpush1.msra.mxu0 %v2898
        %2913 = vmatprep.subr.mxu0 0.0
        %2914 = vmatpush1.msra.mxu0 %v2897
        %2915 = vmatprep.subr.mxu0 0.0
        %2916 = vmatpush1.msra.mxu0 %v2896
        %2917 = vmatprep.subr.mxu0 0.0
        %2918 = vmatpush1.msra.mxu0 %v2895
        %2919 = vmatprep.subr.mxu0 0.0
        %2920 = vmatpush1.msra.mxu0 %v2894
        %2921 = vmatprep.subr.mxu0 0.0
        %2922 = vmatpush1.msra.mxu0 %v2893
        %2923 = vmatprep.subr.mxu0 0.0
        %2924 = vmatpush1.msra.mxu0 %v2892
        %2925 = vmatprep.subr.mxu0 0.0
        %2926 = vmatpush1.msra.mxu0 %v2891
        %2927 = vmatprep.subr.mxu0 0.0
        %2928 = vmatpush1.msra.mxu0 %v2890
        %2929 = vmatprep.subr.mxu0 0.0
        %2930 = vmatpush1.msra.mxu0 %v2889
        %2931 = vmatprep.subr.mxu0 0.0
        %2932 = vmatpush1.msra.mxu0 %v2888
        %2933 = vmatprep.subr.mxu0 0.0
        %2934 = vmatpush1.msra.mxu0 %v2887
        %2935 = vmatprep.subr.mxu0 0.0
        %2936 = vmatpush2.msra.mxu0 0.0
        %2937 = vmatprep.subr.mxu0 0.0
        %2938 = vmatpush2.msra.mxu0 0.0
        %2939 = vmatprep.subr.mxu0 0.0
        %2940 = vmatpush2.msra.mxu0 0.0
        %2941 = vmatprep.subr.mxu0 0.0
        %2942 = vmatpush2.msra.mxu0 0.0
        %2943 = vmatprep.subr.mxu0 0.0
        %2944 = vmatpush2.msra.mxu0 0.0
        %2945 = vmatprep.subr.mxu0 0.0
        %2946 = vmatpush2.msra.mxu0 0.0
        %2947 = vmatprep.subr.mxu0 0.0
        %2948 = vmatpush2.msra.mxu0 0.0
        %2949 = vmatprep.subr.mxu0 0.0
        %2950 = vmatpush2.msra.mxu0 0.0
        %2951 = vmatprep.subr.mxu0 0.0
        %2952 = vmatpush2.msra.mxu0 0.0
        %2953 = vmatprep.subr.mxu0 0.0
        %2954 = vmatpush2.msra.mxu0 0.0
        %2955 = vmatprep.subr.mxu0 0.0
        %2956 = vmatpush2.msra.mxu0 0.0
        %2957 = vmatprep.subr.mxu0 0.0
        %2958 = vmatpush2.msra.mxu0 0.0
        %2959 = vmatprep.subr.mxu0 0.0
        %2960 = vmatpush2.msra.mxu0 0.0
        %2961 = vmatprep.subr.mxu0 0.0
        %2962 = vmatpush2.msra.mxu0 0.0
        %2963 = vmatprep.subr.mxu0 0.0
        %2964 = vmatpush2.msra.mxu0 0.0
        %2965 = vmatprep.subr.mxu0 0.0
        %2966 = vmatpush2.msra.mxu0 0.0
        %2967 = vmatprep.mubr.f32.mxu0 0.0
        %2968 = vmatmul.mubr.f32.gmra.mxu0 %v2709
        %v2969 = vpop.f32.mrf.mxu0
        %v2970 = vadd.f32 0.0, %v2969
        %v2971 = vpop.f32.mrf.mxu0
        %2972 = vdwg.mxu0
        %v2973 = vadd.f32 %v2883, %v2970
        %v2975 = vlaneseq
        %v2976 = vshrl.u32 %v2975, 7
        %v2977 = vsub.s32 0, %v2976
        %v2978 = vrot.slane %v2571, %v2977
        %v2980 = vadd.f32 %v2973, %v2978
        %v2981 = vadd.f32 %v2980, %v2148
        %v2982 = vmax.f32 %v2981, 0.0
        %s2983 = scalar_lea.vmem [#allocation10], 2
        %v2984 = vld [vmem:[%s2983] sm:$0x1]
        %2985 = vmatprep.subr.mxu0 0.0
        %2986 = vmatpush1.msra.mxu0 0.0
        %2987 = vmatprep.subr.mxu0 0.0
        %2988 = vmatpush1.msra.mxu0 0.0
        %2989 = vmatprep.subr.mxu0 0.0
        %2990 = vmatpush1.msra.mxu0 0.0
        %2991 = vmatprep.subr.mxu0 0.0
        %2992 = vmatpush1.msra.mxu0 0.0
        %2993 = vmatprep.subr.mxu0 0.0
        %2994 = vmatpush1.msra.mxu0 0.0
        %2995 = vmatprep.subr.mxu0 0.0
        %2996 = vmatpush1.msra.mxu0 0.0
        %2997 = vmatprep.subr.mxu0 0.0
        %2998 = vmatpush1.msra.mxu0 0.0
        %2999 = vmatprep.subr.mxu0 0.0
        %3000 = vmatpush1.msra.mxu0 0.0
        %3001 = vmatprep.subr.mxu0 0.0
        %3002 = vmatpush1.msra.mxu0 0.0
        %3003 = vmatprep.subr.mxu0 0.0
        %3004 = vmatpush1.msra.mxu0 0.0
        %3005 = vmatprep.subr.mxu0 0.0
        %3006 = vmatpush1.msra.mxu0 0.0
        %3007 = vmatprep.subr.mxu0 0.0
        %3008 = vmatpush1.msra.mxu0 0.0
        %3009 = vmatprep.subr.mxu0 0.0
        %3010 = vmatpush1.msra.mxu0 0.0
        %3011 = vmatprep.subr.mxu0 0.0
        %3012 = vmatpush1.msra.mxu0 0.0
        %3013 = vmatprep.subr.mxu0 0.0
        %3014 = vmatpush1.msra.mxu0 0.0
        %3015 = vmatprep.subr.mxu0 0.0
        %3016 = vmatpush1.msra.mxu0 %v2982
        %3017 = vmatprep.subr.mxu0 0.0
        %3018 = vmatpush2.msra.mxu0 0.0
        %3019 = vmatprep.subr.mxu0 0.0
        %3020 = vmatpush2.msra.mxu0 0.0
        %3021 = vmatprep.subr.mxu0 0.0
        %3022 = vmatpush2.msra.mxu0 0.0
        %3023 = vmatprep.subr.mxu0 0.0
        %3024 = vmatpush2.msra.mxu0 0.0
        %3025 = vmatprep.subr.mxu0 0.0
        %3026 = vmatpush2.msra.mxu0 0.0
        %3027 = vmatprep.subr.mxu0 0.0
        %3028 = vmatpush2.msra.mxu0 0.0
        %3029 = vmatprep.subr.mxu0 0.0
        %3030 = vmatpush2.msra.mxu0 0.0
        %3031 = vmatprep.subr.mxu0 0.0
        %3032 = vmatpush2.msra.mxu0 0.0
        %3033 = vmatprep.subr.mxu0 0.0
        %3034 = vmatpush2.msra.mxu0 0.0
        %3035 = vmatprep.subr.mxu0 0.0
        %3036 = vmatpush2.msra.mxu0 0.0
        %3037 = vmatprep.subr.mxu0 0.0
        %3038 = vmatpush2.msra.mxu0 0.0
        %3039 = vmatprep.subr.mxu0 0.0
        %3040 = vmatpush2.msra.mxu0 0.0
        %3041 = vmatprep.subr.mxu0 0.0
        %3042 = vmatpush2.msra.mxu0 0.0
        %3043 = vmatprep.subr.mxu0 0.0
        %3044 = vmatpush2.msra.mxu0 0.0
        %3045 = vmatprep.subr.mxu0 0.0
        %3046 = vmatpush2.msra.mxu0 0.0
        %3047 = vmatprep.subr.mxu0 0.0
        %3048 = vmatpush2.msra.mxu0 0.0
        %3049 = vmatprep.mubr.f32.mxu0 0.0
        %3050 = vmatmul.mubr.f32.gmra.mxu0 %v2156
        %v3051 = vpop.f32.mrf.mxu0
        %v3052 = vadd.f32 0.0, %v3051
        %v3053 = vpop.f32.mrf.mxu0
        %3054 = vdwg.mxu0
        %3055 = vmatprep.subr.mxu0 0.0
        %3056 = vmatpush1.msra.mxu0 0.0
        %3057 = vmatprep.subr.mxu0 0.0
        %3058 = vmatpush1.msra.mxu0 0.0
        %3059 = vmatprep.subr.mxu0 0.0
        %3060 = vmatpush1.msra.mxu0 0.0
        %3061 = vmatprep.subr.mxu0 0.0
        %3062 = vmatpush1.msra.mxu0 0.0
        %3063 = vmatprep.subr.mxu0 0.0
        %3064 = vmatpush1.msra.mxu0 0.0
        %3065 = vmatprep.subr.mxu0 0.0
        %3066 = vmatpush1.msra.mxu0 0.0
        %3067 = vmatprep.subr.mxu0 0.0
        %3068 = vmatpush1.msra.mxu0 0.0
        %3069 = vmatprep.subr.mxu0 0.0
        %3070 = vmatpush1.msra.mxu0 0.0
        %3071 = vmatprep.subr.mxu0 0.0
        %3072 = vmatpush1.msra.mxu0 0.0
        %3073 = vmatprep.subr.mxu0 0.0
        %3074 = vmatpush1.msra.mxu0 0.0
        %3075 = vmatprep.subr.mxu0 0.0
        %3076 = vmatpush1.msra.mxu0 0.0
        %3077 = vmatprep.subr.mxu0 0.0
        %3078 = vmatpush1.msra.mxu0 0.0
        %3079 = vmatprep.subr.mxu0 0.0
        %3080 = vmatpush1.msra.mxu0 0.0
        %3081 = vmatprep.subr.mxu0 0.0
        %3082 = vmatpush1.msra.mxu0 0.0
        %3083 = vmatprep.subr.mxu0 0.0
        %3084 = vmatpush1.msra.mxu0 0.0
        %3085 = vmatprep.subr.mxu0 0.0
        %3086 = vmatpush1.msra.mxu0 %v2982
        %3087 = vmatprep.subr.mxu0 0.0
        %3088 = vmatpush2.msra.mxu0 0.0
        %3089 = vmatprep.subr.mxu0 0.0
        %3090 = vmatpush2.msra.mxu0 0.0
        %3091 = vmatprep.subr.mxu0 0.0
        %3092 = vmatpush2.msra.mxu0 0.0
        %3093 = vmatprep.subr.mxu0 0.0
        %3094 = vmatpush2.msra.mxu0 0.0
        %3095 = vmatprep.subr.mxu0 0.0
        %3096 = vmatpush2.msra.mxu0 0.0
        %3097 = vmatprep.subr.mxu0 0.0
        %3098 = vmatpush2.msra.mxu0 0.0
        %3099 = vmatprep.subr.mxu0 0.0
        %3100 = vmatpush2.msra.mxu0 0.0
        %3101 = vmatprep.subr.mxu0 0.0
        %3102 = vmatpush2.msra.mxu0 0.0
        %3103 = vmatprep.subr.mxu0 0.0
        %3104 = vmatpush2.msra.mxu0 0.0
        %3105 = vmatprep.subr.mxu0 0.0
        %3106 = vmatpush2.msra.mxu0 0.0
        %3107 = vmatprep.subr.mxu0 0.0
        %3108 = vmatpush2.msra.mxu0 0.0
        %3109 = vmatprep.subr.mxu0 0.0
        %3110 = vmatpush2.msra.mxu0 0.0
        %3111 = vmatprep.subr.mxu0 0.0
        %3112 = vmatpush2.msra.mxu0 0.0
        %3113 = vmatprep.subr.mxu0 0.0
        %3114 = vmatpush2.msra.mxu0 0.0
        %3115 = vmatprep.subr.mxu0 0.0
        %3116 = vmatpush2.msra.mxu0 0.0
        %3117 = vmatprep.subr.mxu0 0.0
        %3118 = vmatpush2.msra.mxu0 0.0
        %3119 = vmatprep.mubr.f32.mxu0 0.0
        %3120 = vmatmul.mubr.f32.gmra.mxu0 %v2229
        %v3121 = vpop.f32.mrf.mxu0
        %v3122 = vadd.f32 0.0, %v3121
        %v3123 = vpop.f32.mrf.mxu0
        %3124 = vdwg.mxu0
        %s3125 = scalar_lea.vmem [#allocation9], 768
        %v3126 = vld [vmem:[%s3125] sm:$0xff]
        %v3127 = vld [vmem:[%s3125 + $0x8] sm:$0xff]
        %v3128 = vld [vmem:[%s3125 + $0x10] sm:$0xff]
        %v3129 = vld [vmem:[%s3125 + $0x18] sm:$0xff]
        %v3130 = vld [vmem:[%s3125 + $0x20] sm:$0xff]
        %v3131 = vld [vmem:[%s3125 + $0x28] sm:$0xff]
        %v3132 = vld [vmem:[%s3125 + $0x30] sm:$0xff]
        %v3133 = vld [vmem:[%s3125 + $0x38] sm:$0xff]
        %v3134 = vld [vmem:[%s3125 + $0x40] sm:$0xff]
        %v3135 = vld [vmem:[%s3125 + $0x48] sm:$0xff]
        %v3136 = vld [vmem:[%s3125 + $0x50] sm:$0xff]
        %v3137 = vld [vmem:[%s3125 + $0x58] sm:$0xff]
        %v3138 = vld [vmem:[%s3125 + $0x60] sm:$0xff]
        %v3139 = vld [vmem:[%s3125 + $0x68] sm:$0xff]
        %v3140 = vld [vmem:[%s3125 + $0x70] sm:$0xff]
        %v3141 = vld [vmem:[%s3125 + $0x78] sm:$0xff]
        %s3142 = scalar_lea.vmem [#allocation9], 896
        %v3143 = vld [vmem:[%s3142] sm:$0xff]
        %v3144 = vld [vmem:[%s3142 + $0x8] sm:$0xff]
        %v3145 = vld [vmem:[%s3142 + $0x10] sm:$0xff]
        %v3146 = vld [vmem:[%s3142 + $0x18] sm:$0xff]
        %v3147 = vld [vmem:[%s3142 + $0x20] sm:$0xff]
        %v3148 = vld [vmem:[%s3142 + $0x28] sm:$0xff]
        %v3149 = vld [vmem:[%s3142 + $0x30] sm:$0xff]
        %v3150 = vld [vmem:[%s3142 + $0x38] sm:$0xff]
        %v3151 = vld [vmem:[%s3142 + $0x40] sm:$0xff]
        %v3152 = vld [vmem:[%s3142 + $0x48] sm:$0xff]
        %v3153 = vld [vmem:[%s3142 + $0x50] sm:$0xff]
        %v3154 = vld [vmem:[%s3142 + $0x58] sm:$0xff]
        %v3155 = vld [vmem:[%s3142 + $0x60] sm:$0xff]
        %v3156 = vld [vmem:[%s3142 + $0x68] sm:$0xff]
        %v3157 = vld [vmem:[%s3142 + $0x70] sm:$0xff]
        %v3158 = vld [vmem:[%s3142 + $0x78] sm:$0xff]
        %3159 = vmatprep.subr.mxu0 0.0
        %3160 = vmatpush1.msra.mxu0 %v3158
        %3161 = vmatprep.subr.mxu0 0.0
        %3162 = vmatpush1.msra.mxu0 %v3157
        %3163 = vmatprep.subr.mxu0 0.0
        %3164 = vmatpush1.msra.mxu0 %v3156
        %3165 = vmatprep.subr.mxu0 0.0
        %3166 = vmatpush1.msra.mxu0 %v3155
        %3167 = vmatprep.subr.mxu0 0.0
        %3168 = vmatpush1.msra.mxu0 %v3154
        %3169 = vmatprep.subr.mxu0 0.0
        %3170 = vmatpush1.msra.mxu0 %v3153
        %3171 = vmatprep.subr.mxu0 0.0
        %3172 = vmatpush1.msra.mxu0 %v3152
        %3173 = vmatprep.subr.mxu0 0.0
        %3174 = vmatpush1.msra.mxu0 %v3151
        %3175 = vmatprep.subr.mxu0 0.0
        %3176 = vmatpush1.msra.mxu0 %v3150
        %3177 = vmatprep.subr.mxu0 0.0
        %3178 = vmatpush1.msra.mxu0 %v3149
        %3179 = vmatprep.subr.mxu0 0.0
        %3180 = vmatpush1.msra.mxu0 %v3148
        %3181 = vmatprep.subr.mxu0 0.0
        %3182 = vmatpush1.msra.mxu0 %v3147
        %3183 = vmatprep.subr.mxu0 0.0
        %3184 = vmatpush1.msra.mxu0 %v3146
        %3185 = vmatprep.subr.mxu0 0.0
        %3186 = vmatpush1.msra.mxu0 %v3145
        %3187 = vmatprep.subr.mxu0 0.0
        %3188 = vmatpush1.msra.mxu0 %v3144
        %3189 = vmatprep.subr.mxu0 0.0
        %3190 = vmatpush1.msra.mxu0 %v3143
        %3191 = vmatprep.subr.mxu0 0.0
        %3192 = vmatpush2.msra.mxu0 0.0
        %3193 = vmatprep.subr.mxu0 0.0
        %3194 = vmatpush2.msra.mxu0 0.0
        %3195 = vmatprep.subr.mxu0 0.0
        %3196 = vmatpush2.msra.mxu0 0.0
        %3197 = vmatprep.subr.mxu0 0.0
        %3198 = vmatpush2.msra.mxu0 0.0
        %3199 = vmatprep.subr.mxu0 0.0
        %3200 = vmatpush2.msra.mxu0 0.0
        %3201 = vmatprep.subr.mxu0 0.0
        %3202 = vmatpush2.msra.mxu0 0.0
        %3203 = vmatprep.subr.mxu0 0.0
        %3204 = vmatpush2.msra.mxu0 0.0
        %3205 = vmatprep.subr.mxu0 0.0
        %3206 = vmatpush2.msra.mxu0 0.0
        %3207 = vmatprep.subr.mxu0 0.0
        %3208 = vmatpush2.msra.mxu0 0.0
        %3209 = vmatprep.subr.mxu0 0.0
        %3210 = vmatpush2.msra.mxu0 0.0
        %3211 = vmatprep.subr.mxu0 0.0
        %3212 = vmatpush2.msra.mxu0 0.0
        %3213 = vmatprep.subr.mxu0 0.0
        %3214 = vmatpush2.msra.mxu0 0.0
        %3215 = vmatprep.subr.mxu0 0.0
        %3216 = vmatpush2.msra.mxu0 0.0
        %3217 = vmatprep.subr.mxu0 0.0
        %3218 = vmatpush2.msra.mxu0 0.0
        %3219 = vmatprep.subr.mxu0 0.0
        %3220 = vmatpush2.msra.mxu0 0.0
        %3221 = vmatprep.subr.mxu0 0.0
        %3222 = vmatpush2.msra.mxu0 0.0
        %3223 = vmatprep.mubr.f32.mxu0 0.0
        %3224 = vmatmul.mubr.f32.gmra.mxu0 %v2982
        %v3225 = vpop.f32.mrf.mxu0
        %v3226 = vadd.f32 0.0, %v3225
        %v3227 = vpop.f32.mrf.mxu0
        %3228 = vdwg.mxu0
        %3229 = vmatprep.subr.mxu0 0.0
        %3230 = vmatpush1.msra.mxu0 %v3141
        %3231 = vmatprep.subr.mxu0 0.0
        %3232 = vmatpush1.msra.mxu0 %v3140
        %3233 = vmatprep.subr.mxu0 0.0
        %3234 = vmatpush1.msra.mxu0 %v3139
        %3235 = vmatprep.subr.mxu0 0.0
        %3236 = vmatpush1.msra.mxu0 %v3138
        %3237 = vmatprep.subr.mxu0 0.0
        %3238 = vmatpush1.msra.mxu0 %v3137
        %3239 = vmatprep.subr.mxu0 0.0
        %3240 = vmatpush1.msra.mxu0 %v3136
        %3241 = vmatprep.subr.mxu0 0.0
        %3242 = vmatpush1.msra.mxu0 %v3135
        %3243 = vmatprep.subr.mxu0 0.0
        %3244 = vmatpush1.msra.mxu0 %v3134
        %3245 = vmatprep.subr.mxu0 0.0
        %3246 = vmatpush1.msra.mxu0 %v3133
        %3247 = vmatprep.subr.mxu0 0.0
        %3248 = vmatpush1.msra.mxu0 %v3132
        %3249 = vmatprep.subr.mxu0 0.0
        %3250 = vmatpush1.msra.mxu0 %v3131
        %3251 = vmatprep.subr.mxu0 0.0
        %3252 = vmatpush1.msra.mxu0 %v3130
        %3253 = vmatprep.subr.mxu0 0.0
        %3254 = vmatpush1.msra.mxu0 %v3129
        %3255 = vmatprep.subr.mxu0 0.0
        %3256 = vmatpush1.msra.mxu0 %v3128
        %3257 = vmatprep.subr.mxu0 0.0
        %3258 = vmatpush1.msra.mxu0 %v3127
        %3259 = vmatprep.subr.mxu0 0.0
        %3260 = vmatpush1.msra.mxu0 %v3126
        %3261 = vmatprep.subr.mxu0 0.0
        %3262 = vmatpush2.msra.mxu0 0.0
        %3263 = vmatprep.subr.mxu0 0.0
        %3264 = vmatpush2.msra.mxu0 0.0
        %3265 = vmatprep.subr.mxu0 0.0
        %3266 = vmatpush2.msra.mxu0 0.0
        %3267 = vmatprep.subr.mxu0 0.0
        %3268 = vmatpush2.msra.mxu0 0.0
        %3269 = vmatprep.subr.mxu0 0.0
        %3270 = vmatpush2.msra.mxu0 0.0
        %3271 = vmatprep.subr.mxu0 0.0
        %3272 = vmatpush2.msra.mxu0 0.0
        %3273 = vmatprep.subr.mxu0 0.0
        %3274 = vmatpush2.msra.mxu0 0.0
        %3275 = vmatprep.subr.mxu0 0.0
        %3276 = vmatpush2.msra.mxu0 0.0
        %3277 = vmatprep.subr.mxu0 0.0
        %3278 = vmatpush2.msra.mxu0 0.0
        %3279 = vmatprep.subr.mxu0 0.0
        %3280 = vmatpush2.msra.mxu0 0.0
        %3281 = vmatprep.subr.mxu0 0.0
        %3282 = vmatpush2.msra.mxu0 0.0
        %3283 = vmatprep.subr.mxu0 0.0
        %3284 = vmatpush2.msra.mxu0 0.0
        %3285 = vmatprep.subr.mxu0 0.0
        %3286 = vmatpush2.msra.mxu0 0.0
        %3287 = vmatprep.subr.mxu0 0.0
        %3288 = vmatpush2.msra.mxu0 0.0
        %3289 = vmatprep.subr.mxu0 0.0
        %3290 = vmatpush2.msra.mxu0 0.0
        %3291 = vmatprep.subr.mxu0 0.0
        %3292 = vmatpush2.msra.mxu0 0.0
        %3293 = vmatprep.mubr.f32.mxu0 0.0
        %3294 = vmatmul.mubr.f32.gmra.mxu0 %v3052
        %v3295 = vpop.f32.mrf.mxu0
        %v3296 = vadd.f32 %v3226, %v3295
        %v3297 = vpop.f32.mrf.mxu0
        %3298 = vdwg.mxu0
        %s3299 = scalar_lea.vmem [#allocation9], 1024
        %v3300 = vld [vmem:[%s3299] sm:$0xff]
        %v3301 = vld [vmem:[%s3299 + $0x8] sm:$0xff]
        %v3302 = vld [vmem:[%s3299 + $0x10] sm:$0xff]
        %v3303 = vld [vmem:[%s3299 + $0x18] sm:$0xff]
        %v3304 = vld [vmem:[%s3299 + $0x20] sm:$0xff]
        %v3305 = vld [vmem:[%s3299 + $0x28] sm:$0xff]
        %v3306 = vld [vmem:[%s3299 + $0x30] sm:$0xff]
        %v3307 = vld [vmem:[%s3299 + $0x38] sm:$0xff]
        %v3308 = vld [vmem:[%s3299 + $0x40] sm:$0xff]
        %v3309 = vld [vmem:[%s3299 + $0x48] sm:$0xff]
        %v3310 = vld [vmem:[%s3299 + $0x50] sm:$0xff]
        %v3311 = vld [vmem:[%s3299 + $0x58] sm:$0xff]
        %v3312 = vld [vmem:[%s3299 + $0x60] sm:$0xff]
        %v3313 = vld [vmem:[%s3299 + $0x68] sm:$0xff]
        %v3314 = vld [vmem:[%s3299 + $0x70] sm:$0xff]
        %v3315 = vld [vmem:[%s3299 + $0x78] sm:$0xff]
        %3316 = vmatprep.subr.mxu0 0.0
        %3317 = vmatpush1.msra.mxu0 %v3315
        %3318 = vmatprep.subr.mxu0 0.0
        %3319 = vmatpush1.msra.mxu0 %v3314
        %3320 = vmatprep.subr.mxu0 0.0
        %3321 = vmatpush1.msra.mxu0 %v3313
        %3322 = vmatprep.subr.mxu0 0.0
        %3323 = vmatpush1.msra.mxu0 %v3312
        %3324 = vmatprep.subr.mxu0 0.0
        %3325 = vmatpush1.msra.mxu0 %v3311
        %3326 = vmatprep.subr.mxu0 0.0
        %3327 = vmatpush1.msra.mxu0 %v3310
        %3328 = vmatprep.subr.mxu0 0.0
        %3329 = vmatpush1.msra.mxu0 %v3309
        %3330 = vmatprep.subr.mxu0 0.0
        %3331 = vmatpush1.msra.mxu0 %v3308
        %3332 = vmatprep.subr.mxu0 0.0
        %3333 = vmatpush1.msra.mxu0 %v3307
        %3334 = vmatprep.subr.mxu0 0.0
        %3335 = vmatpush1.msra.mxu0 %v3306
        %3336 = vmatprep.subr.mxu0 0.0
        %3337 = vmatpush1.msra.mxu0 %v3305
        %3338 = vmatprep.subr.mxu0 0.0
        %3339 = vmatpush1.msra.mxu0 %v3304
        %3340 = vmatprep.subr.mxu0 0.0
        %3341 = vmatpush1.msra.mxu0 %v3303
        %3342 = vmatprep.subr.mxu0 0.0
        %3343 = vmatpush1.msra.mxu0 %v3302
        %3344 = vmatprep.subr.mxu0 0.0
        %3345 = vmatpush1.msra.mxu0 %v3301
        %3346 = vmatprep.subr.mxu0 0.0
        %3347 = vmatpush1.msra.mxu0 %v3300
        %3348 = vmatprep.subr.mxu0 0.0
        %3349 = vmatpush2.msra.mxu0 0.0
        %3350 = vmatprep.subr.mxu0 0.0
        %3351 = vmatpush2.msra.mxu0 0.0
        %3352 = vmatprep.subr.mxu0 0.0
        %3353 = vmatpush2.msra.mxu0 0.0
        %3354 = vmatprep.subr.mxu0 0.0
        %3355 = vmatpush2.msra.mxu0 0.0
        %3356 = vmatprep.subr.mxu0 0.0
        %3357 = vmatpush2.msra.mxu0 0.0
        %3358 = vmatprep.subr.mxu0 0.0
        %3359 = vmatpush2.msra.mxu0 0.0
        %3360 = vmatprep.subr.mxu0 0.0
        %3361 = vmatpush2.msra.mxu0 0.0
        %3362 = vmatprep.subr.mxu0 0.0
        %3363 = vmatpush2.msra.mxu0 0.0
        %3364 = vmatprep.subr.mxu0 0.0
        %3365 = vmatpush2.msra.mxu0 0.0
        %3366 = vmatprep.subr.mxu0 0.0
        %3367 = vmatpush2.msra.mxu0 0.0
        %3368 = vmatprep.subr.mxu0 0.0
        %3369 = vmatpush2.msra.mxu0 0.0
        %3370 = vmatprep.subr.mxu0 0.0
        %3371 = vmatpush2.msra.mxu0 0.0
        %3372 = vmatprep.subr.mxu0 0.0
        %3373 = vmatpush2.msra.mxu0 0.0
        %3374 = vmatprep.subr.mxu0 0.0
        %3375 = vmatpush2.msra.mxu0 0.0
        %3376 = vmatprep.subr.mxu0 0.0
        %3377 = vmatpush2.msra.mxu0 0.0
        %3378 = vmatprep.subr.mxu0 0.0
        %3379 = vmatpush2.msra.mxu0 0.0
        %3380 = vmatprep.mubr.f32.mxu0 0.0
        %3381 = vmatmul.mubr.f32.gmra.mxu0 %v3122
        %v3382 = vpop.f32.mrf.mxu0
        %v3383 = vadd.f32 0.0, %v3382
        %v3384 = vpop.f32.mrf.mxu0
        %3385 = vdwg.mxu0
        %v3386 = vadd.f32 %v3296, %v3383
        %v3388 = vlaneseq
        %v3389 = vshrl.u32 %v3388, 7
        %v3390 = vsub.s32 0, %v3389
        %v3391 = vrot.slane %v2984, %v3390
        %v3393 = vadd.f32 %v3386, %v3391
        %v3394 = vmax.f32 %v3393, 0.0
        %s3395 = scalar_lea.vmem [#allocation10], 3
        %v3396 = vld [vmem:[%s3395] sm:$0x1]
        %3397 = vmatprep.subr.mxu0 0.0
        %3398 = vmatpush1.msra.mxu0 0.0
        %3399 = vmatprep.subr.mxu0 0.0
        %3400 = vmatpush1.msra.mxu0 0.0
        %3401 = vmatprep.subr.mxu0 0.0
        %3402 = vmatpush1.msra.mxu0 0.0
        %3403 = vmatprep.subr.mxu0 0.0
        %3404 = vmatpush1.msra.mxu0 0.0
        %3405 = vmatprep.subr.mxu0 0.0
        %3406 = vmatpush1.msra.mxu0 0.0
        %3407 = vmatprep.subr.mxu0 0.0
        %3408 = vmatpush1.msra.mxu0 0.0
        %3409 = vmatprep.subr.mxu0 0.0
        %3410 = vmatpush1.msra.mxu0 0.0
        %3411 = vmatprep.subr.mxu0 0.0
        %3412 = vmatpush1.msra.mxu0 0.0
        %3413 = vmatprep.subr.mxu0 0.0
        %3414 = vmatpush1.msra.mxu0 0.0
        %3415 = vmatprep.subr.mxu0 0.0
        %3416 = vmatpush1.msra.mxu0 0.0
        %3417 = vmatprep.subr.mxu0 0.0
        %3418 = vmatpush1.msra.mxu0 0.0
        %3419 = vmatprep.subr.mxu0 0.0
        %3420 = vmatpush1.msra.mxu0 0.0
        %3421 = vmatprep.subr.mxu0 0.0
        %3422 = vmatpush1.msra.mxu0 0.0
        %3423 = vmatprep.subr.mxu0 0.0
        %3424 = vmatpush1.msra.mxu0 0.0
        %3425 = vmatprep.subr.mxu0 0.0
        %3426 = vmatpush1.msra.mxu0 0.0
        %3427 = vmatprep.subr.mxu0 0.0
        %3428 = vmatpush1.msra.mxu0 %v3394
        %3429 = vmatprep.subr.mxu0 0.0
        %3430 = vmatpush2.msra.mxu0 0.0
        %3431 = vmatprep.subr.mxu0 0.0
        %3432 = vmatpush2.msra.mxu0 0.0
        %3433 = vmatprep.subr.mxu0 0.0
        %3434 = vmatpush2.msra.mxu0 0.0
        %3435 = vmatprep.subr.mxu0 0.0
        %3436 = vmatpush2.msra.mxu0 0.0
        %3437 = vmatprep.subr.mxu0 0.0
        %3438 = vmatpush2.msra.mxu0 0.0
        %3439 = vmatprep.subr.mxu0 0.0
        %3440 = vmatpush2.msra.mxu0 0.0
        %3441 = vmatprep.subr.mxu0 0.0
        %3442 = vmatpush2.msra.mxu0 0.0
        %3443 = vmatprep.subr.mxu0 0.0
        %3444 = vmatpush2.msra.mxu0 0.0
        %3445 = vmatprep.subr.mxu0 0.0
        %3446 = vmatpush2.msra.mxu0 0.0
        %3447 = vmatprep.subr.mxu0 0.0
        %3448 = vmatpush2.msra.mxu0 0.0
        %3449 = vmatprep.subr.mxu0 0.0
        %3450 = vmatpush2.msra.mxu0 0.0
        %3451 = vmatprep.subr.mxu0 0.0
        %3452 = vmatpush2.msra.mxu0 0.0
        %3453 = vmatprep.subr.mxu0 0.0
        %3454 = vmatpush2.msra.mxu0 0.0
        %3455 = vmatprep.subr.mxu0 0.0
        %3456 = vmatpush2.msra.mxu0 0.0
        %3457 = vmatprep.subr.mxu0 0.0
        %3458 = vmatpush2.msra.mxu0 0.0
        %3459 = vmatprep.subr.mxu0 0.0
        %3460 = vmatpush2.msra.mxu0 0.0
        %3461 = vmatprep.mubr.f32.mxu0 0.0
        %3462 = vmatmul.mubr.f32.gmra.mxu0 %v2156
        %v3463 = vpop.f32.mrf.mxu0
        %v3464 = vadd.f32 0.0, %v3463
        %v3465 = vpop.f32.mrf.mxu0
        %3466 = vdwg.mxu0
        %3467 = vmatprep.subr.mxu0 0.0
        %3468 = vmatpush1.msra.mxu0 0.0
        %3469 = vmatprep.subr.mxu0 0.0
        %3470 = vmatpush1.msra.mxu0 0.0
        %3471 = vmatprep.subr.mxu0 0.0
        %3472 = vmatpush1.msra.mxu0 0.0
        %3473 = vmatprep.subr.mxu0 0.0
        %3474 = vmatpush1.msra.mxu0 0.0
        %3475 = vmatprep.subr.mxu0 0.0
        %3476 = vmatpush1.msra.mxu0 0.0
        %3477 = vmatprep.subr.mxu0 0.0
        %3478 = vmatpush1.msra.mxu0 0.0
        %3479 = vmatprep.subr.mxu0 0.0
        %3480 = vmatpush1.msra.mxu0 0.0
        %3481 = vmatprep.subr.mxu0 0.0
        %3482 = vmatpush1.msra.mxu0 0.0
        %3483 = vmatprep.subr.mxu0 0.0
        %3484 = vmatpush1.msra.mxu0 0.0
        %3485 = vmatprep.subr.mxu0 0.0
        %3486 = vmatpush1.msra.mxu0 0.0
        %3487 = vmatprep.subr.mxu0 0.0
        %3488 = vmatpush1.msra.mxu0 0.0
        %3489 = vmatprep.subr.mxu0 0.0
        %3490 = vmatpush1.msra.mxu0 0.0
        %3491 = vmatprep.subr.mxu0 0.0
        %3492 = vmatpush1.msra.mxu0 0.0
        %3493 = vmatprep.subr.mxu0 0.0
        %3494 = vmatpush1.msra.mxu0 0.0
        %3495 = vmatprep.subr.mxu0 0.0
        %3496 = vmatpush1.msra.mxu0 0.0
        %3497 = vmatprep.subr.mxu0 0.0
        %3498 = vmatpush1.msra.mxu0 %v3394
        %3499 = vmatprep.subr.mxu0 0.0
        %3500 = vmatpush2.msra.mxu0 0.0
        %3501 = vmatprep.subr.mxu0 0.0
        %3502 = vmatpush2.msra.mxu0 0.0
        %3503 = vmatprep.subr.mxu0 0.0
        %3504 = vmatpush2.msra.mxu0 0.0
        %3505 = vmatprep.subr.mxu0 0.0
        %3506 = vmatpush2.msra.mxu0 0.0
        %3507 = vmatprep.subr.mxu0 0.0
        %3508 = vmatpush2.msra.mxu0 0.0
        %3509 = vmatprep.subr.mxu0 0.0
        %3510 = vmatpush2.msra.mxu0 0.0
        %3511 = vmatprep.subr.mxu0 0.0
        %3512 = vmatpush2.msra.mxu0 0.0
        %3513 = vmatprep.subr.mxu0 0.0
        %3514 = vmatpush2.msra.mxu0 0.0
        %3515 = vmatprep.subr.mxu0 0.0
        %3516 = vmatpush2.msra.mxu0 0.0
        %3517 = vmatprep.subr.mxu0 0.0
        %3518 = vmatpush2.msra.mxu0 0.0
        %3519 = vmatprep.subr.mxu0 0.0
        %3520 = vmatpush2.msra.mxu0 0.0
        %3521 = vmatprep.subr.mxu0 0.0
        %3522 = vmatpush2.msra.mxu0 0.0
        %3523 = vmatprep.subr.mxu0 0.0
        %3524 = vmatpush2.msra.mxu0 0.0
        %3525 = vmatprep.subr.mxu0 0.0
        %3526 = vmatpush2.msra.mxu0 0.0
        %3527 = vmatprep.subr.mxu0 0.0
        %3528 = vmatpush2.msra.mxu0 0.0
        %3529 = vmatprep.subr.mxu0 0.0
        %3530 = vmatpush2.msra.mxu0 0.0
        %3531 = vmatprep.mubr.f32.mxu0 0.0
        %3532 = vmatmul.mubr.f32.gmra.mxu0 %v2229
        %v3533 = vpop.f32.mrf.mxu0
        %v3534 = vadd.f32 0.0, %v3533
        %v3535 = vpop.f32.mrf.mxu0
        %3536 = vdwg.mxu0
        %s3537 = scalar_lea.vmem [#allocation9], 1152
        %v3538 = vld [vmem:[%s3537] sm:$0xff]
        %v3539 = vld [vmem:[%s3537 + $0x8] sm:$0xff]
        %v3540 = vld [vmem:[%s3537 + $0x10] sm:$0xff]
        %v3541 = vld [vmem:[%s3537 + $0x18] sm:$0xff]
        %v3542 = vld [vmem:[%s3537 + $0x20] sm:$0xff]
        %v3543 = vld [vmem:[%s3537 + $0x28] sm:$0xff]
        %v3544 = vld [vmem:[%s3537 + $0x30] sm:$0xff]
        %v3545 = vld [vmem:[%s3537 + $0x38] sm:$0xff]
        %v3546 = vld [vmem:[%s3537 + $0x40] sm:$0xff]
        %v3547 = vld [vmem:[%s3537 + $0x48] sm:$0xff]
        %v3548 = vld [vmem:[%s3537 + $0x50] sm:$0xff]
        %v3549 = vld [vmem:[%s3537 + $0x58] sm:$0xff]
        %v3550 = vld [vmem:[%s3537 + $0x60] sm:$0xff]
        %v3551 = vld [vmem:[%s3537 + $0x68] sm:$0xff]
        %v3552 = vld [vmem:[%s3537 + $0x70] sm:$0xff]
        %v3553 = vld [vmem:[%s3537 + $0x78] sm:$0xff]
        %s3554 = scalar_lea.vmem [#allocation9], 1280
        %v3555 = vld [vmem:[%s3554] sm:$0xff]
        %v3556 = vld [vmem:[%s3554 + $0x8] sm:$0xff]
        %v3557 = vld [vmem:[%s3554 + $0x10] sm:$0xff]
        %v3558 = vld [vmem:[%s3554 + $0x18] sm:$0xff]
        %v3559 = vld [vmem:[%s3554 + $0x20] sm:$0xff]
        %v3560 = vld [vmem:[%s3554 + $0x28] sm:$0xff]
        %v3561 = vld [vmem:[%s3554 + $0x30] sm:$0xff]
        %v3562 = vld [vmem:[%s3554 + $0x38] sm:$0xff]
        %v3563 = vld [vmem:[%s3554 + $0x40] sm:$0xff]
        %v3564 = vld [vmem:[%s3554 + $0x48] sm:$0xff]
        %v3565 = vld [vmem:[%s3554 + $0x50] sm:$0xff]
        %v3566 = vld [vmem:[%s3554 + $0x58] sm:$0xff]
        %v3567 = vld [vmem:[%s3554 + $0x60] sm:$0xff]
        %v3568 = vld [vmem:[%s3554 + $0x68] sm:$0xff]
        %v3569 = vld [vmem:[%s3554 + $0x70] sm:$0xff]
        %v3570 = vld [vmem:[%s3554 + $0x78] sm:$0xff]
        %3571 = vmatprep.subr.mxu0 0.0
        %3572 = vmatpush1.msra.mxu0 %v3570
        %3573 = vmatprep.subr.mxu0 0.0
        %3574 = vmatpush1.msra.mxu0 %v3569
        %3575 = vmatprep.subr.mxu0 0.0
        %3576 = vmatpush1.msra.mxu0 %v3568
        %3577 = vmatprep.subr.mxu0 0.0
        %3578 = vmatpush1.msra.mxu0 %v3567
        %3579 = vmatprep.subr.mxu0 0.0
        %3580 = vmatpush1.msra.mxu0 %v3566
        %3581 = vmatprep.subr.mxu0 0.0
        %3582 = vmatpush1.msra.mxu0 %v3565
        %3583 = vmatprep.subr.mxu0 0.0
        %3584 = vmatpush1.msra.mxu0 %v3564
        %3585 = vmatprep.subr.mxu0 0.0
        %3586 = vmatpush1.msra.mxu0 %v3563
        %3587 = vmatprep.subr.mxu0 0.0
        %3588 = vmatpush1.msra.mxu0 %v3562
        %3589 = vmatprep.subr.mxu0 0.0
        %3590 = vmatpush1.msra.mxu0 %v3561
        %3591 = vmatprep.subr.mxu0 0.0
        %3592 = vmatpush1.msra.mxu0 %v3560
        %3593 = vmatprep.subr.mxu0 0.0
        %3594 = vmatpush1.msra.mxu0 %v3559
        %3595 = vmatprep.subr.mxu0 0.0
        %3596 = vmatpush1.msra.mxu0 %v3558
        %3597 = vmatprep.subr.mxu0 0.0
        %3598 = vmatpush1.msra.mxu0 %v3557
        %3599 = vmatprep.subr.mxu0 0.0
        %3600 = vmatpush1.msra.mxu0 %v3556
        %3601 = vmatprep.subr.mxu0 0.0
        %3602 = vmatpush1.msra.mxu0 %v3555
        %3603 = vmatprep.subr.mxu0 0.0
        %3604 = vmatpush2.msra.mxu0 0.0
        %3605 = vmatprep.subr.mxu0 0.0
        %3606 = vmatpush2.msra.mxu0 0.0
        %3607 = vmatprep.subr.mxu0 0.0
        %3608 = vmatpush2.msra.mxu0 0.0
        %3609 = vmatprep.subr.mxu0 0.0
        %3610 = vmatpush2.msra.mxu0 0.0
        %3611 = vmatprep.subr.mxu0 0.0
        %3612 = vmatpush2.msra.mxu0 0.0
        %3613 = vmatprep.subr.mxu0 0.0
        %3614 = vmatpush2.msra.mxu0 0.0
        %3615 = vmatprep.subr.mxu0 0.0
        %3616 = vmatpush2.msra.mxu0 0.0
        %3617 = vmatprep.subr.mxu0 0.0
        %3618 = vmatpush2.msra.mxu0 0.0
        %3619 = vmatprep.subr.mxu0 0.0
        %3620 = vmatpush2.msra.mxu0 0.0
        %3621 = vmatprep.subr.mxu0 0.0
        %3622 = vmatpush2.msra.mxu0 0.0
        %3623 = vmatprep.subr.mxu0 0.0
        %3624 = vmatpush2.msra.mxu0 0.0
        %3625 = vmatprep.subr.mxu0 0.0
        %3626 = vmatpush2.msra.mxu0 0.0
        %3627 = vmatprep.subr.mxu0 0.0
        %3628 = vmatpush2.msra.mxu0 0.0
        %3629 = vmatprep.subr.mxu0 0.0
        %3630 = vmatpush2.msra.mxu0 0.0
        %3631 = vmatprep.subr.mxu0 0.0
        %3632 = vmatpush2.msra.mxu0 0.0
        %3633 = vmatprep.subr.mxu0 0.0
        %3634 = vmatpush2.msra.mxu0 0.0
        %3635 = vmatprep.mubr.f32.mxu0 0.0
        %3636 = vmatmul.mubr.f32.gmra.mxu0 %v3394
        %v3637 = vpop.f32.mrf.mxu0
        %v3638 = vadd.f32 0.0, %v3637
        %v3639 = vpop.f32.mrf.mxu0
        %3640 = vdwg.mxu0
        %3641 = vmatprep.subr.mxu0 0.0
        %3642 = vmatpush1.msra.mxu0 %v3553
        %3643 = vmatprep.subr.mxu0 0.0
        %3644 = vmatpush1.msra.mxu0 %v3552
        %3645 = vmatprep.subr.mxu0 0.0
        %3646 = vmatpush1.msra.mxu0 %v3551
        %3647 = vmatprep.subr.mxu0 0.0
        %3648 = vmatpush1.msra.mxu0 %v3550
        %3649 = vmatprep.subr.mxu0 0.0
        %3650 = vmatpush1.msra.mxu0 %v3549
        %3651 = vmatprep.subr.mxu0 0.0
        %3652 = vmatpush1.msra.mxu0 %v3548
        %3653 = vmatprep.subr.mxu0 0.0
        %3654 = vmatpush1.msra.mxu0 %v3547
        %3655 = vmatprep.subr.mxu0 0.0
        %3656 = vmatpush1.msra.mxu0 %v3546
        %3657 = vmatprep.subr.mxu0 0.0
        %3658 = vmatpush1.msra.mxu0 %v3545
        %3659 = vmatprep.subr.mxu0 0.0
        %3660 = vmatpush1.msra.mxu0 %v3544
        %3661 = vmatprep.subr.mxu0 0.0
        %3662 = vmatpush1.msra.mxu0 %v3543
        %3663 = vmatprep.subr.mxu0 0.0
        %3664 = vmatpush1.msra.mxu0 %v3542
        %3665 = vmatprep.subr.mxu0 0.0
        %3666 = vmatpush1.msra.mxu0 %v3541
        %3667 = vmatprep.subr.mxu0 0.0
        %3668 = vmatpush1.msra.mxu0 %v3540
        %3669 = vmatprep.subr.mxu0 0.0
        %3670 = vmatpush1.msra.mxu0 %v3539
        %3671 = vmatprep.subr.mxu0 0.0
        %3672 = vmatpush1.msra.mxu0 %v3538
        %3673 = vmatprep.subr.mxu0 0.0
        %3674 = vmatpush2.msra.mxu0 0.0
        %3675 = vmatprep.subr.mxu0 0.0
        %3676 = vmatpush2.msra.mxu0 0.0
        %3677 = vmatprep.subr.mxu0 0.0
        %3678 = vmatpush2.msra.mxu0 0.0
        %3679 = vmatprep.subr.mxu0 0.0
        %3680 = vmatpush2.msra.mxu0 0.0
        %3681 = vmatprep.subr.mxu0 0.0
        %3682 = vmatpush2.msra.mxu0 0.0
        %3683 = vmatprep.subr.mxu0 0.0
        %3684 = vmatpush2.msra.mxu0 0.0
        %3685 = vmatprep.subr.mxu0 0.0
        %3686 = vmatpush2.msra.mxu0 0.0
        %3687 = vmatprep.subr.mxu0 0.0
        %3688 = vmatpush2.msra.mxu0 0.0
        %3689 = vmatprep.subr.mxu0 0.0
        %3690 = vmatpush2.msra.mxu0 0.0
        %3691 = vmatprep.subr.mxu0 0.0
        %3692 = vmatpush2.msra.mxu0 0.0
        %3693 = vmatprep.subr.mxu0 0.0
        %3694 = vmatpush2.msra.mxu0 0.0
        %3695 = vmatprep.subr.mxu0 0.0
        %3696 = vmatpush2.msra.mxu0 0.0
        %3697 = vmatprep.subr.mxu0 0.0
        %3698 = vmatpush2.msra.mxu0 0.0
        %3699 = vmatprep.subr.mxu0 0.0
        %3700 = vmatpush2.msra.mxu0 0.0
        %3701 = vmatprep.subr.mxu0 0.0
        %3702 = vmatpush2.msra.mxu0 0.0
        %3703 = vmatprep.subr.mxu0 0.0
        %3704 = vmatpush2.msra.mxu0 0.0
        %3705 = vmatprep.mubr.f32.mxu0 0.0
        %3706 = vmatmul.mubr.f32.gmra.mxu0 %v3464
        %v3707 = vpop.f32.mrf.mxu0
        %v3708 = vadd.f32 %v3638, %v3707
        %v3709 = vpop.f32.mrf.mxu0
        %3710 = vdwg.mxu0
        %s3711 = scalar_lea.vmem [#allocation9], 1408
        %v3712 = vld [vmem:[%s3711] sm:$0xff]
        %v3713 = vld [vmem:[%s3711 + $0x8] sm:$0xff]
        %v3714 = vld [vmem:[%s3711 + $0x10] sm:$0xff]
        %v3715 = vld [vmem:[%s3711 + $0x18] sm:$0xff]
        %v3716 = vld [vmem:[%s3711 + $0x20] sm:$0xff]
        %v3717 = vld [vmem:[%s3711 + $0x28] sm:$0xff]
        %v3718 = vld [vmem:[%s3711 + $0x30] sm:$0xff]
        %v3719 = vld [vmem:[%s3711 + $0x38] sm:$0xff]
        %v3720 = vld [vmem:[%s3711 + $0x40] sm:$0xff]
        %v3721 = vld [vmem:[%s3711 + $0x48] sm:$0xff]
        %v3722 = vld [vmem:[%s3711 + $0x50] sm:$0xff]
        %v3723 = vld [vmem:[%s3711 + $0x58] sm:$0xff]
        %v3724 = vld [vmem:[%s3711 + $0x60] sm:$0xff]
        %v3725 = vld [vmem:[%s3711 + $0x68] sm:$0xff]
        %v3726 = vld [vmem:[%s3711 + $0x70] sm:$0xff]
        %v3727 = vld [vmem:[%s3711 + $0x78] sm:$0xff]
        %3728 = vmatprep.subr.mxu0 0.0
        %3729 = vmatpush1.msra.mxu0 %v3727
        %3730 = vmatprep.subr.mxu0 0.0
        %3731 = vmatpush1.msra.mxu0 %v3726
        %3732 = vmatprep.subr.mxu0 0.0
        %3733 = vmatpush1.msra.mxu0 %v3725
        %3734 = vmatprep.subr.mxu0 0.0
        %3735 = vmatpush1.msra.mxu0 %v3724
        %3736 = vmatprep.subr.mxu0 0.0
        %3737 = vmatpush1.msra.mxu0 %v3723
        %3738 = vmatprep.subr.mxu0 0.0
        %3739 = vmatpush1.msra.mxu0 %v3722
        %3740 = vmatprep.subr.mxu0 0.0
        %3741 = vmatpush1.msra.mxu0 %v3721
        %3742 = vmatprep.subr.mxu0 0.0
        %3743 = vmatpush1.msra.mxu0 %v3720
        %3744 = vmatprep.subr.mxu0 0.0
        %3745 = vmatpush1.msra.mxu0 %v3719
        %3746 = vmatprep.subr.mxu0 0.0
        %3747 = vmatpush1.msra.mxu0 %v3718
        %3748 = vmatprep.subr.mxu0 0.0
        %3749 = vmatpush1.msra.mxu0 %v3717
        %3750 = vmatprep.subr.mxu0 0.0
        %3751 = vmatpush1.msra.mxu0 %v3716
        %3752 = vmatprep.subr.mxu0 0.0
        %3753 = vmatpush1.msra.mxu0 %v3715
        %3754 = vmatprep.subr.mxu0 0.0
        %3755 = vmatpush1.msra.mxu0 %v3714
        %3756 = vmatprep.subr.mxu0 0.0
        %3757 = vmatpush1.msra.mxu0 %v3713
        %3758 = vmatprep.subr.mxu0 0.0
        %3759 = vmatpush1.msra.mxu0 %v3712
        %3760 = vmatprep.subr.mxu0 0.0
        %3761 = vmatpush2.msra.mxu0 0.0
        %3762 = vmatprep.subr.mxu0 0.0
        %3763 = vmatpush2.msra.mxu0 0.0
        %3764 = vmatprep.subr.mxu0 0.0
        %3765 = vmatpush2.msra.mxu0 0.0
        %3766 = vmatprep.subr.mxu0 0.0
        %3767 = vmatpush2.msra.mxu0 0.0
        %3768 = vmatprep.subr.mxu0 0.0
        %3769 = vmatpush2.msra.mxu0 0.0
        %3770 = vmatprep.subr.mxu0 0.0
        %3771 = vmatpush2.msra.mxu0 0.0
        %3772 = vmatprep.subr.mxu0 0.0
        %3773 = vmatpush2.msra.mxu0 0.0
        %3774 = vmatprep.subr.mxu0 0.0
        %3775 = vmatpush2.msra.mxu0 0.0
        %3776 = vmatprep.subr.mxu0 0.0
        %3777 = vmatpush2.msra.mxu0 0.0
        %3778 = vmatprep.subr.mxu0 0.0
        %3779 = vmatpush2.msra.mxu0 0.0
        %3780 = vmatprep.subr.mxu0 0.0
        %3781 = vmatpush2.msra.mxu0 0.0
        %3782 = vmatprep.subr.mxu0 0.0
        %3783 = vmatpush2.msra.mxu0 0.0
        %3784 = vmatprep.subr.mxu0 0.0
        %3785 = vmatpush2.msra.mxu0 0.0
        %3786 = vmatprep.subr.mxu0 0.0
        %3787 = vmatpush2.msra.mxu0 0.0
        %3788 = vmatprep.subr.mxu0 0.0
        %3789 = vmatpush2.msra.mxu0 0.0
        %3790 = vmatprep.subr.mxu0 0.0
        %3791 = vmatpush2.msra.mxu0 0.0
        %3792 = vmatprep.mubr.f32.mxu0 0.0
        %3793 = vmatmul.mubr.f32.gmra.mxu0 %v3534
        %v3794 = vpop.f32.mrf.mxu0
        %v3795 = vadd.f32 0.0, %v3794
        %v3796 = vpop.f32.mrf.mxu0
        %3797 = vdwg.mxu0
        %v3798 = vadd.f32 %v3708, %v3795
        %v3800 = vlaneseq
        %v3801 = vshrl.u32 %v3800, 7
        %v3802 = vsub.s32 0, %v3801
        %v3803 = vrot.slane %v3396, %v3802
        %v3805 = vadd.f32 %v3798, %v3803
        %v3806 = vadd.f32 %v3805, %v2981
        %v3807 = vld [vmem:[#allocation12] sm:$0xff]
        %s3808 = scalar_lea.vmem [#allocation12], 8
        %v3809 = vld [vmem:[%s3808] sm:$0xff]
        %v3810 = vld [vmem:[#allocation15] sm:$0x3]
        %v3812 = vsel %vm2154, %v3807, 0
        %3814 = vmatprep.subr.mxu0 0.0
        %3815 = vmatpush1.msra.mxu0 0.0
        %3816 = vmatprep.subr.mxu0 0.0
        %3817 = vmatpush1.msra.mxu0 0.0
        %3818 = vmatprep.subr.mxu0 0.0
        %3819 = vmatpush1.msra.mxu0 0.0
        %3820 = vmatprep.subr.mxu0 0.0
        %3821 = vmatpush1.msra.mxu0 0.0
        %3822 = vmatprep.subr.mxu0 0.0
        %3823 = vmatpush1.msra.mxu0 0.0
        %3824 = vmatprep.subr.mxu0 0.0
        %3825 = vmatpush1.msra.mxu0 0.0
        %3826 = vmatprep.subr.mxu0 0.0
        %3827 = vmatpush1.msra.mxu0 0.0
        %3828 = vmatprep.subr.mxu0 0.0
        %3829 = vmatpush1.msra.mxu0 0.0
        %3830 = vmatprep.subr.mxu0 0.0
        %3831 = vmatpush1.msra.mxu0 0.0
        %3832 = vmatprep.subr.mxu0 0.0
        %3833 = vmatpush1.msra.mxu0 0.0
        %3834 = vmatprep.subr.mxu0 0.0
        %3835 = vmatpush1.msra.mxu0 0.0
        %3836 = vmatprep.subr.mxu0 0.0
        %3837 = vmatpush1.msra.mxu0 0.0
        %3838 = vmatprep.subr.mxu0 0.0
        %3839 = vmatpush1.msra.mxu0 0.0
        %3840 = vmatprep.subr.mxu0 0.0
        %3841 = vmatpush1.msra.mxu0 0.0
        %3842 = vmatprep.subr.mxu0 0.0
        %3843 = vmatpush1.msra.mxu0 0.0
        %3844 = vmatprep.subr.mxu0 0.0
        %3845 = vmatpush1.msra.mxu0 %v3806
        %3846 = vmatprep.subr.mxu0 0.0
        %3847 = vmatpush2.msra.mxu0 0.0
        %3848 = vmatprep.subr.mxu0 0.0
        %3849 = vmatpush2.msra.mxu0 0.0
        %3850 = vmatprep.subr.mxu0 0.0
        %3851 = vmatpush2.msra.mxu0 0.0
        %3852 = vmatprep.subr.mxu0 0.0
        %3853 = vmatpush2.msra.mxu0 0.0
        %3854 = vmatprep.subr.mxu0 0.0
        %3855 = vmatpush2.msra.mxu0 0.0
        %3856 = vmatprep.subr.mxu0 0.0
        %3857 = vmatpush2.msra.mxu0 0.0
        %3858 = vmatprep.subr.mxu0 0.0
        %3859 = vmatpush2.msra.mxu0 0.0
        %3860 = vmatprep.subr.mxu0 0.0
        %3861 = vmatpush2.msra.mxu0 0.0
        %3862 = vmatprep.subr.mxu0 0.0
        %3863 = vmatpush2.msra.mxu0 0.0
        %3864 = vmatprep.subr.mxu0 0.0
        %3865 = vmatpush2.msra.mxu0 0.0
        %3866 = vmatprep.subr.mxu0 0.0
        %3867 = vmatpush2.msra.mxu0 0.0
        %3868 = vmatprep.subr.mxu0 0.0
        %3869 = vmatpush2.msra.mxu0 0.0
        %3870 = vmatprep.subr.mxu0 0.0
        %3871 = vmatpush2.msra.mxu0 0.0
        %3872 = vmatprep.subr.mxu0 0.0
        %3873 = vmatpush2.msra.mxu0 0.0
        %3874 = vmatprep.subr.mxu0 0.0
        %3875 = vmatpush2.msra.mxu0 0.0
        %3876 = vmatprep.subr.mxu0 0.0
        %3877 = vmatpush2.msra.mxu0 0.0
        %3878 = vmatprep.mubr.f32.mxu0 0.0
        %3879 = vmatmul.mubr.f32.gmra.mxu0 %v3812
        %v3880 = vpop.f32.mrf.mxu0
        %v3881 = vadd.f32 0.0, %v3880
        %v3882 = vpop.f32.mrf.mxu0
        %3883 = vdwg.mxu0
        %v3885 = vsel %vm2154, %v3809, 0
        %3887 = vmatprep.subr.mxu0 0.0
        %3888 = vmatpush1.msra.mxu0 0.0
        %3889 = vmatprep.subr.mxu0 0.0
        %3890 = vmatpush1.msra.mxu0 0.0
        %3891 = vmatprep.subr.mxu0 0.0
        %3892 = vmatpush1.msra.mxu0 0.0
        %3893 = vmatprep.subr.mxu0 0.0
        %3894 = vmatpush1.msra.mxu0 0.0
        %3895 = vmatprep.subr.mxu0 0.0
        %3896 = vmatpush1.msra.mxu0 0.0
        %3897 = vmatprep.subr.mxu0 0.0
        %3898 = vmatpush1.msra.mxu0 0.0
        %3899 = vmatprep.subr.mxu0 0.0
        %3900 = vmatpush1.msra.mxu0 0.0
        %3901 = vmatprep.subr.mxu0 0.0
        %3902 = vmatpush1.msra.mxu0 0.0
        %3903 = vmatprep.subr.mxu0 0.0
        %3904 = vmatpush1.msra.mxu0 0.0
        %3905 = vmatprep.subr.mxu0 0.0
        %3906 = vmatpush1.msra.mxu0 0.0
        %3907 = vmatprep.subr.mxu0 0.0
        %3908 = vmatpush1.msra.mxu0 0.0
        %3909 = vmatprep.subr.mxu0 0.0
        %3910 = vmatpush1.msra.mxu0 0.0
        %3911 = vmatprep.subr.mxu0 0.0
        %3912 = vmatpush1.msra.mxu0 0.0
        %3913 = vmatprep.subr.mxu0 0.0
        %3914 = vmatpush1.msra.mxu0 0.0
        %3915 = vmatprep.subr.mxu0 0.0
        %3916 = vmatpush1.msra.mxu0 0.0
        %3917 = vmatprep.subr.mxu0 0.0
        %3918 = vmatpush1.msra.mxu0 %v3806
        %3919 = vmatprep.subr.mxu0 0.0
        %3920 = vmatpush2.msra.mxu0 0.0
        %3921 = vmatprep.subr.mxu0 0.0
        %3922 = vmatpush2.msra.mxu0 0.0
        %3923 = vmatprep.subr.mxu0 0.0
        %3924 = vmatpush2.msra.mxu0 0.0
        %3925 = vmatprep.subr.mxu0 0.0
        %3926 = vmatpush2.msra.mxu0 0.0
        %3927 = vmatprep.subr.mxu0 0.0
        %3928 = vmatpush2.msra.mxu0 0.0
        %3929 = vmatprep.subr.mxu0 0.0
        %3930 = vmatpush2.msra.mxu0 0.0
        %3931 = vmatprep.subr.mxu0 0.0
        %3932 = vmatpush2.msra.mxu0 0.0
        %3933 = vmatprep.subr.mxu0 0.0
        %3934 = vmatpush2.msra.mxu0 0.0
        %3935 = vmatprep.subr.mxu0 0.0
        %3936 = vmatpush2.msra.mxu0 0.0
        %3937 = vmatprep.subr.mxu0 0.0
        %3938 = vmatpush2.msra.mxu0 0.0
        %3939 = vmatprep.subr.mxu0 0.0
        %3940 = vmatpush2.msra.mxu0 0.0
        %3941 = vmatprep.subr.mxu0 0.0
        %3942 = vmatpush2.msra.mxu0 0.0
        %3943 = vmatprep.subr.mxu0 0.0
        %3944 = vmatpush2.msra.mxu0 0.0
        %3945 = vmatprep.subr.mxu0 0.0
        %3946 = vmatpush2.msra.mxu0 0.0
        %3947 = vmatprep.subr.mxu0 0.0
        %3948 = vmatpush2.msra.mxu0 0.0
        %3949 = vmatprep.subr.mxu0 0.0
        %3950 = vmatpush2.msra.mxu0 0.0
        %3951 = vmatprep.mubr.f32.mxu0 0.0
        %3952 = vmatmul.mubr.f32.gmra.mxu0 %v3885
        %v3953 = vpop.f32.mrf.mxu0
        %v3954 = vadd.f32 0.0, %v3953
        %v3955 = vpop.f32.mrf.mxu0
        %3956 = vdwg.mxu0
        %v3957 = vld [vmem:[#allocation13] sm:$0xff]
        %v3958 = vld [vmem:[#allocation13 + $0x8] sm:$0xff]
        %v3959 = vld [vmem:[#allocation13 + $0x10] sm:$0xff]
        %v3960 = vld [vmem:[#allocation13 + $0x18] sm:$0xff]
        %v3961 = vld [vmem:[#allocation13 + $0x20] sm:$0xff]
        %v3962 = vld [vmem:[#allocation13 + $0x28] sm:$0xff]
        %v3963 = vld [vmem:[#allocation13 + $0x30] sm:$0xff]
        %v3964 = vld [vmem:[#allocation13 + $0x38] sm:$0xff]
        %v3965 = vld [vmem:[#allocation13 + $0x40] sm:$0xff]
        %v3966 = vld [vmem:[#allocation13 + $0x48] sm:$0xff]
        %v3967 = vld [vmem:[#allocation13 + $0x50] sm:$0xff]
        %v3968 = vld [vmem:[#allocation13 + $0x58] sm:$0xff]
        %v3969 = vld [vmem:[#allocation13 + $0x60] sm:$0xff]
        %v3970 = vld [vmem:[#allocation13 + $0x68] sm:$0xff]
        %v3971 = vld [vmem:[#allocation13 + $0x70] sm:$0xff]
        %v3972 = vld [vmem:[#allocation13 + $0x78] sm:$0xff]
        %v3973 = vld [vmem:[#allocation13 + $0x80] sm:$0xff]
        %v3974 = vld [vmem:[#allocation13 + $0x88] sm:$0xff]
        %v3975 = vld [vmem:[#allocation13 + $0x90] sm:$0xff]
        %v3976 = vld [vmem:[#allocation13 + $0x98] sm:$0xff]
        %v3977 = vld [vmem:[#allocation13 + $0xa0] sm:$0xff]
        %v3978 = vld [vmem:[#allocation13 + $0xa8] sm:$0xff]
        %v3979 = vld [vmem:[#allocation13 + $0xb0] sm:$0xff]
        %v3980 = vld [vmem:[#allocation13 + $0xb8] sm:$0xff]
        %v3981 = vld [vmem:[#allocation13 + $0xc0] sm:$0xff]
        %v3982 = vld [vmem:[#allocation13 + $0xc8] sm:$0xff]
        %v3983 = vld [vmem:[#allocation13 + $0xd0] sm:$0xff]
        %v3984 = vld [vmem:[#allocation13 + $0xd8] sm:$0xff]
        %v3985 = vld [vmem:[#allocation13 + $0xe0] sm:$0xff]
        %v3986 = vld [vmem:[#allocation13 + $0xe8] sm:$0xff]
        %v3987 = vld [vmem:[#allocation13 + $0xf0] sm:$0xff]
        %v3988 = vld [vmem:[#allocation13 + $0xf8] sm:$0xff]
        %s3989 = scalar_lea.vmem [#allocation13], 256
        %v3990 = vld [vmem:[%s3989] sm:$0xff]
        %v3991 = vld [vmem:[%s3989 + $0x8] sm:$0xff]
        %v3992 = vld [vmem:[%s3989 + $0x10] sm:$0xff]
        %v3993 = vld [vmem:[%s3989 + $0x18] sm:$0xff]
        %v3994 = vld [vmem:[%s3989 + $0x20] sm:$0xff]
        %v3995 = vld [vmem:[%s3989 + $0x28] sm:$0xff]
        %v3996 = vld [vmem:[%s3989 + $0x30] sm:$0xff]
        %v3997 = vld [vmem:[%s3989 + $0x38] sm:$0xff]
        %v3998 = vld [vmem:[%s3989 + $0x40] sm:$0xff]
        %v3999 = vld [vmem:[%s3989 + $0x48] sm:$0xff]
        %v4000 = vld [vmem:[%s3989 + $0x50] sm:$0xff]
        %v4001 = vld [vmem:[%s3989 + $0x58] sm:$0xff]
        %v4002 = vld [vmem:[%s3989 + $0x60] sm:$0xff]
        %v4003 = vld [vmem:[%s3989 + $0x68] sm:$0xff]
        %v4004 = vld [vmem:[%s3989 + $0x70] sm:$0xff]
        %v4005 = vld [vmem:[%s3989 + $0x78] sm:$0xff]
        %v4006 = vld [vmem:[%s3989 + $0x80] sm:$0xff]
        %v4007 = vld [vmem:[%s3989 + $0x88] sm:$0xff]
        %v4008 = vld [vmem:[%s3989 + $0x90] sm:$0xff]
        %v4009 = vld [vmem:[%s3989 + $0x98] sm:$0xff]
        %v4010 = vld [vmem:[%s3989 + $0xa0] sm:$0xff]
        %v4011 = vld [vmem:[%s3989 + $0xa8] sm:$0xff]
        %v4012 = vld [vmem:[%s3989 + $0xb0] sm:$0xff]
        %v4013 = vld [vmem:[%s3989 + $0xb8] sm:$0xff]
        %v4014 = vld [vmem:[%s3989 + $0xc0] sm:$0xff]
        %v4015 = vld [vmem:[%s3989 + $0xc8] sm:$0xff]
        %v4016 = vld [vmem:[%s3989 + $0xd0] sm:$0xff]
        %v4017 = vld [vmem:[%s3989 + $0xd8] sm:$0xff]
        %v4018 = vld [vmem:[%s3989 + $0xe0] sm:$0xff]
        %v4019 = vld [vmem:[%s3989 + $0xe8] sm:$0xff]
        %v4020 = vld [vmem:[%s3989 + $0xf0] sm:$0xff]
        %v4021 = vld [vmem:[%s3989 + $0xf8] sm:$0xff]
        %4022 = vmatprep.subr.mxu0 %v4021
        %4023 = vmatpush1.msra.mxu0 %v4020
        %4024 = vmatprep.subr.mxu0 %v4019
        %4025 = vmatpush1.msra.mxu0 %v4018
        %4026 = vmatprep.subr.mxu0 %v4017
        %4027 = vmatpush1.msra.mxu0 %v4016
        %4028 = vmatprep.subr.mxu0 %v4015
        %4029 = vmatpush1.msra.mxu0 %v4014
        %4030 = vmatprep.subr.mxu0 %v4013
        %4031 = vmatpush1.msra.mxu0 %v4012
        %4032 = vmatprep.subr.mxu0 %v4011
        %4033 = vmatpush1.msra.mxu0 %v4010
        %4034 = vmatprep.subr.mxu0 %v4009
        %4035 = vmatpush1.msra.mxu0 %v4008
        %4036 = vmatprep.subr.mxu0 %v4007
        %4037 = vmatpush1.msra.mxu0 %v4006
        %4038 = vmatprep.subr.mxu0 %v4005
        %4039 = vmatpush1.msra.mxu0 %v4004
        %4040 = vmatprep.subr.mxu0 %v4003
        %4041 = vmatpush1.msra.mxu0 %v4002
        %4042 = vmatprep.subr.mxu0 %v4001
        %4043 = vmatpush1.msra.mxu0 %v4000
        %4044 = vmatprep.subr.mxu0 %v3999
        %4045 = vmatpush1.msra.mxu0 %v3998
        %4046 = vmatprep.subr.mxu0 %v3997
        %4047 = vmatpush1.msra.mxu0 %v3996
        %4048 = vmatprep.subr.mxu0 %v3995
        %4049 = vmatpush1.msra.mxu0 %v3994
        %4050 = vmatprep.subr.mxu0 %v3993
        %4051 = vmatpush1.msra.mxu0 %v3992
        %4052 = vmatprep.subr.mxu0 %v3991
        %4053 = vmatpush1.msra.mxu0 %v3990
        %4054 = vmatprep.subr.mxu0 0.0
        %4055 = vmatpush2.msra.mxu0 0.0
        %4056 = vmatprep.subr.mxu0 0.0
        %4057 = vmatpush2.msra.mxu0 0.0
        %4058 = vmatprep.subr.mxu0 0.0
        %4059 = vmatpush2.msra.mxu0 0.0
        %4060 = vmatprep.subr.mxu0 0.0
        %4061 = vmatpush2.msra.mxu0 0.0
        %4062 = vmatprep.subr.mxu0 0.0
        %4063 = vmatpush2.msra.mxu0 0.0
        %4064 = vmatprep.subr.mxu0 0.0
        %4065 = vmatpush2.msra.mxu0 0.0
        %4066 = vmatprep.subr.mxu0 0.0
        %4067 = vmatpush2.msra.mxu0 0.0
        %4068 = vmatprep.subr.mxu0 0.0
        %4069 = vmatpush2.msra.mxu0 0.0
        %4070 = vmatprep.subr.mxu0 0.0
        %4071 = vmatpush2.msra.mxu0 0.0
        %4072 = vmatprep.subr.mxu0 0.0
        %4073 = vmatpush2.msra.mxu0 0.0
        %4074 = vmatprep.subr.mxu0 0.0
        %4075 = vmatpush2.msra.mxu0 0.0
        %4076 = vmatprep.subr.mxu0 0.0
        %4077 = vmatpush2.msra.mxu0 0.0
        %4078 = vmatprep.subr.mxu0 0.0
        %4079 = vmatpush2.msra.mxu0 0.0
        %4080 = vmatprep.subr.mxu0 0.0
        %4081 = vmatpush2.msra.mxu0 0.0
        %4082 = vmatprep.subr.mxu0 0.0
        %4083 = vmatpush2.msra.mxu0 0.0
        %4084 = vmatprep.subr.mxu0 0.0
        %4085 = vmatpush2.msra.mxu0 0.0
        %4086 = vmatprep.mubr.f32.mxu0 0.0
        %4087 = vmatmul.mubr.f32.gmra.mxu0 %v3806
        %v4088 = vpop.f32.mrf.mxu0
        %v4089 = vadd.f32 0.0, %v4088
        %v4090 = vpop.f32.mrf.mxu0
        %v4091 = vadd.f32 0.0, %v4090
        %4092 = vdwg.mxu0
        %4093 = vmatprep.subr.mxu0 %v3988
        %4094 = vmatpush1.msra.mxu0 %v3987
        %4095 = vmatprep.subr.mxu0 %v3986
        %4096 = vmatpush1.msra.mxu0 %v3985
        %4097 = vmatprep.subr.mxu0 %v3984
        %4098 = vmatpush1.msra.mxu0 %v3983
        %4099 = vmatprep.subr.mxu0 %v3982
        %4100 = vmatpush1.msra.mxu0 %v3981
        %4101 = vmatprep.subr.mxu0 %v3980
        %4102 = vmatpush1.msra.mxu0 %v3979
        %4103 = vmatprep.subr.mxu0 %v3978
        %4104 = vmatpush1.msra.mxu0 %v3977
        %4105 = vmatprep.subr.mxu0 %v3976
        %4106 = vmatpush1.msra.mxu0 %v3975
        %4107 = vmatprep.subr.mxu0 %v3974
        %4108 = vmatpush1.msra.mxu0 %v3973
        %4109 = vmatprep.subr.mxu0 %v3972
        %4110 = vmatpush1.msra.mxu0 %v3971
        %4111 = vmatprep.subr.mxu0 %v3970
        %4112 = vmatpush1.msra.mxu0 %v3969
        %4113 = vmatprep.subr.mxu0 %v3968
        %4114 = vmatpush1.msra.mxu0 %v3967
        %4115 = vmatprep.subr.mxu0 %v3966
        %4116 = vmatpush1.msra.mxu0 %v3965
        %4117 = vmatprep.subr.mxu0 %v3964
        %4118 = vmatpush1.msra.mxu0 %v3963
        %4119 = vmatprep.subr.mxu0 %v3962
        %4120 = vmatpush1.msra.mxu0 %v3961
        %4121 = vmatprep.subr.mxu0 %v3960
        %4122 = vmatpush1.msra.mxu0 %v3959
        %4123 = vmatprep.subr.mxu0 %v3958
        %4124 = vmatpush1.msra.mxu0 %v3957
        %4125 = vmatprep.subr.mxu0 0.0
        %4126 = vmatpush2.msra.mxu0 0.0
        %4127 = vmatprep.subr.mxu0 0.0
        %4128 = vmatpush2.msra.mxu0 0.0
        %4129 = vmatprep.subr.mxu0 0.0
        %4130 = vmatpush2.msra.mxu0 0.0
        %4131 = vmatprep.subr.mxu0 0.0
        %4132 = vmatpush2.msra.mxu0 0.0
        %4133 = vmatprep.subr.mxu0 0.0
        %4134 = vmatpush2.msra.mxu0 0.0
        %4135 = vmatprep.subr.mxu0 0.0
        %4136 = vmatpush2.msra.mxu0 0.0
        %4137 = vmatprep.subr.mxu0 0.0
        %4138 = vmatpush2.msra.mxu0 0.0
        %4139 = vmatprep.subr.mxu0 0.0
        %4140 = vmatpush2.msra.mxu0 0.0
        %4141 = vmatprep.subr.mxu0 0.0
        %4142 = vmatpush2.msra.mxu0 0.0
        %4143 = vmatprep.subr.mxu0 0.0
        %4144 = vmatpush2.msra.mxu0 0.0
        %4145 = vmatprep.subr.mxu0 0.0
        %4146 = vmatpush2.msra.mxu0 0.0
        %4147 = vmatprep.subr.mxu0 0.0
        %4148 = vmatpush2.msra.mxu0 0.0
        %4149 = vmatprep.subr.mxu0 0.0
        %4150 = vmatpush2.msra.mxu0 0.0
        %4151 = vmatprep.subr.mxu0 0.0
        %4152 = vmatpush2.msra.mxu0 0.0
        %4153 = vmatprep.subr.mxu0 0.0
        %4154 = vmatpush2.msra.mxu0 0.0
        %4155 = vmatprep.subr.mxu0 0.0
        %4156 = vmatpush2.msra.mxu0 0.0
        %4157 = vmatprep.mubr.f32.mxu0 0.0
        %4158 = vmatmul.mubr.f32.gmra.mxu0 %v3881
        %v4159 = vpop.f32.mrf.mxu0
        %v4160 = vadd.f32 %v4089, %v4159
        %v4161 = vpop.f32.mrf.mxu0
        %v4162 = vadd.f32 %v4091, %v4161
        %4163 = vdwg.mxu0
        %s4164 = scalar_lea.vmem [#allocation13], 512
        %v4165 = vld [vmem:[%s4164] sm:$0xff]
        %v4166 = vld [vmem:[%s4164 + $0x8] sm:$0xff]
        %v4167 = vld [vmem:[%s4164 + $0x10] sm:$0xff]
        %v4168 = vld [vmem:[%s4164 + $0x18] sm:$0xff]
        %v4169 = vld [vmem:[%s4164 + $0x20] sm:$0xff]
        %v4170 = vld [vmem:[%s4164 + $0x28] sm:$0xff]
        %v4171 = vld [vmem:[%s4164 + $0x30] sm:$0xff]
        %v4172 = vld [vmem:[%s4164 + $0x38] sm:$0xff]
        %v4173 = vld [vmem:[%s4164 + $0x40] sm:$0xff]
        %v4174 = vld [vmem:[%s4164 + $0x48] sm:$0xff]
        %v4175 = vld [vmem:[%s4164 + $0x50] sm:$0xff]
        %v4176 = vld [vmem:[%s4164 + $0x58] sm:$0xff]
        %v4177 = vld [vmem:[%s4164 + $0x60] sm:$0xff]
        %v4178 = vld [vmem:[%s4164 + $0x68] sm:$0xff]
        %v4179 = vld [vmem:[%s4164 + $0x70] sm:$0xff]
        %v4180 = vld [vmem:[%s4164 + $0x78] sm:$0xff]
        %v4181 = vld [vmem:[%s4164 + $0x80] sm:$0xff]
        %v4182 = vld [vmem:[%s4164 + $0x88] sm:$0xff]
        %v4183 = vld [vmem:[%s4164 + $0x90] sm:$0xff]
        %v4184 = vld [vmem:[%s4164 + $0x98] sm:$0xff]
        %v4185 = vld [vmem:[%s4164 + $0xa0] sm:$0xff]
        %v4186 = vld [vmem:[%s4164 + $0xa8] sm:$0xff]
        %v4187 = vld [vmem:[%s4164 + $0xb0] sm:$0xff]
        %v4188 = vld [vmem:[%s4164 + $0xb8] sm:$0xff]
        %v4189 = vld [vmem:[%s4164 + $0xc0] sm:$0xff]
        %v4190 = vld [vmem:[%s4164 + $0xc8] sm:$0xff]
        %v4191 = vld [vmem:[%s4164 + $0xd0] sm:$0xff]
        %v4192 = vld [vmem:[%s4164 + $0xd8] sm:$0xff]
        %v4193 = vld [vmem:[%s4164 + $0xe0] sm:$0xff]
        %v4194 = vld [vmem:[%s4164 + $0xe8] sm:$0xff]
        %v4195 = vld [vmem:[%s4164 + $0xf0] sm:$0xff]
        %v4196 = vld [vmem:[%s4164 + $0xf8] sm:$0xff]
        %4197 = vmatprep.subr.mxu0 %v4196
        %4198 = vmatpush1.msra.mxu0 %v4195
        %4199 = vmatprep.subr.mxu0 %v4194
        %4200 = vmatpush1.msra.mxu0 %v4193
        %4201 = vmatprep.subr.mxu0 %v4192
        %4202 = vmatpush1.msra.mxu0 %v4191
        %4203 = vmatprep.subr.mxu0 %v4190
        %4204 = vmatpush1.msra.mxu0 %v4189
        %4205 = vmatprep.subr.mxu0 %v4188
        %4206 = vmatpush1.msra.mxu0 %v4187
        %4207 = vmatprep.subr.mxu0 %v4186
        %4208 = vmatpush1.msra.mxu0 %v4185
        %4209 = vmatprep.subr.mxu0 %v4184
        %4210 = vmatpush1.msra.mxu0 %v4183
        %4211 = vmatprep.subr.mxu0 %v4182
        %4212 = vmatpush1.msra.mxu0 %v4181
        %4213 = vmatprep.subr.mxu0 %v4180
        %4214 = vmatpush1.msra.mxu0 %v4179
        %4215 = vmatprep.subr.mxu0 %v4178
        %4216 = vmatpush1.msra.mxu0 %v4177
        %4217 = vmatprep.subr.mxu0 %v4176
        %4218 = vmatpush1.msra.mxu0 %v4175
        %4219 = vmatprep.subr.mxu0 %v4174
        %4220 = vmatpush1.msra.mxu0 %v4173
        %4221 = vmatprep.subr.mxu0 %v4172
        %4222 = vmatpush1.msra.mxu0 %v4171
        %4223 = vmatprep.subr.mxu0 %v4170
        %4224 = vmatpush1.msra.mxu0 %v4169
        %4225 = vmatprep.subr.mxu0 %v4168
        %4226 = vmatpush1.msra.mxu0 %v4167
        %4227 = vmatprep.subr.mxu0 %v4166
        %4228 = vmatpush1.msra.mxu0 %v4165
        %4229 = vmatprep.subr.mxu0 0.0
        %4230 = vmatpush2.msra.mxu0 0.0
        %4231 = vmatprep.subr.mxu0 0.0
        %4232 = vmatpush2.msra.mxu0 0.0
        %4233 = vmatprep.subr.mxu0 0.0
        %4234 = vmatpush2.msra.mxu0 0.0
        %4235 = vmatprep.subr.mxu0 0.0
        %4236 = vmatpush2.msra.mxu0 0.0
        %4237 = vmatprep.subr.mxu0 0.0
        %4238 = vmatpush2.msra.mxu0 0.0
        %4239 = vmatprep.subr.mxu0 0.0
        %4240 = vmatpush2.msra.mxu0 0.0
        %4241 = vmatprep.subr.mxu0 0.0
        %4242 = vmatpush2.msra.mxu0 0.0
        %4243 = vmatprep.subr.mxu0 0.0
        %4244 = vmatpush2.msra.mxu0 0.0
        %4245 = vmatprep.subr.mxu0 0.0
        %4246 = vmatpush2.msra.mxu0 0.0
        %4247 = vmatprep.subr.mxu0 0.0
        %4248 = vmatpush2.msra.mxu0 0.0
        %4249 = vmatprep.subr.mxu0 0.0
        %4250 = vmatpush2.msra.mxu0 0.0
        %4251 = vmatprep.subr.mxu0 0.0
        %4252 = vmatpush2.msra.mxu0 0.0
        %4253 = vmatprep.subr.mxu0 0.0
        %4254 = vmatpush2.msra.mxu0 0.0
        %4255 = vmatprep.subr.mxu0 0.0
        %4256 = vmatpush2.msra.mxu0 0.0
        %4257 = vmatprep.subr.mxu0 0.0
        %4258 = vmatpush2.msra.mxu0 0.0
        %4259 = vmatprep.subr.mxu0 0.0
        %4260 = vmatpush2.msra.mxu0 0.0
        %4261 = vmatprep.mubr.f32.mxu0 0.0
        %4262 = vmatmul.mubr.f32.gmra.mxu0 %v3954
        %v4263 = vpop.f32.mrf.mxu0
        %v4264 = vadd.f32 0.0, %v4263
        %v4265 = vpop.f32.mrf.mxu0
        %v4266 = vadd.f32 0.0, %v4265
        %4267 = vdwg.mxu0
        %v4268 = vadd.f32 %v4160, %v4264
        %v4269 = vadd.f32 %v4162, %v4266
        %v4271 = vlaneseq
        %v4272 = vshrl.u32 %v4271, 7
        %v4273 = vsub.s32 0, %v4272
        %v4274 = vrot.slane %v3810, %v4273
        %v4275 = vlaneseq
        %v4276 = vshrl.u32 %v4275, 7
        %v4277 = vsub.s32 1, %v4276
        %v4278 = vrot.slane %v3810, %v4277
        %v4281 = vadd.f32 %v4268, %v4274
        %v4282 = vadd.f32 %v4269, %v4278
        %v4283 = vld [vmem:[#allocation16] sm:$0xf]
        %v4285 = vsel %vm2154, %v4283, 0
        %4287 = vmatprep.subr.mxu0 0.0
        %4288 = vmatpush1.msra.mxu0 0.0
        %4289 = vmatprep.subr.mxu0 0.0
        %4290 = vmatpush1.msra.mxu0 0.0
        %4291 = vmatprep.subr.mxu0 0.0
        %4292 = vmatpush1.msra.mxu0 0.0
        %4293 = vmatprep.subr.mxu0 0.0
        %4294 = vmatpush1.msra.mxu0 0.0
        %4295 = vmatprep.subr.mxu0 0.0
        %4296 = vmatpush1.msra.mxu0 0.0
        %4297 = vmatprep.subr.mxu0 0.0
        %4298 = vmatpush1.msra.mxu0 0.0
        %4299 = vmatprep.subr.mxu0 0.0
        %4300 = vmatpush1.msra.mxu0 0.0
        %4301 = vmatprep.subr.mxu0 0.0
        %4302 = vmatpush1.msra.mxu0 0.0
        %4303 = vmatprep.subr.mxu0 0.0
        %4304 = vmatpush1.msra.mxu0 0.0
        %4305 = vmatprep.subr.mxu0 0.0
        %4306 = vmatpush1.msra.mxu0 0.0
        %4307 = vmatprep.subr.mxu0 0.0
        %4308 = vmatpush1.msra.mxu0 0.0
        %4309 = vmatprep.subr.mxu0 0.0
        %4310 = vmatpush1.msra.mxu0 0.0
        %4311 = vmatprep.subr.mxu0 0.0
        %4312 = vmatpush1.msra.mxu0 0.0
        %4313 = vmatprep.subr.mxu0 0.0
        %4314 = vmatpush1.msra.mxu0 0.0
        %4315 = vmatprep.subr.mxu0 0.0
        %4316 = vmatpush1.msra.mxu0 0.0
        %4317 = vmatprep.subr.mxu0 %v4282
        %4318 = vmatpush1.msra.mxu0 %v4281
        %4319 = vmatprep.subr.mxu0 0.0
        %4320 = vmatpush2.msra.mxu0 0.0
        %4321 = vmatprep.subr.mxu0 0.0
        %4322 = vmatpush2.msra.mxu0 0.0
        %4323 = vmatprep.subr.mxu0 0.0
        %4324 = vmatpush2.msra.mxu0 0.0
        %4325 = vmatprep.subr.mxu0 0.0
        %4326 = vmatpush2.msra.mxu0 0.0
        %4327 = vmatprep.subr.mxu0 0.0
        %4328 = vmatpush2.msra.mxu0 0.0
        %4329 = vmatprep.subr.mxu0 0.0
        %4330 = vmatpush2.msra.mxu0 0.0
        %4331 = vmatprep.subr.mxu0 0.0
        %4332 = vmatpush2.msra.mxu0 0.0
        %4333 = vmatprep.subr.mxu0 0.0
        %4334 = vmatpush2.msra.mxu0 0.0
        %4335 = vmatprep.subr.mxu0 0.0
        %4336 = vmatpush2.msra.mxu0 0.0
        %4337 = vmatprep.subr.mxu0 0.0
        %4338 = vmatpush2.msra.mxu0 0.0
        %4339 = vmatprep.subr.mxu0 0.0
        %4340 = vmatpush2.msra.mxu0 0.0
        %4341 = vmatprep.subr.mxu0 0.0
        %4342 = vmatpush2.msra.mxu0 0.0
        %4343 = vmatprep.subr.mxu0 0.0
        %4344 = vmatpush2.msra.mxu0 0.0
        %4345 = vmatprep.subr.mxu0 0.0
        %4346 = vmatpush2.msra.mxu0 0.0
        %4347 = vmatprep.subr.mxu0 0.0
        %4348 = vmatpush2.msra.mxu0 0.0
        %4349 = vmatprep.subr.mxu0 0.0
        %4350 = vmatpush2.msra.mxu0 0.0
        %4351 = vmatprep.mubr.f32.mxu0 0.0
        %4352 = vmatmul.mubr.f32.gmra.mxu0 %v4285
        %v4353 = vpop.f32.mrf.mxu0
        %v4354 = vadd.f32 0.0, %v4353
        %v4355 = vpop.f32.mrf.mxu0
        %v4356 = vadd.f32 0.0, %v4355
        %4357 = vdwg.mxu0
        %s4358 = scalar_lea.vmem [#allocation16], 4
        %v4359 = vld [vmem:[%s4358] sm:$0xf]
        %v4361 = vsel %vm2154, %v4359, 0
        %4363 = vmatprep.subr.mxu0 0.0
        %4364 = vmatpush1.msra.mxu0 0.0
        %4365 = vmatprep.subr.mxu0 0.0
        %4366 = vmatpush1.msra.mxu0 0.0
        %4367 = vmatprep.subr.mxu0 0.0
        %4368 = vmatpush1.msra.mxu0 0.0
        %4369 = vmatprep.subr.mxu0 0.0
        %4370 = vmatpush1.msra.mxu0 0.0
        %4371 = vmatprep.subr.mxu0 0.0
        %4372 = vmatpush1.msra.mxu0 0.0
        %4373 = vmatprep.subr.mxu0 0.0
        %4374 = vmatpush1.msra.mxu0 0.0
        %4375 = vmatprep.subr.mxu0 0.0
        %4376 = vmatpush1.msra.mxu0 0.0
        %4377 = vmatprep.subr.mxu0 0.0
        %4378 = vmatpush1.msra.mxu0 0.0
        %4379 = vmatprep.subr.mxu0 0.0
        %4380 = vmatpush1.msra.mxu0 0.0
        %4381 = vmatprep.subr.mxu0 0.0
        %4382 = vmatpush1.msra.mxu0 0.0
        %4383 = vmatprep.subr.mxu0 0.0
        %4384 = vmatpush1.msra.mxu0 0.0
        %4385 = vmatprep.subr.mxu0 0.0
        %4386 = vmatpush1.msra.mxu0 0.0
        %4387 = vmatprep.subr.mxu0 0.0
        %4388 = vmatpush1.msra.mxu0 0.0
        %4389 = vmatprep.subr.mxu0 0.0
        %4390 = vmatpush1.msra.mxu0 0.0
        %4391 = vmatprep.subr.mxu0 0.0
        %4392 = vmatpush1.msra.mxu0 0.0
        %4393 = vmatprep.subr.mxu0 %v4282
        %4394 = vmatpush1.msra.mxu0 %v4281
        %4395 = vmatprep.subr.mxu0 0.0
        %4396 = vmatpush2.msra.mxu0 0.0
        %4397 = vmatprep.subr.mxu0 0.0
        %4398 = vmatpush2.msra.mxu0 0.0
        %4399 = vmatprep.subr.mxu0 0.0
        %4400 = vmatpush2.msra.mxu0 0.0
        %4401 = vmatprep.subr.mxu0 0.0
        %4402 = vmatpush2.msra.mxu0 0.0
        %4403 = vmatprep.subr.mxu0 0.0
        %4404 = vmatpush2.msra.mxu0 0.0
        %4405 = vmatprep.subr.mxu0 0.0
        %4406 = vmatpush2.msra.mxu0 0.0
        %4407 = vmatprep.subr.mxu0 0.0
        %4408 = vmatpush2.msra.mxu0 0.0
        %4409 = vmatprep.subr.mxu0 0.0
        %4410 = vmatpush2.msra.mxu0 0.0
        %4411 = vmatprep.subr.mxu0 0.0
        %4412 = vmatpush2.msra.mxu0 0.0
        %4413 = vmatprep.subr.mxu0 0.0
        %4414 = vmatpush2.msra.mxu0 0.0
        %4415 = vmatprep.subr.mxu0 0.0
        %4416 = vmatpush2.msra.mxu0 0.0
        %4417 = vmatprep.subr.mxu0 0.0
        %4418 = vmatpush2.msra.mxu0 0.0
        %4419 = vmatprep.subr.mxu0 0.0
        %4420 = vmatpush2.msra.mxu0 0.0
        %4421 = vmatprep.subr.mxu0 0.0
        %4422 = vmatpush2.msra.mxu0 0.0
        %4423 = vmatprep.subr.mxu0 0.0
        %4424 = vmatpush2.msra.mxu0 0.0
        %4425 = vmatprep.subr.mxu0 0.0
        %4426 = vmatpush2.msra.mxu0 0.0
        %4427 = vmatprep.mubr.f32.mxu0 0.0
        %4428 = vmatmul.mubr.f32.gmra.mxu0 %v4361
        %v4429 = vpop.f32.mrf.mxu0
        %v4430 = vadd.f32 0.0, %v4429
        %v4431 = vpop.f32.mrf.mxu0
        %v4432 = vadd.f32 0.0, %v4431
        %4433 = vdwg.mxu0
        %v4434 = vmax.f32 %v4354, %v4430
        %v4435 = vmax.f32 %v4356, %v4432
        %s4436 = scalar_lea.vmem [#allocation16], 8
        %v4437 = vld [vmem:[%s4436] sm:$0xf]
        %v4439 = vsel %vm2154, %v4437, 0
        %4441 = vmatprep.subr.mxu0 0.0
        %4442 = vmatpush1.msra.mxu0 0.0
        %4443 = vmatprep.subr.mxu0 0.0
        %4444 = vmatpush1.msra.mxu0 0.0
        %4445 = vmatprep.subr.mxu0 0.0
        %4446 = vmatpush1.msra.mxu0 0.0
        %4447 = vmatprep.subr.mxu0 0.0
        %4448 = vmatpush1.msra.mxu0 0.0
        %4449 = vmatprep.subr.mxu0 0.0
        %4450 = vmatpush1.msra.mxu0 0.0
        %4451 = vmatprep.subr.mxu0 0.0
        %4452 = vmatpush1.msra.mxu0 0.0
        %4453 = vmatprep.subr.mxu0 0.0
        %4454 = vmatpush1.msra.mxu0 0.0
        %4455 = vmatprep.subr.mxu0 0.0
        %4456 = vmatpush1.msra.mxu0 0.0
        %4457 = vmatprep.subr.mxu0 0.0
        %4458 = vmatpush1.msra.mxu0 0.0
        %4459 = vmatprep.subr.mxu0 0.0
        %4460 = vmatpush1.msra.mxu0 0.0
        %4461 = vmatprep.subr.mxu0 0.0
        %4462 = vmatpush1.msra.mxu0 0.0
        %4463 = vmatprep.subr.mxu0 0.0
        %4464 = vmatpush1.msra.mxu0 0.0
        %4465 = vmatprep.subr.mxu0 0.0
        %4466 = vmatpush1.msra.mxu0 0.0
        %4467 = vmatprep.subr.mxu0 0.0
        %4468 = vmatpush1.msra.mxu0 0.0
        %4469 = vmatprep.subr.mxu0 0.0
        %4470 = vmatpush1.msra.mxu0 0.0
        %4471 = vmatprep.subr.mxu0 %v4282
        %4472 = vmatpush1.msra.mxu0 %v4281
        %4473 = vmatprep.subr.mxu0 0.0
        %4474 = vmatpush2.msra.mxu0 0.0
        %4475 = vmatprep.subr.mxu0 0.0
        %4476 = vmatpush2.msra.mxu0 0.0
        %4477 = vmatprep.subr.mxu0 0.0
        %4478 = vmatpush2.msra.mxu0 0.0
        %4479 = vmatprep.subr.mxu0 0.0
        %4480 = vmatpush2.msra.mxu0 0.0
        %4481 = vmatprep.subr.mxu0 0.0
        %4482 = vmatpush2.msra.mxu0 0.0
        %4483 = vmatprep.subr.mxu0 0.0
        %4484 = vmatpush2.msra.mxu0 0.0
        %4485 = vmatprep.subr.mxu0 0.0
        %4486 = vmatpush2.msra.mxu0 0.0
        %4487 = vmatprep.subr.mxu0 0.0
        %4488 = vmatpush2.msra.mxu0 0.0
        %4489 = vmatprep.subr.mxu0 0.0
        %4490 = vmatpush2.msra.mxu0 0.0
        %4491 = vmatprep.subr.mxu0 0.0
        %4492 = vmatpush2.msra.mxu0 0.0
        %4493 = vmatprep.subr.mxu0 0.0
        %4494 = vmatpush2.msra.mxu0 0.0
        %4495 = vmatprep.subr.mxu0 0.0
        %4496 = vmatpush2.msra.mxu0 0.0
        %4497 = vmatprep.subr.mxu0 0.0
        %4498 = vmatpush2.msra.mxu0 0.0
        %4499 = vmatprep.subr.mxu0 0.0
        %4500 = vmatpush2.msra.mxu0 0.0
        %4501 = vmatprep.subr.mxu0 0.0
        %4502 = vmatpush2.msra.mxu0 0.0
        %4503 = vmatprep.subr.mxu0 0.0
        %4504 = vmatpush2.msra.mxu0 0.0
        %4505 = vmatprep.mubr.f32.mxu0 0.0
        %4506 = vmatmul.mubr.f32.gmra.mxu0 %v4439
        %v4507 = vpop.f32.mrf.mxu0
        %v4508 = vadd.f32 0.0, %v4507
        %v4509 = vpop.f32.mrf.mxu0
        %v4510 = vadd.f32 0.0, %v4509
        %4511 = vdwg.mxu0
        %v4512 = vmax.f32 %v4434, %v4508
        %v4513 = vmax.f32 %v4435, %v4510
        %v4514 = vld [vmem:[#allocation18] sm:$0xff]
        %v4515 = vld [vmem:[#allocation18 + $0x8] sm:$0xff]
        %v4516 = vld [vmem:[#allocation18 + $0x10] sm:$0xff]
        %v4517 = vld [vmem:[#allocation18 + $0x18] sm:$0xff]
        %v4518 = vld [vmem:[#allocation18 + $0x20] sm:$0xff]
        %v4519 = vld [vmem:[#allocation18 + $0x28] sm:$0xff]
        %v4520 = vld [vmem:[#allocation18 + $0x30] sm:$0xff]
        %v4521 = vld [vmem:[#allocation18 + $0x38] sm:$0xff]
        %v4522 = vld [vmem:[#allocation18 + $0x40] sm:$0xff]
        %v4523 = vld [vmem:[#allocation18 + $0x48] sm:$0xff]
        %v4524 = vld [vmem:[#allocation18 + $0x50] sm:$0xff]
        %v4525 = vld [vmem:[#allocation18 + $0x58] sm:$0xff]
        %v4526 = vld [vmem:[#allocation18 + $0x60] sm:$0xff]
        %v4527 = vld [vmem:[#allocation18 + $0x68] sm:$0xff]
        %v4528 = vld [vmem:[#allocation18 + $0x70] sm:$0xff]
        %v4529 = vld [vmem:[#allocation18 + $0x78] sm:$0xff]
        %v4530 = vld [vmem:[#allocation18 + $0x80] sm:$0xff]
        %v4531 = vld [vmem:[#allocation18 + $0x88] sm:$0xff]
        %v4532 = vld [vmem:[#allocation18 + $0x90] sm:$0xff]
        %v4533 = vld [vmem:[#allocation18 + $0x98] sm:$0xff]
        %v4534 = vld [vmem:[#allocation18 + $0xa0] sm:$0xff]
        %v4535 = vld [vmem:[#allocation18 + $0xa8] sm:$0xff]
        %v4536 = vld [vmem:[#allocation18 + $0xb0] sm:$0xff]
        %v4537 = vld [vmem:[#allocation18 + $0xb8] sm:$0xff]
        %v4538 = vld [vmem:[#allocation18 + $0xc0] sm:$0xff]
        %v4539 = vld [vmem:[#allocation18 + $0xc8] sm:$0xff]
        %v4540 = vld [vmem:[#allocation18 + $0xd0] sm:$0xff]
        %v4541 = vld [vmem:[#allocation18 + $0xd8] sm:$0xff]
        %v4542 = vld [vmem:[#allocation18 + $0xe0] sm:$0xff]
        %v4543 = vld [vmem:[#allocation18 + $0xe8] sm:$0xff]
        %v4544 = vld [vmem:[#allocation18 + $0xf0] sm:$0xff]
        %v4545 = vld [vmem:[#allocation18 + $0xf8] sm:$0xff]
        %4546 = vmatprep.subr.mxu0 0.0
        %4547 = vmatpush1.msra.mxu0 %v4529
        %4548 = vmatprep.subr.mxu0 0.0
        %4549 = vmatpush1.msra.mxu0 %v4528
        %4550 = vmatprep.subr.mxu0 0.0
        %4551 = vmatpush1.msra.mxu0 %v4527
        %4552 = vmatprep.subr.mxu0 0.0
        %4553 = vmatpush1.msra.mxu0 %v4526
        %4554 = vmatprep.subr.mxu0 0.0
        %4555 = vmatpush1.msra.mxu0 %v4525
        %4556 = vmatprep.subr.mxu0 0.0
        %4557 = vmatpush1.msra.mxu0 %v4524
        %4558 = vmatprep.subr.mxu0 0.0
        %4559 = vmatpush1.msra.mxu0 %v4523
        %4560 = vmatprep.subr.mxu0 0.0
        %4561 = vmatpush1.msra.mxu0 %v4522
        %4562 = vmatprep.subr.mxu0 0.0
        %4563 = vmatpush1.msra.mxu0 %v4521
        %4564 = vmatprep.subr.mxu0 0.0
        %4565 = vmatpush1.msra.mxu0 %v4520
        %4566 = vmatprep.subr.mxu0 0.0
        %4567 = vmatpush1.msra.mxu0 %v4519
        %4568 = vmatprep.subr.mxu0 0.0
        %4569 = vmatpush1.msra.mxu0 %v4518
        %4570 = vmatprep.subr.mxu0 0.0
        %4571 = vmatpush1.msra.mxu0 %v4517
        %4572 = vmatprep.subr.mxu0 0.0
        %4573 = vmatpush1.msra.mxu0 %v4516
        %4574 = vmatprep.subr.mxu0 0.0
        %4575 = vmatpush1.msra.mxu0 %v4515
        %4576 = vmatprep.subr.mxu0 0.0
        %4577 = vmatpush1.msra.mxu0 %v4514
        %4578 = vmatprep.subr.mxu0 0.0
        %4579 = vmatpush2.msra.mxu0 %v4545
        %4580 = vmatprep.subr.mxu0 0.0
        %4581 = vmatpush2.msra.mxu0 %v4544
        %4582 = vmatprep.subr.mxu0 0.0
        %4583 = vmatpush2.msra.mxu0 %v4543
        %4584 = vmatprep.subr.mxu0 0.0
        %4585 = vmatpush2.msra.mxu0 %v4542
        %4586 = vmatprep.subr.mxu0 0.0
        %4587 = vmatpush2.msra.mxu0 %v4541
        %4588 = vmatprep.subr.mxu0 0.0
        %4589 = vmatpush2.msra.mxu0 %v4540
        %4590 = vmatprep.subr.mxu0 0.0
        %4591 = vmatpush2.msra.mxu0 %v4539
        %4592 = vmatprep.subr.mxu0 0.0
        %4593 = vmatpush2.msra.mxu0 %v4538
        %4594 = vmatprep.subr.mxu0 0.0
        %4595 = vmatpush2.msra.mxu0 %v4537
        %4596 = vmatprep.subr.mxu0 0.0
        %4597 = vmatpush2.msra.mxu0 %v4536
        %4598 = vmatprep.subr.mxu0 0.0
        %4599 = vmatpush2.msra.mxu0 %v4535
        %4600 = vmatprep.subr.mxu0 0.0
        %4601 = vmatpush2.msra.mxu0 %v4534
        %4602 = vmatprep.subr.mxu0 0.0
        %4603 = vmatpush2.msra.mxu0 %v4533
        %4604 = vmatprep.subr.mxu0 0.0
        %4605 = vmatpush2.msra.mxu0 %v4532
        %4606 = vmatprep.subr.mxu0 0.0
        %4607 = vmatpush2.msra.mxu0 %v4531
        %4608 = vmatprep.subr.mxu0 0.0
        %4609 = vmatpush2.msra.mxu0 %v4530
        %4610 = vmatprep.mubr.f32.mxu0 %v4513
        %4611 = vmatmul.mubr.f32.gmra.mxu0 %v4512
        %v4612 = vpop.f32.mrf.mxu0
        %v4613 = vadd.f32 0.0, %v4612
        %v4614 = vpop.f32.mrf.mxu0
        %4615 = vdwg.mxu0
        %s4616 = scalar_lea.vmem [#allocation18], 256
        %v4617 = vld [vmem:[%s4616] sm:$0xff]
        %v4618 = vld [vmem:[%s4616 + $0x8] sm:$0xff]
        %v4619 = vld [vmem:[%s4616 + $0x10] sm:$0xff]
        %v4620 = vld [vmem:[%s4616 + $0x18] sm:$0xff]
        %v4621 = vld [vmem:[%s4616 + $0x20] sm:$0xff]
        %v4622 = vld [vmem:[%s4616 + $0x28] sm:$0xff]
        %v4623 = vld [vmem:[%s4616 + $0x30] sm:$0xff]
        %v4624 = vld [vmem:[%s4616 + $0x38] sm:$0xff]
        %v4625 = vld [vmem:[%s4616 + $0x40] sm:$0xff]
        %v4626 = vld [vmem:[%s4616 + $0x48] sm:$0xff]
        %v4627 = vld [vmem:[%s4616 + $0x50] sm:$0xff]
        %v4628 = vld [vmem:[%s4616 + $0x58] sm:$0xff]
        %v4629 = vld [vmem:[%s4616 + $0x60] sm:$0xff]
        %v4630 = vld [vmem:[%s4616 + $0x68] sm:$0xff]
        %v4631 = vld [vmem:[%s4616 + $0x70] sm:$0xff]
        %v4632 = vld [vmem:[%s4616 + $0x78] sm:$0xff]
        %v4633 = vld [vmem:[%s4616 + $0x80] sm:$0xff]
        %v4634 = vld [vmem:[%s4616 + $0x88] sm:$0xff]
        %v4635 = vld [vmem:[%s4616 + $0x90] sm:$0xff]
        %v4636 = vld [vmem:[%s4616 + $0x98] sm:$0xff]
        %v4637 = vld [vmem:[%s4616 + $0xa0] sm:$0xff]
        %v4638 = vld [vmem:[%s4616 + $0xa8] sm:$0xff]
        %v4639 = vld [vmem:[%s4616 + $0xb0] sm:$0xff]
        %v4640 = vld [vmem:[%s4616 + $0xb8] sm:$0xff]
        %v4641 = vld [vmem:[%s4616 + $0xc0] sm:$0xff]
        %v4642 = vld [vmem:[%s4616 + $0xc8] sm:$0xff]
        %v4643 = vld [vmem:[%s4616 + $0xd0] sm:$0xff]
        %v4644 = vld [vmem:[%s4616 + $0xd8] sm:$0xff]
        %v4645 = vld [vmem:[%s4616 + $0xe0] sm:$0xff]
        %v4646 = vld [vmem:[%s4616 + $0xe8] sm:$0xff]
        %v4647 = vld [vmem:[%s4616 + $0xf0] sm:$0xff]
        %v4648 = vld [vmem:[%s4616 + $0xf8] sm:$0xff]
        %4649 = vmatprep.subr.mxu0 0.0
        %4650 = vmatpush1.msra.mxu0 %v4632
        %4651 = vmatprep.subr.mxu0 0.0
        %4652 = vmatpush1.msra.mxu0 %v4631
        %4653 = vmatprep.subr.mxu0 0.0
        %4654 = vmatpush1.msra.mxu0 %v4630
        %4655 = vmatprep.subr.mxu0 0.0
        %4656 = vmatpush1.msra.mxu0 %v4629
        %4657 = vmatprep.subr.mxu0 0.0
        %4658 = vmatpush1.msra.mxu0 %v4628
        %4659 = vmatprep.subr.mxu0 0.0
        %4660 = vmatpush1.msra.mxu0 %v4627
        %4661 = vmatprep.subr.mxu0 0.0
        %4662 = vmatpush1.msra.mxu0 %v4626
        %4663 = vmatprep.subr.mxu0 0.0
        %4664 = vmatpush1.msra.mxu0 %v4625
        %4665 = vmatprep.subr.mxu0 0.0
        %4666 = vmatpush1.msra.mxu0 %v4624
        %4667 = vmatprep.subr.mxu0 0.0
        %4668 = vmatpush1.msra.mxu0 %v4623
        %4669 = vmatprep.subr.mxu0 0.0
        %4670 = vmatpush1.msra.mxu0 %v4622
        %4671 = vmatprep.subr.mxu0 0.0
        %4672 = vmatpush1.msra.mxu0 %v4621
        %4673 = vmatprep.subr.mxu0 0.0
        %4674 = vmatpush1.msra.mxu0 %v4620
        %4675 = vmatprep.subr.mxu0 0.0
        %4676 = vmatpush1.msra.mxu0 %v4619
        %4677 = vmatprep.subr.mxu0 0.0
        %4678 = vmatpush1.msra.mxu0 %v4618
        %4679 = vmatprep.subr.mxu0 0.0
        %4680 = vmatpush1.msra.mxu0 %v4617
        %4681 = vmatprep.subr.mxu0 0.0
        %4682 = vmatpush2.msra.mxu0 %v4648
        %4683 = vmatprep.subr.mxu0 0.0
        %4684 = vmatpush2.msra.mxu0 %v4647
        %4685 = vmatprep.subr.mxu0 0.0
        %4686 = vmatpush2.msra.mxu0 %v4646
        %4687 = vmatprep.subr.mxu0 0.0
        %4688 = vmatpush2.msra.mxu0 %v4645
        %4689 = vmatprep.subr.mxu0 0.0
        %4690 = vmatpush2.msra.mxu0 %v4644
        %4691 = vmatprep.subr.mxu0 0.0
        %4692 = vmatpush2.msra.mxu0 %v4643
        %4693 = vmatprep.subr.mxu0 0.0
        %4694 = vmatpush2.msra.mxu0 %v4642
        %4695 = vmatprep.subr.mxu0 0.0
        %4696 = vmatpush2.msra.mxu0 %v4641
        %4697 = vmatprep.subr.mxu0 0.0
        %4698 = vmatpush2.msra.mxu0 %v4640
        %4699 = vmatprep.subr.mxu0 0.0
        %4700 = vmatpush2.msra.mxu0 %v4639
        %4701 = vmatprep.subr.mxu0 0.0
        %4702 = vmatpush2.msra.mxu0 %v4638
        %4703 = vmatprep.subr.mxu0 0.0
        %4704 = vmatpush2.msra.mxu0 %v4637
        %4705 = vmatprep.subr.mxu0 0.0
        %4706 = vmatpush2.msra.mxu0 %v4636
        %4707 = vmatprep.subr.mxu0 0.0
        %4708 = vmatpush2.msra.mxu0 %v4635
        %4709 = vmatprep.subr.mxu0 0.0
        %4710 = vmatpush2.msra.mxu0 %v4634
        %4711 = vmatprep.subr.mxu0 0.0
        %4712 = vmatpush2.msra.mxu0 %v4633
        %4713 = vmatprep.mubr.f32.mxu0 %v4513
        %4714 = vmatmul.mubr.f32.gmra.mxu0 %v4512
        %v4715 = vpop.f32.mrf.mxu0
        %v4716 = vadd.f32 0.0, %v4715
        %v4717 = vpop.f32.mrf.mxu0
        %4718 = vdwg.mxu0
        %v4719 = vmax.f32 %v4613, %v4716
        %s4720 = scalar_lea.vmem [#allocation18], 512
        %v4721 = vld [vmem:[%s4720] sm:$0xff]
        %v4722 = vld [vmem:[%s4720 + $0x8] sm:$0xff]
        %v4723 = vld [vmem:[%s4720 + $0x10] sm:$0xff]
        %v4724 = vld [vmem:[%s4720 + $0x18] sm:$0xff]
        %v4725 = vld [vmem:[%s4720 + $0x20] sm:$0xff]
        %v4726 = vld [vmem:[%s4720 + $0x28] sm:$0xff]
        %v4727 = vld [vmem:[%s4720 + $0x30] sm:$0xff]
        %v4728 = vld [vmem:[%s4720 + $0x38] sm:$0xff]
        %v4729 = vld [vmem:[%s4720 + $0x40] sm:$0xff]
        %v4730 = vld [vmem:[%s4720 + $0x48] sm:$0xff]
        %v4731 = vld [vmem:[%s4720 + $0x50] sm:$0xff]
        %v4732 = vld [vmem:[%s4720 + $0x58] sm:$0xff]
        %v4733 = vld [vmem:[%s4720 + $0x60] sm:$0xff]
        %v4734 = vld [vmem:[%s4720 + $0x68] sm:$0xff]
        %v4735 = vld [vmem:[%s4720 + $0x70] sm:$0xff]
        %v4736 = vld [vmem:[%s4720 + $0x78] sm:$0xff]
        %v4737 = vld [vmem:[%s4720 + $0x80] sm:$0xff]
        %v4738 = vld [vmem:[%s4720 + $0x88] sm:$0xff]
        %v4739 = vld [vmem:[%s4720 + $0x90] sm:$0xff]
        %v4740 = vld [vmem:[%s4720 + $0x98] sm:$0xff]
        %v4741 = vld [vmem:[%s4720 + $0xa0] sm:$0xff]
        %v4742 = vld [vmem:[%s4720 + $0xa8] sm:$0xff]
        %v4743 = vld [vmem:[%s4720 + $0xb0] sm:$0xff]
        %v4744 = vld [vmem:[%s4720 + $0xb8] sm:$0xff]
        %v4745 = vld [vmem:[%s4720 + $0xc0] sm:$0xff]
        %v4746 = vld [vmem:[%s4720 + $0xc8] sm:$0xff]
        %v4747 = vld [vmem:[%s4720 + $0xd0] sm:$0xff]
        %v4748 = vld [vmem:[%s4720 + $0xd8] sm:$0xff]
        %v4749 = vld [vmem:[%s4720 + $0xe0] sm:$0xff]
        %v4750 = vld [vmem:[%s4720 + $0xe8] sm:$0xff]
        %v4751 = vld [vmem:[%s4720 + $0xf0] sm:$0xff]
        %v4752 = vld [vmem:[%s4720 + $0xf8] sm:$0xff]
        %4753 = vmatprep.subr.mxu0 0.0
        %4754 = vmatpush1.msra.mxu0 %v4736
        %4755 = vmatprep.subr.mxu0 0.0
        %4756 = vmatpush1.msra.mxu0 %v4735
        %4757 = vmatprep.subr.mxu0 0.0
        %4758 = vmatpush1.msra.mxu0 %v4734
        %4759 = vmatprep.subr.mxu0 0.0
        %4760 = vmatpush1.msra.mxu0 %v4733
        %4761 = vmatprep.subr.mxu0 0.0
        %4762 = vmatpush1.msra.mxu0 %v4732
        %4763 = vmatprep.subr.mxu0 0.0
        %4764 = vmatpush1.msra.mxu0 %v4731
        %4765 = vmatprep.subr.mxu0 0.0
        %4766 = vmatpush1.msra.mxu0 %v4730
        %4767 = vmatprep.subr.mxu0 0.0
        %4768 = vmatpush1.msra.mxu0 %v4729
        %4769 = vmatprep.subr.mxu0 0.0
        %4770 = vmatpush1.msra.mxu0 %v4728
        %4771 = vmatprep.subr.mxu0 0.0
        %4772 = vmatpush1.msra.mxu0 %v4727
        %4773 = vmatprep.subr.mxu0 0.0
        %4774 = vmatpush1.msra.mxu0 %v4726
        %4775 = vmatprep.subr.mxu0 0.0
        %4776 = vmatpush1.msra.mxu0 %v4725
        %4777 = vmatprep.subr.mxu0 0.0
        %4778 = vmatpush1.msra.mxu0 %v4724
        %4779 = vmatprep.subr.mxu0 0.0
        %4780 = vmatpush1.msra.mxu0 %v4723
        %4781 = vmatprep.subr.mxu0 0.0
        %4782 = vmatpush1.msra.mxu0 %v4722
        %4783 = vmatprep.subr.mxu0 0.0
        %4784 = vmatpush1.msra.mxu0 %v4721
        %4785 = vmatprep.subr.mxu0 0.0
        %4786 = vmatpush2.msra.mxu0 %v4752
        %4787 = vmatprep.subr.mxu0 0.0
        %4788 = vmatpush2.msra.mxu0 %v4751
        %4789 = vmatprep.subr.mxu0 0.0
        %4790 = vmatpush2.msra.mxu0 %v4750
        %4791 = vmatprep.subr.mxu0 0.0
        %4792 = vmatpush2.msra.mxu0 %v4749
        %4793 = vmatprep.subr.mxu0 0.0
        %4794 = vmatpush2.msra.mxu0 %v4748
        %4795 = vmatprep.subr.mxu0 0.0
        %4796 = vmatpush2.msra.mxu0 %v4747
        %4797 = vmatprep.subr.mxu0 0.0
        %4798 = vmatpush2.msra.mxu0 %v4746
        %4799 = vmatprep.subr.mxu0 0.0
        %4800 = vmatpush2.msra.mxu0 %v4745
        %4801 = vmatprep.subr.mxu0 0.0
        %4802 = vmatpush2.msra.mxu0 %v4744
        %4803 = vmatprep.subr.mxu0 0.0
        %4804 = vmatpush2.msra.mxu0 %v4743
        %4805 = vmatprep.subr.mxu0 0.0
        %4806 = vmatpush2.msra.mxu0 %v4742
        %4807 = vmatprep.subr.mxu0 0.0
        %4808 = vmatpush2.msra.mxu0 %v4741
        %4809 = vmatprep.subr.mxu0 0.0
        %4810 = vmatpush2.msra.mxu0 %v4740
        %4811 = vmatprep.subr.mxu0 0.0
        %4812 = vmatpush2.msra.mxu0 %v4739
        %4813 = vmatprep.subr.mxu0 0.0
        %4814 = vmatpush2.msra.mxu0 %v4738
        %4815 = vmatprep.subr.mxu0 0.0
        %4816 = vmatpush2.msra.mxu0 %v4737
        %4817 = vmatprep.mubr.f32.mxu0 %v4513
        %4818 = vmatmul.mubr.f32.gmra.mxu0 %v4512
        %v4819 = vpop.f32.mrf.mxu0
        %v4820 = vadd.f32 0.0, %v4819
        %v4821 = vpop.f32.mrf.mxu0
        %4822 = vdwg.mxu0
        %v4823 = vmax.f32 %v4719, %v4820
        %v4824 = vld [vmem:[#allocation19] sm:$0xf]
        %s4825 = scalar_lea.vmem [#allocation19], 4
        %v4826 = vld [vmem:[%s4825] sm:$0xf]
        %v4827 = vmax.f32 %v4823, 0.0
        %v4828 = vld [vmem:[#allocation22] sm:$0x1]
        %vm4829 = vcmask 31744
        %v4831 = vsel %vm4829, %v4824, 0
        %vm4833 = vcmask 1043456
        %v4835 = vsel %vm4833, %v4827, 0
        %4837 = vmatprep.subr.mxu0 0.0
        %4838 = vmatpush1.msra.mxu0 0.0
        %4839 = vmatprep.subr.mxu0 0.0
        %4840 = vmatpush1.msra.mxu0 0.0
        %4841 = vmatprep.subr.mxu0 0.0
        %4842 = vmatpush1.msra.mxu0 0.0
        %4843 = vmatprep.subr.mxu0 0.0
        %4844 = vmatpush1.msra.mxu0 0.0
        %4845 = vmatprep.subr.mxu0 0.0
        %4846 = vmatpush1.msra.mxu0 0.0
        %4847 = vmatprep.subr.mxu0 0.0
        %4848 = vmatpush1.msra.mxu0 0.0
        %4849 = vmatprep.subr.mxu0 0.0
        %4850 = vmatpush1.msra.mxu0 0.0
        %4851 = vmatprep.subr.mxu0 0.0
        %4852 = vmatpush1.msra.mxu0 0.0
        %4853 = vmatprep.subr.mxu0 0.0
        %4854 = vmatpush1.msra.mxu0 0.0
        %4855 = vmatprep.subr.mxu0 0.0
        %4856 = vmatpush1.msra.mxu0 0.0
        %4857 = vmatprep.subr.mxu0 0.0
        %4858 = vmatpush1.msra.mxu0 0.0
        %4859 = vmatprep.subr.mxu0 0.0
        %4860 = vmatpush1.msra.mxu0 0.0
        %4861 = vmatprep.subr.mxu0 0.0
        %4862 = vmatpush1.msra.mxu0 0.0
        %4863 = vmatprep.subr.mxu0 0.0
        %4864 = vmatpush1.msra.mxu0 0.0
        %4865 = vmatprep.subr.mxu0 0.0
        %4866 = vmatpush1.msra.mxu0 0.0
        %4867 = vmatprep.subr.mxu0 0.0
        %4868 = vmatpush1.msra.mxu0 %v4835
        %4869 = vmatprep.subr.mxu0 0.0
        %4870 = vmatpush2.msra.mxu0 0.0
        %4871 = vmatprep.subr.mxu0 0.0
        %4872 = vmatpush2.msra.mxu0 0.0
        %4873 = vmatprep.subr.mxu0 0.0
        %4874 = vmatpush2.msra.mxu0 0.0
        %4875 = vmatprep.subr.mxu0 0.0
        %4876 = vmatpush2.msra.mxu0 0.0
        %4877 = vmatprep.subr.mxu0 0.0
        %4878 = vmatpush2.msra.mxu0 0.0
        %4879 = vmatprep.subr.mxu0 0.0
        %4880 = vmatpush2.msra.mxu0 0.0
        %4881 = vmatprep.subr.mxu0 0.0
        %4882 = vmatpush2.msra.mxu0 0.0
        %4883 = vmatprep.subr.mxu0 0.0
        %4884 = vmatpush2.msra.mxu0 0.0
        %4885 = vmatprep.subr.mxu0 0.0
        %4886 = vmatpush2.msra.mxu0 0.0
        %4887 = vmatprep.subr.mxu0 0.0
        %4888 = vmatpush2.msra.mxu0 0.0
        %4889 = vmatprep.subr.mxu0 0.0
        %4890 = vmatpush2.msra.mxu0 0.0
        %4891 = vmatprep.subr.mxu0 0.0
        %4892 = vmatpush2.msra.mxu0 0.0
        %4893 = vmatprep.subr.mxu0 0.0
        %4894 = vmatpush2.msra.mxu0 0.0
        %4895 = vmatprep.subr.mxu0 0.0
        %4896 = vmatpush2.msra.mxu0 0.0
        %4897 = vmatprep.subr.mxu0 0.0
        %4898 = vmatpush2.msra.mxu0 0.0
        %4899 = vmatprep.subr.mxu0 0.0
        %4900 = vmatpush2.msra.mxu0 0.0
        %4901 = vmatprep.mubr.f32.mxu0 0.0
        %4902 = vmatmul.mubr.f32.gmra.mxu0 %v4831
        %v4903 = vpop.f32.mrf.mxu0
        %v4904 = vadd.f32 0.0, %v4903
        %v4905 = vpop.f32.mrf.mxu0
        %4906 = vdwg.mxu0
        %v4908 = vsel %vm4829, %v4826, 0
        %4910 = vmatprep.subr.mxu0 0.0
        %4911 = vmatpush1.msra.mxu0 0.0
        %4912 = vmatprep.subr.mxu0 0.0
        %4913 = vmatpush1.msra.mxu0 0.0
        %4914 = vmatprep.subr.mxu0 0.0
        %4915 = vmatpush1.msra.mxu0 0.0
        %4916 = vmatprep.subr.mxu0 0.0
        %4917 = vmatpush1.msra.mxu0 0.0
        %4918 = vmatprep.subr.mxu0 0.0
        %4919 = vmatpush1.msra.mxu0 0.0
        %4920 = vmatprep.subr.mxu0 0.0
        %4921 = vmatpush1.msra.mxu0 0.0
        %4922 = vmatprep.subr.mxu0 0.0
        %4923 = vmatpush1.msra.mxu0 0.0
        %4924 = vmatprep.subr.mxu0 0.0
        %4925 = vmatpush1.msra.mxu0 0.0
        %4926 = vmatprep.subr.mxu0 0.0
        %4927 = vmatpush1.msra.mxu0 0.0
        %4928 = vmatprep.subr.mxu0 0.0
        %4929 = vmatpush1.msra.mxu0 0.0
        %4930 = vmatprep.subr.mxu0 0.0
        %4931 = vmatpush1.msra.mxu0 0.0
        %4932 = vmatprep.subr.mxu0 0.0
        %4933 = vmatpush1.msra.mxu0 0.0
        %4934 = vmatprep.subr.mxu0 0.0
        %4935 = vmatpush1.msra.mxu0 0.0
        %4936 = vmatprep.subr.mxu0 0.0
        %4937 = vmatpush1.msra.mxu0 0.0
        %4938 = vmatprep.subr.mxu0 0.0
        %4939 = vmatpush1.msra.mxu0 0.0
        %4940 = vmatprep.subr.mxu0 0.0
        %4941 = vmatpush1.msra.mxu0 %v4835
        %4942 = vmatprep.subr.mxu0 0.0
        %4943 = vmatpush2.msra.mxu0 0.0
        %4944 = vmatprep.subr.mxu0 0.0
        %4945 = vmatpush2.msra.mxu0 0.0
        %4946 = vmatprep.subr.mxu0 0.0
        %4947 = vmatpush2.msra.mxu0 0.0
        %4948 = vmatprep.subr.mxu0 0.0
        %4949 = vmatpush2.msra.mxu0 0.0
        %4950 = vmatprep.subr.mxu0 0.0
        %4951 = vmatpush2.msra.mxu0 0.0
        %4952 = vmatprep.subr.mxu0 0.0
        %4953 = vmatpush2.msra.mxu0 0.0
        %4954 = vmatprep.subr.mxu0 0.0
        %4955 = vmatpush2.msra.mxu0 0.0
        %4956 = vmatprep.subr.mxu0 0.0
        %4957 = vmatpush2.msra.mxu0 0.0
        %4958 = vmatprep.subr.mxu0 0.0
        %4959 = vmatpush2.msra.mxu0 0.0
        %4960 = vmatprep.subr.mxu0 0.0
        %4961 = vmatpush2.msra.mxu0 0.0
        %4962 = vmatprep.subr.mxu0 0.0
        %4963 = vmatpush2.msra.mxu0 0.0
        %4964 = vmatprep.subr.mxu0 0.0
        %4965 = vmatpush2.msra.mxu0 0.0
        %4966 = vmatprep.subr.mxu0 0.0
        %4967 = vmatpush2.msra.mxu0 0.0
        %4968 = vmatprep.subr.mxu0 0.0
        %4969 = vmatpush2.msra.mxu0 0.0
        %4970 = vmatprep.subr.mxu0 0.0
        %4971 = vmatpush2.msra.mxu0 0.0
        %4972 = vmatprep.subr.mxu0 0.0
        %4973 = vmatpush2.msra.mxu0 0.0
        %4974 = vmatprep.mubr.f32.mxu0 0.0
        %4975 = vmatmul.mubr.f32.gmra.mxu0 %v4908
        %v4976 = vpop.f32.mrf.mxu0
        %v4977 = vadd.f32 0.0, %v4976
        %v4978 = vpop.f32.mrf.mxu0
        %4979 = vdwg.mxu0
        %v4980 = vld [vmem:[#allocation21] sm:$0xff]
        %v4981 = vld [vmem:[#allocation21 + $0x8] sm:$0xff]
        %v4982 = vld [vmem:[#allocation21 + $0x10] sm:$0xff]
        %v4983 = vld [vmem:[#allocation21 + $0x18] sm:$0xff]
        %v4984 = vld [vmem:[#allocation21 + $0x20] sm:$0xff]
        %v4985 = vld [vmem:[#allocation21 + $0x28] sm:$0xff]
        %v4986 = vld [vmem:[#allocation21 + $0x30] sm:$0xff]
        %v4987 = vld [vmem:[#allocation21 + $0x38] sm:$0xff]
        %v4988 = vld [vmem:[#allocation21 + $0x40] sm:$0xff]
        %v4989 = vld [vmem:[#allocation21 + $0x48] sm:$0xff]
        %v4990 = vld [vmem:[#allocation21 + $0x50] sm:$0xff]
        %v4991 = vld [vmem:[#allocation21 + $0x58] sm:$0xff]
        %v4992 = vld [vmem:[#allocation21 + $0x60] sm:$0xff]
        %v4993 = vld [vmem:[#allocation21 + $0x68] sm:$0xff]
        %v4994 = vld [vmem:[#allocation21 + $0x70] sm:$0xff]
        %v4995 = vld [vmem:[#allocation21 + $0x78] sm:$0xff]
        %s4996 = scalar_lea.vmem [#allocation21], 128
        %v4997 = vld [vmem:[%s4996] sm:$0xff]
        %v4998 = vld [vmem:[%s4996 + $0x8] sm:$0xff]
        %v4999 = vld [vmem:[%s4996 + $0x10] sm:$0xff]
        %v5000 = vld [vmem:[%s4996 + $0x18] sm:$0xff]
        %v5001 = vld [vmem:[%s4996 + $0x20] sm:$0xff]
        %v5002 = vld [vmem:[%s4996 + $0x28] sm:$0xff]
        %v5003 = vld [vmem:[%s4996 + $0x30] sm:$0xff]
        %v5004 = vld [vmem:[%s4996 + $0x38] sm:$0xff]
        %v5005 = vld [vmem:[%s4996 + $0x40] sm:$0xff]
        %v5006 = vld [vmem:[%s4996 + $0x48] sm:$0xff]
        %v5007 = vld [vmem:[%s4996 + $0x50] sm:$0xff]
        %v5008 = vld [vmem:[%s4996 + $0x58] sm:$0xff]
        %v5009 = vld [vmem:[%s4996 + $0x60] sm:$0xff]
        %v5010 = vld [vmem:[%s4996 + $0x68] sm:$0xff]
        %v5011 = vld [vmem:[%s4996 + $0x70] sm:$0xff]
        %v5012 = vld [vmem:[%s4996 + $0x78] sm:$0xff]
        %5013 = vmatprep.subr.mxu0 0.0
        %5014 = vmatpush1.msra.mxu0 %v5012
        %5015 = vmatprep.subr.mxu0 0.0
        %5016 = vmatpush1.msra.mxu0 %v5011
        %5017 = vmatprep.subr.mxu0 0.0
        %5018 = vmatpush1.msra.mxu0 %v5010
        %5019 = vmatprep.subr.mxu0 0.0
        %5020 = vmatpush1.msra.mxu0 %v5009
        %5021 = vmatprep.subr.mxu0 0.0
        %5022 = vmatpush1.msra.mxu0 %v5008
        %5023 = vmatprep.subr.mxu0 0.0
        %5024 = vmatpush1.msra.mxu0 %v5007
        %5025 = vmatprep.subr.mxu0 0.0
        %5026 = vmatpush1.msra.mxu0 %v5006
        %5027 = vmatprep.subr.mxu0 0.0
        %5028 = vmatpush1.msra.mxu0 %v5005
        %5029 = vmatprep.subr.mxu0 0.0
        %5030 = vmatpush1.msra.mxu0 %v5004
        %5031 = vmatprep.subr.mxu0 0.0
        %5032 = vmatpush1.msra.mxu0 %v5003
        %5033 = vmatprep.subr.mxu0 0.0
        %5034 = vmatpush1.msra.mxu0 %v5002
        %5035 = vmatprep.subr.mxu0 0.0
        %5036 = vmatpush1.msra.mxu0 %v5001
        %5037 = vmatprep.subr.mxu0 0.0
        %5038 = vmatpush1.msra.mxu0 %v5000
        %5039 = vmatprep.subr.mxu0 0.0
        %5040 = vmatpush1.msra.mxu0 %v4999
        %5041 = vmatprep.subr.mxu0 0.0
        %5042 = vmatpush1.msra.mxu0 %v4998
        %5043 = vmatprep.subr.mxu0 0.0
        %5044 = vmatpush1.msra.mxu0 %v4997
        %5045 = vmatprep.subr.mxu0 0.0
        %5046 = vmatpush2.msra.mxu0 0.0
        %5047 = vmatprep.subr.mxu0 0.0
        %5048 = vmatpush2.msra.mxu0 0.0
        %5049 = vmatprep.subr.mxu0 0.0
        %5050 = vmatpush2.msra.mxu0 0.0
        %5051 = vmatprep.subr.mxu0 0.0
        %5052 = vmatpush2.msra.mxu0 0.0
        %5053 = vmatprep.subr.mxu0 0.0
        %5054 = vmatpush2.msra.mxu0 0.0
        %5055 = vmatprep.subr.mxu0 0.0
        %5056 = vmatpush2.msra.mxu0 0.0
        %5057 = vmatprep.subr.mxu0 0.0
        %5058 = vmatpush2.msra.mxu0 0.0
        %5059 = vmatprep.subr.mxu0 0.0
        %5060 = vmatpush2.msra.mxu0 0.0
        %5061 = vmatprep.subr.mxu0 0.0
        %5062 = vmatpush2.msra.mxu0 0.0
        %5063 = vmatprep.subr.mxu0 0.0
        %5064 = vmatpush2.msra.mxu0 0.0
        %5065 = vmatprep.subr.mxu0 0.0
        %5066 = vmatpush2.msra.mxu0 0.0
        %5067 = vmatprep.subr.mxu0 0.0
        %5068 = vmatpush2.msra.mxu0 0.0
        %5069 = vmatprep.subr.mxu0 0.0
        %5070 = vmatpush2.msra.mxu0 0.0
        %5071 = vmatprep.subr.mxu0 0.0
        %5072 = vmatpush2.msra.mxu0 0.0
        %5073 = vmatprep.subr.mxu0 0.0
        %5074 = vmatpush2.msra.mxu0 0.0
        %5075 = vmatprep.subr.mxu0 0.0
        %5076 = vmatpush2.msra.mxu0 0.0
        %5077 = vmatprep.mubr.f32.mxu0 0.0
        %5078 = vmatmul.mubr.f32.gmra.mxu0 %v4827
        %v5079 = vpop.f32.mrf.mxu0
        %v5080 = vadd.f32 0.0, %v5079
        %v5081 = vpop.f32.mrf.mxu0
        %5082 = vdwg.mxu0
        %5083 = vmatprep.subr.mxu0 0.0
        %5084 = vmatpush1.msra.mxu0 %v4995
        %5085 = vmatprep.subr.mxu0 0.0
        %5086 = vmatpush1.msra.mxu0 %v4994
        %5087 = vmatprep.subr.mxu0 0.0
        %5088 = vmatpush1.msra.mxu0 %v4993
        %5089 = vmatprep.subr.mxu0 0.0
        %5090 = vmatpush1.msra.mxu0 %v4992
        %5091 = vmatprep.subr.mxu0 0.0
        %5092 = vmatpush1.msra.mxu0 %v4991
        %5093 = vmatprep.subr.mxu0 0.0
        %5094 = vmatpush1.msra.mxu0 %v4990
        %5095 = vmatprep.subr.mxu0 0.0
        %5096 = vmatpush1.msra.mxu0 %v4989
        %5097 = vmatprep.subr.mxu0 0.0
        %5098 = vmatpush1.msra.mxu0 %v4988
        %5099 = vmatprep.subr.mxu0 0.0
        %5100 = vmatpush1.msra.mxu0 %v4987
        %5101 = vmatprep.subr.mxu0 0.0
        %5102 = vmatpush1.msra.mxu0 %v4986
        %5103 = vmatprep.subr.mxu0 0.0
        %5104 = vmatpush1.msra.mxu0 %v4985
        %5105 = vmatprep.subr.mxu0 0.0
        %5106 = vmatpush1.msra.mxu0 %v4984
        %5107 = vmatprep.subr.mxu0 0.0
        %5108 = vmatpush1.msra.mxu0 %v4983
        %5109 = vmatprep.subr.mxu0 0.0
        %5110 = vmatpush1.msra.mxu0 %v4982
        %5111 = vmatprep.subr.mxu0 0.0
        %5112 = vmatpush1.msra.mxu0 %v4981
        %5113 = vmatprep.subr.mxu0 0.0
        %5114 = vmatpush1.msra.mxu0 %v4980
        %5115 = vmatprep.subr.mxu0 0.0
        %5116 = vmatpush2.msra.mxu0 0.0
        %5117 = vmatprep.subr.mxu0 0.0
        %5118 = vmatpush2.msra.mxu0 0.0
        %5119 = vmatprep.subr.mxu0 0.0
        %5120 = vmatpush2.msra.mxu0 0.0
        %5121 = vmatprep.subr.mxu0 0.0
        %5122 = vmatpush2.msra.mxu0 0.0
        %5123 = vmatprep.subr.mxu0 0.0
        %5124 = vmatpush2.msra.mxu0 0.0
        %5125 = vmatprep.subr.mxu0 0.0
        %5126 = vmatpush2.msra.mxu0 0.0
        %5127 = vmatprep.subr.mxu0 0.0
        %5128 = vmatpush2.msra.mxu0 0.0
        %5129 = vmatprep.subr.mxu0 0.0
        %5130 = vmatpush2.msra.mxu0 0.0
        %5131 = vmatprep.subr.mxu0 0.0
        %5132 = vmatpush2.msra.mxu0 0.0
        %5133 = vmatprep.subr.mxu0 0.0
        %5134 = vmatpush2.msra.mxu0 0.0
        %5135 = vmatprep.subr.mxu0 0.0
        %5136 = vmatpush2.msra.mxu0 0.0
        %5137 = vmatprep.subr.mxu0 0.0
        %5138 = vmatpush2.msra.mxu0 0.0
        %5139 = vmatprep.subr.mxu0 0.0
        %5140 = vmatpush2.msra.mxu0 0.0
        %5141 = vmatprep.subr.mxu0 0.0
        %5142 = vmatpush2.msra.mxu0 0.0
        %5143 = vmatprep.subr.mxu0 0.0
        %5144 = vmatpush2.msra.mxu0 0.0
        %5145 = vmatprep.subr.mxu0 0.0
        %5146 = vmatpush2.msra.mxu0 0.0
        %5147 = vmatprep.mubr.f32.mxu0 0.0
        %5148 = vmatmul.mubr.f32.gmra.mxu0 %v4904
        %v5149 = vpop.f32.mrf.mxu0
        %v5150 = vadd.f32 %v5080, %v5149
        %v5151 = vpop.f32.mrf.mxu0
        %5152 = vdwg.mxu0
        %s5153 = scalar_lea.vmem [#allocation21], 256
        %v5154 = vld [vmem:[%s5153] sm:$0xff]
        %v5155 = vld [vmem:[%s5153 + $0x8] sm:$0xff]
        %v5156 = vld [vmem:[%s5153 + $0x10] sm:$0xff]
        %v5157 = vld [vmem:[%s5153 + $0x18] sm:$0xff]
        %v5158 = vld [vmem:[%s5153 + $0x20] sm:$0xff]
        %v5159 = vld [vmem:[%s5153 + $0x28] sm:$0xff]
        %v5160 = vld [vmem:[%s5153 + $0x30] sm:$0xff]
        %v5161 = vld [vmem:[%s5153 + $0x38] sm:$0xff]
        %v5162 = vld [vmem:[%s5153 + $0x40] sm:$0xff]
        %v5163 = vld [vmem:[%s5153 + $0x48] sm:$0xff]
        %v5164 = vld [vmem:[%s5153 + $0x50] sm:$0xff]
        %v5165 = vld [vmem:[%s5153 + $0x58] sm:$0xff]
        %v5166 = vld [vmem:[%s5153 + $0x60] sm:$0xff]
        %v5167 = vld [vmem:[%s5153 + $0x68] sm:$0xff]
        %v5168 = vld [vmem:[%s5153 + $0x70] sm:$0xff]
        %v5169 = vld [vmem:[%s5153 + $0x78] sm:$0xff]
        %5170 = vmatprep.subr.mxu0 0.0
        %5171 = vmatpush1.msra.mxu0 %v5169
        %5172 = vmatprep.subr.mxu0 0.0
        %5173 = vmatpush1.msra.mxu0 %v5168
        %5174 = vmatprep.subr.mxu0 0.0
        %5175 = vmatpush1.msra.mxu0 %v5167
        %5176 = vmatprep.subr.mxu0 0.0
        %5177 = vmatpush1.msra.mxu0 %v5166
        %5178 = vmatprep.subr.mxu0 0.0
        %5179 = vmatpush1.msra.mxu0 %v5165
        %5180 = vmatprep.subr.mxu0 0.0
        %5181 = vmatpush1.msra.mxu0 %v5164
        %5182 = vmatprep.subr.mxu0 0.0
        %5183 = vmatpush1.msra.mxu0 %v5163
        %5184 = vmatprep.subr.mxu0 0.0
        %5185 = vmatpush1.msra.mxu0 %v5162
        %5186 = vmatprep.subr.mxu0 0.0
        %5187 = vmatpush1.msra.mxu0 %v5161
        %5188 = vmatprep.subr.mxu0 0.0
        %5189 = vmatpush1.msra.mxu0 %v5160
        %5190 = vmatprep.subr.mxu0 0.0
        %5191 = vmatpush1.msra.mxu0 %v5159
        %5192 = vmatprep.subr.mxu0 0.0
        %5193 = vmatpush1.msra.mxu0 %v5158
        %5194 = vmatprep.subr.mxu0 0.0
        %5195 = vmatpush1.msra.mxu0 %v5157
        %5196 = vmatprep.subr.mxu0 0.0
        %5197 = vmatpush1.msra.mxu0 %v5156
        %5198 = vmatprep.subr.mxu0 0.0
        %5199 = vmatpush1.msra.mxu0 %v5155
        %5200 = vmatprep.subr.mxu0 0.0
        %5201 = vmatpush1.msra.mxu0 %v5154
        %5202 = vmatprep.subr.mxu0 0.0
        %5203 = vmatpush2.msra.mxu0 0.0
        %5204 = vmatprep.subr.mxu0 0.0
        %5205 = vmatpush2.msra.mxu0 0.0
        %5206 = vmatprep.subr.mxu0 0.0
        %5207 = vmatpush2.msra.mxu0 0.0
        %5208 = vmatprep.subr.mxu0 0.0
        %5209 = vmatpush2.msra.mxu0 0.0
        %5210 = vmatprep.subr.mxu0 0.0
        %5211 = vmatpush2.msra.mxu0 0.0
        %5212 = vmatprep.subr.mxu0 0.0
        %5213 = vmatpush2.msra.mxu0 0.0
        %5214 = vmatprep.subr.mxu0 0.0
        %5215 = vmatpush2.msra.mxu0 0.0
        %5216 = vmatprep.subr.mxu0 0.0
        %5217 = vmatpush2.msra.mxu0 0.0
        %5218 = vmatprep.subr.mxu0 0.0
        %5219 = vmatpush2.msra.mxu0 0.0
        %5220 = vmatprep.subr.mxu0 0.0
        %5221 = vmatpush2.msra.mxu0 0.0
        %5222 = vmatprep.subr.mxu0 0.0
        %5223 = vmatpush2.msra.mxu0 0.0
        %5224 = vmatprep.subr.mxu0 0.0
        %5225 = vmatpush2.msra.mxu0 0.0
        %5226 = vmatprep.subr.mxu0 0.0
        %5227 = vmatpush2.msra.mxu0 0.0
        %5228 = vmatprep.subr.mxu0 0.0
        %5229 = vmatpush2.msra.mxu0 0.0
        %5230 = vmatprep.subr.mxu0 0.0
        %5231 = vmatpush2.msra.mxu0 0.0
        %5232 = vmatprep.subr.mxu0 0.0
        %5233 = vmatpush2.msra.mxu0 0.0
        %5234 = vmatprep.mubr.f32.mxu0 0.0
        %5235 = vmatmul.mubr.f32.gmra.mxu0 %v4977
        %v5236 = vpop.f32.mrf.mxu0
        %v5237 = vadd.f32 0.0, %v5236
        %v5238 = vpop.f32.mrf.mxu0
        %5239 = vdwg.mxu0
        %v5240 = vadd.f32 %v5150, %v5237
        %v5242 = vlaneseq
        %v5243 = vshrl.u32 %v5242, 7
        %v5244 = vsub.s32 0, %v5243
        %v5245 = vrot.slane %v4828, %v5244
        %v5247 = vadd.f32 %v5240, %v5245
        %v5248 = vmax.f32 %v5247, 0.0
        %s5249 = scalar_lea.vmem [#allocation22], 1
        %v5250 = vld [vmem:[%s5249] sm:$0x1]
        %v5252 = vsel %vm4833, %v5248, 0
        %5254 = vmatprep.subr.mxu0 0.0
        %5255 = vmatpush1.msra.mxu0 0.0
        %5256 = vmatprep.subr.mxu0 0.0
        %5257 = vmatpush1.msra.mxu0 0.0
        %5258 = vmatprep.subr.mxu0 0.0
        %5259 = vmatpush1.msra.mxu0 0.0
        %5260 = vmatprep.subr.mxu0 0.0
        %5261 = vmatpush1.msra.mxu0 0.0
        %5262 = vmatprep.subr.mxu0 0.0
        %5263 = vmatpush1.msra.mxu0 0.0
        %5264 = vmatprep.subr.mxu0 0.0
        %5265 = vmatpush1.msra.mxu0 0.0
        %5266 = vmatprep.subr.mxu0 0.0
        %5267 = vmatpush1.msra.mxu0 0.0
        %5268 = vmatprep.subr.mxu0 0.0
        %5269 = vmatpush1.msra.mxu0 0.0
        %5270 = vmatprep.subr.mxu0 0.0
        %5271 = vmatpush1.msra.mxu0 0.0
        %5272 = vmatprep.subr.mxu0 0.0
        %5273 = vmatpush1.msra.mxu0 0.0
        %5274 = vmatprep.subr.mxu0 0.0
        %5275 = vmatpush1.msra.mxu0 0.0
        %5276 = vmatprep.subr.mxu0 0.0
        %5277 = vmatpush1.msra.mxu0 0.0
        %5278 = vmatprep.subr.mxu0 0.0
        %5279 = vmatpush1.msra.mxu0 0.0
        %5280 = vmatprep.subr.mxu0 0.0
        %5281 = vmatpush1.msra.mxu0 0.0
        %5282 = vmatprep.subr.mxu0 0.0
        %5283 = vmatpush1.msra.mxu0 0.0
        %5284 = vmatprep.subr.mxu0 0.0
        %5285 = vmatpush1.msra.mxu0 %v5252
        %5286 = vmatprep.subr.mxu0 0.0
        %5287 = vmatpush2.msra.mxu0 0.0
        %5288 = vmatprep.subr.mxu0 0.0
        %5289 = vmatpush2.msra.mxu0 0.0
        %5290 = vmatprep.subr.mxu0 0.0
        %5291 = vmatpush2.msra.mxu0 0.0
        %5292 = vmatprep.subr.mxu0 0.0
        %5293 = vmatpush2.msra.mxu0 0.0
        %5294 = vmatprep.subr.mxu0 0.0
        %5295 = vmatpush2.msra.mxu0 0.0
        %5296 = vmatprep.subr.mxu0 0.0
        %5297 = vmatpush2.msra.mxu0 0.0
        %5298 = vmatprep.subr.mxu0 0.0
        %5299 = vmatpush2.msra.mxu0 0.0
        %5300 = vmatprep.subr.mxu0 0.0
        %5301 = vmatpush2.msra.mxu0 0.0
        %5302 = vmatprep.subr.mxu0 0.0
        %5303 = vmatpush2.msra.mxu0 0.0
        %5304 = vmatprep.subr.mxu0 0.0
        %5305 = vmatpush2.msra.mxu0 0.0
        %5306 = vmatprep.subr.mxu0 0.0
        %5307 = vmatpush2.msra.mxu0 0.0
        %5308 = vmatprep.subr.mxu0 0.0
        %5309 = vmatpush2.msra.mxu0 0.0
        %5310 = vmatprep.subr.mxu0 0.0
        %5311 = vmatpush2.msra.mxu0 0.0
        %5312 = vmatprep.subr.mxu0 0.0
        %5313 = vmatpush2.msra.mxu0 0.0
        %5314 = vmatprep.subr.mxu0 0.0
        %5315 = vmatpush2.msra.mxu0 0.0
        %5316 = vmatprep.subr.mxu0 0.0
        %5317 = vmatpush2.msra.mxu0 0.0
        %5318 = vmatprep.mubr.f32.mxu0 0.0
        %5319 = vmatmul.mubr.f32.gmra.mxu0 %v4831
        %v5320 = vpop.f32.mrf.mxu0
        %v5321 = vadd.f32 0.0, %v5320
        %v5322 = vpop.f32.mrf.mxu0
        %5323 = vdwg.mxu0
        %5324 = vmatprep.subr.mxu0 0.0
        %5325 = vmatpush1.msra.mxu0 0.0
        %5326 = vmatprep.subr.mxu0 0.0
        %5327 = vmatpush1.msra.mxu0 0.0
        %5328 = vmatprep.subr.mxu0 0.0
        %5329 = vmatpush1.msra.mxu0 0.0
        %5330 = vmatprep.subr.mxu0 0.0
        %5331 = vmatpush1.msra.mxu0 0.0
        %5332 = vmatprep.subr.mxu0 0.0
        %5333 = vmatpush1.msra.mxu0 0.0
        %5334 = vmatprep.subr.mxu0 0.0
        %5335 = vmatpush1.msra.mxu0 0.0
        %5336 = vmatprep.subr.mxu0 0.0
        %5337 = vmatpush1.msra.mxu0 0.0
        %5338 = vmatprep.subr.mxu0 0.0
        %5339 = vmatpush1.msra.mxu0 0.0
        %5340 = vmatprep.subr.mxu0 0.0
        %5341 = vmatpush1.msra.mxu0 0.0
        %5342 = vmatprep.subr.mxu0 0.0
        %5343 = vmatpush1.msra.mxu0 0.0
        %5344 = vmatprep.subr.mxu0 0.0
        %5345 = vmatpush1.msra.mxu0 0.0
        %5346 = vmatprep.subr.mxu0 0.0
        %5347 = vmatpush1.msra.mxu0 0.0
        %5348 = vmatprep.subr.mxu0 0.0
        %5349 = vmatpush1.msra.mxu0 0.0
        %5350 = vmatprep.subr.mxu0 0.0
        %5351 = vmatpush1.msra.mxu0 0.0
        %5352 = vmatprep.subr.mxu0 0.0
        %5353 = vmatpush1.msra.mxu0 0.0
        %5354 = vmatprep.subr.mxu0 0.0
        %5355 = vmatpush1.msra.mxu0 %v5252
        %5356 = vmatprep.subr.mxu0 0.0
        %5357 = vmatpush2.msra.mxu0 0.0
        %5358 = vmatprep.subr.mxu0 0.0
        %5359 = vmatpush2.msra.mxu0 0.0
        %5360 = vmatprep.subr.mxu0 0.0
        %5361 = vmatpush2.msra.mxu0 0.0
        %5362 = vmatprep.subr.mxu0 0.0
        %5363 = vmatpush2.msra.mxu0 0.0
        %5364 = vmatprep.subr.mxu0 0.0
        %5365 = vmatpush2.msra.mxu0 0.0
        %5366 = vmatprep.subr.mxu0 0.0
        %5367 = vmatpush2.msra.mxu0 0.0
        %5368 = vmatprep.subr.mxu0 0.0
        %5369 = vmatpush2.msra.mxu0 0.0
        %5370 = vmatprep.subr.mxu0 0.0
        %5371 = vmatpush2.msra.mxu0 0.0
        %5372 = vmatprep.subr.mxu0 0.0
        %5373 = vmatpush2.msra.mxu0 0.0
        %5374 = vmatprep.subr.mxu0 0.0
        %5375 = vmatpush2.msra.mxu0 0.0
        %5376 = vmatprep.subr.mxu0 0.0
        %5377 = vmatpush2.msra.mxu0 0.0
        %5378 = vmatprep.subr.mxu0 0.0
        %5379 = vmatpush2.msra.mxu0 0.0
        %5380 = vmatprep.subr.mxu0 0.0
        %5381 = vmatpush2.msra.mxu0 0.0
        %5382 = vmatprep.subr.mxu0 0.0
        %5383 = vmatpush2.msra.mxu0 0.0
        %5384 = vmatprep.subr.mxu0 0.0
        %5385 = vmatpush2.msra.mxu0 0.0
        %5386 = vmatprep.subr.mxu0 0.0
        %5387 = vmatpush2.msra.mxu0 0.0
        %5388 = vmatprep.mubr.f32.mxu0 0.0
        %5389 = vmatmul.mubr.f32.gmra.mxu0 %v4908
        %v5390 = vpop.f32.mrf.mxu0
        %v5391 = vadd.f32 0.0, %v5390
        %v5392 = vpop.f32.mrf.mxu0
        %5393 = vdwg.mxu0
        %s5394 = scalar_lea.vmem [#allocation21], 384
        %v5395 = vld [vmem:[%s5394] sm:$0xff]
        %v5396 = vld [vmem:[%s5394 + $0x8] sm:$0xff]
        %v5397 = vld [vmem:[%s5394 + $0x10] sm:$0xff]
        %v5398 = vld [vmem:[%s5394 + $0x18] sm:$0xff]
        %v5399 = vld [vmem:[%s5394 + $0x20] sm:$0xff]
        %v5400 = vld [vmem:[%s5394 + $0x28] sm:$0xff]
        %v5401 = vld [vmem:[%s5394 + $0x30] sm:$0xff]
        %v5402 = vld [vmem:[%s5394 + $0x38] sm:$0xff]
        %v5403 = vld [vmem:[%s5394 + $0x40] sm:$0xff]
        %v5404 = vld [vmem:[%s5394 + $0x48] sm:$0xff]
        %v5405 = vld [vmem:[%s5394 + $0x50] sm:$0xff]
        %v5406 = vld [vmem:[%s5394 + $0x58] sm:$0xff]
        %v5407 = vld [vmem:[%s5394 + $0x60] sm:$0xff]
        %v5408 = vld [vmem:[%s5394 + $0x68] sm:$0xff]
        %v5409 = vld [vmem:[%s5394 + $0x70] sm:$0xff]
        %v5410 = vld [vmem:[%s5394 + $0x78] sm:$0xff]
        %s5411 = scalar_lea.vmem [#allocation21], 512
        %v5412 = vld [vmem:[%s5411] sm:$0xff]
        %v5413 = vld [vmem:[%s5411 + $0x8] sm:$0xff]
        %v5414 = vld [vmem:[%s5411 + $0x10] sm:$0xff]
        %v5415 = vld [vmem:[%s5411 + $0x18] sm:$0xff]
        %v5416 = vld [vmem:[%s5411 + $0x20] sm:$0xff]
        %v5417 = vld [vmem:[%s5411 + $0x28] sm:$0xff]
        %v5418 = vld [vmem:[%s5411 + $0x30] sm:$0xff]
        %v5419 = vld [vmem:[%s5411 + $0x38] sm:$0xff]
        %v5420 = vld [vmem:[%s5411 + $0x40] sm:$0xff]
        %v5421 = vld [vmem:[%s5411 + $0x48] sm:$0xff]
        %v5422 = vld [vmem:[%s5411 + $0x50] sm:$0xff]
        %v5423 = vld [vmem:[%s5411 + $0x58] sm:$0xff]
        %v5424 = vld [vmem:[%s5411 + $0x60] sm:$0xff]
        %v5425 = vld [vmem:[%s5411 + $0x68] sm:$0xff]
        %v5426 = vld [vmem:[%s5411 + $0x70] sm:$0xff]
        %v5427 = vld [vmem:[%s5411 + $0x78] sm:$0xff]
        %5428 = vmatprep.subr.mxu0 0.0
        %5429 = vmatpush1.msra.mxu0 %v5427
        %5430 = vmatprep.subr.mxu0 0.0
        %5431 = vmatpush1.msra.mxu0 %v5426
        %5432 = vmatprep.subr.mxu0 0.0
        %5433 = vmatpush1.msra.mxu0 %v5425
        %5434 = vmatprep.subr.mxu0 0.0
        %5435 = vmatpush1.msra.mxu0 %v5424
        %5436 = vmatprep.subr.mxu0 0.0
        %5437 = vmatpush1.msra.mxu0 %v5423
        %5438 = vmatprep.subr.mxu0 0.0
        %5439 = vmatpush1.msra.mxu0 %v5422
        %5440 = vmatprep.subr.mxu0 0.0
        %5441 = vmatpush1.msra.mxu0 %v5421
        %5442 = vmatprep.subr.mxu0 0.0
        %5443 = vmatpush1.msra.mxu0 %v5420
        %5444 = vmatprep.subr.mxu0 0.0
        %5445 = vmatpush1.msra.mxu0 %v5419
        %5446 = vmatprep.subr.mxu0 0.0
        %5447 = vmatpush1.msra.mxu0 %v5418
        %5448 = vmatprep.subr.mxu0 0.0
        %5449 = vmatpush1.msra.mxu0 %v5417
        %5450 = vmatprep.subr.mxu0 0.0
        %5451 = vmatpush1.msra.mxu0 %v5416
        %5452 = vmatprep.subr.mxu0 0.0
        %5453 = vmatpush1.msra.mxu0 %v5415
        %5454 = vmatprep.subr.mxu0 0.0
        %5455 = vmatpush1.msra.mxu0 %v5414
        %5456 = vmatprep.subr.mxu0 0.0
        %5457 = vmatpush1.msra.mxu0 %v5413
        %5458 = vmatprep.subr.mxu0 0.0
        %5459 = vmatpush1.msra.mxu0 %v5412
        %5460 = vmatprep.subr.mxu0 0.0
        %5461 = vmatpush2.msra.mxu0 0.0
        %5462 = vmatprep.subr.mxu0 0.0
        %5463 = vmatpush2.msra.mxu0 0.0
        %5464 = vmatprep.subr.mxu0 0.0
        %5465 = vmatpush2.msra.mxu0 0.0
        %5466 = vmatprep.subr.mxu0 0.0
        %5467 = vmatpush2.msra.mxu0 0.0
        %5468 = vmatprep.subr.mxu0 0.0
        %5469 = vmatpush2.msra.mxu0 0.0
        %5470 = vmatprep.subr.mxu0 0.0
        %5471 = vmatpush2.msra.mxu0 0.0
        %5472 = vmatprep.subr.mxu0 0.0
        %5473 = vmatpush2.msra.mxu0 0.0
        %5474 = vmatprep.subr.mxu0 0.0
        %5475 = vmatpush2.msra.mxu0 0.0
        %5476 = vmatprep.subr.mxu0 0.0
        %5477 = vmatpush2.msra.mxu0 0.0
        %5478 = vmatprep.subr.mxu0 0.0
        %5479 = vmatpush2.msra.mxu0 0.0
        %5480 = vmatprep.subr.mxu0 0.0
        %5481 = vmatpush2.msra.mxu0 0.0
        %5482 = vmatprep.subr.mxu0 0.0
        %5483 = vmatpush2.msra.mxu0 0.0
        %5484 = vmatprep.subr.mxu0 0.0
        %5485 = vmatpush2.msra.mxu0 0.0
        %5486 = vmatprep.subr.mxu0 0.0
        %5487 = vmatpush2.msra.mxu0 0.0
        %5488 = vmatprep.subr.mxu0 0.0
        %5489 = vmatpush2.msra.mxu0 0.0
        %5490 = vmatprep.subr.mxu0 0.0
        %5491 = vmatpush2.msra.mxu0 0.0
        %5492 = vmatprep.mubr.f32.mxu0 0.0
        %5493 = vmatmul.mubr.f32.gmra.mxu0 %v5248
        %v5494 = vpop.f32.mrf.mxu0
        %v5495 = vadd.f32 0.0, %v5494
        %v5496 = vpop.f32.mrf.mxu0
        %5497 = vdwg.mxu0
        %5498 = vmatprep.subr.mxu0 0.0
        %5499 = vmatpush1.msra.mxu0 %v5410
        %5500 = vmatprep.subr.mxu0 0.0
        %5501 = vmatpush1.msra.mxu0 %v5409
        %5502 = vmatprep.subr.mxu0 0.0
        %5503 = vmatpush1.msra.mxu0 %v5408
        %5504 = vmatprep.subr.mxu0 0.0
        %5505 = vmatpush1.msra.mxu0 %v5407
        %5506 = vmatprep.subr.mxu0 0.0
        %5507 = vmatpush1.msra.mxu0 %v5406
        %5508 = vmatprep.subr.mxu0 0.0
        %5509 = vmatpush1.msra.mxu0 %v5405
        %5510 = vmatprep.subr.mxu0 0.0
        %5511 = vmatpush1.msra.mxu0 %v5404
        %5512 = vmatprep.subr.mxu0 0.0
        %5513 = vmatpush1.msra.mxu0 %v5403
        %5514 = vmatprep.subr.mxu0 0.0
        %5515 = vmatpush1.msra.mxu0 %v5402
        %5516 = vmatprep.subr.mxu0 0.0
        %5517 = vmatpush1.msra.mxu0 %v5401
        %5518 = vmatprep.subr.mxu0 0.0
        %5519 = vmatpush1.msra.mxu0 %v5400
        %5520 = vmatprep.subr.mxu0 0.0
        %5521 = vmatpush1.msra.mxu0 %v5399
        %5522 = vmatprep.subr.mxu0 0.0
        %5523 = vmatpush1.msra.mxu0 %v5398
        %5524 = vmatprep.subr.mxu0 0.0
        %5525 = vmatpush1.msra.mxu0 %v5397
        %5526 = vmatprep.subr.mxu0 0.0
        %5527 = vmatpush1.msra.mxu0 %v5396
        %5528 = vmatprep.subr.mxu0 0.0
        %5529 = vmatpush1.msra.mxu0 %v5395
        %5530 = vmatprep.subr.mxu0 0.0
        %5531 = vmatpush2.msra.mxu0 0.0
        %5532 = vmatprep.subr.mxu0 0.0
        %5533 = vmatpush2.msra.mxu0 0.0
        %5534 = vmatprep.subr.mxu0 0.0
        %5535 = vmatpush2.msra.mxu0 0.0
        %5536 = vmatprep.subr.mxu0 0.0
        %5537 = vmatpush2.msra.mxu0 0.0
        %5538 = vmatprep.subr.mxu0 0.0
        %5539 = vmatpush2.msra.mxu0 0.0
        %5540 = vmatprep.subr.mxu0 0.0
        %5541 = vmatpush2.msra.mxu0 0.0
        %5542 = vmatprep.subr.mxu0 0.0
        %5543 = vmatpush2.msra.mxu0 0.0
        %5544 = vmatprep.subr.mxu0 0.0
        %5545 = vmatpush2.msra.mxu0 0.0
        %5546 = vmatprep.subr.mxu0 0.0
        %5547 = vmatpush2.msra.mxu0 0.0
        %5548 = vmatprep.subr.mxu0 0.0
        %5549 = vmatpush2.msra.mxu0 0.0
        %5550 = vmatprep.subr.mxu0 0.0
        %5551 = vmatpush2.msra.mxu0 0.0
        %5552 = vmatprep.subr.mxu0 0.0
        %5553 = vmatpush2.msra.mxu0 0.0
        %5554 = vmatprep.subr.mxu0 0.0
        %5555 = vmatpush2.msra.mxu0 0.0
        %5556 = vmatprep.subr.mxu0 0.0
        %5557 = vmatpush2.msra.mxu0 0.0
        %5558 = vmatprep.subr.mxu0 0.0
        %5559 = vmatpush2.msra.mxu0 0.0
        %5560 = vmatprep.subr.mxu0 0.0
        %5561 = vmatpush2.msra.mxu0 0.0
        %5562 = vmatprep.mubr.f32.mxu0 0.0
        %5563 = vmatmul.mubr.f32.gmra.mxu0 %v5321
        %v5564 = vpop.f32.mrf.mxu0
        %v5565 = vadd.f32 %v5495, %v5564
        %v5566 = vpop.f32.mrf.mxu0
        %5567 = vdwg.mxu0
        %s5568 = scalar_lea.vmem [#allocation21], 640
        %v5569 = vld [vmem:[%s5568] sm:$0xff]
        %v5570 = vld [vmem:[%s5568 + $0x8] sm:$0xff]
        %v5571 = vld [vmem:[%s5568 + $0x10] sm:$0xff]
        %v5572 = vld [vmem:[%s5568 + $0x18] sm:$0xff]
        %v5573 = vld [vmem:[%s5568 + $0x20] sm:$0xff]
        %v5574 = vld [vmem:[%s5568 + $0x28] sm:$0xff]
        %v5575 = vld [vmem:[%s5568 + $0x30] sm:$0xff]
        %v5576 = vld [vmem:[%s5568 + $0x38] sm:$0xff]
        %v5577 = vld [vmem:[%s5568 + $0x40] sm:$0xff]
        %v5578 = vld [vmem:[%s5568 + $0x48] sm:$0xff]
        %v5579 = vld [vmem:[%s5568 + $0x50] sm:$0xff]
        %v5580 = vld [vmem:[%s5568 + $0x58] sm:$0xff]
        %v5581 = vld [vmem:[%s5568 + $0x60] sm:$0xff]
        %v5582 = vld [vmem:[%s5568 + $0x68] sm:$0xff]
        %v5583 = vld [vmem:[%s5568 + $0x70] sm:$0xff]
        %v5584 = vld [vmem:[%s5568 + $0x78] sm:$0xff]
        %5585 = vmatprep.subr.mxu0 0.0
        %5586 = vmatpush1.msra.mxu0 %v5584
        %5587 = vmatprep.subr.mxu0 0.0
        %5588 = vmatpush1.msra.mxu0 %v5583
        %5589 = vmatprep.subr.mxu0 0.0
        %5590 = vmatpush1.msra.mxu0 %v5582
        %5591 = vmatprep.subr.mxu0 0.0
        %5592 = vmatpush1.msra.mxu0 %v5581
        %5593 = vmatprep.subr.mxu0 0.0
        %5594 = vmatpush1.msra.mxu0 %v5580
        %5595 = vmatprep.subr.mxu0 0.0
        %5596 = vmatpush1.msra.mxu0 %v5579
        %5597 = vmatprep.subr.mxu0 0.0
        %5598 = vmatpush1.msra.mxu0 %v5578
        %5599 = vmatprep.subr.mxu0 0.0
        %5600 = vmatpush1.msra.mxu0 %v5577
        %5601 = vmatprep.subr.mxu0 0.0
        %5602 = vmatpush1.msra.mxu0 %v5576
        %5603 = vmatprep.subr.mxu0 0.0
        %5604 = vmatpush1.msra.mxu0 %v5575
        %5605 = vmatprep.subr.mxu0 0.0
        %5606 = vmatpush1.msra.mxu0 %v5574
        %5607 = vmatprep.subr.mxu0 0.0
        %5608 = vmatpush1.msra.mxu0 %v5573
        %5609 = vmatprep.subr.mxu0 0.0
        %5610 = vmatpush1.msra.mxu0 %v5572
        %5611 = vmatprep.subr.mxu0 0.0
        %5612 = vmatpush1.msra.mxu0 %v5571
        %5613 = vmatprep.subr.mxu0 0.0
        %5614 = vmatpush1.msra.mxu0 %v5570
        %5615 = vmatprep.subr.mxu0 0.0
        %5616 = vmatpush1.msra.mxu0 %v5569
        %5617 = vmatprep.subr.mxu0 0.0
        %5618 = vmatpush2.msra.mxu0 0.0
        %5619 = vmatprep.subr.mxu0 0.0
        %5620 = vmatpush2.msra.mxu0 0.0
        %5621 = vmatprep.subr.mxu0 0.0
        %5622 = vmatpush2.msra.mxu0 0.0
        %5623 = vmatprep.subr.mxu0 0.0
        %5624 = vmatpush2.msra.mxu0 0.0
        %5625 = vmatprep.subr.mxu0 0.0
        %5626 = vmatpush2.msra.mxu0 0.0
        %5627 = vmatprep.subr.mxu0 0.0
        %5628 = vmatpush2.msra.mxu0 0.0
        %5629 = vmatprep.subr.mxu0 0.0
        %5630 = vmatpush2.msra.mxu0 0.0
        %5631 = vmatprep.subr.mxu0 0.0
        %5632 = vmatpush2.msra.mxu0 0.0
        %5633 = vmatprep.subr.mxu0 0.0
        %5634 = vmatpush2.msra.mxu0 0.0
        %5635 = vmatprep.subr.mxu0 0.0
        %5636 = vmatpush2.msra.mxu0 0.0
        %5637 = vmatprep.subr.mxu0 0.0
        %5638 = vmatpush2.msra.mxu0 0.0
        %5639 = vmatprep.subr.mxu0 0.0
        %5640 = vmatpush2.msra.mxu0 0.0
        %5641 = vmatprep.subr.mxu0 0.0
        %5642 = vmatpush2.msra.mxu0 0.0
        %5643 = vmatprep.subr.mxu0 0.0
        %5644 = vmatpush2.msra.mxu0 0.0
        %5645 = vmatprep.subr.mxu0 0.0
        %5646 = vmatpush2.msra.mxu0 0.0
        %5647 = vmatprep.subr.mxu0 0.0
        %5648 = vmatpush2.msra.mxu0 0.0
        %5649 = vmatprep.mubr.f32.mxu0 0.0
        %5650 = vmatmul.mubr.f32.gmra.mxu0 %v5391
        %v5651 = vpop.f32.mrf.mxu0
        %v5652 = vadd.f32 0.0, %v5651
        %v5653 = vpop.f32.mrf.mxu0
        %5654 = vdwg.mxu0
        %v5655 = vadd.f32 %v5565, %v5652
        %v5657 = vlaneseq
        %v5658 = vshrl.u32 %v5657, 7
        %v5659 = vsub.s32 0, %v5658
        %v5660 = vrot.slane %v5250, %v5659
        %v5662 = vadd.f32 %v5655, %v5660
        %v5663 = vadd.f32 %v5662, %v4823
        %v5664 = vmax.f32 %v5663, 0.0
        %s5665 = scalar_lea.vmem [#allocation22], 2
        %v5666 = vld [vmem:[%s5665] sm:$0x1]
        %v5668 = vsel %vm4833, %v5664, 0
        %5670 = vmatprep.subr.mxu0 0.0
        %5671 = vmatpush1.msra.mxu0 0.0
        %5672 = vmatprep.subr.mxu0 0.0
        %5673 = vmatpush1.msra.mxu0 0.0
        %5674 = vmatprep.subr.mxu0 0.0
        %5675 = vmatpush1.msra.mxu0 0.0
        %5676 = vmatprep.subr.mxu0 0.0
        %5677 = vmatpush1.msra.mxu0 0.0
        %5678 = vmatprep.subr.mxu0 0.0
        %5679 = vmatpush1.msra.mxu0 0.0
        %5680 = vmatprep.subr.mxu0 0.0
        %5681 = vmatpush1.msra.mxu0 0.0
        %5682 = vmatprep.subr.mxu0 0.0
        %5683 = vmatpush1.msra.mxu0 0.0
        %5684 = vmatprep.subr.mxu0 0.0
        %5685 = vmatpush1.msra.mxu0 0.0
        %5686 = vmatprep.subr.mxu0 0.0
        %5687 = vmatpush1.msra.mxu0 0.0
        %5688 = vmatprep.subr.mxu0 0.0
        %5689 = vmatpush1.msra.mxu0 0.0
        %5690 = vmatprep.subr.mxu0 0.0
        %5691 = vmatpush1.msra.mxu0 0.0
        %5692 = vmatprep.subr.mxu0 0.0
        %5693 = vmatpush1.msra.mxu0 0.0
        %5694 = vmatprep.subr.mxu0 0.0
        %5695 = vmatpush1.msra.mxu0 0.0
        %5696 = vmatprep.subr.mxu0 0.0
        %5697 = vmatpush1.msra.mxu0 0.0
        %5698 = vmatprep.subr.mxu0 0.0
        %5699 = vmatpush1.msra.mxu0 0.0
        %5700 = vmatprep.subr.mxu0 0.0
        %5701 = vmatpush1.msra.mxu0 %v5668
        %5702 = vmatprep.subr.mxu0 0.0
        %5703 = vmatpush2.msra.mxu0 0.0
        %5704 = vmatprep.subr.mxu0 0.0
        %5705 = vmatpush2.msra.mxu0 0.0
        %5706 = vmatprep.subr.mxu0 0.0
        %5707 = vmatpush2.msra.mxu0 0.0
        %5708 = vmatprep.subr.mxu0 0.0
        %5709 = vmatpush2.msra.mxu0 0.0
        %5710 = vmatprep.subr.mxu0 0.0
        %5711 = vmatpush2.msra.mxu0 0.0
        %5712 = vmatprep.subr.mxu0 0.0
        %5713 = vmatpush2.msra.mxu0 0.0
        %5714 = vmatprep.subr.mxu0 0.0
        %5715 = vmatpush2.msra.mxu0 0.0
        %5716 = vmatprep.subr.mxu0 0.0
        %5717 = vmatpush2.msra.mxu0 0.0
        %5718 = vmatprep.subr.mxu0 0.0
        %5719 = vmatpush2.msra.mxu0 0.0
        %5720 = vmatprep.subr.mxu0 0.0
        %5721 = vmatpush2.msra.mxu0 0.0
        %5722 = vmatprep.subr.mxu0 0.0
        %5723 = vmatpush2.msra.mxu0 0.0
        %5724 = vmatprep.subr.mxu0 0.0
        %5725 = vmatpush2.msra.mxu0 0.0
        %5726 = vmatprep.subr.mxu0 0.0
        %5727 = vmatpush2.msra.mxu0 0.0
        %5728 = vmatprep.subr.mxu0 0.0
        %5729 = vmatpush2.msra.mxu0 0.0
        %5730 = vmatprep.subr.mxu0 0.0
        %5731 = vmatpush2.msra.mxu0 0.0
        %5732 = vmatprep.subr.mxu0 0.0
        %5733 = vmatpush2.msra.mxu0 0.0
        %5734 = vmatprep.mubr.f32.mxu0 0.0
        %5735 = vmatmul.mubr.f32.gmra.mxu0 %v4831
        %v5736 = vpop.f32.mrf.mxu0
        %v5737 = vadd.f32 0.0, %v5736
        %v5738 = vpop.f32.mrf.mxu0
        %5739 = vdwg.mxu0
        %5740 = vmatprep.subr.mxu0 0.0
        %5741 = vmatpush1.msra.mxu0 0.0
        %5742 = vmatprep.subr.mxu0 0.0
        %5743 = vmatpush1.msra.mxu0 0.0
        %5744 = vmatprep.subr.mxu0 0.0
        %5745 = vmatpush1.msra.mxu0 0.0
        %5746 = vmatprep.subr.mxu0 0.0
        %5747 = vmatpush1.msra.mxu0 0.0
        %5748 = vmatprep.subr.mxu0 0.0
        %5749 = vmatpush1.msra.mxu0 0.0
        %5750 = vmatprep.subr.mxu0 0.0
        %5751 = vmatpush1.msra.mxu0 0.0
        %5752 = vmatprep.subr.mxu0 0.0
        %5753 = vmatpush1.msra.mxu0 0.0
        %5754 = vmatprep.subr.mxu0 0.0
        %5755 = vmatpush1.msra.mxu0 0.0
        %5756 = vmatprep.subr.mxu0 0.0
        %5757 = vmatpush1.msra.mxu0 0.0
        %5758 = vmatprep.subr.mxu0 0.0
        %5759 = vmatpush1.msra.mxu0 0.0
        %5760 = vmatprep.subr.mxu0 0.0
        %5761 = vmatpush1.msra.mxu0 0.0
        %5762 = vmatprep.subr.mxu0 0.0
        %5763 = vmatpush1.msra.mxu0 0.0
        %5764 = vmatprep.subr.mxu0 0.0
        %5765 = vmatpush1.msra.mxu0 0.0
        %5766 = vmatprep.subr.mxu0 0.0
        %5767 = vmatpush1.msra.mxu0 0.0
        %5768 = vmatprep.subr.mxu0 0.0
        %5769 = vmatpush1.msra.mxu0 0.0
        %5770 = vmatprep.subr.mxu0 0.0
        %5771 = vmatpush1.msra.mxu0 %v5668
        %5772 = vmatprep.subr.mxu0 0.0
        %5773 = vmatpush2.msra.mxu0 0.0
        %5774 = vmatprep.subr.mxu0 0.0
        %5775 = vmatpush2.msra.mxu0 0.0
        %5776 = vmatprep.subr.mxu0 0.0
        %5777 = vmatpush2.msra.mxu0 0.0
        %5778 = vmatprep.subr.mxu0 0.0
        %5779 = vmatpush2.msra.mxu0 0.0
        %5780 = vmatprep.subr.mxu0 0.0
        %5781 = vmatpush2.msra.mxu0 0.0
        %5782 = vmatprep.subr.mxu0 0.0
        %5783 = vmatpush2.msra.mxu0 0.0
        %5784 = vmatprep.subr.mxu0 0.0
        %5785 = vmatpush2.msra.mxu0 0.0
        %5786 = vmatprep.subr.mxu0 0.0
        %5787 = vmatpush2.msra.mxu0 0.0
        %5788 = vmatprep.subr.mxu0 0.0
        %5789 = vmatpush2.msra.mxu0 0.0
        %5790 = vmatprep.subr.mxu0 0.0
        %5791 = vmatpush2.msra.mxu0 0.0
        %5792 = vmatprep.subr.mxu0 0.0
        %5793 = vmatpush2.msra.mxu0 0.0
        %5794 = vmatprep.subr.mxu0 0.0
        %5795 = vmatpush2.msra.mxu0 0.0
        %5796 = vmatprep.subr.mxu0 0.0
        %5797 = vmatpush2.msra.mxu0 0.0
        %5798 = vmatprep.subr.mxu0 0.0
        %5799 = vmatpush2.msra.mxu0 0.0
        %5800 = vmatprep.subr.mxu0 0.0
        %5801 = vmatpush2.msra.mxu0 0.0
        %5802 = vmatprep.subr.mxu0 0.0
        %5803 = vmatpush2.msra.mxu0 0.0
        %5804 = vmatprep.mubr.f32.mxu0 0.0
        %5805 = vmatmul.mubr.f32.gmra.mxu0 %v4908
        %v5806 = vpop.f32.mrf.mxu0
        %v5807 = vadd.f32 0.0, %v5806
        %v5808 = vpop.f32.mrf.mxu0
        %5809 = vdwg.mxu0
        %s5810 = scalar_lea.vmem [#allocation21], 768
        %v5811 = vld [vmem:[%s5810] sm:$0xff]
        %v5812 = vld [vmem:[%s5810 + $0x8] sm:$0xff]
        %v5813 = vld [vmem:[%s5810 + $0x10] sm:$0xff]
        %v5814 = vld [vmem:[%s5810 + $0x18] sm:$0xff]
        %v5815 = vld [vmem:[%s5810 + $0x20] sm:$0xff]
        %v5816 = vld [vmem:[%s5810 + $0x28] sm:$0xff]
        %v5817 = vld [vmem:[%s5810 + $0x30] sm:$0xff]
        %v5818 = vld [vmem:[%s5810 + $0x38] sm:$0xff]
        %v5819 = vld [vmem:[%s5810 + $0x40] sm:$0xff]
        %v5820 = vld [vmem:[%s5810 + $0x48] sm:$0xff]
        %v5821 = vld [vmem:[%s5810 + $0x50] sm:$0xff]
        %v5822 = vld [vmem:[%s5810 + $0x58] sm:$0xff]
        %v5823 = vld [vmem:[%s5810 + $0x60] sm:$0xff]
        %v5824 = vld [vmem:[%s5810 + $0x68] sm:$0xff]
        %v5825 = vld [vmem:[%s5810 + $0x70] sm:$0xff]
        %v5826 = vld [vmem:[%s5810 + $0x78] sm:$0xff]
        %s5827 = scalar_lea.vmem [#allocation21], 896
        %v5828 = vld [vmem:[%s5827] sm:$0xff]
        %v5829 = vld [vmem:[%s5827 + $0x8] sm:$0xff]
        %v5830 = vld [vmem:[%s5827 + $0x10] sm:$0xff]
        %v5831 = vld [vmem:[%s5827 + $0x18] sm:$0xff]
        %v5832 = vld [vmem:[%s5827 + $0x20] sm:$0xff]
        %v5833 = vld [vmem:[%s5827 + $0x28] sm:$0xff]
        %v5834 = vld [vmem:[%s5827 + $0x30] sm:$0xff]
        %v5835 = vld [vmem:[%s5827 + $0x38] sm:$0xff]
        %v5836 = vld [vmem:[%s5827 + $0x40] sm:$0xff]
        %v5837 = vld [vmem:[%s5827 + $0x48] sm:$0xff]
        %v5838 = vld [vmem:[%s5827 + $0x50] sm:$0xff]
        %v5839 = vld [vmem:[%s5827 + $0x58] sm:$0xff]
        %v5840 = vld [vmem:[%s5827 + $0x60] sm:$0xff]
        %v5841 = vld [vmem:[%s5827 + $0x68] sm:$0xff]
        %v5842 = vld [vmem:[%s5827 + $0x70] sm:$0xff]
        %v5843 = vld [vmem:[%s5827 + $0x78] sm:$0xff]
        %5844 = vmatprep.subr.mxu0 0.0
        %5845 = vmatpush1.msra.mxu0 %v5843
        %5846 = vmatprep.subr.mxu0 0.0
        %5847 = vmatpush1.msra.mxu0 %v5842
        %5848 = vmatprep.subr.mxu0 0.0
        %5849 = vmatpush1.msra.mxu0 %v5841
        %5850 = vmatprep.subr.mxu0 0.0
        %5851 = vmatpush1.msra.mxu0 %v5840
        %5852 = vmatprep.subr.mxu0 0.0
        %5853 = vmatpush1.msra.mxu0 %v5839
        %5854 = vmatprep.subr.mxu0 0.0
        %5855 = vmatpush1.msra.mxu0 %v5838
        %5856 = vmatprep.subr.mxu0 0.0
        %5857 = vmatpush1.msra.mxu0 %v5837
        %5858 = vmatprep.subr.mxu0 0.0
        %5859 = vmatpush1.msra.mxu0 %v5836
        %5860 = vmatprep.subr.mxu0 0.0
        %5861 = vmatpush1.msra.mxu0 %v5835
        %5862 = vmatprep.subr.mxu0 0.0
        %5863 = vmatpush1.msra.mxu0 %v5834
        %5864 = vmatprep.subr.mxu0 0.0
        %5865 = vmatpush1.msra.mxu0 %v5833
        %5866 = vmatprep.subr.mxu0 0.0
        %5867 = vmatpush1.msra.mxu0 %v5832
        %5868 = vmatprep.subr.mxu0 0.0
        %5869 = vmatpush1.msra.mxu0 %v5831
        %5870 = vmatprep.subr.mxu0 0.0
        %5871 = vmatpush1.msra.mxu0 %v5830
        %5872 = vmatprep.subr.mxu0 0.0
        %5873 = vmatpush1.msra.mxu0 %v5829
        %5874 = vmatprep.subr.mxu0 0.0
        %5875 = vmatpush1.msra.mxu0 %v5828
        %5876 = vmatprep.subr.mxu0 0.0
        %5877 = vmatpush2.msra.mxu0 0.0
        %5878 = vmatprep.subr.mxu0 0.0
        %5879 = vmatpush2.msra.mxu0 0.0
        %5880 = vmatprep.subr.mxu0 0.0
        %5881 = vmatpush2.msra.mxu0 0.0
        %5882 = vmatprep.subr.mxu0 0.0
        %5883 = vmatpush2.msra.mxu0 0.0
        %5884 = vmatprep.subr.mxu0 0.0
        %5885 = vmatpush2.msra.mxu0 0.0
        %5886 = vmatprep.subr.mxu0 0.0
        %5887 = vmatpush2.msra.mxu0 0.0
        %5888 = vmatprep.subr.mxu0 0.0
        %5889 = vmatpush2.msra.mxu0 0.0
        %5890 = vmatprep.subr.mxu0 0.0
        %5891 = vmatpush2.msra.mxu0 0.0
        %5892 = vmatprep.subr.mxu0 0.0
        %5893 = vmatpush2.msra.mxu0 0.0
        %5894 = vmatprep.subr.mxu0 0.0
        %5895 = vmatpush2.msra.mxu0 0.0
        %5896 = vmatprep.subr.mxu0 0.0
        %5897 = vmatpush2.msra.mxu0 0.0
        %5898 = vmatprep.subr.mxu0 0.0
        %5899 = vmatpush2.msra.mxu0 0.0
        %5900 = vmatprep.subr.mxu0 0.0
        %5901 = vmatpush2.msra.mxu0 0.0
        %5902 = vmatprep.subr.mxu0 0.0
        %5903 = vmatpush2.msra.mxu0 0.0
        %5904 = vmatprep.subr.mxu0 0.0
        %5905 = vmatpush2.msra.mxu0 0.0
        %5906 = vmatprep.subr.mxu0 0.0
        %5907 = vmatpush2.msra.mxu0 0.0
        %5908 = vmatprep.mubr.f32.mxu0 0.0
        %5909 = vmatmul.mubr.f32.gmra.mxu0 %v5664
        %v5910 = vpop.f32.mrf.mxu0
        %v5911 = vadd.f32 0.0, %v5910
        %v5912 = vpop.f32.mrf.mxu0
        %5913 = vdwg.mxu0
        %5914 = vmatprep.subr.mxu0 0.0
        %5915 = vmatpush1.msra.mxu0 %v5826
        %5916 = vmatprep.subr.mxu0 0.0
        %5917 = vmatpush1.msra.mxu0 %v5825
        %5918 = vmatprep.subr.mxu0 0.0
        %5919 = vmatpush1.msra.mxu0 %v5824
        %5920 = vmatprep.subr.mxu0 0.0
        %5921 = vmatpush1.msra.mxu0 %v5823
        %5922 = vmatprep.subr.mxu0 0.0
        %5923 = vmatpush1.msra.mxu0 %v5822
        %5924 = vmatprep.subr.mxu0 0.0
        %5925 = vmatpush1.msra.mxu0 %v5821
        %5926 = vmatprep.subr.mxu0 0.0
        %5927 = vmatpush1.msra.mxu0 %v5820
        %5928 = vmatprep.subr.mxu0 0.0
        %5929 = vmatpush1.msra.mxu0 %v5819
        %5930 = vmatprep.subr.mxu0 0.0
        %5931 = vmatpush1.msra.mxu0 %v5818
        %5932 = vmatprep.subr.mxu0 0.0
        %5933 = vmatpush1.msra.mxu0 %v5817
        %5934 = vmatprep.subr.mxu0 0.0
        %5935 = vmatpush1.msra.mxu0 %v5816
        %5936 = vmatprep.subr.mxu0 0.0
        %5937 = vmatpush1.msra.mxu0 %v5815
        %5938 = vmatprep.subr.mxu0 0.0
        %5939 = vmatpush1.msra.mxu0 %v5814
        %5940 = vmatprep.subr.mxu0 0.0
        %5941 = vmatpush1.msra.mxu0 %v5813
        %5942 = vmatprep.subr.mxu0 0.0
        %5943 = vmatpush1.msra.mxu0 %v5812
        %5944 = vmatprep.subr.mxu0 0.0
        %5945 = vmatpush1.msra.mxu0 %v5811
        %5946 = vmatprep.subr.mxu0 0.0
        %5947 = vmatpush2.msra.mxu0 0.0
        %5948 = vmatprep.subr.mxu0 0.0
        %5949 = vmatpush2.msra.mxu0 0.0
        %5950 = vmatprep.subr.mxu0 0.0
        %5951 = vmatpush2.msra.mxu0 0.0
        %5952 = vmatprep.subr.mxu0 0.0
        %5953 = vmatpush2.msra.mxu0 0.0
        %5954 = vmatprep.subr.mxu0 0.0
        %5955 = vmatpush2.msra.mxu0 0.0
        %5956 = vmatprep.subr.mxu0 0.0
        %5957 = vmatpush2.msra.mxu0 0.0
        %5958 = vmatprep.subr.mxu0 0.0
        %5959 = vmatpush2.msra.mxu0 0.0
        %5960 = vmatprep.subr.mxu0 0.0
        %5961 = vmatpush2.msra.mxu0 0.0
        %5962 = vmatprep.subr.mxu0 0.0
        %5963 = vmatpush2.msra.mxu0 0.0
        %5964 = vmatprep.subr.mxu0 0.0
        %5965 = vmatpush2.msra.mxu0 0.0
        %5966 = vmatprep.subr.mxu0 0.0
        %5967 = vmatpush2.msra.mxu0 0.0
        %5968 = vmatprep.subr.mxu0 0.0
        %5969 = vmatpush2.msra.mxu0 0.0
        %5970 = vmatprep.subr.mxu0 0.0
        %5971 = vmatpush2.msra.mxu0 0.0
        %5972 = vmatprep.subr.mxu0 0.0
        %5973 = vmatpush2.msra.mxu0 0.0
        %5974 = vmatprep.subr.mxu0 0.0
        %5975 = vmatpush2.msra.mxu0 0.0
        %5976 = vmatprep.subr.mxu0 0.0
        %5977 = vmatpush2.msra.mxu0 0.0
        %5978 = vmatprep.mubr.f32.mxu0 0.0
        %5979 = vmatmul.mubr.f32.gmra.mxu0 %v5737
        %v5980 = vpop.f32.mrf.mxu0
        %v5981 = vadd.f32 %v5911, %v5980
        %v5982 = vpop.f32.mrf.mxu0
        %5983 = vdwg.mxu0
        %s5984 = scalar_lea.vmem [#allocation21], 1024
        %v5985 = vld [vmem:[%s5984] sm:$0xff]
        %v5986 = vld [vmem:[%s5984 + $0x8] sm:$0xff]
        %v5987 = vld [vmem:[%s5984 + $0x10] sm:$0xff]
        %v5988 = vld [vmem:[%s5984 + $0x18] sm:$0xff]
        %v5989 = vld [vmem:[%s5984 + $0x20] sm:$0xff]
        %v5990 = vld [vmem:[%s5984 + $0x28] sm:$0xff]
        %v5991 = vld [vmem:[%s5984 + $0x30] sm:$0xff]
        %v5992 = vld [vmem:[%s5984 + $0x38] sm:$0xff]
        %v5993 = vld [vmem:[%s5984 + $0x40] sm:$0xff]
        %v5994 = vld [vmem:[%s5984 + $0x48] sm:$0xff]
        %v5995 = vld [vmem:[%s5984 + $0x50] sm:$0xff]
        %v5996 = vld [vmem:[%s5984 + $0x58] sm:$0xff]
        %v5997 = vld [vmem:[%s5984 + $0x60] sm:$0xff]
        %v5998 = vld [vmem:[%s5984 + $0x68] sm:$0xff]
        %v5999 = vld [vmem:[%s5984 + $0x70] sm:$0xff]
        %v6000 = vld [vmem:[%s5984 + $0x78] sm:$0xff]
        %6001 = vmatprep.subr.mxu0 0.0
        %6002 = vmatpush1.msra.mxu0 %v6000
        %6003 = vmatprep.subr.mxu0 0.0
        %6004 = vmatpush1.msra.mxu0 %v5999
        %6005 = vmatprep.subr.mxu0 0.0
        %6006 = vmatpush1.msra.mxu0 %v5998
        %6007 = vmatprep.subr.mxu0 0.0
        %6008 = vmatpush1.msra.mxu0 %v5997
        %6009 = vmatprep.subr.mxu0 0.0
        %6010 = vmatpush1.msra.mxu0 %v5996
        %6011 = vmatprep.subr.mxu0 0.0
        %6012 = vmatpush1.msra.mxu0 %v5995
        %6013 = vmatprep.subr.mxu0 0.0
        %6014 = vmatpush1.msra.mxu0 %v5994
        %6015 = vmatprep.subr.mxu0 0.0
        %6016 = vmatpush1.msra.mxu0 %v5993
        %6017 = vmatprep.subr.mxu0 0.0
        %6018 = vmatpush1.msra.mxu0 %v5992
        %6019 = vmatprep.subr.mxu0 0.0
        %6020 = vmatpush1.msra.mxu0 %v5991
        %6021 = vmatprep.subr.mxu0 0.0
        %6022 = vmatpush1.msra.mxu0 %v5990
        %6023 = vmatprep.subr.mxu0 0.0
        %6024 = vmatpush1.msra.mxu0 %v5989
        %6025 = vmatprep.subr.mxu0 0.0
        %6026 = vmatpush1.msra.mxu0 %v5988
        %6027 = vmatprep.subr.mxu0 0.0
        %6028 = vmatpush1.msra.mxu0 %v5987
        %6029 = vmatprep.subr.mxu0 0.0
        %6030 = vmatpush1.msra.mxu0 %v5986
        %6031 = vmatprep.subr.mxu0 0.0
        %6032 = vmatpush1.msra.mxu0 %v5985
        %6033 = vmatprep.subr.mxu0 0.0
        %6034 = vmatpush2.msra.mxu0 0.0
        %6035 = vmatprep.subr.mxu0 0.0
        %6036 = vmatpush2.msra.mxu0 0.0
        %6037 = vmatprep.subr.mxu0 0.0
        %6038 = vmatpush2.msra.mxu0 0.0
        %6039 = vmatprep.subr.mxu0 0.0
        %6040 = vmatpush2.msra.mxu0 0.0
        %6041 = vmatprep.subr.mxu0 0.0
        %6042 = vmatpush2.msra.mxu0 0.0
        %6043 = vmatprep.subr.mxu0 0.0
        %6044 = vmatpush2.msra.mxu0 0.0
        %6045 = vmatprep.subr.mxu0 0.0
        %6046 = vmatpush2.msra.mxu0 0.0
        %6047 = vmatprep.subr.mxu0 0.0
        %6048 = vmatpush2.msra.mxu0 0.0
        %6049 = vmatprep.subr.mxu0 0.0
        %6050 = vmatpush2.msra.mxu0 0.0
        %6051 = vmatprep.subr.mxu0 0.0
        %6052 = vmatpush2.msra.mxu0 0.0
        %6053 = vmatprep.subr.mxu0 0.0
        %6054 = vmatpush2.msra.mxu0 0.0
        %6055 = vmatprep.subr.mxu0 0.0
        %6056 = vmatpush2.msra.mxu0 0.0
        %6057 = vmatprep.subr.mxu0 0.0
        %6058 = vmatpush2.msra.mxu0 0.0
        %6059 = vmatprep.subr.mxu0 0.0
        %6060 = vmatpush2.msra.mxu0 0.0
        %6061 = vmatprep.subr.mxu0 0.0
        %6062 = vmatpush2.msra.mxu0 0.0
        %6063 = vmatprep.subr.mxu0 0.0
        %6064 = vmatpush2.msra.mxu0 0.0
        %6065 = vmatprep.mubr.f32.mxu0 0.0
        %6066 = vmatmul.mubr.f32.gmra.mxu0 %v5807
        %v6067 = vpop.f32.mrf.mxu0
        %v6068 = vadd.f32 0.0, %v6067
        %v6069 = vpop.f32.mrf.mxu0
        %6070 = vdwg.mxu0
        %v6071 = vadd.f32 %v5981, %v6068
        %v6073 = vlaneseq
        %v6074 = vshrl.u32 %v6073, 7
        %v6075 = vsub.s32 0, %v6074
        %v6076 = vrot.slane %v5666, %v6075
        %v6078 = vadd.f32 %v6071, %v6076
        %v6079 = vmax.f32 %v6078, 0.0
        %s6080 = scalar_lea.vmem [#allocation22], 3
        %v6081 = vld [vmem:[%s6080] sm:$0x1]
        %v6083 = vsel %vm4833, %v6079, 0
        %6085 = vmatprep.subr.mxu0 0.0
        %6086 = vmatpush1.msra.mxu0 0.0
        %6087 = vmatprep.subr.mxu0 0.0
        %6088 = vmatpush1.msra.mxu0 0.0
        %6089 = vmatprep.subr.mxu0 0.0
        %6090 = vmatpush1.msra.mxu0 0.0
        %6091 = vmatprep.subr.mxu0 0.0
        %6092 = vmatpush1.msra.mxu0 0.0
        %6093 = vmatprep.subr.mxu0 0.0
        %6094 = vmatpush1.msra.mxu0 0.0
        %6095 = vmatprep.subr.mxu0 0.0
        %6096 = vmatpush1.msra.mxu0 0.0
        %6097 = vmatprep.subr.mxu0 0.0
        %6098 = vmatpush1.msra.mxu0 0.0
        %6099 = vmatprep.subr.mxu0 0.0
        %6100 = vmatpush1.msra.mxu0 0.0
        %6101 = vmatprep.subr.mxu0 0.0
        %6102 = vmatpush1.msra.mxu0 0.0
        %6103 = vmatprep.subr.mxu0 0.0
        %6104 = vmatpush1.msra.mxu0 0.0
        %6105 = vmatprep.subr.mxu0 0.0
        %6106 = vmatpush1.msra.mxu0 0.0
        %6107 = vmatprep.subr.mxu0 0.0
        %6108 = vmatpush1.msra.mxu0 0.0
        %6109 = vmatprep.subr.mxu0 0.0
        %6110 = vmatpush1.msra.mxu0 0.0
        %6111 = vmatprep.subr.mxu0 0.0
        %6112 = vmatpush1.msra.mxu0 0.0
        %6113 = vmatprep.subr.mxu0 0.0
        %6114 = vmatpush1.msra.mxu0 0.0
        %6115 = vmatprep.subr.mxu0 0.0
        %6116 = vmatpush1.msra.mxu0 %v6083
        %6117 = vmatprep.subr.mxu0 0.0
        %6118 = vmatpush2.msra.mxu0 0.0
        %6119 = vmatprep.subr.mxu0 0.0
        %6120 = vmatpush2.msra.mxu0 0.0
        %6121 = vmatprep.subr.mxu0 0.0
        %6122 = vmatpush2.msra.mxu0 0.0
        %6123 = vmatprep.subr.mxu0 0.0
        %6124 = vmatpush2.msra.mxu0 0.0
        %6125 = vmatprep.subr.mxu0 0.0
        %6126 = vmatpush2.msra.mxu0 0.0
        %6127 = vmatprep.subr.mxu0 0.0
        %6128 = vmatpush2.msra.mxu0 0.0
        %6129 = vmatprep.subr.mxu0 0.0
        %6130 = vmatpush2.msra.mxu0 0.0
        %6131 = vmatprep.subr.mxu0 0.0
        %6132 = vmatpush2.msra.mxu0 0.0
        %6133 = vmatprep.subr.mxu0 0.0
        %6134 = vmatpush2.msra.mxu0 0.0
        %6135 = vmatprep.subr.mxu0 0.0
        %6136 = vmatpush2.msra.mxu0 0.0
        %6137 = vmatprep.subr.mxu0 0.0
        %6138 = vmatpush2.msra.mxu0 0.0
        %6139 = vmatprep.subr.mxu0 0.0
        %6140 = vmatpush2.msra.mxu0 0.0
        %6141 = vmatprep.subr.mxu0 0.0
        %6142 = vmatpush2.msra.mxu0 0.0
        %6143 = vmatprep.subr.mxu0 0.0
        %6144 = vmatpush2.msra.mxu0 0.0
        %6145 = vmatprep.subr.mxu0 0.0
        %6146 = vmatpush2.msra.mxu0 0.0
        %6147 = vmatprep.subr.mxu0 0.0
        %6148 = vmatpush2.msra.mxu0 0.0
        %6149 = vmatprep.mubr.f32.mxu0 0.0
        %6150 = vmatmul.mubr.f32.gmra.mxu0 %v4831
        %v6151 = vpop.f32.mrf.mxu0
        %v6152 = vadd.f32 0.0, %v6151
        %v6153 = vpop.f32.mrf.mxu0
        %6154 = vdwg.mxu0
        %6155 = vmatprep.subr.mxu0 0.0
        %6156 = vmatpush1.msra.mxu0 0.0
        %6157 = vmatprep.subr.mxu0 0.0
        %6158 = vmatpush1.msra.mxu0 0.0
        %6159 = vmatprep.subr.mxu0 0.0
        %6160 = vmatpush1.msra.mxu0 0.0
        %6161 = vmatprep.subr.mxu0 0.0
        %6162 = vmatpush1.msra.mxu0 0.0
        %6163 = vmatprep.subr.mxu0 0.0
        %6164 = vmatpush1.msra.mxu0 0.0
        %6165 = vmatprep.subr.mxu0 0.0
        %6166 = vmatpush1.msra.mxu0 0.0
        %6167 = vmatprep.subr.mxu0 0.0
        %6168 = vmatpush1.msra.mxu0 0.0
        %6169 = vmatprep.subr.mxu0 0.0
        %6170 = vmatpush1.msra.mxu0 0.0
        %6171 = vmatprep.subr.mxu0 0.0
        %6172 = vmatpush1.msra.mxu0 0.0
        %6173 = vmatprep.subr.mxu0 0.0
        %6174 = vmatpush1.msra.mxu0 0.0
        %6175 = vmatprep.subr.mxu0 0.0
        %6176 = vmatpush1.msra.mxu0 0.0
        %6177 = vmatprep.subr.mxu0 0.0
        %6178 = vmatpush1.msra.mxu0 0.0
        %6179 = vmatprep.subr.mxu0 0.0
        %6180 = vmatpush1.msra.mxu0 0.0
        %6181 = vmatprep.subr.mxu0 0.0
        %6182 = vmatpush1.msra.mxu0 0.0
        %6183 = vmatprep.subr.mxu0 0.0
        %6184 = vmatpush1.msra.mxu0 0.0
        %6185 = vmatprep.subr.mxu0 0.0
        %6186 = vmatpush1.msra.mxu0 %v6083
        %6187 = vmatprep.subr.mxu0 0.0
        %6188 = vmatpush2.msra.mxu0 0.0
        %6189 = vmatprep.subr.mxu0 0.0
        %6190 = vmatpush2.msra.mxu0 0.0
        %6191 = vmatprep.subr.mxu0 0.0
        %6192 = vmatpush2.msra.mxu0 0.0
        %6193 = vmatprep.subr.mxu0 0.0
        %6194 = vmatpush2.msra.mxu0 0.0
        %6195 = vmatprep.subr.mxu0 0.0
        %6196 = vmatpush2.msra.mxu0 0.0
        %6197 = vmatprep.subr.mxu0 0.0
        %6198 = vmatpush2.msra.mxu0 0.0
        %6199 = vmatprep.subr.mxu0 0.0
        %6200 = vmatpush2.msra.mxu0 0.0
        %6201 = vmatprep.subr.mxu0 0.0
        %6202 = vmatpush2.msra.mxu0 0.0
        %6203 = vmatprep.subr.mxu0 0.0
        %6204 = vmatpush2.msra.mxu0 0.0
        %6205 = vmatprep.subr.mxu0 0.0
        %6206 = vmatpush2.msra.mxu0 0.0
        %6207 = vmatprep.subr.mxu0 0.0
        %6208 = vmatpush2.msra.mxu0 0.0
        %6209 = vmatprep.subr.mxu0 0.0
        %6210 = vmatpush2.msra.mxu0 0.0
        %6211 = vmatprep.subr.mxu0 0.0
        %6212 = vmatpush2.msra.mxu0 0.0
        %6213 = vmatprep.subr.mxu0 0.0
        %6214 = vmatpush2.msra.mxu0 0.0
        %6215 = vmatprep.subr.mxu0 0.0
        %6216 = vmatpush2.msra.mxu0 0.0
        %6217 = vmatprep.subr.mxu0 0.0
        %6218 = vmatpush2.msra.mxu0 0.0
        %6219 = vmatprep.mubr.f32.mxu0 0.0
        %6220 = vmatmul.mubr.f32.gmra.mxu0 %v4908
        %v6221 = vpop.f32.mrf.mxu0
        %v6222 = vadd.f32 0.0, %v6221
        %v6223 = vpop.f32.mrf.mxu0
        %6224 = vdwg.mxu0
        %s6225 = scalar_lea.vmem [#allocation21], 1152
        %v6226 = vld [vmem:[%s6225] sm:$0xff]
        %v6227 = vld [vmem:[%s6225 + $0x8] sm:$0xff]
        %v6228 = vld [vmem:[%s6225 + $0x10] sm:$0xff]
        %v6229 = vld [vmem:[%s6225 + $0x18] sm:$0xff]
        %v6230 = vld [vmem:[%s6225 + $0x20] sm:$0xff]
        %v6231 = vld [vmem:[%s6225 + $0x28] sm:$0xff]
        %v6232 = vld [vmem:[%s6225 + $0x30] sm:$0xff]
        %v6233 = vld [vmem:[%s6225 + $0x38] sm:$0xff]
        %v6234 = vld [vmem:[%s6225 + $0x40] sm:$0xff]
        %v6235 = vld [vmem:[%s6225 + $0x48] sm:$0xff]
        %v6236 = vld [vmem:[%s6225 + $0x50] sm:$0xff]
        %v6237 = vld [vmem:[%s6225 + $0x58] sm:$0xff]
        %v6238 = vld [vmem:[%s6225 + $0x60] sm:$0xff]
        %v6239 = vld [vmem:[%s6225 + $0x68] sm:$0xff]
        %v6240 = vld [vmem:[%s6225 + $0x70] sm:$0xff]
        %v6241 = vld [vmem:[%s6225 + $0x78] sm:$0xff]
        %s6242 = scalar_lea.vmem [#allocation21], 1280
        %v6243 = vld [vmem:[%s6242] sm:$0xff]
        %v6244 = vld [vmem:[%s6242 + $0x8] sm:$0xff]
        %v6245 = vld [vmem:[%s6242 + $0x10] sm:$0xff]
        %v6246 = vld [vmem:[%s6242 + $0x18] sm:$0xff]
        %v6247 = vld [vmem:[%s6242 + $0x20] sm:$0xff]
        %v6248 = vld [vmem:[%s6242 + $0x28] sm:$0xff]
        %v6249 = vld [vmem:[%s6242 + $0x30] sm:$0xff]
        %v6250 = vld [vmem:[%s6242 + $0x38] sm:$0xff]
        %v6251 = vld [vmem:[%s6242 + $0x40] sm:$0xff]
        %v6252 = vld [vmem:[%s6242 + $0x48] sm:$0xff]
        %v6253 = vld [vmem:[%s6242 + $0x50] sm:$0xff]
        %v6254 = vld [vmem:[%s6242 + $0x58] sm:$0xff]
        %v6255 = vld [vmem:[%s6242 + $0x60] sm:$0xff]
        %v6256 = vld [vmem:[%s6242 + $0x68] sm:$0xff]
        %v6257 = vld [vmem:[%s6242 + $0x70] sm:$0xff]
        %v6258 = vld [vmem:[%s6242 + $0x78] sm:$0xff]
        %6259 = vmatprep.subr.mxu0 0.0
        %6260 = vmatpush1.msra.mxu0 %v6258
        %6261 = vmatprep.subr.mxu0 0.0
        %6262 = vmatpush1.msra.mxu0 %v6257
        %6263 = vmatprep.subr.mxu0 0.0
        %6264 = vmatpush1.msra.mxu0 %v6256
        %6265 = vmatprep.subr.mxu0 0.0
        %6266 = vmatpush1.msra.mxu0 %v6255
        %6267 = vmatprep.subr.mxu0 0.0
        %6268 = vmatpush1.msra.mxu0 %v6254
        %6269 = vmatprep.subr.mxu0 0.0
        %6270 = vmatpush1.msra.mxu0 %v6253
        %6271 = vmatprep.subr.mxu0 0.0
        %6272 = vmatpush1.msra.mxu0 %v6252
        %6273 = vmatprep.subr.mxu0 0.0
        %6274 = vmatpush1.msra.mxu0 %v6251
        %6275 = vmatprep.subr.mxu0 0.0
        %6276 = vmatpush1.msra.mxu0 %v6250
        %6277 = vmatprep.subr.mxu0 0.0
        %6278 = vmatpush1.msra.mxu0 %v6249
        %6279 = vmatprep.subr.mxu0 0.0
        %6280 = vmatpush1.msra.mxu0 %v6248
        %6281 = vmatprep.subr.mxu0 0.0
        %6282 = vmatpush1.msra.mxu0 %v6247
        %6283 = vmatprep.subr.mxu0 0.0
        %6284 = vmatpush1.msra.mxu0 %v6246
        %6285 = vmatprep.subr.mxu0 0.0
        %6286 = vmatpush1.msra.mxu0 %v6245
        %6287 = vmatprep.subr.mxu0 0.0
        %6288 = vmatpush1.msra.mxu0 %v6244
        %6289 = vmatprep.subr.mxu0 0.0
        %6290 = vmatpush1.msra.mxu0 %v6243
        %6291 = vmatprep.subr.mxu0 0.0
        %6292 = vmatpush2.msra.mxu0 0.0
        %6293 = vmatprep.subr.mxu0 0.0
        %6294 = vmatpush2.msra.mxu0 0.0
        %6295 = vmatprep.subr.mxu0 0.0
        %6296 = vmatpush2.msra.mxu0 0.0
        %6297 = vmatprep.subr.mxu0 0.0
        %6298 = vmatpush2.msra.mxu0 0.0
        %6299 = vmatprep.subr.mxu0 0.0
        %6300 = vmatpush2.msra.mxu0 0.0
        %6301 = vmatprep.subr.mxu0 0.0
        %6302 = vmatpush2.msra.mxu0 0.0
        %6303 = vmatprep.subr.mxu0 0.0
        %6304 = vmatpush2.msra.mxu0 0.0
        %6305 = vmatprep.subr.mxu0 0.0
        %6306 = vmatpush2.msra.mxu0 0.0
        %6307 = vmatprep.subr.mxu0 0.0
        %6308 = vmatpush2.msra.mxu0 0.0
        %6309 = vmatprep.subr.mxu0 0.0
        %6310 = vmatpush2.msra.mxu0 0.0
        %6311 = vmatprep.subr.mxu0 0.0
        %6312 = vmatpush2.msra.mxu0 0.0
        %6313 = vmatprep.subr.mxu0 0.0
        %6314 = vmatpush2.msra.mxu0 0.0
        %6315 = vmatprep.subr.mxu0 0.0
        %6316 = vmatpush2.msra.mxu0 0.0
        %6317 = vmatprep.subr.mxu0 0.0
        %6318 = vmatpush2.msra.mxu0 0.0
        %6319 = vmatprep.subr.mxu0 0.0
        %6320 = vmatpush2.msra.mxu0 0.0
        %6321 = vmatprep.subr.mxu0 0.0
        %6322 = vmatpush2.msra.mxu0 0.0
        %6323 = vmatprep.mubr.f32.mxu0 0.0
        %6324 = vmatmul.mubr.f32.gmra.mxu0 %v6079
        %v6325 = vpop.f32.mrf.mxu0
        %v6326 = vadd.f32 0.0, %v6325
        %v6327 = vpop.f32.mrf.mxu0
        %6328 = vdwg.mxu0
        %6329 = vmatprep.subr.mxu0 0.0
        %6330 = vmatpush1.msra.mxu0 %v6241
        %6331 = vmatprep.subr.mxu0 0.0
        %6332 = vmatpush1.msra.mxu0 %v6240
        %6333 = vmatprep.subr.mxu0 0.0
        %6334 = vmatpush1.msra.mxu0 %v6239
        %6335 = vmatprep.subr.mxu0 0.0
        %6336 = vmatpush1.msra.mxu0 %v6238
        %6337 = vmatprep.subr.mxu0 0.0
        %6338 = vmatpush1.msra.mxu0 %v6237
        %6339 = vmatprep.subr.mxu0 0.0
        %6340 = vmatpush1.msra.mxu0 %v6236
        %6341 = vmatprep.subr.mxu0 0.0
        %6342 = vmatpush1.msra.mxu0 %v6235
        %6343 = vmatprep.subr.mxu0 0.0
        %6344 = vmatpush1.msra.mxu0 %v6234
        %6345 = vmatprep.subr.mxu0 0.0
        %6346 = vmatpush1.msra.mxu0 %v6233
        %6347 = vmatprep.subr.mxu0 0.0
        %6348 = vmatpush1.msra.mxu0 %v6232
        %6349 = vmatprep.subr.mxu0 0.0
        %6350 = vmatpush1.msra.mxu0 %v6231
        %6351 = vmatprep.subr.mxu0 0.0
        %6352 = vmatpush1.msra.mxu0 %v6230
        %6353 = vmatprep.subr.mxu0 0.0
        %6354 = vmatpush1.msra.mxu0 %v6229
        %6355 = vmatprep.subr.mxu0 0.0
        %6356 = vmatpush1.msra.mxu0 %v6228
        %6357 = vmatprep.subr.mxu0 0.0
        %6358 = vmatpush1.msra.mxu0 %v6227
        %6359 = vmatprep.subr.mxu0 0.0
        %6360 = vmatpush1.msra.mxu0 %v6226
        %6361 = vmatprep.subr.mxu0 0.0
        %6362 = vmatpush2.msra.mxu0 0.0
        %6363 = vmatprep.subr.mxu0 0.0
        %6364 = vmatpush2.msra.mxu0 0.0
        %6365 = vmatprep.subr.mxu0 0.0
        %6366 = vmatpush2.msra.mxu0 0.0
        %6367 = vmatprep.subr.mxu0 0.0
        %6368 = vmatpush2.msra.mxu0 0.0
        %6369 = vmatprep.subr.mxu0 0.0
        %6370 = vmatpush2.msra.mxu0 0.0
        %6371 = vmatprep.subr.mxu0 0.0
        %6372 = vmatpush2.msra.mxu0 0.0
        %6373 = vmatprep.subr.mxu0 0.0
        %6374 = vmatpush2.msra.mxu0 0.0
        %6375 = vmatprep.subr.mxu0 0.0
        %6376 = vmatpush2.msra.mxu0 0.0
        %6377 = vmatprep.subr.mxu0 0.0
        %6378 = vmatpush2.msra.mxu0 0.0
        %6379 = vmatprep.subr.mxu0 0.0
        %6380 = vmatpush2.msra.mxu0 0.0
        %6381 = vmatprep.subr.mxu0 0.0
        %6382 = vmatpush2.msra.mxu0 0.0
        %6383 = vmatprep.subr.mxu0 0.0
        %6384 = vmatpush2.msra.mxu0 0.0
        %6385 = vmatprep.subr.mxu0 0.0
        %6386 = vmatpush2.msra.mxu0 0.0
        %6387 = vmatprep.subr.mxu0 0.0
        %6388 = vmatpush2.msra.mxu0 0.0
        %6389 = vmatprep.subr.mxu0 0.0
        %6390 = vmatpush2.msra.mxu0 0.0
        %6391 = vmatprep.subr.mxu0 0.0
        %6392 = vmatpush2.msra.mxu0 0.0
        %6393 = vmatprep.mubr.f32.mxu0 0.0
        %6394 = vmatmul.mubr.f32.gmra.mxu0 %v6152
        %v6395 = vpop.f32.mrf.mxu0
        %v6396 = vadd.f32 %v6326, %v6395
        %v6397 = vpop.f32.mrf.mxu0
        %6398 = vdwg.mxu0
        %s6399 = scalar_lea.vmem [#allocation21], 1408
        %v6400 = vld [vmem:[%s6399] sm:$0xff]
        %v6401 = vld [vmem:[%s6399 + $0x8] sm:$0xff]
        %v6402 = vld [vmem:[%s6399 + $0x10] sm:$0xff]
        %v6403 = vld [vmem:[%s6399 + $0x18] sm:$0xff]
        %v6404 = vld [vmem:[%s6399 + $0x20] sm:$0xff]
        %v6405 = vld [vmem:[%s6399 + $0x28] sm:$0xff]
        %v6406 = vld [vmem:[%s6399 + $0x30] sm:$0xff]
        %v6407 = vld [vmem:[%s6399 + $0x38] sm:$0xff]
        %v6408 = vld [vmem:[%s6399 + $0x40] sm:$0xff]
        %v6409 = vld [vmem:[%s6399 + $0x48] sm:$0xff]
        %v6410 = vld [vmem:[%s6399 + $0x50] sm:$0xff]
        %v6411 = vld [vmem:[%s6399 + $0x58] sm:$0xff]
        %v6412 = vld [vmem:[%s6399 + $0x60] sm:$0xff]
        %v6413 = vld [vmem:[%s6399 + $0x68] sm:$0xff]
        %v6414 = vld [vmem:[%s6399 + $0x70] sm:$0xff]
        %v6415 = vld [vmem:[%s6399 + $0x78] sm:$0xff]
        %6416 = vmatprep.subr.mxu0 0.0
        %6417 = vmatpush1.msra.mxu0 %v6415
        %6418 = vmatprep.subr.mxu0 0.0
        %6419 = vmatpush1.msra.mxu0 %v6414
        %6420 = vmatprep.subr.mxu0 0.0
        %6421 = vmatpush1.msra.mxu0 %v6413
        %6422 = vmatprep.subr.mxu0 0.0
        %6423 = vmatpush1.msra.mxu0 %v6412
        %6424 = vmatprep.subr.mxu0 0.0
        %6425 = vmatpush1.msra.mxu0 %v6411
        %6426 = vmatprep.subr.mxu0 0.0
        %6427 = vmatpush1.msra.mxu0 %v6410
        %6428 = vmatprep.subr.mxu0 0.0
        %6429 = vmatpush1.msra.mxu0 %v6409
        %6430 = vmatprep.subr.mxu0 0.0
        %6431 = vmatpush1.msra.mxu0 %v6408
        %6432 = vmatprep.subr.mxu0 0.0
        %6433 = vmatpush1.msra.mxu0 %v6407
        %6434 = vmatprep.subr.mxu0 0.0
        %6435 = vmatpush1.msra.mxu0 %v6406
        %6436 = vmatprep.subr.mxu0 0.0
        %6437 = vmatpush1.msra.mxu0 %v6405
        %6438 = vmatprep.subr.mxu0 0.0
        %6439 = vmatpush1.msra.mxu0 %v6404
        %6440 = vmatprep.subr.mxu0 0.0
        %6441 = vmatpush1.msra.mxu0 %v6403
        %6442 = vmatprep.subr.mxu0 0.0
        %6443 = vmatpush1.msra.mxu0 %v6402
        %6444 = vmatprep.subr.mxu0 0.0
        %6445 = vmatpush1.msra.mxu0 %v6401
        %6446 = vmatprep.subr.mxu0 0.0
        %6447 = vmatpush1.msra.mxu0 %v6400
        %6448 = vmatprep.subr.mxu0 0.0
        %6449 = vmatpush2.msra.mxu0 0.0
        %6450 = vmatprep.subr.mxu0 0.0
        %6451 = vmatpush2.msra.mxu0 0.0
        %6452 = vmatprep.subr.mxu0 0.0
        %6453 = vmatpush2.msra.mxu0 0.0
        %6454 = vmatprep.subr.mxu0 0.0
        %6455 = vmatpush2.msra.mxu0 0.0
        %6456 = vmatprep.subr.mxu0 0.0
        %6457 = vmatpush2.msra.mxu0 0.0
        %6458 = vmatprep.subr.mxu0 0.0
        %6459 = vmatpush2.msra.mxu0 0.0
        %6460 = vmatprep.subr.mxu0 0.0
        %6461 = vmatpush2.msra.mxu0 0.0
        %6462 = vmatprep.subr.mxu0 0.0
        %6463 = vmatpush2.msra.mxu0 0.0
        %6464 = vmatprep.subr.mxu0 0.0
        %6465 = vmatpush2.msra.mxu0 0.0
        %6466 = vmatprep.subr.mxu0 0.0
        %6467 = vmatpush2.msra.mxu0 0.0
        %6468 = vmatprep.subr.mxu0 0.0
        %6469 = vmatpush2.msra.mxu0 0.0
        %6470 = vmatprep.subr.mxu0 0.0
        %6471 = vmatpush2.msra.mxu0 0.0
        %6472 = vmatprep.subr.mxu0 0.0
        %6473 = vmatpush2.msra.mxu0 0.0
        %6474 = vmatprep.subr.mxu0 0.0
        %6475 = vmatpush2.msra.mxu0 0.0
        %6476 = vmatprep.subr.mxu0 0.0
        %6477 = vmatpush2.msra.mxu0 0.0
        %6478 = vmatprep.subr.mxu0 0.0
        %6479 = vmatpush2.msra.mxu0 0.0
        %6480 = vmatprep.mubr.f32.mxu0 0.0
        %6481 = vmatmul.mubr.f32.gmra.mxu0 %v6222
        %v6482 = vpop.f32.mrf.mxu0
        %v6483 = vadd.f32 0.0, %v6482
        %v6484 = vpop.f32.mrf.mxu0
        %6485 = vdwg.mxu0
        %v6486 = vadd.f32 %v6396, %v6483
        %v6488 = vlaneseq
        %v6489 = vshrl.u32 %v6488, 7
        %v6490 = vsub.s32 0, %v6489
        %v6491 = vrot.slane %v6081, %v6490
        %v6493 = vadd.f32 %v6486, %v6491
        %v6494 = vadd.f32 %v6493, %v5663
        %v6495 = vld [vmem:[#allocation24] sm:$0xf]
        %s6496 = scalar_lea.vmem [#allocation24], 4
        %v6497 = vld [vmem:[%s6496] sm:$0xf]
        %v6498 = vld [vmem:[#allocation27] sm:$0x1]
        %v6500 = vsel %vm4829, %v6495, 0
        %v6503 = vsel %vm4833, %v6494, 0
        %6505 = vmatprep.subr.mxu0 0.0
        %6506 = vmatpush1.msra.mxu0 0.0
        %6507 = vmatprep.subr.mxu0 0.0
        %6508 = vmatpush1.msra.mxu0 0.0
        %6509 = vmatprep.subr.mxu0 0.0
        %6510 = vmatpush1.msra.mxu0 0.0
        %6511 = vmatprep.subr.mxu0 0.0
        %6512 = vmatpush1.msra.mxu0 0.0
        %6513 = vmatprep.subr.mxu0 0.0
        %6514 = vmatpush1.msra.mxu0 0.0
        %6515 = vmatprep.subr.mxu0 0.0
        %6516 = vmatpush1.msra.mxu0 0.0
        %6517 = vmatprep.subr.mxu0 0.0
        %6518 = vmatpush1.msra.mxu0 0.0
        %6519 = vmatprep.subr.mxu0 0.0
        %6520 = vmatpush1.msra.mxu0 0.0
        %6521 = vmatprep.subr.mxu0 0.0
        %6522 = vmatpush1.msra.mxu0 0.0
        %6523 = vmatprep.subr.mxu0 0.0
        %6524 = vmatpush1.msra.mxu0 0.0
        %6525 = vmatprep.subr.mxu0 0.0
        %6526 = vmatpush1.msra.mxu0 0.0
        %6527 = vmatprep.subr.mxu0 0.0
        %6528 = vmatpush1.msra.mxu0 0.0
        %6529 = vmatprep.subr.mxu0 0.0
        %6530 = vmatpush1.msra.mxu0 0.0
        %6531 = vmatprep.subr.mxu0 0.0
        %6532 = vmatpush1.msra.mxu0 0.0
        %6533 = vmatprep.subr.mxu0 0.0
        %6534 = vmatpush1.msra.mxu0 0.0
        %6535 = vmatprep.subr.mxu0 0.0
        %6536 = vmatpush1.msra.mxu0 %v6503
        %6537 = vmatprep.subr.mxu0 0.0
        %6538 = vmatpush2.msra.mxu0 0.0
        %6539 = vmatprep.subr.mxu0 0.0
        %6540 = vmatpush2.msra.mxu0 0.0
        %6541 = vmatprep.subr.mxu0 0.0
        %6542 = vmatpush2.msra.mxu0 0.0
        %6543 = vmatprep.subr.mxu0 0.0
        %6544 = vmatpush2.msra.mxu0 0.0
        %6545 = vmatprep.subr.mxu0 0.0
        %6546 = vmatpush2.msra.mxu0 0.0
        %6547 = vmatprep.subr.mxu0 0.0
        %6548 = vmatpush2.msra.mxu0 0.0
        %6549 = vmatprep.subr.mxu0 0.0
        %6550 = vmatpush2.msra.mxu0 0.0
        %6551 = vmatprep.subr.mxu0 0.0
        %6552 = vmatpush2.msra.mxu0 0.0
        %6553 = vmatprep.subr.mxu0 0.0
        %6554 = vmatpush2.msra.mxu0 0.0
        %6555 = vmatprep.subr.mxu0 0.0
        %6556 = vmatpush2.msra.mxu0 0.0
        %6557 = vmatprep.subr.mxu0 0.0
        %6558 = vmatpush2.msra.mxu0 0.0
        %6559 = vmatprep.subr.mxu0 0.0
        %6560 = vmatpush2.msra.mxu0 0.0
        %6561 = vmatprep.subr.mxu0 0.0
        %6562 = vmatpush2.msra.mxu0 0.0
        %6563 = vmatprep.subr.mxu0 0.0
        %6564 = vmatpush2.msra.mxu0 0.0
        %6565 = vmatprep.subr.mxu0 0.0
        %6566 = vmatpush2.msra.mxu0 0.0
        %6567 = vmatprep.subr.mxu0 0.0
        %6568 = vmatpush2.msra.mxu0 0.0
        %6569 = vmatprep.mubr.f32.mxu0 0.0
        %6570 = vmatmul.mubr.f32.gmra.mxu0 %v6500
        %v6571 = vpop.f32.mrf.mxu0
        %v6572 = vadd.f32 0.0, %v6571
        %v6573 = vpop.f32.mrf.mxu0
        %6574 = vdwg.mxu0
        %v6576 = vsel %vm4829, %v6497, 0
        %6578 = vmatprep.subr.mxu0 0.0
        %6579 = vmatpush1.msra.mxu0 0.0
        %6580 = vmatprep.subr.mxu0 0.0
        %6581 = vmatpush1.msra.mxu0 0.0
        %6582 = vmatprep.subr.mxu0 0.0
        %6583 = vmatpush1.msra.mxu0 0.0
        %6584 = vmatprep.subr.mxu0 0.0
        %6585 = vmatpush1.msra.mxu0 0.0
        %6586 = vmatprep.subr.mxu0 0.0
        %6587 = vmatpush1.msra.mxu0 0.0
        %6588 = vmatprep.subr.mxu0 0.0
        %6589 = vmatpush1.msra.mxu0 0.0
        %6590 = vmatprep.subr.mxu0 0.0
        %6591 = vmatpush1.msra.mxu0 0.0
        %6592 = vmatprep.subr.mxu0 0.0
        %6593 = vmatpush1.msra.mxu0 0.0
        %6594 = vmatprep.subr.mxu0 0.0
        %6595 = vmatpush1.msra.mxu0 0.0
        %6596 = vmatprep.subr.mxu0 0.0
        %6597 = vmatpush1.msra.mxu0 0.0
        %6598 = vmatprep.subr.mxu0 0.0
        %6599 = vmatpush1.msra.mxu0 0.0
        %6600 = vmatprep.subr.mxu0 0.0
        %6601 = vmatpush1.msra.mxu0 0.0
        %6602 = vmatprep.subr.mxu0 0.0
        %6603 = vmatpush1.msra.mxu0 0.0
        %6604 = vmatprep.subr.mxu0 0.0
        %6605 = vmatpush1.msra.mxu0 0.0
        %6606 = vmatprep.subr.mxu0 0.0
        %6607 = vmatpush1.msra.mxu0 0.0
        %6608 = vmatprep.subr.mxu0 0.0
        %6609 = vmatpush1.msra.mxu0 %v6503
        %6610 = vmatprep.subr.mxu0 0.0
        %6611 = vmatpush2.msra.mxu0 0.0
        %6612 = vmatprep.subr.mxu0 0.0
        %6613 = vmatpush2.msra.mxu0 0.0
        %6614 = vmatprep.subr.mxu0 0.0
        %6615 = vmatpush2.msra.mxu0 0.0
        %6616 = vmatprep.subr.mxu0 0.0
        %6617 = vmatpush2.msra.mxu0 0.0
        %6618 = vmatprep.subr.mxu0 0.0
        %6619 = vmatpush2.msra.mxu0 0.0
        %6620 = vmatprep.subr.mxu0 0.0
        %6621 = vmatpush2.msra.mxu0 0.0
        %6622 = vmatprep.subr.mxu0 0.0
        %6623 = vmatpush2.msra.mxu0 0.0
        %6624 = vmatprep.subr.mxu0 0.0
        %6625 = vmatpush2.msra.mxu0 0.0
        %6626 = vmatprep.subr.mxu0 0.0
        %6627 = vmatpush2.msra.mxu0 0.0
        %6628 = vmatprep.subr.mxu0 0.0
        %6629 = vmatpush2.msra.mxu0 0.0
        %6630 = vmatprep.subr.mxu0 0.0
        %6631 = vmatpush2.msra.mxu0 0.0
        %6632 = vmatprep.subr.mxu0 0.0
        %6633 = vmatpush2.msra.mxu0 0.0
        %6634 = vmatprep.subr.mxu0 0.0
        %6635 = vmatpush2.msra.mxu0 0.0
        %6636 = vmatprep.subr.mxu0 0.0
        %6637 = vmatpush2.msra.mxu0 0.0
        %6638 = vmatprep.subr.mxu0 0.0
        %6639 = vmatpush2.msra.mxu0 0.0
        %6640 = vmatprep.subr.mxu0 0.0
        %6641 = vmatpush2.msra.mxu0 0.0
        %6642 = vmatprep.mubr.f32.mxu0 0.0
        %6643 = vmatmul.mubr.f32.gmra.mxu0 %v6576
        %v6644 = vpop.f32.mrf.mxu0
        %v6645 = vadd.f32 0.0, %v6644
        %v6646 = vpop.f32.mrf.mxu0
        %6647 = vdwg.mxu0
        %v6648 = vld [vmem:[#allocation25] sm:$0xff]
        %v6649 = vld [vmem:[#allocation25 + $0x8] sm:$0xff]
        %v6650 = vld [vmem:[#allocation25 + $0x10] sm:$0xff]
        %v6651 = vld [vmem:[#allocation25 + $0x18] sm:$0xff]
        %v6652 = vld [vmem:[#allocation25 + $0x20] sm:$0xff]
        %v6653 = vld [vmem:[#allocation25 + $0x28] sm:$0xff]
        %v6654 = vld [vmem:[#allocation25 + $0x30] sm:$0xff]
        %v6655 = vld [vmem:[#allocation25 + $0x38] sm:$0xff]
        %v6656 = vld [vmem:[#allocation25 + $0x40] sm:$0xff]
        %v6657 = vld [vmem:[#allocation25 + $0x48] sm:$0xff]
        %v6658 = vld [vmem:[#allocation25 + $0x50] sm:$0xff]
        %v6659 = vld [vmem:[#allocation25 + $0x58] sm:$0xff]
        %v6660 = vld [vmem:[#allocation25 + $0x60] sm:$0xff]
        %v6661 = vld [vmem:[#allocation25 + $0x68] sm:$0xff]
        %v6662 = vld [vmem:[#allocation25 + $0x70] sm:$0xff]
        %v6663 = vld [vmem:[#allocation25 + $0x78] sm:$0xff]
        %s6664 = scalar_lea.vmem [#allocation25], 128
        %v6665 = vld [vmem:[%s6664] sm:$0xff]
        %v6666 = vld [vmem:[%s6664 + $0x8] sm:$0xff]
        %v6667 = vld [vmem:[%s6664 + $0x10] sm:$0xff]
        %v6668 = vld [vmem:[%s6664 + $0x18] sm:$0xff]
        %v6669 = vld [vmem:[%s6664 + $0x20] sm:$0xff]
        %v6670 = vld [vmem:[%s6664 + $0x28] sm:$0xff]
        %v6671 = vld [vmem:[%s6664 + $0x30] sm:$0xff]
        %v6672 = vld [vmem:[%s6664 + $0x38] sm:$0xff]
        %v6673 = vld [vmem:[%s6664 + $0x40] sm:$0xff]
        %v6674 = vld [vmem:[%s6664 + $0x48] sm:$0xff]
        %v6675 = vld [vmem:[%s6664 + $0x50] sm:$0xff]
        %v6676 = vld [vmem:[%s6664 + $0x58] sm:$0xff]
        %v6677 = vld [vmem:[%s6664 + $0x60] sm:$0xff]
        %v6678 = vld [vmem:[%s6664 + $0x68] sm:$0xff]
        %v6679 = vld [vmem:[%s6664 + $0x70] sm:$0xff]
        %v6680 = vld [vmem:[%s6664 + $0x78] sm:$0xff]
        %6681 = vmatprep.subr.mxu0 0.0
        %6682 = vmatpush1.msra.mxu0 %v6680
        %6683 = vmatprep.subr.mxu0 0.0
        %6684 = vmatpush1.msra.mxu0 %v6679
        %6685 = vmatprep.subr.mxu0 0.0
        %6686 = vmatpush1.msra.mxu0 %v6678
        %6687 = vmatprep.subr.mxu0 0.0
        %6688 = vmatpush1.msra.mxu0 %v6677
        %6689 = vmatprep.subr.mxu0 0.0
        %6690 = vmatpush1.msra.mxu0 %v6676
        %6691 = vmatprep.subr.mxu0 0.0
        %6692 = vmatpush1.msra.mxu0 %v6675
        %6693 = vmatprep.subr.mxu0 0.0
        %6694 = vmatpush1.msra.mxu0 %v6674
        %6695 = vmatprep.subr.mxu0 0.0
        %6696 = vmatpush1.msra.mxu0 %v6673
        %6697 = vmatprep.subr.mxu0 0.0
        %6698 = vmatpush1.msra.mxu0 %v6672
        %6699 = vmatprep.subr.mxu0 0.0
        %6700 = vmatpush1.msra.mxu0 %v6671
        %6701 = vmatprep.subr.mxu0 0.0
        %6702 = vmatpush1.msra.mxu0 %v6670
        %6703 = vmatprep.subr.mxu0 0.0
        %6704 = vmatpush1.msra.mxu0 %v6669
        %6705 = vmatprep.subr.mxu0 0.0
        %6706 = vmatpush1.msra.mxu0 %v6668
        %6707 = vmatprep.subr.mxu0 0.0
        %6708 = vmatpush1.msra.mxu0 %v6667
        %6709 = vmatprep.subr.mxu0 0.0
        %6710 = vmatpush1.msra.mxu0 %v6666
        %6711 = vmatprep.subr.mxu0 0.0
        %6712 = vmatpush1.msra.mxu0 %v6665
        %6713 = vmatprep.subr.mxu0 0.0
        %6714 = vmatpush2.msra.mxu0 0.0
        %6715 = vmatprep.subr.mxu0 0.0
        %6716 = vmatpush2.msra.mxu0 0.0
        %6717 = vmatprep.subr.mxu0 0.0
        %6718 = vmatpush2.msra.mxu0 0.0
        %6719 = vmatprep.subr.mxu0 0.0
        %6720 = vmatpush2.msra.mxu0 0.0
        %6721 = vmatprep.subr.mxu0 0.0
        %6722 = vmatpush2.msra.mxu0 0.0
        %6723 = vmatprep.subr.mxu0 0.0
        %6724 = vmatpush2.msra.mxu0 0.0
        %6725 = vmatprep.subr.mxu0 0.0
        %6726 = vmatpush2.msra.mxu0 0.0
        %6727 = vmatprep.subr.mxu0 0.0
        %6728 = vmatpush2.msra.mxu0 0.0
        %6729 = vmatprep.subr.mxu0 0.0
        %6730 = vmatpush2.msra.mxu0 0.0
        %6731 = vmatprep.subr.mxu0 0.0
        %6732 = vmatpush2.msra.mxu0 0.0
        %6733 = vmatprep.subr.mxu0 0.0
        %6734 = vmatpush2.msra.mxu0 0.0
        %6735 = vmatprep.subr.mxu0 0.0
        %6736 = vmatpush2.msra.mxu0 0.0
        %6737 = vmatprep.subr.mxu0 0.0
        %6738 = vmatpush2.msra.mxu0 0.0
        %6739 = vmatprep.subr.mxu0 0.0
        %6740 = vmatpush2.msra.mxu0 0.0
        %6741 = vmatprep.subr.mxu0 0.0
        %6742 = vmatpush2.msra.mxu0 0.0
        %6743 = vmatprep.subr.mxu0 0.0
        %6744 = vmatpush2.msra.mxu0 0.0
        %6745 = vmatprep.mubr.f32.mxu0 0.0
        %6746 = vmatmul.mubr.f32.gmra.mxu0 %v6494
        %v6747 = vpop.f32.mrf.mxu0
        %v6748 = vadd.f32 0.0, %v6747
        %v6749 = vpop.f32.mrf.mxu0
        %6750 = vdwg.mxu0
        %6751 = vmatprep.subr.mxu0 0.0
        %6752 = vmatpush1.msra.mxu0 %v6663
        %6753 = vmatprep.subr.mxu0 0.0
        %6754 = vmatpush1.msra.mxu0 %v6662
        %6755 = vmatprep.subr.mxu0 0.0
        %6756 = vmatpush1.msra.mxu0 %v6661
        %6757 = vmatprep.subr.mxu0 0.0
        %6758 = vmatpush1.msra.mxu0 %v6660
        %6759 = vmatprep.subr.mxu0 0.0
        %6760 = vmatpush1.msra.mxu0 %v6659
        %6761 = vmatprep.subr.mxu0 0.0
        %6762 = vmatpush1.msra.mxu0 %v6658
        %6763 = vmatprep.subr.mxu0 0.0
        %6764 = vmatpush1.msra.mxu0 %v6657
        %6765 = vmatprep.subr.mxu0 0.0
        %6766 = vmatpush1.msra.mxu0 %v6656
        %6767 = vmatprep.subr.mxu0 0.0
        %6768 = vmatpush1.msra.mxu0 %v6655
        %6769 = vmatprep.subr.mxu0 0.0
        %6770 = vmatpush1.msra.mxu0 %v6654
        %6771 = vmatprep.subr.mxu0 0.0
        %6772 = vmatpush1.msra.mxu0 %v6653
        %6773 = vmatprep.subr.mxu0 0.0
        %6774 = vmatpush1.msra.mxu0 %v6652
        %6775 = vmatprep.subr.mxu0 0.0
        %6776 = vmatpush1.msra.mxu0 %v6651
        %6777 = vmatprep.subr.mxu0 0.0
        %6778 = vmatpush1.msra.mxu0 %v6650
        %6779 = vmatprep.subr.mxu0 0.0
        %6780 = vmatpush1.msra.mxu0 %v6649
        %6781 = vmatprep.subr.mxu0 0.0
        %6782 = vmatpush1.msra.mxu0 %v6648
        %6783 = vmatprep.subr.mxu0 0.0
        %6784 = vmatpush2.msra.mxu0 0.0
        %6785 = vmatprep.subr.mxu0 0.0
        %6786 = vmatpush2.msra.mxu0 0.0
        %6787 = vmatprep.subr.mxu0 0.0
        %6788 = vmatpush2.msra.mxu0 0.0
        %6789 = vmatprep.subr.mxu0 0.0
        %6790 = vmatpush2.msra.mxu0 0.0
        %6791 = vmatprep.subr.mxu0 0.0
        %6792 = vmatpush2.msra.mxu0 0.0
        %6793 = vmatprep.subr.mxu0 0.0
        %6794 = vmatpush2.msra.mxu0 0.0
        %6795 = vmatprep.subr.mxu0 0.0
        %6796 = vmatpush2.msra.mxu0 0.0
        %6797 = vmatprep.subr.mxu0 0.0
        %6798 = vmatpush2.msra.mxu0 0.0
        %6799 = vmatprep.subr.mxu0 0.0
        %6800 = vmatpush2.msra.mxu0 0.0
        %6801 = vmatprep.subr.mxu0 0.0
        %6802 = vmatpush2.msra.mxu0 0.0
        %6803 = vmatprep.subr.mxu0 0.0
        %6804 = vmatpush2.msra.mxu0 0.0
        %6805 = vmatprep.subr.mxu0 0.0
        %6806 = vmatpush2.msra.mxu0 0.0
        %6807 = vmatprep.subr.mxu0 0.0
        %6808 = vmatpush2.msra.mxu0 0.0
        %6809 = vmatprep.subr.mxu0 0.0
        %6810 = vmatpush2.msra.mxu0 0.0
        %6811 = vmatprep.subr.mxu0 0.0
        %6812 = vmatpush2.msra.mxu0 0.0
        %6813 = vmatprep.subr.mxu0 0.0
        %6814 = vmatpush2.msra.mxu0 0.0
        %6815 = vmatprep.mubr.f32.mxu0 0.0
        %6816 = vmatmul.mubr.f32.gmra.mxu0 %v6572
        %v6817 = vpop.f32.mrf.mxu0
        %v6818 = vadd.f32 %v6748, %v6817
        %v6819 = vpop.f32.mrf.mxu0
        %6820 = vdwg.mxu0
        %s6821 = scalar_lea.vmem [#allocation25], 256
        %v6822 = vld [vmem:[%s6821] sm:$0xff]
        %v6823 = vld [vmem:[%s6821 + $0x8] sm:$0xff]
        %v6824 = vld [vmem:[%s6821 + $0x10] sm:$0xff]
        %v6825 = vld [vmem:[%s6821 + $0x18] sm:$0xff]
        %v6826 = vld [vmem:[%s6821 + $0x20] sm:$0xff]
        %v6827 = vld [vmem:[%s6821 + $0x28] sm:$0xff]
        %v6828 = vld [vmem:[%s6821 + $0x30] sm:$0xff]
        %v6829 = vld [vmem:[%s6821 + $0x38] sm:$0xff]
        %v6830 = vld [vmem:[%s6821 + $0x40] sm:$0xff]
        %v6831 = vld [vmem:[%s6821 + $0x48] sm:$0xff]
        %v6832 = vld [vmem:[%s6821 + $0x50] sm:$0xff]
        %v6833 = vld [vmem:[%s6821 + $0x58] sm:$0xff]
        %v6834 = vld [vmem:[%s6821 + $0x60] sm:$0xff]
        %v6835 = vld [vmem:[%s6821 + $0x68] sm:$0xff]
        %v6836 = vld [vmem:[%s6821 + $0x70] sm:$0xff]
        %v6837 = vld [vmem:[%s6821 + $0x78] sm:$0xff]
        %6838 = vmatprep.subr.mxu0 0.0
        %6839 = vmatpush1.msra.mxu0 %v6837
        %6840 = vmatprep.subr.mxu0 0.0
        %6841 = vmatpush1.msra.mxu0 %v6836
        %6842 = vmatprep.subr.mxu0 0.0
        %6843 = vmatpush1.msra.mxu0 %v6835
        %6844 = vmatprep.subr.mxu0 0.0
        %6845 = vmatpush1.msra.mxu0 %v6834
        %6846 = vmatprep.subr.mxu0 0.0
        %6847 = vmatpush1.msra.mxu0 %v6833
        %6848 = vmatprep.subr.mxu0 0.0
        %6849 = vmatpush1.msra.mxu0 %v6832
        %6850 = vmatprep.subr.mxu0 0.0
        %6851 = vmatpush1.msra.mxu0 %v6831
        %6852 = vmatprep.subr.mxu0 0.0
        %6853 = vmatpush1.msra.mxu0 %v6830
        %6854 = vmatprep.subr.mxu0 0.0
        %6855 = vmatpush1.msra.mxu0 %v6829
        %6856 = vmatprep.subr.mxu0 0.0
        %6857 = vmatpush1.msra.mxu0 %v6828
        %6858 = vmatprep.subr.mxu0 0.0
        %6859 = vmatpush1.msra.mxu0 %v6827
        %6860 = vmatprep.subr.mxu0 0.0
        %6861 = vmatpush1.msra.mxu0 %v6826
        %6862 = vmatprep.subr.mxu0 0.0
        %6863 = vmatpush1.msra.mxu0 %v6825
        %6864 = vmatprep.subr.mxu0 0.0
        %6865 = vmatpush1.msra.mxu0 %v6824
        %6866 = vmatprep.subr.mxu0 0.0
        %6867 = vmatpush1.msra.mxu0 %v6823
        %6868 = vmatprep.subr.mxu0 0.0
        %6869 = vmatpush1.msra.mxu0 %v6822
        %6870 = vmatprep.subr.mxu0 0.0
        %6871 = vmatpush2.msra.mxu0 0.0
        %6872 = vmatprep.subr.mxu0 0.0
        %6873 = vmatpush2.msra.mxu0 0.0
        %6874 = vmatprep.subr.mxu0 0.0
        %6875 = vmatpush2.msra.mxu0 0.0
        %6876 = vmatprep.subr.mxu0 0.0
        %6877 = vmatpush2.msra.mxu0 0.0
        %6878 = vmatprep.subr.mxu0 0.0
        %6879 = vmatpush2.msra.mxu0 0.0
        %6880 = vmatprep.subr.mxu0 0.0
        %6881 = vmatpush2.msra.mxu0 0.0
        %6882 = vmatprep.subr.mxu0 0.0
        %6883 = vmatpush2.msra.mxu0 0.0
        %6884 = vmatprep.subr.mxu0 0.0
        %6885 = vmatpush2.msra.mxu0 0.0
        %6886 = vmatprep.subr.mxu0 0.0
        %6887 = vmatpush2.msra.mxu0 0.0
        %6888 = vmatprep.subr.mxu0 0.0
        %6889 = vmatpush2.msra.mxu0 0.0
        %6890 = vmatprep.subr.mxu0 0.0
        %6891 = vmatpush2.msra.mxu0 0.0
        %6892 = vmatprep.subr.mxu0 0.0
        %6893 = vmatpush2.msra.mxu0 0.0
        %6894 = vmatprep.subr.mxu0 0.0
        %6895 = vmatpush2.msra.mxu0 0.0
        %6896 = vmatprep.subr.mxu0 0.0
        %6897 = vmatpush2.msra.mxu0 0.0
        %6898 = vmatprep.subr.mxu0 0.0
        %6899 = vmatpush2.msra.mxu0 0.0
        %6900 = vmatprep.subr.mxu0 0.0
        %6901 = vmatpush2.msra.mxu0 0.0
        %6902 = vmatprep.mubr.f32.mxu0 0.0
        %6903 = vmatmul.mubr.f32.gmra.mxu0 %v6645
        %v6904 = vpop.f32.mrf.mxu0
        %v6905 = vadd.f32 0.0, %v6904
        %v6906 = vpop.f32.mrf.mxu0
        %6907 = vdwg.mxu0
        %v6908 = vadd.f32 %v6818, %v6905
        %v6910 = vlaneseq
        %v6911 = vshrl.u32 %v6910, 7
        %v6912 = vsub.s32 0, %v6911
        %v6913 = vrot.slane %v6498, %v6912
        %v6915 = vadd.f32 %v6908, %v6913
        %v6916 = vld [vmem:[#allocation28] sm:$0x3]
        %v6918 = vsel %vm4829, %v6916, 0
        %v6921 = vsel %vm4833, %v6915, 0
        %6923 = vmatprep.subr.mxu0 0.0
        %6924 = vmatpush1.msra.mxu0 0.0
        %6925 = vmatprep.subr.mxu0 0.0
        %6926 = vmatpush1.msra.mxu0 0.0
        %6927 = vmatprep.subr.mxu0 0.0
        %6928 = vmatpush1.msra.mxu0 0.0
        %6929 = vmatprep.subr.mxu0 0.0
        %6930 = vmatpush1.msra.mxu0 0.0
        %6931 = vmatprep.subr.mxu0 0.0
        %6932 = vmatpush1.msra.mxu0 0.0
        %6933 = vmatprep.subr.mxu0 0.0
        %6934 = vmatpush1.msra.mxu0 0.0
        %6935 = vmatprep.subr.mxu0 0.0
        %6936 = vmatpush1.msra.mxu0 0.0
        %6937 = vmatprep.subr.mxu0 0.0
        %6938 = vmatpush1.msra.mxu0 0.0
        %6939 = vmatprep.subr.mxu0 0.0
        %6940 = vmatpush1.msra.mxu0 0.0
        %6941 = vmatprep.subr.mxu0 0.0
        %6942 = vmatpush1.msra.mxu0 0.0
        %6943 = vmatprep.subr.mxu0 0.0
        %6944 = vmatpush1.msra.mxu0 0.0
        %6945 = vmatprep.subr.mxu0 0.0
        %6946 = vmatpush1.msra.mxu0 0.0
        %6947 = vmatprep.subr.mxu0 0.0
        %6948 = vmatpush1.msra.mxu0 0.0
        %6949 = vmatprep.subr.mxu0 0.0
        %6950 = vmatpush1.msra.mxu0 0.0
        %6951 = vmatprep.subr.mxu0 0.0
        %6952 = vmatpush1.msra.mxu0 0.0
        %6953 = vmatprep.subr.mxu0 0.0
        %6954 = vmatpush1.msra.mxu0 %v6921
        %6955 = vmatprep.subr.mxu0 0.0
        %6956 = vmatpush2.msra.mxu0 0.0
        %6957 = vmatprep.subr.mxu0 0.0
        %6958 = vmatpush2.msra.mxu0 0.0
        %6959 = vmatprep.subr.mxu0 0.0
        %6960 = vmatpush2.msra.mxu0 0.0
        %6961 = vmatprep.subr.mxu0 0.0
        %6962 = vmatpush2.msra.mxu0 0.0
        %6963 = vmatprep.subr.mxu0 0.0
        %6964 = vmatpush2.msra.mxu0 0.0
        %6965 = vmatprep.subr.mxu0 0.0
        %6966 = vmatpush2.msra.mxu0 0.0
        %6967 = vmatprep.subr.mxu0 0.0
        %6968 = vmatpush2.msra.mxu0 0.0
        %6969 = vmatprep.subr.mxu0 0.0
        %6970 = vmatpush2.msra.mxu0 0.0
        %6971 = vmatprep.subr.mxu0 0.0
        %6972 = vmatpush2.msra.mxu0 0.0
        %6973 = vmatprep.subr.mxu0 0.0
        %6974 = vmatpush2.msra.mxu0 0.0
        %6975 = vmatprep.subr.mxu0 0.0
        %6976 = vmatpush2.msra.mxu0 0.0
        %6977 = vmatprep.subr.mxu0 0.0
        %6978 = vmatpush2.msra.mxu0 0.0
        %6979 = vmatprep.subr.mxu0 0.0
        %6980 = vmatpush2.msra.mxu0 0.0
        %6981 = vmatprep.subr.mxu0 0.0
        %6982 = vmatpush2.msra.mxu0 0.0
        %6983 = vmatprep.subr.mxu0 0.0
        %6984 = vmatpush2.msra.mxu0 0.0
        %6985 = vmatprep.subr.mxu0 0.0
        %6986 = vmatpush2.msra.mxu0 0.0
        %6987 = vmatprep.mubr.f32.mxu0 0.0
        %6988 = vmatmul.mubr.f32.gmra.mxu0 %v6918
        %v6989 = vpop.f32.mrf.mxu0
        %v6990 = vadd.f32 0.0, %v6989
        %v6991 = vpop.f32.mrf.mxu0
        %6992 = vdwg.mxu0
        %s6993 = scalar_lea.vmem [#allocation28], 2
        %v6994 = vld [vmem:[%s6993] sm:$0x3]
        %v6996 = vsel %vm4829, %v6994, 0
        %6998 = vmatprep.subr.mxu0 0.0
        %6999 = vmatpush1.msra.mxu0 0.0
        %7000 = vmatprep.subr.mxu0 0.0
        %7001 = vmatpush1.msra.mxu0 0.0
        %7002 = vmatprep.subr.mxu0 0.0
        %7003 = vmatpush1.msra.mxu0 0.0
        %7004 = vmatprep.subr.mxu0 0.0
        %7005 = vmatpush1.msra.mxu0 0.0
        %7006 = vmatprep.subr.mxu0 0.0
        %7007 = vmatpush1.msra.mxu0 0.0
        %7008 = vmatprep.subr.mxu0 0.0
        %7009 = vmatpush1.msra.mxu0 0.0
        %7010 = vmatprep.subr.mxu0 0.0
        %7011 = vmatpush1.msra.mxu0 0.0
        %7012 = vmatprep.subr.mxu0 0.0
        %7013 = vmatpush1.msra.mxu0 0.0
        %7014 = vmatprep.subr.mxu0 0.0
        %7015 = vmatpush1.msra.mxu0 0.0
        %7016 = vmatprep.subr.mxu0 0.0
        %7017 = vmatpush1.msra.mxu0 0.0
        %7018 = vmatprep.subr.mxu0 0.0
        %7019 = vmatpush1.msra.mxu0 0.0
        %7020 = vmatprep.subr.mxu0 0.0
        %7021 = vmatpush1.msra.mxu0 0.0
        %7022 = vmatprep.subr.mxu0 0.0
        %7023 = vmatpush1.msra.mxu0 0.0
        %7024 = vmatprep.subr.mxu0 0.0
        %7025 = vmatpush1.msra.mxu0 0.0
        %7026 = vmatprep.subr.mxu0 0.0
        %7027 = vmatpush1.msra.mxu0 0.0
        %7028 = vmatprep.subr.mxu0 0.0
        %7029 = vmatpush1.msra.mxu0 %v6921
        %7030 = vmatprep.subr.mxu0 0.0
        %7031 = vmatpush2.msra.mxu0 0.0
        %7032 = vmatprep.subr.mxu0 0.0
        %7033 = vmatpush2.msra.mxu0 0.0
        %7034 = vmatprep.subr.mxu0 0.0
        %7035 = vmatpush2.msra.mxu0 0.0
        %7036 = vmatprep.subr.mxu0 0.0
        %7037 = vmatpush2.msra.mxu0 0.0
        %7038 = vmatprep.subr.mxu0 0.0
        %7039 = vmatpush2.msra.mxu0 0.0
        %7040 = vmatprep.subr.mxu0 0.0
        %7041 = vmatpush2.msra.mxu0 0.0
        %7042 = vmatprep.subr.mxu0 0.0
        %7043 = vmatpush2.msra.mxu0 0.0
        %7044 = vmatprep.subr.mxu0 0.0
        %7045 = vmatpush2.msra.mxu0 0.0
        %7046 = vmatprep.subr.mxu0 0.0
        %7047 = vmatpush2.msra.mxu0 0.0
        %7048 = vmatprep.subr.mxu0 0.0
        %7049 = vmatpush2.msra.mxu0 0.0
        %7050 = vmatprep.subr.mxu0 0.0
        %7051 = vmatpush2.msra.mxu0 0.0
        %7052 = vmatprep.subr.mxu0 0.0
        %7053 = vmatpush2.msra.mxu0 0.0
        %7054 = vmatprep.subr.mxu0 0.0
        %7055 = vmatpush2.msra.mxu0 0.0
        %7056 = vmatprep.subr.mxu0 0.0
        %7057 = vmatpush2.msra.mxu0 0.0
        %7058 = vmatprep.subr.mxu0 0.0
        %7059 = vmatpush2.msra.mxu0 0.0
        %7060 = vmatprep.subr.mxu0 0.0
        %7061 = vmatpush2.msra.mxu0 0.0
        %7062 = vmatprep.mubr.f32.mxu0 0.0
        %7063 = vmatmul.mubr.f32.gmra.mxu0 %v6996
        %v7064 = vpop.f32.mrf.mxu0
        %v7065 = vadd.f32 0.0, %v7064
        %v7066 = vpop.f32.mrf.mxu0
        %7067 = vdwg.mxu0
        %v7068 = vmax.f32 %v6990, %v7065
        %s7069 = scalar_lea.vmem [#allocation28], 4
        %v7070 = vld [vmem:[%s7069] sm:$0x3]
        %v7072 = vsel %vm4829, %v7070, 0
        %7074 = vmatprep.subr.mxu0 0.0
        %7075 = vmatpush1.msra.mxu0 0.0
        %7076 = vmatprep.subr.mxu0 0.0
        %7077 = vmatpush1.msra.mxu0 0.0
        %7078 = vmatprep.subr.mxu0 0.0
        %7079 = vmatpush1.msra.mxu0 0.0
        %7080 = vmatprep.subr.mxu0 0.0
        %7081 = vmatpush1.msra.mxu0 0.0
        %7082 = vmatprep.subr.mxu0 0.0
        %7083 = vmatpush1.msra.mxu0 0.0
        %7084 = vmatprep.subr.mxu0 0.0
        %7085 = vmatpush1.msra.mxu0 0.0
        %7086 = vmatprep.subr.mxu0 0.0
        %7087 = vmatpush1.msra.mxu0 0.0
        %7088 = vmatprep.subr.mxu0 0.0
        %7089 = vmatpush1.msra.mxu0 0.0
        %7090 = vmatprep.subr.mxu0 0.0
        %7091 = vmatpush1.msra.mxu0 0.0
        %7092 = vmatprep.subr.mxu0 0.0
        %7093 = vmatpush1.msra.mxu0 0.0
        %7094 = vmatprep.subr.mxu0 0.0
        %7095 = vmatpush1.msra.mxu0 0.0
        %7096 = vmatprep.subr.mxu0 0.0
        %7097 = vmatpush1.msra.mxu0 0.0
        %7098 = vmatprep.subr.mxu0 0.0
        %7099 = vmatpush1.msra.mxu0 0.0
        %7100 = vmatprep.subr.mxu0 0.0
        %7101 = vmatpush1.msra.mxu0 0.0
        %7102 = vmatprep.subr.mxu0 0.0
        %7103 = vmatpush1.msra.mxu0 0.0
        %7104 = vmatprep.subr.mxu0 0.0
        %7105 = vmatpush1.msra.mxu0 %v6921
        %7106 = vmatprep.subr.mxu0 0.0
        %7107 = vmatpush2.msra.mxu0 0.0
        %7108 = vmatprep.subr.mxu0 0.0
        %7109 = vmatpush2.msra.mxu0 0.0
        %7110 = vmatprep.subr.mxu0 0.0
        %7111 = vmatpush2.msra.mxu0 0.0
        %7112 = vmatprep.subr.mxu0 0.0
        %7113 = vmatpush2.msra.mxu0 0.0
        %7114 = vmatprep.subr.mxu0 0.0
        %7115 = vmatpush2.msra.mxu0 0.0
        %7116 = vmatprep.subr.mxu0 0.0
        %7117 = vmatpush2.msra.mxu0 0.0
        %7118 = vmatprep.subr.mxu0 0.0
        %7119 = vmatpush2.msra.mxu0 0.0
        %7120 = vmatprep.subr.mxu0 0.0
        %7121 = vmatpush2.msra.mxu0 0.0
        %7122 = vmatprep.subr.mxu0 0.0
        %7123 = vmatpush2.msra.mxu0 0.0
        %7124 = vmatprep.subr.mxu0 0.0
        %7125 = vmatpush2.msra.mxu0 0.0
        %7126 = vmatprep.subr.mxu0 0.0
        %7127 = vmatpush2.msra.mxu0 0.0
        %7128 = vmatprep.subr.mxu0 0.0
        %7129 = vmatpush2.msra.mxu0 0.0
        %7130 = vmatprep.subr.mxu0 0.0
        %7131 = vmatpush2.msra.mxu0 0.0
        %7132 = vmatprep.subr.mxu0 0.0
        %7133 = vmatpush2.msra.mxu0 0.0
        %7134 = vmatprep.subr.mxu0 0.0
        %7135 = vmatpush2.msra.mxu0 0.0
        %7136 = vmatprep.subr.mxu0 0.0
        %7137 = vmatpush2.msra.mxu0 0.0
        %7138 = vmatprep.mubr.f32.mxu0 0.0
        %7139 = vmatmul.mubr.f32.gmra.mxu0 %v7072
        %v7140 = vpop.f32.mrf.mxu0
        %v7141 = vadd.f32 0.0, %v7140
        %v7142 = vpop.f32.mrf.mxu0
        %7143 = vdwg.mxu0
        %v7144 = vmax.f32 %v7068, %v7141
        %v7145 = vld [vmem:[%s21] sm:$0xff]
        %v7146 = vld [vmem:[%s21 + $0x8] sm:$0xff]
        %v7147 = vld [vmem:[%s21 + $0x10] sm:$0xff]
        %v7148 = vld [vmem:[%s21 + $0x18] sm:$0xff]
        %v7149 = vld [vmem:[%s21 + $0x20] sm:$0xff]
        %v7150 = vld [vmem:[%s21 + $0x28] sm:$0xff]
        %v7151 = vld [vmem:[%s21 + $0x30] sm:$0xff]
        %v7152 = vld [vmem:[%s21 + $0x38] sm:$0xff]
        %v7153 = vld [vmem:[%s21 + $0x40] sm:$0xff]
        %v7154 = vld [vmem:[%s21 + $0x48] sm:$0xff]
        %v7155 = vld [vmem:[%s21 + $0x50] sm:$0xff]
        %v7156 = vld [vmem:[%s21 + $0x58] sm:$0xff]
        %v7157 = vld [vmem:[%s21 + $0x60] sm:$0xff]
        %v7158 = vld [vmem:[%s21 + $0x68] sm:$0xff]
        %v7159 = vld [vmem:[%s21 + $0x70] sm:$0xff]
        %v7160 = vld [vmem:[%s21 + $0x78] sm:$0xff]
        %7161 = vmatprep.subr.mxu0 0.0
        %7162 = vmatpush1.msra.mxu0 %v7160
        %7163 = vmatprep.subr.mxu0 0.0
        %7164 = vmatpush1.msra.mxu0 %v7159
        %7165 = vmatprep.subr.mxu0 0.0
        %7166 = vmatpush1.msra.mxu0 %v7158
        %7167 = vmatprep.subr.mxu0 0.0
        %7168 = vmatpush1.msra.mxu0 %v7157
        %7169 = vmatprep.subr.mxu0 0.0
        %7170 = vmatpush1.msra.mxu0 %v7156
        %7171 = vmatprep.subr.mxu0 0.0
        %7172 = vmatpush1.msra.mxu0 %v7155
        %7173 = vmatprep.subr.mxu0 0.0
        %7174 = vmatpush1.msra.mxu0 %v7154
        %7175 = vmatprep.subr.mxu0 0.0
        %7176 = vmatpush1.msra.mxu0 %v7153
        %7177 = vmatprep.subr.mxu0 0.0
        %7178 = vmatpush1.msra.mxu0 %v7152
        %7179 = vmatprep.subr.mxu0 0.0
        %7180 = vmatpush1.msra.mxu0 %v7151
        %7181 = vmatprep.subr.mxu0 0.0
        %7182 = vmatpush1.msra.mxu0 %v7150
        %7183 = vmatprep.subr.mxu0 0.0
        %7184 = vmatpush1.msra.mxu0 %v7149
        %7185 = vmatprep.subr.mxu0 0.0
        %7186 = vmatpush1.msra.mxu0 %v7148
        %7187 = vmatprep.subr.mxu0 0.0
        %7188 = vmatpush1.msra.mxu0 %v7147
        %7189 = vmatprep.subr.mxu0 0.0
        %7190 = vmatpush1.msra.mxu0 %v7146
        %7191 = vmatprep.subr.mxu0 0.0
        %7192 = vmatpush1.msra.mxu0 %v7145
        %7193 = vmatprep.subr.mxu0 0.0
        %7194 = vmatpush2.msra.mxu0 0.0
        %7195 = vmatprep.subr.mxu0 0.0
        %7196 = vmatpush2.msra.mxu0 0.0
        %7197 = vmatprep.subr.mxu0 0.0
        %7198 = vmatpush2.msra.mxu0 0.0
        %7199 = vmatprep.subr.mxu0 0.0
        %7200 = vmatpush2.msra.mxu0 0.0
        %7201 = vmatprep.subr.mxu0 0.0
        %7202 = vmatpush2.msra.mxu0 0.0
        %7203 = vmatprep.subr.mxu0 0.0
        %7204 = vmatpush2.msra.mxu0 0.0
        %7205 = vmatprep.subr.mxu0 0.0
        %7206 = vmatpush2.msra.mxu0 0.0
        %7207 = vmatprep.subr.mxu0 0.0
        %7208 = vmatpush2.msra.mxu0 0.0
        %7209 = vmatprep.subr.mxu0 0.0
        %7210 = vmatpush2.msra.mxu0 0.0
        %7211 = vmatprep.subr.mxu0 0.0
        %7212 = vmatpush2.msra.mxu0 0.0
        %7213 = vmatprep.subr.mxu0 0.0
        %7214 = vmatpush2.msra.mxu0 0.0
        %7215 = vmatprep.subr.mxu0 0.0
        %7216 = vmatpush2.msra.mxu0 0.0
        %7217 = vmatprep.subr.mxu0 0.0
        %7218 = vmatpush2.msra.mxu0 0.0
        %7219 = vmatprep.subr.mxu0 0.0
        %7220 = vmatpush2.msra.mxu0 0.0
        %7221 = vmatprep.subr.mxu0 0.0
        %7222 = vmatpush2.msra.mxu0 0.0
        %7223 = vmatprep.subr.mxu0 0.0
        %7224 = vmatpush2.msra.mxu0 0.0
        %7225 = vmatprep.mubr.f32.mxu0 0.0
        %7226 = vmatmul.mubr.f32.gmra.mxu0 %v7144
        %v7227 = vpop.f32.mrf.mxu0
        %v7228 = vadd.f32 0.0, %v7227
        %v7229 = vpop.f32.mrf.mxu0
        %7230 = vdwg.mxu0
        %s7231 = scalar_lea.vmem %s21, 128
        %v7232 = vld [vmem:[%s7231] sm:$0xff]
        %v7233 = vld [vmem:[%s7231 + $0x8] sm:$0xff]
        %v7234 = vld [vmem:[%s7231 + $0x10] sm:$0xff]
        %v7235 = vld [vmem:[%s7231 + $0x18] sm:$0xff]
        %v7236 = vld [vmem:[%s7231 + $0x20] sm:$0xff]
        %v7237 = vld [vmem:[%s7231 + $0x28] sm:$0xff]
        %v7238 = vld [vmem:[%s7231 + $0x30] sm:$0xff]
        %v7239 = vld [vmem:[%s7231 + $0x38] sm:$0xff]
        %v7240 = vld [vmem:[%s7231 + $0x40] sm:$0xff]
        %v7241 = vld [vmem:[%s7231 + $0x48] sm:$0xff]
        %v7242 = vld [vmem:[%s7231 + $0x50] sm:$0xff]
        %v7243 = vld [vmem:[%s7231 + $0x58] sm:$0xff]
        %v7244 = vld [vmem:[%s7231 + $0x60] sm:$0xff]
        %v7245 = vld [vmem:[%s7231 + $0x68] sm:$0xff]
        %v7246 = vld [vmem:[%s7231 + $0x70] sm:$0xff]
        %v7247 = vld [vmem:[%s7231 + $0x78] sm:$0xff]
        %7248 = vmatprep.subr.mxu0 0.0
        %7249 = vmatpush1.msra.mxu0 %v7247
        %7250 = vmatprep.subr.mxu0 0.0
        %7251 = vmatpush1.msra.mxu0 %v7246
        %7252 = vmatprep.subr.mxu0 0.0
        %7253 = vmatpush1.msra.mxu0 %v7245
        %7254 = vmatprep.subr.mxu0 0.0
        %7255 = vmatpush1.msra.mxu0 %v7244
        %7256 = vmatprep.subr.mxu0 0.0
        %7257 = vmatpush1.msra.mxu0 %v7243
        %7258 = vmatprep.subr.mxu0 0.0
        %7259 = vmatpush1.msra.mxu0 %v7242
        %7260 = vmatprep.subr.mxu0 0.0
        %7261 = vmatpush1.msra.mxu0 %v7241
        %7262 = vmatprep.subr.mxu0 0.0
        %7263 = vmatpush1.msra.mxu0 %v7240
        %7264 = vmatprep.subr.mxu0 0.0
        %7265 = vmatpush1.msra.mxu0 %v7239
        %7266 = vmatprep.subr.mxu0 0.0
        %7267 = vmatpush1.msra.mxu0 %v7238
        %7268 = vmatprep.subr.mxu0 0.0
        %7269 = vmatpush1.msra.mxu0 %v7237
        %7270 = vmatprep.subr.mxu0 0.0
        %7271 = vmatpush1.msra.mxu0 %v7236
        %7272 = vmatprep.subr.mxu0 0.0
        %7273 = vmatpush1.msra.mxu0 %v7235
        %7274 = vmatprep.subr.mxu0 0.0
        %7275 = vmatpush1.msra.mxu0 %v7234
        %7276 = vmatprep.subr.mxu0 0.0
        %7277 = vmatpush1.msra.mxu0 %v7233
        %7278 = vmatprep.subr.mxu0 0.0
        %7279 = vmatpush1.msra.mxu0 %v7232
        %7280 = vmatprep.subr.mxu0 0.0
        %7281 = vmatpush2.msra.mxu0 0.0
        %7282 = vmatprep.subr.mxu0 0.0
        %7283 = vmatpush2.msra.mxu0 0.0
        %7284 = vmatprep.subr.mxu0 0.0
        %7285 = vmatpush2.msra.mxu0 0.0
        %7286 = vmatprep.subr.mxu0 0.0
        %7287 = vmatpush2.msra.mxu0 0.0
        %7288 = vmatprep.subr.mxu0 0.0
        %7289 = vmatpush2.msra.mxu0 0.0
        %7290 = vmatprep.subr.mxu0 0.0
        %7291 = vmatpush2.msra.mxu0 0.0
        %7292 = vmatprep.subr.mxu0 0.0
        %7293 = vmatpush2.msra.mxu0 0.0
        %7294 = vmatprep.subr.mxu0 0.0
        %7295 = vmatpush2.msra.mxu0 0.0
        %7296 = vmatprep.subr.mxu0 0.0
        %7297 = vmatpush2.msra.mxu0 0.0
        %7298 = vmatprep.subr.mxu0 0.0
        %7299 = vmatpush2.msra.mxu0 0.0
        %7300 = vmatprep.subr.mxu0 0.0
        %7301 = vmatpush2.msra.mxu0 0.0
        %7302 = vmatprep.subr.mxu0 0.0
        %7303 = vmatpush2.msra.mxu0 0.0
        %7304 = vmatprep.subr.mxu0 0.0
        %7305 = vmatpush2.msra.mxu0 0.0
        %7306 = vmatprep.subr.mxu0 0.0
        %7307 = vmatpush2.msra.mxu0 0.0
        %7308 = vmatprep.subr.mxu0 0.0
        %7309 = vmatpush2.msra.mxu0 0.0
        %7310 = vmatprep.subr.mxu0 0.0
        %7311 = vmatpush2.msra.mxu0 0.0
        %7312 = vmatprep.mubr.f32.mxu0 0.0
        %7313 = vmatmul.mubr.f32.gmra.mxu0 %v7144
        %v7314 = vpop.f32.mrf.mxu0
        %v7315 = vadd.f32 0.0, %v7314
        %v7316 = vpop.f32.mrf.mxu0
        %7317 = vdwg.mxu0
        %v7318 = vmax.f32 %v7228, %v7315
        %s7319 = scalar_lea.vmem %s21, 256
        %v7320 = vld [vmem:[%s7319] sm:$0xff]
        %v7321 = vld [vmem:[%s7319 + $0x8] sm:$0xff]
        %v7322 = vld [vmem:[%s7319 + $0x10] sm:$0xff]
        %v7323 = vld [vmem:[%s7319 + $0x18] sm:$0xff]
        %v7324 = vld [vmem:[%s7319 + $0x20] sm:$0xff]
        %v7325 = vld [vmem:[%s7319 + $0x28] sm:$0xff]
        %v7326 = vld [vmem:[%s7319 + $0x30] sm:$0xff]
        %v7327 = vld [vmem:[%s7319 + $0x38] sm:$0xff]
        %v7328 = vld [vmem:[%s7319 + $0x40] sm:$0xff]
        %v7329 = vld [vmem:[%s7319 + $0x48] sm:$0xff]
        %v7330 = vld [vmem:[%s7319 + $0x50] sm:$0xff]
        %v7331 = vld [vmem:[%s7319 + $0x58] sm:$0xff]
        %v7332 = vld [vmem:[%s7319 + $0x60] sm:$0xff]
        %v7333 = vld [vmem:[%s7319 + $0x68] sm:$0xff]
        %v7334 = vld [vmem:[%s7319 + $0x70] sm:$0xff]
        %v7335 = vld [vmem:[%s7319 + $0x78] sm:$0xff]
        %7336 = vmatprep.subr.mxu0 0.0
        %7337 = vmatpush1.msra.mxu0 %v7335
        %7338 = vmatprep.subr.mxu0 0.0
        %7339 = vmatpush1.msra.mxu0 %v7334
        %7340 = vmatprep.subr.mxu0 0.0
        %7341 = vmatpush1.msra.mxu0 %v7333
        %7342 = vmatprep.subr.mxu0 0.0
        %7343 = vmatpush1.msra.mxu0 %v7332
        %7344 = vmatprep.subr.mxu0 0.0
        %7345 = vmatpush1.msra.mxu0 %v7331
        %7346 = vmatprep.subr.mxu0 0.0
        %7347 = vmatpush1.msra.mxu0 %v7330
        %7348 = vmatprep.subr.mxu0 0.0
        %7349 = vmatpush1.msra.mxu0 %v7329
        %7350 = vmatprep.subr.mxu0 0.0
        %7351 = vmatpush1.msra.mxu0 %v7328
        %7352 = vmatprep.subr.mxu0 0.0
        %7353 = vmatpush1.msra.mxu0 %v7327
        %7354 = vmatprep.subr.mxu0 0.0
        %7355 = vmatpush1.msra.mxu0 %v7326
        %7356 = vmatprep.subr.mxu0 0.0
        %7357 = vmatpush1.msra.mxu0 %v7325
        %7358 = vmatprep.subr.mxu0 0.0
        %7359 = vmatpush1.msra.mxu0 %v7324
        %7360 = vmatprep.subr.mxu0 0.0
        %7361 = vmatpush1.msra.mxu0 %v7323
        %7362 = vmatprep.subr.mxu0 0.0
        %7363 = vmatpush1.msra.mxu0 %v7322
        %7364 = vmatprep.subr.mxu0 0.0
        %7365 = vmatpush1.msra.mxu0 %v7321
        %7366 = vmatprep.subr.mxu0 0.0
        %7367 = vmatpush1.msra.mxu0 %v7320
        %7368 = vmatprep.subr.mxu0 0.0
        %7369 = vmatpush2.msra.mxu0 0.0
        %7370 = vmatprep.subr.mxu0 0.0
        %7371 = vmatpush2.msra.mxu0 0.0
        %7372 = vmatprep.subr.mxu0 0.0
        %7373 = vmatpush2.msra.mxu0 0.0
        %7374 = vmatprep.subr.mxu0 0.0
        %7375 = vmatpush2.msra.mxu0 0.0
        %7376 = vmatprep.subr.mxu0 0.0
        %7377 = vmatpush2.msra.mxu0 0.0
        %7378 = vmatprep.subr.mxu0 0.0
        %7379 = vmatpush2.msra.mxu0 0.0
        %7380 = vmatprep.subr.mxu0 0.0
        %7381 = vmatpush2.msra.mxu0 0.0
        %7382 = vmatprep.subr.mxu0 0.0
        %7383 = vmatpush2.msra.mxu0 0.0
        %7384 = vmatprep.subr.mxu0 0.0
        %7385 = vmatpush2.msra.mxu0 0.0
        %7386 = vmatprep.subr.mxu0 0.0
        %7387 = vmatpush2.msra.mxu0 0.0
        %7388 = vmatprep.subr.mxu0 0.0
        %7389 = vmatpush2.msra.mxu0 0.0
        %7390 = vmatprep.subr.mxu0 0.0
        %7391 = vmatpush2.msra.mxu0 0.0
        %7392 = vmatprep.subr.mxu0 0.0
        %7393 = vmatpush2.msra.mxu0 0.0
        %7394 = vmatprep.subr.mxu0 0.0
        %7395 = vmatpush2.msra.mxu0 0.0
        %7396 = vmatprep.subr.mxu0 0.0
        %7397 = vmatpush2.msra.mxu0 0.0
        %7398 = vmatprep.subr.mxu0 0.0
        %7399 = vmatpush2.msra.mxu0 0.0
        %7400 = vmatprep.mubr.f32.mxu0 0.0
        %7401 = vmatmul.mubr.f32.gmra.mxu0 %v7144
        %v7402 = vpop.f32.mrf.mxu0
        %v7403 = vadd.f32 0.0, %v7402
        %v7404 = vpop.f32.mrf.mxu0
        %7405 = vdwg.mxu0
        %v7406 = vmax.f32 %v7318, %v7403
        %v7407 = vld [vmem:[#allocation30] sm:$0x3]
        %s7408 = scalar_lea.vmem [#allocation30], 2
        %v7409 = vld [vmem:[%s7408] sm:$0x3]
        %v7410 = vmax.f32 %v7406, 0.0
        %v7411 = vld [vmem:[#allocation33] sm:$0x1]
        %vm7412 = vcmask 15360
        %v7414 = vsel %vm7412, %v7407, 0
        %vm7416 = vcmask 1041408
        %v7418 = vsel %vm7416, %v7410, 0
        %7420 = vmatprep.subr.mxu0 0.0
        %7421 = vmatpush1.msra.mxu0 0.0
        %7422 = vmatprep.subr.mxu0 0.0
        %7423 = vmatpush1.msra.mxu0 0.0
        %7424 = vmatprep.subr.mxu0 0.0
        %7425 = vmatpush1.msra.mxu0 0.0
        %7426 = vmatprep.subr.mxu0 0.0
        %7427 = vmatpush1.msra.mxu0 0.0
        %7428 = vmatprep.subr.mxu0 0.0
        %7429 = vmatpush1.msra.mxu0 0.0
        %7430 = vmatprep.subr.mxu0 0.0
        %7431 = vmatpush1.msra.mxu0 0.0
        %7432 = vmatprep.subr.mxu0 0.0
        %7433 = vmatpush1.msra.mxu0 0.0
        %7434 = vmatprep.subr.mxu0 0.0
        %7435 = vmatpush1.msra.mxu0 0.0
        %7436 = vmatprep.subr.mxu0 0.0
        %7437 = vmatpush1.msra.mxu0 0.0
        %7438 = vmatprep.subr.mxu0 0.0
        %7439 = vmatpush1.msra.mxu0 0.0
        %7440 = vmatprep.subr.mxu0 0.0
        %7441 = vmatpush1.msra.mxu0 0.0
        %7442 = vmatprep.subr.mxu0 0.0
        %7443 = vmatpush1.msra.mxu0 0.0
        %7444 = vmatprep.subr.mxu0 0.0
        %7445 = vmatpush1.msra.mxu0 0.0
        %7446 = vmatprep.subr.mxu0 0.0
        %7447 = vmatpush1.msra.mxu0 0.0
        %7448 = vmatprep.subr.mxu0 0.0
        %7449 = vmatpush1.msra.mxu0 0.0
        %7450 = vmatprep.subr.mxu0 0.0
        %7451 = vmatpush1.msra.mxu0 %v7418
        %7452 = vmatprep.subr.mxu0 0.0
        %7453 = vmatpush2.msra.mxu0 0.0
        %7454 = vmatprep.subr.mxu0 0.0
        %7455 = vmatpush2.msra.mxu0 0.0
        %7456 = vmatprep.subr.mxu0 0.0
        %7457 = vmatpush2.msra.mxu0 0.0
        %7458 = vmatprep.subr.mxu0 0.0
        %7459 = vmatpush2.msra.mxu0 0.0
        %7460 = vmatprep.subr.mxu0 0.0
        %7461 = vmatpush2.msra.mxu0 0.0
        %7462 = vmatprep.subr.mxu0 0.0
        %7463 = vmatpush2.msra.mxu0 0.0
        %7464 = vmatprep.subr.mxu0 0.0
        %7465 = vmatpush2.msra.mxu0 0.0
        %7466 = vmatprep.subr.mxu0 0.0
        %7467 = vmatpush2.msra.mxu0 0.0
        %7468 = vmatprep.subr.mxu0 0.0
        %7469 = vmatpush2.msra.mxu0 0.0
        %7470 = vmatprep.subr.mxu0 0.0
        %7471 = vmatpush2.msra.mxu0 0.0
        %7472 = vmatprep.subr.mxu0 0.0
        %7473 = vmatpush2.msra.mxu0 0.0
        %7474 = vmatprep.subr.mxu0 0.0
        %7475 = vmatpush2.msra.mxu0 0.0
        %7476 = vmatprep.subr.mxu0 0.0
        %7477 = vmatpush2.msra.mxu0 0.0
        %7478 = vmatprep.subr.mxu0 0.0
        %7479 = vmatpush2.msra.mxu0 0.0
        %7480 = vmatprep.subr.mxu0 0.0
        %7481 = vmatpush2.msra.mxu0 0.0
        %7482 = vmatprep.subr.mxu0 0.0
        %7483 = vmatpush2.msra.mxu0 0.0
        %7484 = vmatprep.mubr.f32.mxu0 0.0
        %7485 = vmatmul.mubr.f32.gmra.mxu0 %v7414
        %v7486 = vpop.f32.mrf.mxu0
        %v7487 = vadd.f32 0.0, %v7486
        %v7488 = vpop.f32.mrf.mxu0
        %7489 = vdwg.mxu0
        %v7491 = vsel %vm7412, %v7409, 0
        %7493 = vmatprep.subr.mxu0 0.0
        %7494 = vmatpush1.msra.mxu0 0.0
        %7495 = vmatprep.subr.mxu0 0.0
        %7496 = vmatpush1.msra.mxu0 0.0
        %7497 = vmatprep.subr.mxu0 0.0
        %7498 = vmatpush1.msra.mxu0 0.0
        %7499 = vmatprep.subr.mxu0 0.0
        %7500 = vmatpush1.msra.mxu0 0.0
        %7501 = vmatprep.subr.mxu0 0.0
        %7502 = vmatpush1.msra.mxu0 0.0
        %7503 = vmatprep.subr.mxu0 0.0
        %7504 = vmatpush1.msra.mxu0 0.0
        %7505 = vmatprep.subr.mxu0 0.0
        %7506 = vmatpush1.msra.mxu0 0.0
        %7507 = vmatprep.subr.mxu0 0.0
        %7508 = vmatpush1.msra.mxu0 0.0
        %7509 = vmatprep.subr.mxu0 0.0
        %7510 = vmatpush1.msra.mxu0 0.0
        %7511 = vmatprep.subr.mxu0 0.0
        %7512 = vmatpush1.msra.mxu0 0.0
        %7513 = vmatprep.subr.mxu0 0.0
        %7514 = vmatpush1.msra.mxu0 0.0
        %7515 = vmatprep.subr.mxu0 0.0
        %7516 = vmatpush1.msra.mxu0 0.0
        %7517 = vmatprep.subr.mxu0 0.0
        %7518 = vmatpush1.msra.mxu0 0.0
        %7519 = vmatprep.subr.mxu0 0.0
        %7520 = vmatpush1.msra.mxu0 0.0
        %7521 = vmatprep.subr.mxu0 0.0
        %7522 = vmatpush1.msra.mxu0 0.0
        %7523 = vmatprep.subr.mxu0 0.0
        %7524 = vmatpush1.msra.mxu0 %v7418
        %7525 = vmatprep.subr.mxu0 0.0
        %7526 = vmatpush2.msra.mxu0 0.0
        %7527 = vmatprep.subr.mxu0 0.0
        %7528 = vmatpush2.msra.mxu0 0.0
        %7529 = vmatprep.subr.mxu0 0.0
        %7530 = vmatpush2.msra.mxu0 0.0
        %7531 = vmatprep.subr.mxu0 0.0
        %7532 = vmatpush2.msra.mxu0 0.0
        %7533 = vmatprep.subr.mxu0 0.0
        %7534 = vmatpush2.msra.mxu0 0.0
        %7535 = vmatprep.subr.mxu0 0.0
        %7536 = vmatpush2.msra.mxu0 0.0
        %7537 = vmatprep.subr.mxu0 0.0
        %7538 = vmatpush2.msra.mxu0 0.0
        %7539 = vmatprep.subr.mxu0 0.0
        %7540 = vmatpush2.msra.mxu0 0.0
        %7541 = vmatprep.subr.mxu0 0.0
        %7542 = vmatpush2.msra.mxu0 0.0
        %7543 = vmatprep.subr.mxu0 0.0
        %7544 = vmatpush2.msra.mxu0 0.0
        %7545 = vmatprep.subr.mxu0 0.0
        %7546 = vmatpush2.msra.mxu0 0.0
        %7547 = vmatprep.subr.mxu0 0.0
        %7548 = vmatpush2.msra.mxu0 0.0
        %7549 = vmatprep.subr.mxu0 0.0
        %7550 = vmatpush2.msra.mxu0 0.0
        %7551 = vmatprep.subr.mxu0 0.0
        %7552 = vmatpush2.msra.mxu0 0.0
        %7553 = vmatprep.subr.mxu0 0.0
        %7554 = vmatpush2.msra.mxu0 0.0
        %7555 = vmatprep.subr.mxu0 0.0
        %7556 = vmatpush2.msra.mxu0 0.0
        %7557 = vmatprep.mubr.f32.mxu0 0.0
        %7558 = vmatmul.mubr.f32.gmra.mxu0 %v7491
        %v7559 = vpop.f32.mrf.mxu0
        %v7560 = vadd.f32 0.0, %v7559
        %v7561 = vpop.f32.mrf.mxu0
        %7562 = vdwg.mxu0
        %v7563 = vld [vmem:[#allocation31] sm:$0xff]
        %v7564 = vld [vmem:[#allocation31 + $0x8] sm:$0xff]
        %v7565 = vld [vmem:[#allocation31 + $0x10] sm:$0xff]
        %v7566 = vld [vmem:[#allocation31 + $0x18] sm:$0xff]
        %v7567 = vld [vmem:[#allocation31 + $0x20] sm:$0xff]
        %v7568 = vld [vmem:[#allocation31 + $0x28] sm:$0xff]
        %v7569 = vld [vmem:[#allocation31 + $0x30] sm:$0xff]
        %v7570 = vld [vmem:[#allocation31 + $0x38] sm:$0xff]
        %s7571 = scalar_lea.vmem [#allocation31], 64
        %v7572 = vld [vmem:[%s7571] sm:$0xff]
        %v7573 = vld [vmem:[%s7571 + $0x8] sm:$0xff]
        %v7574 = vld [vmem:[%s7571 + $0x10] sm:$0xff]
        %v7575 = vld [vmem:[%s7571 + $0x18] sm:$0xff]
        %v7576 = vld [vmem:[%s7571 + $0x20] sm:$0xff]
        %v7577 = vld [vmem:[%s7571 + $0x28] sm:$0xff]
        %v7578 = vld [vmem:[%s7571 + $0x30] sm:$0xff]
        %v7579 = vld [vmem:[%s7571 + $0x38] sm:$0xff]
        %v7580 = vsel %vm1322, %v7410, 0
        %7582 = vmatprep.subr.mxu0 0.0
        %7583 = vmatpush1.msra.mxu0 0.0
        %7584 = vmatprep.subr.mxu0 0.0
        %7585 = vmatpush1.msra.mxu0 0.0
        %7586 = vmatprep.subr.mxu0 0.0
        %7587 = vmatpush1.msra.mxu0 0.0
        %7588 = vmatprep.subr.mxu0 0.0
        %7589 = vmatpush1.msra.mxu0 0.0
        %7590 = vmatprep.subr.mxu0 0.0
        %7591 = vmatpush1.msra.mxu0 0.0
        %7592 = vmatprep.subr.mxu0 0.0
        %7593 = vmatpush1.msra.mxu0 0.0
        %7594 = vmatprep.subr.mxu0 0.0
        %7595 = vmatpush1.msra.mxu0 0.0
        %7596 = vmatprep.subr.mxu0 0.0
        %7597 = vmatpush1.msra.mxu0 0.0
        %7598 = vmatprep.subr.mxu0 0.0
        %7599 = vmatpush1.msra.mxu0 %v7579
        %7600 = vmatprep.subr.mxu0 0.0
        %7601 = vmatpush1.msra.mxu0 %v7578
        %7602 = vmatprep.subr.mxu0 0.0
        %7603 = vmatpush1.msra.mxu0 %v7577
        %7604 = vmatprep.subr.mxu0 0.0
        %7605 = vmatpush1.msra.mxu0 %v7576
        %7606 = vmatprep.subr.mxu0 0.0
        %7607 = vmatpush1.msra.mxu0 %v7575
        %7608 = vmatprep.subr.mxu0 0.0
        %7609 = vmatpush1.msra.mxu0 %v7574
        %7610 = vmatprep.subr.mxu0 0.0
        %7611 = vmatpush1.msra.mxu0 %v7573
        %7612 = vmatprep.subr.mxu0 0.0
        %7613 = vmatpush1.msra.mxu0 %v7572
        %7614 = vmatprep.subr.mxu0 0.0
        %7615 = vmatpush2.msra.mxu0 0.0
        %7616 = vmatprep.subr.mxu0 0.0
        %7617 = vmatpush2.msra.mxu0 0.0
        %7618 = vmatprep.subr.mxu0 0.0
        %7619 = vmatpush2.msra.mxu0 0.0
        %7620 = vmatprep.subr.mxu0 0.0
        %7621 = vmatpush2.msra.mxu0 0.0
        %7622 = vmatprep.subr.mxu0 0.0
        %7623 = vmatpush2.msra.mxu0 0.0
        %7624 = vmatprep.subr.mxu0 0.0
        %7625 = vmatpush2.msra.mxu0 0.0
        %7626 = vmatprep.subr.mxu0 0.0
        %7627 = vmatpush2.msra.mxu0 0.0
        %7628 = vmatprep.subr.mxu0 0.0
        %7629 = vmatpush2.msra.mxu0 0.0
        %7630 = vmatprep.subr.mxu0 0.0
        %7631 = vmatpush2.msra.mxu0 0.0
        %7632 = vmatprep.subr.mxu0 0.0
        %7633 = vmatpush2.msra.mxu0 0.0
        %7634 = vmatprep.subr.mxu0 0.0
        %7635 = vmatpush2.msra.mxu0 0.0
        %7636 = vmatprep.subr.mxu0 0.0
        %7637 = vmatpush2.msra.mxu0 0.0
        %7638 = vmatprep.subr.mxu0 0.0
        %7639 = vmatpush2.msra.mxu0 0.0
        %7640 = vmatprep.subr.mxu0 0.0
        %7641 = vmatpush2.msra.mxu0 0.0
        %7642 = vmatprep.subr.mxu0 0.0
        %7643 = vmatpush2.msra.mxu0 0.0
        %7644 = vmatprep.subr.mxu0 0.0
        %7645 = vmatpush2.msra.mxu0 0.0
        %7646 = vmatprep.mubr.f32.mxu0 0.0
        %7647 = vmatmul.mubr.f32.gmra.mxu0 %v7580
        %v7648 = vpop.f32.mrf.mxu0
        %v7649 = vadd.f32 0.0, %v7648
        %v7650 = vpop.f32.mrf.mxu0
        %7651 = vdwg.mxu0
        %v7653 = vsel %vm1322, %v7487, 0
        %7655 = vmatprep.subr.mxu0 0.0
        %7656 = vmatpush1.msra.mxu0 0.0
        %7657 = vmatprep.subr.mxu0 0.0
        %7658 = vmatpush1.msra.mxu0 0.0
        %7659 = vmatprep.subr.mxu0 0.0
        %7660 = vmatpush1.msra.mxu0 0.0
        %7661 = vmatprep.subr.mxu0 0.0
        %7662 = vmatpush1.msra.mxu0 0.0
        %7663 = vmatprep.subr.mxu0 0.0
        %7664 = vmatpush1.msra.mxu0 0.0
        %7665 = vmatprep.subr.mxu0 0.0
        %7666 = vmatpush1.msra.mxu0 0.0
        %7667 = vmatprep.subr.mxu0 0.0
        %7668 = vmatpush1.msra.mxu0 0.0
        %7669 = vmatprep.subr.mxu0 0.0
        %7670 = vmatpush1.msra.mxu0 0.0
        %7671 = vmatprep.subr.mxu0 0.0
        %7672 = vmatpush1.msra.mxu0 %v7570
        %7673 = vmatprep.subr.mxu0 0.0
        %7674 = vmatpush1.msra.mxu0 %v7569
        %7675 = vmatprep.subr.mxu0 0.0
        %7676 = vmatpush1.msra.mxu0 %v7568
        %7677 = vmatprep.subr.mxu0 0.0
        %7678 = vmatpush1.msra.mxu0 %v7567
        %7679 = vmatprep.subr.mxu0 0.0
        %7680 = vmatpush1.msra.mxu0 %v7566
        %7681 = vmatprep.subr.mxu0 0.0
        %7682 = vmatpush1.msra.mxu0 %v7565
        %7683 = vmatprep.subr.mxu0 0.0
        %7684 = vmatpush1.msra.mxu0 %v7564
        %7685 = vmatprep.subr.mxu0 0.0
        %7686 = vmatpush1.msra.mxu0 %v7563
        %7687 = vmatprep.subr.mxu0 0.0
        %7688 = vmatpush2.msra.mxu0 0.0
        %7689 = vmatprep.subr.mxu0 0.0
        %7690 = vmatpush2.msra.mxu0 0.0
        %7691 = vmatprep.subr.mxu0 0.0
        %7692 = vmatpush2.msra.mxu0 0.0
        %7693 = vmatprep.subr.mxu0 0.0
        %7694 = vmatpush2.msra.mxu0 0.0
        %7695 = vmatprep.subr.mxu0 0.0
        %7696 = vmatpush2.msra.mxu0 0.0
        %7697 = vmatprep.subr.mxu0 0.0
        %7698 = vmatpush2.msra.mxu0 0.0
        %7699 = vmatprep.subr.mxu0 0.0
        %7700 = vmatpush2.msra.mxu0 0.0
        %7701 = vmatprep.subr.mxu0 0.0
        %7702 = vmatpush2.msra.mxu0 0.0
        %7703 = vmatprep.subr.mxu0 0.0
        %7704 = vmatpush2.msra.mxu0 0.0
        %7705 = vmatprep.subr.mxu0 0.0
        %7706 = vmatpush2.msra.mxu0 0.0
        %7707 = vmatprep.subr.mxu0 0.0
        %7708 = vmatpush2.msra.mxu0 0.0
        %7709 = vmatprep.subr.mxu0 0.0
        %7710 = vmatpush2.msra.mxu0 0.0
        %7711 = vmatprep.subr.mxu0 0.0
        %7712 = vmatpush2.msra.mxu0 0.0
        %7713 = vmatprep.subr.mxu0 0.0
        %7714 = vmatpush2.msra.mxu0 0.0
        %7715 = vmatprep.subr.mxu0 0.0
        %7716 = vmatpush2.msra.mxu0 0.0
        %7717 = vmatprep.subr.mxu0 0.0
        %7718 = vmatpush2.msra.mxu0 0.0
        %7719 = vmatprep.mubr.f32.mxu0 0.0
        %7720 = vmatmul.mubr.f32.gmra.mxu0 %v7653
        %v7721 = vpop.f32.mrf.mxu0
        %v7722 = vadd.f32 %v7649, %v7721
        %v7723 = vpop.f32.mrf.mxu0
        %7724 = vdwg.mxu0
        %s7725 = scalar_lea.vmem [#allocation31], 128
        %v7726 = vld [vmem:[%s7725] sm:$0xff]
        %v7727 = vld [vmem:[%s7725 + $0x8] sm:$0xff]
        %v7728 = vld [vmem:[%s7725 + $0x10] sm:$0xff]
        %v7729 = vld [vmem:[%s7725 + $0x18] sm:$0xff]
        %v7730 = vld [vmem:[%s7725 + $0x20] sm:$0xff]
        %v7731 = vld [vmem:[%s7725 + $0x28] sm:$0xff]
        %v7732 = vld [vmem:[%s7725 + $0x30] sm:$0xff]
        %v7733 = vld [vmem:[%s7725 + $0x38] sm:$0xff]
        %v7735 = vsel %vm1322, %v7560, 0
        %7737 = vmatprep.subr.mxu0 0.0
        %7738 = vmatpush1.msra.mxu0 0.0
        %7739 = vmatprep.subr.mxu0 0.0
        %7740 = vmatpush1.msra.mxu0 0.0
        %7741 = vmatprep.subr.mxu0 0.0
        %7742 = vmatpush1.msra.mxu0 0.0
        %7743 = vmatprep.subr.mxu0 0.0
        %7744 = vmatpush1.msra.mxu0 0.0
        %7745 = vmatprep.subr.mxu0 0.0
        %7746 = vmatpush1.msra.mxu0 0.0
        %7747 = vmatprep.subr.mxu0 0.0
        %7748 = vmatpush1.msra.mxu0 0.0
        %7749 = vmatprep.subr.mxu0 0.0
        %7750 = vmatpush1.msra.mxu0 0.0
        %7751 = vmatprep.subr.mxu0 0.0
        %7752 = vmatpush1.msra.mxu0 0.0
        %7753 = vmatprep.subr.mxu0 0.0
        %7754 = vmatpush1.msra.mxu0 %v7733
        %7755 = vmatprep.subr.mxu0 0.0
        %7756 = vmatpush1.msra.mxu0 %v7732
        %7757 = vmatprep.subr.mxu0 0.0
        %7758 = vmatpush1.msra.mxu0 %v7731
        %7759 = vmatprep.subr.mxu0 0.0
        %7760 = vmatpush1.msra.mxu0 %v7730
        %7761 = vmatprep.subr.mxu0 0.0
        %7762 = vmatpush1.msra.mxu0 %v7729
        %7763 = vmatprep.subr.mxu0 0.0
        %7764 = vmatpush1.msra.mxu0 %v7728
        %7765 = vmatprep.subr.mxu0 0.0
        %7766 = vmatpush1.msra.mxu0 %v7727
        %7767 = vmatprep.subr.mxu0 0.0
        %7768 = vmatpush1.msra.mxu0 %v7726
        %7769 = vmatprep.subr.mxu0 0.0
        %7770 = vmatpush2.msra.mxu0 0.0
        %7771 = vmatprep.subr.mxu0 0.0
        %7772 = vmatpush2.msra.mxu0 0.0
        %7773 = vmatprep.subr.mxu0 0.0
        %7774 = vmatpush2.msra.mxu0 0.0
        %7775 = vmatprep.subr.mxu0 0.0
        %7776 = vmatpush2.msra.mxu0 0.0
        %7777 = vmatprep.subr.mxu0 0.0
        %7778 = vmatpush2.msra.mxu0 0.0
        %7779 = vmatprep.subr.mxu0 0.0
        %7780 = vmatpush2.msra.mxu0 0.0
        %7781 = vmatprep.subr.mxu0 0.0
        %7782 = vmatpush2.msra.mxu0 0.0
        %7783 = vmatprep.subr.mxu0 0.0
        %7784 = vmatpush2.msra.mxu0 0.0
        %7785 = vmatprep.subr.mxu0 0.0
        %7786 = vmatpush2.msra.mxu0 0.0
        %7787 = vmatprep.subr.mxu0 0.0
        %7788 = vmatpush2.msra.mxu0 0.0
        %7789 = vmatprep.subr.mxu0 0.0
        %7790 = vmatpush2.msra.mxu0 0.0
        %7791 = vmatprep.subr.mxu0 0.0
        %7792 = vmatpush2.msra.mxu0 0.0
        %7793 = vmatprep.subr.mxu0 0.0
        %7794 = vmatpush2.msra.mxu0 0.0
        %7795 = vmatprep.subr.mxu0 0.0
        %7796 = vmatpush2.msra.mxu0 0.0
        %7797 = vmatprep.subr.mxu0 0.0
        %7798 = vmatpush2.msra.mxu0 0.0
        %7799 = vmatprep.subr.mxu0 0.0
        %7800 = vmatpush2.msra.mxu0 0.0
        %7801 = vmatprep.mubr.f32.mxu0 0.0
        %7802 = vmatmul.mubr.f32.gmra.mxu0 %v7735
        %v7803 = vpop.f32.mrf.mxu0
        %v7804 = vadd.f32 0.0, %v7803
        %v7805 = vpop.f32.mrf.mxu0
        %7806 = vdwg.mxu0
        %v7807 = vadd.f32 %v7722, %v7804
        %v7809 = vlaneseq
        %v7810 = vshrl.u32 %v7809, 7
        %v7811 = vsub.s32 0, %v7810
        %v7812 = vrot.slane %v7411, %v7811
        %v7814 = vadd.f32 %v7807, %v7812
        %v7815 = vmax.f32 %v7814, 0.0
        %s7816 = scalar_lea.vmem [#allocation33], 1
        %v7817 = vld [vmem:[%s7816] sm:$0x1]
        %v7819 = vsel %vm7416, %v7815, 0
        %7821 = vmatprep.subr.mxu0 0.0
        %7822 = vmatpush1.msra.mxu0 0.0
        %7823 = vmatprep.subr.mxu0 0.0
        %7824 = vmatpush1.msra.mxu0 0.0
        %7825 = vmatprep.subr.mxu0 0.0
        %7826 = vmatpush1.msra.mxu0 0.0
        %7827 = vmatprep.subr.mxu0 0.0
        %7828 = vmatpush1.msra.mxu0 0.0
        %7829 = vmatprep.subr.mxu0 0.0
        %7830 = vmatpush1.msra.mxu0 0.0
        %7831 = vmatprep.subr.mxu0 0.0
        %7832 = vmatpush1.msra.mxu0 0.0
        %7833 = vmatprep.subr.mxu0 0.0
        %7834 = vmatpush1.msra.mxu0 0.0
        %7835 = vmatprep.subr.mxu0 0.0
        %7836 = vmatpush1.msra.mxu0 0.0
        %7837 = vmatprep.subr.mxu0 0.0
        %7838 = vmatpush1.msra.mxu0 0.0
        %7839 = vmatprep.subr.mxu0 0.0
        %7840 = vmatpush1.msra.mxu0 0.0
        %7841 = vmatprep.subr.mxu0 0.0
        %7842 = vmatpush1.msra.mxu0 0.0
        %7843 = vmatprep.subr.mxu0 0.0
        %7844 = vmatpush1.msra.mxu0 0.0
        %7845 = vmatprep.subr.mxu0 0.0
        %7846 = vmatpush1.msra.mxu0 0.0
        %7847 = vmatprep.subr.mxu0 0.0
        %7848 = vmatpush1.msra.mxu0 0.0
        %7849 = vmatprep.subr.mxu0 0.0
        %7850 = vmatpush1.msra.mxu0 0.0
        %7851 = vmatprep.subr.mxu0 0.0
        %7852 = vmatpush1.msra.mxu0 %v7819
        %7853 = vmatprep.subr.mxu0 0.0
        %7854 = vmatpush2.msra.mxu0 0.0
        %7855 = vmatprep.subr.mxu0 0.0
        %7856 = vmatpush2.msra.mxu0 0.0
        %7857 = vmatprep.subr.mxu0 0.0
        %7858 = vmatpush2.msra.mxu0 0.0
        %7859 = vmatprep.subr.mxu0 0.0
        %7860 = vmatpush2.msra.mxu0 0.0
        %7861 = vmatprep.subr.mxu0 0.0
        %7862 = vmatpush2.msra.mxu0 0.0
        %7863 = vmatprep.subr.mxu0 0.0
        %7864 = vmatpush2.msra.mxu0 0.0
        %7865 = vmatprep.subr.mxu0 0.0
        %7866 = vmatpush2.msra.mxu0 0.0
        %7867 = vmatprep.subr.mxu0 0.0
        %7868 = vmatpush2.msra.mxu0 0.0
        %7869 = vmatprep.subr.mxu0 0.0
        %7870 = vmatpush2.msra.mxu0 0.0
        %7871 = vmatprep.subr.mxu0 0.0
        %7872 = vmatpush2.msra.mxu0 0.0
        %7873 = vmatprep.subr.mxu0 0.0
        %7874 = vmatpush2.msra.mxu0 0.0
        %7875 = vmatprep.subr.mxu0 0.0
        %7876 = vmatpush2.msra.mxu0 0.0
        %7877 = vmatprep.subr.mxu0 0.0
        %7878 = vmatpush2.msra.mxu0 0.0
        %7879 = vmatprep.subr.mxu0 0.0
        %7880 = vmatpush2.msra.mxu0 0.0
        %7881 = vmatprep.subr.mxu0 0.0
        %7882 = vmatpush2.msra.mxu0 0.0
        %7883 = vmatprep.subr.mxu0 0.0
        %7884 = vmatpush2.msra.mxu0 0.0
        %7885 = vmatprep.mubr.f32.mxu0 0.0
        %7886 = vmatmul.mubr.f32.gmra.mxu0 %v7414
        %v7887 = vpop.f32.mrf.mxu0
        %v7888 = vadd.f32 0.0, %v7887
        %v7889 = vpop.f32.mrf.mxu0
        %7890 = vdwg.mxu0
        %7891 = vmatprep.subr.mxu0 0.0
        %7892 = vmatpush1.msra.mxu0 0.0
        %7893 = vmatprep.subr.mxu0 0.0
        %7894 = vmatpush1.msra.mxu0 0.0
        %7895 = vmatprep.subr.mxu0 0.0
        %7896 = vmatpush1.msra.mxu0 0.0
        %7897 = vmatprep.subr.mxu0 0.0
        %7898 = vmatpush1.msra.mxu0 0.0
        %7899 = vmatprep.subr.mxu0 0.0
        %7900 = vmatpush1.msra.mxu0 0.0
        %7901 = vmatprep.subr.mxu0 0.0
        %7902 = vmatpush1.msra.mxu0 0.0
        %7903 = vmatprep.subr.mxu0 0.0
        %7904 = vmatpush1.msra.mxu0 0.0
        %7905 = vmatprep.subr.mxu0 0.0
        %7906 = vmatpush1.msra.mxu0 0.0
        %7907 = vmatprep.subr.mxu0 0.0
        %7908 = vmatpush1.msra.mxu0 0.0
        %7909 = vmatprep.subr.mxu0 0.0
        %7910 = vmatpush1.msra.mxu0 0.0
        %7911 = vmatprep.subr.mxu0 0.0
        %7912 = vmatpush1.msra.mxu0 0.0
        %7913 = vmatprep.subr.mxu0 0.0
        %7914 = vmatpush1.msra.mxu0 0.0
        %7915 = vmatprep.subr.mxu0 0.0
        %7916 = vmatpush1.msra.mxu0 0.0
        %7917 = vmatprep.subr.mxu0 0.0
        %7918 = vmatpush1.msra.mxu0 0.0
        %7919 = vmatprep.subr.mxu0 0.0
        %7920 = vmatpush1.msra.mxu0 0.0
        %7921 = vmatprep.subr.mxu0 0.0
        %7922 = vmatpush1.msra.mxu0 %v7819
        %7923 = vmatprep.subr.mxu0 0.0
        %7924 = vmatpush2.msra.mxu0 0.0
        %7925 = vmatprep.subr.mxu0 0.0
        %7926 = vmatpush2.msra.mxu0 0.0
        %7927 = vmatprep.subr.mxu0 0.0
        %7928 = vmatpush2.msra.mxu0 0.0
        %7929 = vmatprep.subr.mxu0 0.0
        %7930 = vmatpush2.msra.mxu0 0.0
        %7931 = vmatprep.subr.mxu0 0.0
        %7932 = vmatpush2.msra.mxu0 0.0
        %7933 = vmatprep.subr.mxu0 0.0
        %7934 = vmatpush2.msra.mxu0 0.0
        %7935 = vmatprep.subr.mxu0 0.0
        %7936 = vmatpush2.msra.mxu0 0.0
        %7937 = vmatprep.subr.mxu0 0.0
        %7938 = vmatpush2.msra.mxu0 0.0
        %7939 = vmatprep.subr.mxu0 0.0
        %7940 = vmatpush2.msra.mxu0 0.0
        %7941 = vmatprep.subr.mxu0 0.0
        %7942 = vmatpush2.msra.mxu0 0.0
        %7943 = vmatprep.subr.mxu0 0.0
        %7944 = vmatpush2.msra.mxu0 0.0
        %7945 = vmatprep.subr.mxu0 0.0
        %7946 = vmatpush2.msra.mxu0 0.0
        %7947 = vmatprep.subr.mxu0 0.0
        %7948 = vmatpush2.msra.mxu0 0.0
        %7949 = vmatprep.subr.mxu0 0.0
        %7950 = vmatpush2.msra.mxu0 0.0
        %7951 = vmatprep.subr.mxu0 0.0
        %7952 = vmatpush2.msra.mxu0 0.0
        %7953 = vmatprep.subr.mxu0 0.0
        %7954 = vmatpush2.msra.mxu0 0.0
        %7955 = vmatprep.mubr.f32.mxu0 0.0
        %7956 = vmatmul.mubr.f32.gmra.mxu0 %v7491
        %v7957 = vpop.f32.mrf.mxu0
        %v7958 = vadd.f32 0.0, %v7957
        %v7959 = vpop.f32.mrf.mxu0
        %7960 = vdwg.mxu0
        %s7961 = scalar_lea.vmem [#allocation31], 192
        %v7962 = vld [vmem:[%s7961] sm:$0xff]
        %v7963 = vld [vmem:[%s7961 + $0x8] sm:$0xff]
        %v7964 = vld [vmem:[%s7961 + $0x10] sm:$0xff]
        %v7965 = vld [vmem:[%s7961 + $0x18] sm:$0xff]
        %v7966 = vld [vmem:[%s7961 + $0x20] sm:$0xff]
        %v7967 = vld [vmem:[%s7961 + $0x28] sm:$0xff]
        %v7968 = vld [vmem:[%s7961 + $0x30] sm:$0xff]
        %v7969 = vld [vmem:[%s7961 + $0x38] sm:$0xff]
        %s7970 = scalar_lea.vmem [#allocation31], 256
        %v7971 = vld [vmem:[%s7970] sm:$0xff]
        %v7972 = vld [vmem:[%s7970 + $0x8] sm:$0xff]
        %v7973 = vld [vmem:[%s7970 + $0x10] sm:$0xff]
        %v7974 = vld [vmem:[%s7970 + $0x18] sm:$0xff]
        %v7975 = vld [vmem:[%s7970 + $0x20] sm:$0xff]
        %v7976 = vld [vmem:[%s7970 + $0x28] sm:$0xff]
        %v7977 = vld [vmem:[%s7970 + $0x30] sm:$0xff]
        %v7978 = vld [vmem:[%s7970 + $0x38] sm:$0xff]
        %v7979 = vsel %vm1322, %v7815, 0
        %7981 = vmatprep.subr.mxu0 0.0
        %7982 = vmatpush1.msra.mxu0 0.0
        %7983 = vmatprep.subr.mxu0 0.0
        %7984 = vmatpush1.msra.mxu0 0.0
        %7985 = vmatprep.subr.mxu0 0.0
        %7986 = vmatpush1.msra.mxu0 0.0
        %7987 = vmatprep.subr.mxu0 0.0
        %7988 = vmatpush1.msra.mxu0 0.0
        %7989 = vmatprep.subr.mxu0 0.0
        %7990 = vmatpush1.msra.mxu0 0.0
        %7991 = vmatprep.subr.mxu0 0.0
        %7992 = vmatpush1.msra.mxu0 0.0
        %7993 = vmatprep.subr.mxu0 0.0
        %7994 = vmatpush1.msra.mxu0 0.0
        %7995 = vmatprep.subr.mxu0 0.0
        %7996 = vmatpush1.msra.mxu0 0.0
        %7997 = vmatprep.subr.mxu0 0.0
        %7998 = vmatpush1.msra.mxu0 %v7978
        %7999 = vmatprep.subr.mxu0 0.0
        %8000 = vmatpush1.msra.mxu0 %v7977
        %8001 = vmatprep.subr.mxu0 0.0
        %8002 = vmatpush1.msra.mxu0 %v7976
        %8003 = vmatprep.subr.mxu0 0.0
        %8004 = vmatpush1.msra.mxu0 %v7975
        %8005 = vmatprep.subr.mxu0 0.0
        %8006 = vmatpush1.msra.mxu0 %v7974
        %8007 = vmatprep.subr.mxu0 0.0
        %8008 = vmatpush1.msra.mxu0 %v7973
        %8009 = vmatprep.subr.mxu0 0.0
        %8010 = vmatpush1.msra.mxu0 %v7972
        %8011 = vmatprep.subr.mxu0 0.0
        %8012 = vmatpush1.msra.mxu0 %v7971
        %8013 = vmatprep.subr.mxu0 0.0
        %8014 = vmatpush2.msra.mxu0 0.0
        %8015 = vmatprep.subr.mxu0 0.0
        %8016 = vmatpush2.msra.mxu0 0.0
        %8017 = vmatprep.subr.mxu0 0.0
        %8018 = vmatpush2.msra.mxu0 0.0
        %8019 = vmatprep.subr.mxu0 0.0
        %8020 = vmatpush2.msra.mxu0 0.0
        %8021 = vmatprep.subr.mxu0 0.0
        %8022 = vmatpush2.msra.mxu0 0.0
        %8023 = vmatprep.subr.mxu0 0.0
        %8024 = vmatpush2.msra.mxu0 0.0
        %8025 = vmatprep.subr.mxu0 0.0
        %8026 = vmatpush2.msra.mxu0 0.0
        %8027 = vmatprep.subr.mxu0 0.0
        %8028 = vmatpush2.msra.mxu0 0.0
        %8029 = vmatprep.subr.mxu0 0.0
        %8030 = vmatpush2.msra.mxu0 0.0
        %8031 = vmatprep.subr.mxu0 0.0
        %8032 = vmatpush2.msra.mxu0 0.0
        %8033 = vmatprep.subr.mxu0 0.0
        %8034 = vmatpush2.msra.mxu0 0.0
        %8035 = vmatprep.subr.mxu0 0.0
        %8036 = vmatpush2.msra.mxu0 0.0
        %8037 = vmatprep.subr.mxu0 0.0
        %8038 = vmatpush2.msra.mxu0 0.0
        %8039 = vmatprep.subr.mxu0 0.0
        %8040 = vmatpush2.msra.mxu0 0.0
        %8041 = vmatprep.subr.mxu0 0.0
        %8042 = vmatpush2.msra.mxu0 0.0
        %8043 = vmatprep.subr.mxu0 0.0
        %8044 = vmatpush2.msra.mxu0 0.0
        %8045 = vmatprep.mubr.f32.mxu0 0.0
        %8046 = vmatmul.mubr.f32.gmra.mxu0 %v7979
        %v8047 = vpop.f32.mrf.mxu0
        %v8048 = vadd.f32 0.0, %v8047
        %v8049 = vpop.f32.mrf.mxu0
        %8050 = vdwg.mxu0
        %v8052 = vsel %vm1322, %v7888, 0
        %8054 = vmatprep.subr.mxu0 0.0
        %8055 = vmatpush1.msra.mxu0 0.0
        %8056 = vmatprep.subr.mxu0 0.0
        %8057 = vmatpush1.msra.mxu0 0.0
        %8058 = vmatprep.subr.mxu0 0.0
        %8059 = vmatpush1.msra.mxu0 0.0
        %8060 = vmatprep.subr.mxu0 0.0
        %8061 = vmatpush1.msra.mxu0 0.0
        %8062 = vmatprep.subr.mxu0 0.0
        %8063 = vmatpush1.msra.mxu0 0.0
        %8064 = vmatprep.subr.mxu0 0.0
        %8065 = vmatpush1.msra.mxu0 0.0
        %8066 = vmatprep.subr.mxu0 0.0
        %8067 = vmatpush1.msra.mxu0 0.0
        %8068 = vmatprep.subr.mxu0 0.0
        %8069 = vmatpush1.msra.mxu0 0.0
        %8070 = vmatprep.subr.mxu0 0.0
        %8071 = vmatpush1.msra.mxu0 %v7969
        %8072 = vmatprep.subr.mxu0 0.0
        %8073 = vmatpush1.msra.mxu0 %v7968
        %8074 = vmatprep.subr.mxu0 0.0
        %8075 = vmatpush1.msra.mxu0 %v7967
        %8076 = vmatprep.subr.mxu0 0.0
        %8077 = vmatpush1.msra.mxu0 %v7966
        %8078 = vmatprep.subr.mxu0 0.0
        %8079 = vmatpush1.msra.mxu0 %v7965
        %8080 = vmatprep.subr.mxu0 0.0
        %8081 = vmatpush1.msra.mxu0 %v7964
        %8082 = vmatprep.subr.mxu0 0.0
        %8083 = vmatpush1.msra.mxu0 %v7963
        %8084 = vmatprep.subr.mxu0 0.0
        %8085 = vmatpush1.msra.mxu0 %v7962
        %8086 = vmatprep.subr.mxu0 0.0
        %8087 = vmatpush2.msra.mxu0 0.0
        %8088 = vmatprep.subr.mxu0 0.0
        %8089 = vmatpush2.msra.mxu0 0.0
        %8090 = vmatprep.subr.mxu0 0.0
        %8091 = vmatpush2.msra.mxu0 0.0
        %8092 = vmatprep.subr.mxu0 0.0
        %8093 = vmatpush2.msra.mxu0 0.0
        %8094 = vmatprep.subr.mxu0 0.0
        %8095 = vmatpush2.msra.mxu0 0.0
        %8096 = vmatprep.subr.mxu0 0.0
        %8097 = vmatpush2.msra.mxu0 0.0
        %8098 = vmatprep.subr.mxu0 0.0
        %8099 = vmatpush2.msra.mxu0 0.0
        %8100 = vmatprep.subr.mxu0 0.0
        %8101 = vmatpush2.msra.mxu0 0.0
        %8102 = vmatprep.subr.mxu0 0.0
        %8103 = vmatpush2.msra.mxu0 0.0
        %8104 = vmatprep.subr.mxu0 0.0
        %8105 = vmatpush2.msra.mxu0 0.0
        %8106 = vmatprep.subr.mxu0 0.0
        %8107 = vmatpush2.msra.mxu0 0.0
        %8108 = vmatprep.subr.mxu0 0.0
        %8109 = vmatpush2.msra.mxu0 0.0
        %8110 = vmatprep.subr.mxu0 0.0
        %8111 = vmatpush2.msra.mxu0 0.0
        %8112 = vmatprep.subr.mxu0 0.0
        %8113 = vmatpush2.msra.mxu0 0.0
        %8114 = vmatprep.subr.mxu0 0.0
        %8115 = vmatpush2.msra.mxu0 0.0
        %8116 = vmatprep.subr.mxu0 0.0
        %8117 = vmatpush2.msra.mxu0 0.0
        %8118 = vmatprep.mubr.f32.mxu0 0.0
        %8119 = vmatmul.mubr.f32.gmra.mxu0 %v8052
        %v8120 = vpop.f32.mrf.mxu0
        %v8121 = vadd.f32 %v8048, %v8120
        %v8122 = vpop.f32.mrf.mxu0
        %8123 = vdwg.mxu0
        %s8124 = scalar_lea.vmem [#allocation31], 320
        %v8125 = vld [vmem:[%s8124] sm:$0xff]
        %v8126 = vld [vmem:[%s8124 + $0x8] sm:$0xff]
        %v8127 = vld [vmem:[%s8124 + $0x10] sm:$0xff]
        %v8128 = vld [vmem:[%s8124 + $0x18] sm:$0xff]
        %v8129 = vld [vmem:[%s8124 + $0x20] sm:$0xff]
        %v8130 = vld [vmem:[%s8124 + $0x28] sm:$0xff]
        %v8131 = vld [vmem:[%s8124 + $0x30] sm:$0xff]
        %v8132 = vld [vmem:[%s8124 + $0x38] sm:$0xff]
        %v8134 = vsel %vm1322, %v7958, 0
        %8136 = vmatprep.subr.mxu0 0.0
        %8137 = vmatpush1.msra.mxu0 0.0
        %8138 = vmatprep.subr.mxu0 0.0
        %8139 = vmatpush1.msra.mxu0 0.0
        %8140 = vmatprep.subr.mxu0 0.0
        %8141 = vmatpush1.msra.mxu0 0.0
        %8142 = vmatprep.subr.mxu0 0.0
        %8143 = vmatpush1.msra.mxu0 0.0
        %8144 = vmatprep.subr.mxu0 0.0
        %8145 = vmatpush1.msra.mxu0 0.0
        %8146 = vmatprep.subr.mxu0 0.0
        %8147 = vmatpush1.msra.mxu0 0.0
        %8148 = vmatprep.subr.mxu0 0.0
        %8149 = vmatpush1.msra.mxu0 0.0
        %8150 = vmatprep.subr.mxu0 0.0
        %8151 = vmatpush1.msra.mxu0 0.0
        %8152 = vmatprep.subr.mxu0 0.0
        %8153 = vmatpush1.msra.mxu0 %v8132
        %8154 = vmatprep.subr.mxu0 0.0
        %8155 = vmatpush1.msra.mxu0 %v8131
        %8156 = vmatprep.subr.mxu0 0.0
        %8157 = vmatpush1.msra.mxu0 %v8130
        %8158 = vmatprep.subr.mxu0 0.0
        %8159 = vmatpush1.msra.mxu0 %v8129
        %8160 = vmatprep.subr.mxu0 0.0
        %8161 = vmatpush1.msra.mxu0 %v8128
        %8162 = vmatprep.subr.mxu0 0.0
        %8163 = vmatpush1.msra.mxu0 %v8127
        %8164 = vmatprep.subr.mxu0 0.0
        %8165 = vmatpush1.msra.mxu0 %v8126
        %8166 = vmatprep.subr.mxu0 0.0
        %8167 = vmatpush1.msra.mxu0 %v8125
        %8168 = vmatprep.subr.mxu0 0.0
        %8169 = vmatpush2.msra.mxu0 0.0
        %8170 = vmatprep.subr.mxu0 0.0
        %8171 = vmatpush2.msra.mxu0 0.0
        %8172 = vmatprep.subr.mxu0 0.0
        %8173 = vmatpush2.msra.mxu0 0.0
        %8174 = vmatprep.subr.mxu0 0.0
        %8175 = vmatpush2.msra.mxu0 0.0
        %8176 = vmatprep.subr.mxu0 0.0
        %8177 = vmatpush2.msra.mxu0 0.0
        %8178 = vmatprep.subr.mxu0 0.0
        %8179 = vmatpush2.msra.mxu0 0.0
        %8180 = vmatprep.subr.mxu0 0.0
        %8181 = vmatpush2.msra.mxu0 0.0
        %8182 = vmatprep.subr.mxu0 0.0
        %8183 = vmatpush2.msra.mxu0 0.0
        %8184 = vmatprep.subr.mxu0 0.0
        %8185 = vmatpush2.msra.mxu0 0.0
        %8186 = vmatprep.subr.mxu0 0.0
        %8187 = vmatpush2.msra.mxu0 0.0
        %8188 = vmatprep.subr.mxu0 0.0
        %8189 = vmatpush2.msra.mxu0 0.0
        %8190 = vmatprep.subr.mxu0 0.0
        %8191 = vmatpush2.msra.mxu0 0.0
        %8192 = vmatprep.subr.mxu0 0.0
        %8193 = vmatpush2.msra.mxu0 0.0
        %8194 = vmatprep.subr.mxu0 0.0
        %8195 = vmatpush2.msra.mxu0 0.0
        %8196 = vmatprep.subr.mxu0 0.0
        %8197 = vmatpush2.msra.mxu0 0.0
        %8198 = vmatprep.subr.mxu0 0.0
        %8199 = vmatpush2.msra.mxu0 0.0
        %8200 = vmatprep.mubr.f32.mxu0 0.0
        %8201 = vmatmul.mubr.f32.gmra.mxu0 %v8134
        %v8202 = vpop.f32.mrf.mxu0
        %v8203 = vadd.f32 0.0, %v8202
        %v8204 = vpop.f32.mrf.mxu0
        %8205 = vdwg.mxu0
        %v8206 = vadd.f32 %v8121, %v8203
        %v8208 = vlaneseq
        %v8209 = vshrl.u32 %v8208, 7
        %v8210 = vsub.s32 0, %v8209
        %v8211 = vrot.slane %v7817, %v8210
        %v8213 = vadd.f32 %v8206, %v8211
        %v8214 = vadd.f32 %v8213, %v7406
        %v8215 = vmax.f32 %v8214, 0.0
        %s8216 = scalar_lea.vmem [#allocation33], 2
        %v8217 = vld [vmem:[%s8216] sm:$0x1]
        %v8219 = vsel %vm7416, %v8215, 0
        %8221 = vmatprep.subr.mxu0 0.0
        %8222 = vmatpush1.msra.mxu0 0.0
        %8223 = vmatprep.subr.mxu0 0.0
        %8224 = vmatpush1.msra.mxu0 0.0
        %8225 = vmatprep.subr.mxu0 0.0
        %8226 = vmatpush1.msra.mxu0 0.0
        %8227 = vmatprep.subr.mxu0 0.0
        %8228 = vmatpush1.msra.mxu0 0.0
        %8229 = vmatprep.subr.mxu0 0.0
        %8230 = vmatpush1.msra.mxu0 0.0
        %8231 = vmatprep.subr.mxu0 0.0
        %8232 = vmatpush1.msra.mxu0 0.0
        %8233 = vmatprep.subr.mxu0 0.0
        %8234 = vmatpush1.msra.mxu0 0.0
        %8235 = vmatprep.subr.mxu0 0.0
        %8236 = vmatpush1.msra.mxu0 0.0
        %8237 = vmatprep.subr.mxu0 0.0
        %8238 = vmatpush1.msra.mxu0 0.0
        %8239 = vmatprep.subr.mxu0 0.0
        %8240 = vmatpush1.msra.mxu0 0.0
        %8241 = vmatprep.subr.mxu0 0.0
        %8242 = vmatpush1.msra.mxu0 0.0
        %8243 = vmatprep.subr.mxu0 0.0
        %8244 = vmatpush1.msra.mxu0 0.0
        %8245 = vmatprep.subr.mxu0 0.0
        %8246 = vmatpush1.msra.mxu0 0.0
        %8247 = vmatprep.subr.mxu0 0.0
        %8248 = vmatpush1.msra.mxu0 0.0
        %8249 = vmatprep.subr.mxu0 0.0
        %8250 = vmatpush1.msra.mxu0 0.0
        %8251 = vmatprep.subr.mxu0 0.0
        %8252 = vmatpush1.msra.mxu0 %v8219
        %8253 = vmatprep.subr.mxu0 0.0
        %8254 = vmatpush2.msra.mxu0 0.0
        %8255 = vmatprep.subr.mxu0 0.0
        %8256 = vmatpush2.msra.mxu0 0.0
        %8257 = vmatprep.subr.mxu0 0.0
        %8258 = vmatpush2.msra.mxu0 0.0
        %8259 = vmatprep.subr.mxu0 0.0
        %8260 = vmatpush2.msra.mxu0 0.0
        %8261 = vmatprep.subr.mxu0 0.0
        %8262 = vmatpush2.msra.mxu0 0.0
        %8263 = vmatprep.subr.mxu0 0.0
        %8264 = vmatpush2.msra.mxu0 0.0
        %8265 = vmatprep.subr.mxu0 0.0
        %8266 = vmatpush2.msra.mxu0 0.0
        %8267 = vmatprep.subr.mxu0 0.0
        %8268 = vmatpush2.msra.mxu0 0.0
        %8269 = vmatprep.subr.mxu0 0.0
        %8270 = vmatpush2.msra.mxu0 0.0
        %8271 = vmatprep.subr.mxu0 0.0
        %8272 = vmatpush2.msra.mxu0 0.0
        %8273 = vmatprep.subr.mxu0 0.0
        %8274 = vmatpush2.msra.mxu0 0.0
        %8275 = vmatprep.subr.mxu0 0.0
        %8276 = vmatpush2.msra.mxu0 0.0
        %8277 = vmatprep.subr.mxu0 0.0
        %8278 = vmatpush2.msra.mxu0 0.0
        %8279 = vmatprep.subr.mxu0 0.0
        %8280 = vmatpush2.msra.mxu0 0.0
        %8281 = vmatprep.subr.mxu0 0.0
        %8282 = vmatpush2.msra.mxu0 0.0
        %8283 = vmatprep.subr.mxu0 0.0
        %8284 = vmatpush2.msra.mxu0 0.0
        %8285 = vmatprep.mubr.f32.mxu0 0.0
        %8286 = vmatmul.mubr.f32.gmra.mxu0 %v7414
        %v8287 = vpop.f32.mrf.mxu0
        %v8288 = vadd.f32 0.0, %v8287
        %v8289 = vpop.f32.mrf.mxu0
        %8290 = vdwg.mxu0
        %8291 = vmatprep.subr.mxu0 0.0
        %8292 = vmatpush1.msra.mxu0 0.0
        %8293 = vmatprep.subr.mxu0 0.0
        %8294 = vmatpush1.msra.mxu0 0.0
        %8295 = vmatprep.subr.mxu0 0.0
        %8296 = vmatpush1.msra.mxu0 0.0
        %8297 = vmatprep.subr.mxu0 0.0
        %8298 = vmatpush1.msra.mxu0 0.0
        %8299 = vmatprep.subr.mxu0 0.0
        %8300 = vmatpush1.msra.mxu0 0.0
        %8301 = vmatprep.subr.mxu0 0.0
        %8302 = vmatpush1.msra.mxu0 0.0
        %8303 = vmatprep.subr.mxu0 0.0
        %8304 = vmatpush1.msra.mxu0 0.0
        %8305 = vmatprep.subr.mxu0 0.0
        %8306 = vmatpush1.msra.mxu0 0.0
        %8307 = vmatprep.subr.mxu0 0.0
        %8308 = vmatpush1.msra.mxu0 0.0
        %8309 = vmatprep.subr.mxu0 0.0
        %8310 = vmatpush1.msra.mxu0 0.0
        %8311 = vmatprep.subr.mxu0 0.0
        %8312 = vmatpush1.msra.mxu0 0.0
        %8313 = vmatprep.subr.mxu0 0.0
        %8314 = vmatpush1.msra.mxu0 0.0
        %8315 = vmatprep.subr.mxu0 0.0
        %8316 = vmatpush1.msra.mxu0 0.0
        %8317 = vmatprep.subr.mxu0 0.0
        %8318 = vmatpush1.msra.mxu0 0.0
        %8319 = vmatprep.subr.mxu0 0.0
        %8320 = vmatpush1.msra.mxu0 0.0
        %8321 = vmatprep.subr.mxu0 0.0
        %8322 = vmatpush1.msra.mxu0 %v8219
        %8323 = vmatprep.subr.mxu0 0.0
        %8324 = vmatpush2.msra.mxu0 0.0
        %8325 = vmatprep.subr.mxu0 0.0
        %8326 = vmatpush2.msra.mxu0 0.0
        %8327 = vmatprep.subr.mxu0 0.0
        %8328 = vmatpush2.msra.mxu0 0.0
        %8329 = vmatprep.subr.mxu0 0.0
        %8330 = vmatpush2.msra.mxu0 0.0
        %8331 = vmatprep.subr.mxu0 0.0
        %8332 = vmatpush2.msra.mxu0 0.0
        %8333 = vmatprep.subr.mxu0 0.0
        %8334 = vmatpush2.msra.mxu0 0.0
        %8335 = vmatprep.subr.mxu0 0.0
        %8336 = vmatpush2.msra.mxu0 0.0
        %8337 = vmatprep.subr.mxu0 0.0
        %8338 = vmatpush2.msra.mxu0 0.0
        %8339 = vmatprep.subr.mxu0 0.0
        %8340 = vmatpush2.msra.mxu0 0.0
        %8341 = vmatprep.subr.mxu0 0.0
        %8342 = vmatpush2.msra.mxu0 0.0
        %8343 = vmatprep.subr.mxu0 0.0
        %8344 = vmatpush2.msra.mxu0 0.0
        %8345 = vmatprep.subr.mxu0 0.0
        %8346 = vmatpush2.msra.mxu0 0.0
        %8347 = vmatprep.subr.mxu0 0.0
        %8348 = vmatpush2.msra.mxu0 0.0
        %8349 = vmatprep.subr.mxu0 0.0
        %8350 = vmatpush2.msra.mxu0 0.0
        %8351 = vmatprep.subr.mxu0 0.0
        %8352 = vmatpush2.msra.mxu0 0.0
        %8353 = vmatprep.subr.mxu0 0.0
        %8354 = vmatpush2.msra.mxu0 0.0
        %8355 = vmatprep.mubr.f32.mxu0 0.0
        %8356 = vmatmul.mubr.f32.gmra.mxu0 %v7491
        %v8357 = vpop.f32.mrf.mxu0
        %v8358 = vadd.f32 0.0, %v8357
        %v8359 = vpop.f32.mrf.mxu0
        %8360 = vdwg.mxu0
        %s8361 = scalar_lea.vmem [#allocation31], 384
        %v8362 = vld [vmem:[%s8361] sm:$0xff]
        %v8363 = vld [vmem:[%s8361 + $0x8] sm:$0xff]
        %v8364 = vld [vmem:[%s8361 + $0x10] sm:$0xff]
        %v8365 = vld [vmem:[%s8361 + $0x18] sm:$0xff]
        %v8366 = vld [vmem:[%s8361 + $0x20] sm:$0xff]
        %v8367 = vld [vmem:[%s8361 + $0x28] sm:$0xff]
        %v8368 = vld [vmem:[%s8361 + $0x30] sm:$0xff]
        %v8369 = vld [vmem:[%s8361 + $0x38] sm:$0xff]
        %s8370 = scalar_lea.vmem [#allocation31], 448
        %v8371 = vld [vmem:[%s8370] sm:$0xff]
        %v8372 = vld [vmem:[%s8370 + $0x8] sm:$0xff]
        %v8373 = vld [vmem:[%s8370 + $0x10] sm:$0xff]
        %v8374 = vld [vmem:[%s8370 + $0x18] sm:$0xff]
        %v8375 = vld [vmem:[%s8370 + $0x20] sm:$0xff]
        %v8376 = vld [vmem:[%s8370 + $0x28] sm:$0xff]
        %v8377 = vld [vmem:[%s8370 + $0x30] sm:$0xff]
        %v8378 = vld [vmem:[%s8370 + $0x38] sm:$0xff]
        %v8379 = vsel %vm1322, %v8215, 0
        %8381 = vmatprep.subr.mxu0 0.0
        %8382 = vmatpush1.msra.mxu0 0.0
        %8383 = vmatprep.subr.mxu0 0.0
        %8384 = vmatpush1.msra.mxu0 0.0
        %8385 = vmatprep.subr.mxu0 0.0
        %8386 = vmatpush1.msra.mxu0 0.0
        %8387 = vmatprep.subr.mxu0 0.0
        %8388 = vmatpush1.msra.mxu0 0.0
        %8389 = vmatprep.subr.mxu0 0.0
        %8390 = vmatpush1.msra.mxu0 0.0
        %8391 = vmatprep.subr.mxu0 0.0
        %8392 = vmatpush1.msra.mxu0 0.0
        %8393 = vmatprep.subr.mxu0 0.0
        %8394 = vmatpush1.msra.mxu0 0.0
        %8395 = vmatprep.subr.mxu0 0.0
        %8396 = vmatpush1.msra.mxu0 0.0
        %8397 = vmatprep.subr.mxu0 0.0
        %8398 = vmatpush1.msra.mxu0 %v8378
        %8399 = vmatprep.subr.mxu0 0.0
        %8400 = vmatpush1.msra.mxu0 %v8377
        %8401 = vmatprep.subr.mxu0 0.0
        %8402 = vmatpush1.msra.mxu0 %v8376
        %8403 = vmatprep.subr.mxu0 0.0
        %8404 = vmatpush1.msra.mxu0 %v8375
        %8405 = vmatprep.subr.mxu0 0.0
        %8406 = vmatpush1.msra.mxu0 %v8374
        %8407 = vmatprep.subr.mxu0 0.0
        %8408 = vmatpush1.msra.mxu0 %v8373
        %8409 = vmatprep.subr.mxu0 0.0
        %8410 = vmatpush1.msra.mxu0 %v8372
        %8411 = vmatprep.subr.mxu0 0.0
        %8412 = vmatpush1.msra.mxu0 %v8371
        %8413 = vmatprep.subr.mxu0 0.0
        %8414 = vmatpush2.msra.mxu0 0.0
        %8415 = vmatprep.subr.mxu0 0.0
        %8416 = vmatpush2.msra.mxu0 0.0
        %8417 = vmatprep.subr.mxu0 0.0
        %8418 = vmatpush2.msra.mxu0 0.0
        %8419 = vmatprep.subr.mxu0 0.0
        %8420 = vmatpush2.msra.mxu0 0.0
        %8421 = vmatprep.subr.mxu0 0.0
        %8422 = vmatpush2.msra.mxu0 0.0
        %8423 = vmatprep.subr.mxu0 0.0
        %8424 = vmatpush2.msra.mxu0 0.0
        %8425 = vmatprep.subr.mxu0 0.0
        %8426 = vmatpush2.msra.mxu0 0.0
        %8427 = vmatprep.subr.mxu0 0.0
        %8428 = vmatpush2.msra.mxu0 0.0
        %8429 = vmatprep.subr.mxu0 0.0
        %8430 = vmatpush2.msra.mxu0 0.0
        %8431 = vmatprep.subr.mxu0 0.0
        %8432 = vmatpush2.msra.mxu0 0.0
        %8433 = vmatprep.subr.mxu0 0.0
        %8434 = vmatpush2.msra.mxu0 0.0
        %8435 = vmatprep.subr.mxu0 0.0
        %8436 = vmatpush2.msra.mxu0 0.0
        %8437 = vmatprep.subr.mxu0 0.0
        %8438 = vmatpush2.msra.mxu0 0.0
        %8439 = vmatprep.subr.mxu0 0.0
        %8440 = vmatpush2.msra.mxu0 0.0
        %8441 = vmatprep.subr.mxu0 0.0
        %8442 = vmatpush2.msra.mxu0 0.0
        %8443 = vmatprep.subr.mxu0 0.0
        %8444 = vmatpush2.msra.mxu0 0.0
        %8445 = vmatprep.mubr.f32.mxu0 0.0
        %8446 = vmatmul.mubr.f32.gmra.mxu0 %v8379
        %v8447 = vpop.f32.mrf.mxu0
        %v8448 = vadd.f32 0.0, %v8447
        %v8449 = vpop.f32.mrf.mxu0
        %8450 = vdwg.mxu0
        %v8452 = vsel %vm1322, %v8288, 0
        %8454 = vmatprep.subr.mxu0 0.0
        %8455 = vmatpush1.msra.mxu0 0.0
        %8456 = vmatprep.subr.mxu0 0.0
        %8457 = vmatpush1.msra.mxu0 0.0
        %8458 = vmatprep.subr.mxu0 0.0
        %8459 = vmatpush1.msra.mxu0 0.0
        %8460 = vmatprep.subr.mxu0 0.0
        %8461 = vmatpush1.msra.mxu0 0.0
        %8462 = vmatprep.subr.mxu0 0.0
        %8463 = vmatpush1.msra.mxu0 0.0
        %8464 = vmatprep.subr.mxu0 0.0
        %8465 = vmatpush1.msra.mxu0 0.0
        %8466 = vmatprep.subr.mxu0 0.0
        %8467 = vmatpush1.msra.mxu0 0.0
        %8468 = vmatprep.subr.mxu0 0.0
        %8469 = vmatpush1.msra.mxu0 0.0
        %8470 = vmatprep.subr.mxu0 0.0
        %8471 = vmatpush1.msra.mxu0 %v8369
        %8472 = vmatprep.subr.mxu0 0.0
        %8473 = vmatpush1.msra.mxu0 %v8368
        %8474 = vmatprep.subr.mxu0 0.0
        %8475 = vmatpush1.msra.mxu0 %v8367
        %8476 = vmatprep.subr.mxu0 0.0
        %8477 = vmatpush1.msra.mxu0 %v8366
        %8478 = vmatprep.subr.mxu0 0.0
        %8479 = vmatpush1.msra.mxu0 %v8365
        %8480 = vmatprep.subr.mxu0 0.0
        %8481 = vmatpush1.msra.mxu0 %v8364
        %8482 = vmatprep.subr.mxu0 0.0
        %8483 = vmatpush1.msra.mxu0 %v8363
        %8484 = vmatprep.subr.mxu0 0.0
        %8485 = vmatpush1.msra.mxu0 %v8362
        %8486 = vmatprep.subr.mxu0 0.0
        %8487 = vmatpush2.msra.mxu0 0.0
        %8488 = vmatprep.subr.mxu0 0.0
        %8489 = vmatpush2.msra.mxu0 0.0
        %8490 = vmatprep.subr.mxu0 0.0
        %8491 = vmatpush2.msra.mxu0 0.0
        %8492 = vmatprep.subr.mxu0 0.0
        %8493 = vmatpush2.msra.mxu0 0.0
        %8494 = vmatprep.subr.mxu0 0.0
        %8495 = vmatpush2.msra.mxu0 0.0
        %8496 = vmatprep.subr.mxu0 0.0
        %8497 = vmatpush2.msra.mxu0 0.0
        %8498 = vmatprep.subr.mxu0 0.0
        %8499 = vmatpush2.msra.mxu0 0.0
        %8500 = vmatprep.subr.mxu0 0.0
        %8501 = vmatpush2.msra.mxu0 0.0
        %8502 = vmatprep.subr.mxu0 0.0
        %8503 = vmatpush2.msra.mxu0 0.0
        %8504 = vmatprep.subr.mxu0 0.0
        %8505 = vmatpush2.msra.mxu0 0.0
        %8506 = vmatprep.subr.mxu0 0.0
        %8507 = vmatpush2.msra.mxu0 0.0
        %8508 = vmatprep.subr.mxu0 0.0
        %8509 = vmatpush2.msra.mxu0 0.0
        %8510 = vmatprep.subr.mxu0 0.0
        %8511 = vmatpush2.msra.mxu0 0.0
        %8512 = vmatprep.subr.mxu0 0.0
        %8513 = vmatpush2.msra.mxu0 0.0
        %8514 = vmatprep.subr.mxu0 0.0
        %8515 = vmatpush2.msra.mxu0 0.0
        %8516 = vmatprep.subr.mxu0 0.0
        %8517 = vmatpush2.msra.mxu0 0.0
        %8518 = vmatprep.mubr.f32.mxu0 0.0
        %8519 = vmatmul.mubr.f32.gmra.mxu0 %v8452
        %v8520 = vpop.f32.mrf.mxu0
        %v8521 = vadd.f32 %v8448, %v8520
        %v8522 = vpop.f32.mrf.mxu0
        %8523 = vdwg.mxu0
        %s8524 = scalar_lea.vmem [#allocation31], 512
        %v8525 = vld [vmem:[%s8524] sm:$0xff]
        %v8526 = vld [vmem:[%s8524 + $0x8] sm:$0xff]
        %v8527 = vld [vmem:[%s8524 + $0x10] sm:$0xff]
        %v8528 = vld [vmem:[%s8524 + $0x18] sm:$0xff]
        %v8529 = vld [vmem:[%s8524 + $0x20] sm:$0xff]
        %v8530 = vld [vmem:[%s8524 + $0x28] sm:$0xff]
        %v8531 = vld [vmem:[%s8524 + $0x30] sm:$0xff]
        %v8532 = vld [vmem:[%s8524 + $0x38] sm:$0xff]
        %v8534 = vsel %vm1322, %v8358, 0
        %8536 = vmatprep.subr.mxu0 0.0
        %8537 = vmatpush1.msra.mxu0 0.0
        %8538 = vmatprep.subr.mxu0 0.0
        %8539 = vmatpush1.msra.mxu0 0.0
        %8540 = vmatprep.subr.mxu0 0.0
        %8541 = vmatpush1.msra.mxu0 0.0
        %8542 = vmatprep.subr.mxu0 0.0
        %8543 = vmatpush1.msra.mxu0 0.0
        %8544 = vmatprep.subr.mxu0 0.0
        %8545 = vmatpush1.msra.mxu0 0.0
        %8546 = vmatprep.subr.mxu0 0.0
        %8547 = vmatpush1.msra.mxu0 0.0
        %8548 = vmatprep.subr.mxu0 0.0
        %8549 = vmatpush1.msra.mxu0 0.0
        %8550 = vmatprep.subr.mxu0 0.0
        %8551 = vmatpush1.msra.mxu0 0.0
        %8552 = vmatprep.subr.mxu0 0.0
        %8553 = vmatpush1.msra.mxu0 %v8532
        %8554 = vmatprep.subr.mxu0 0.0
        %8555 = vmatpush1.msra.mxu0 %v8531
        %8556 = vmatprep.subr.mxu0 0.0
        %8557 = vmatpush1.msra.mxu0 %v8530
        %8558 = vmatprep.subr.mxu0 0.0
        %8559 = vmatpush1.msra.mxu0 %v8529
        %8560 = vmatprep.subr.mxu0 0.0
        %8561 = vmatpush1.msra.mxu0 %v8528
        %8562 = vmatprep.subr.mxu0 0.0
        %8563 = vmatpush1.msra.mxu0 %v8527
        %8564 = vmatprep.subr.mxu0 0.0
        %8565 = vmatpush1.msra.mxu0 %v8526
        %8566 = vmatprep.subr.mxu0 0.0
        %8567 = vmatpush1.msra.mxu0 %v8525
        %8568 = vmatprep.subr.mxu0 0.0
        %8569 = vmatpush2.msra.mxu0 0.0
        %8570 = vmatprep.subr.mxu0 0.0
        %8571 = vmatpush2.msra.mxu0 0.0
        %8572 = vmatprep.subr.mxu0 0.0
        %8573 = vmatpush2.msra.mxu0 0.0
        %8574 = vmatprep.subr.mxu0 0.0
        %8575 = vmatpush2.msra.mxu0 0.0
        %8576 = vmatprep.subr.mxu0 0.0
        %8577 = vmatpush2.msra.mxu0 0.0
        %8578 = vmatprep.subr.mxu0 0.0
        %8579 = vmatpush2.msra.mxu0 0.0
        %8580 = vmatprep.subr.mxu0 0.0
        %8581 = vmatpush2.msra.mxu0 0.0
        %8582 = vmatprep.subr.mxu0 0.0
        %8583 = vmatpush2.msra.mxu0 0.0
        %8584 = vmatprep.subr.mxu0 0.0
        %8585 = vmatpush2.msra.mxu0 0.0
        %8586 = vmatprep.subr.mxu0 0.0
        %8587 = vmatpush2.msra.mxu0 0.0
        %8588 = vmatprep.subr.mxu0 0.0
        %8589 = vmatpush2.msra.mxu0 0.0
        %8590 = vmatprep.subr.mxu0 0.0
        %8591 = vmatpush2.msra.mxu0 0.0
        %8592 = vmatprep.subr.mxu0 0.0
        %8593 = vmatpush2.msra.mxu0 0.0
        %8594 = vmatprep.subr.mxu0 0.0
        %8595 = vmatpush2.msra.mxu0 0.0
        %8596 = vmatprep.subr.mxu0 0.0
        %8597 = vmatpush2.msra.mxu0 0.0
        %8598 = vmatprep.subr.mxu0 0.0
        %8599 = vmatpush2.msra.mxu0 0.0
        %8600 = vmatprep.mubr.f32.mxu0 0.0
        %8601 = vmatmul.mubr.f32.gmra.mxu0 %v8534
        %v8602 = vpop.f32.mrf.mxu0
        %v8603 = vadd.f32 0.0, %v8602
        %v8604 = vpop.f32.mrf.mxu0
        %8605 = vdwg.mxu0
        %v8606 = vadd.f32 %v8521, %v8603
        %v8608 = vlaneseq
        %v8609 = vshrl.u32 %v8608, 7
        %v8610 = vsub.s32 0, %v8609
        %v8611 = vrot.slane %v8217, %v8610
        %v8613 = vadd.f32 %v8606, %v8611
        %v8614 = vmax.f32 %v8613, 0.0
        %s8615 = scalar_lea.vmem [#allocation33], 3
        %v8616 = vld [vmem:[%s8615] sm:$0x1]
        %v8618 = vsel %vm7416, %v8614, 0
        %8620 = vmatprep.subr.mxu0 0.0
        %8621 = vmatpush1.msra.mxu0 0.0
        %8622 = vmatprep.subr.mxu0 0.0
        %8623 = vmatpush1.msra.mxu0 0.0
        %8624 = vmatprep.subr.mxu0 0.0
        %8625 = vmatpush1.msra.mxu0 0.0
        %8626 = vmatprep.subr.mxu0 0.0
        %8627 = vmatpush1.msra.mxu0 0.0
        %8628 = vmatprep.subr.mxu0 0.0
        %8629 = vmatpush1.msra.mxu0 0.0
        %8630 = vmatprep.subr.mxu0 0.0
        %8631 = vmatpush1.msra.mxu0 0.0
        %8632 = vmatprep.subr.mxu0 0.0
        %8633 = vmatpush1.msra.mxu0 0.0
        %8634 = vmatprep.subr.mxu0 0.0
        %8635 = vmatpush1.msra.mxu0 0.0
        %8636 = vmatprep.subr.mxu0 0.0
        %8637 = vmatpush1.msra.mxu0 0.0
        %8638 = vmatprep.subr.mxu0 0.0
        %8639 = vmatpush1.msra.mxu0 0.0
        %8640 = vmatprep.subr.mxu0 0.0
        %8641 = vmatpush1.msra.mxu0 0.0
        %8642 = vmatprep.subr.mxu0 0.0
        %8643 = vmatpush1.msra.mxu0 0.0
        %8644 = vmatprep.subr.mxu0 0.0
        %8645 = vmatpush1.msra.mxu0 0.0
        %8646 = vmatprep.subr.mxu0 0.0
        %8647 = vmatpush1.msra.mxu0 0.0
        %8648 = vmatprep.subr.mxu0 0.0
        %8649 = vmatpush1.msra.mxu0 0.0
        %8650 = vmatprep.subr.mxu0 0.0
        %8651 = vmatpush1.msra.mxu0 %v8618
        %8652 = vmatprep.subr.mxu0 0.0
        %8653 = vmatpush2.msra.mxu0 0.0
        %8654 = vmatprep.subr.mxu0 0.0
        %8655 = vmatpush2.msra.mxu0 0.0
        %8656 = vmatprep.subr.mxu0 0.0
        %8657 = vmatpush2.msra.mxu0 0.0
        %8658 = vmatprep.subr.mxu0 0.0
        %8659 = vmatpush2.msra.mxu0 0.0
        %8660 = vmatprep.subr.mxu0 0.0
        %8661 = vmatpush2.msra.mxu0 0.0
        %8662 = vmatprep.subr.mxu0 0.0
        %8663 = vmatpush2.msra.mxu0 0.0
        %8664 = vmatprep.subr.mxu0 0.0
        %8665 = vmatpush2.msra.mxu0 0.0
        %8666 = vmatprep.subr.mxu0 0.0
        %8667 = vmatpush2.msra.mxu0 0.0
        %8668 = vmatprep.subr.mxu0 0.0
        %8669 = vmatpush2.msra.mxu0 0.0
        %8670 = vmatprep.subr.mxu0 0.0
        %8671 = vmatpush2.msra.mxu0 0.0
        %8672 = vmatprep.subr.mxu0 0.0
        %8673 = vmatpush2.msra.mxu0 0.0
        %8674 = vmatprep.subr.mxu0 0.0
        %8675 = vmatpush2.msra.mxu0 0.0
        %8676 = vmatprep.subr.mxu0 0.0
        %8677 = vmatpush2.msra.mxu0 0.0
        %8678 = vmatprep.subr.mxu0 0.0
        %8679 = vmatpush2.msra.mxu0 0.0
        %8680 = vmatprep.subr.mxu0 0.0
        %8681 = vmatpush2.msra.mxu0 0.0
        %8682 = vmatprep.subr.mxu0 0.0
        %8683 = vmatpush2.msra.mxu0 0.0
        %8684 = vmatprep.mubr.f32.mxu0 0.0
        %8685 = vmatmul.mubr.f32.gmra.mxu0 %v7414
        %v8686 = vpop.f32.mrf.mxu0
        %v8687 = vadd.f32 0.0, %v8686
        %v8688 = vpop.f32.mrf.mxu0
        %8689 = vdwg.mxu0
        %8690 = vmatprep.subr.mxu0 0.0
        %8691 = vmatpush1.msra.mxu0 0.0
        %8692 = vmatprep.subr.mxu0 0.0
        %8693 = vmatpush1.msra.mxu0 0.0
        %8694 = vmatprep.subr.mxu0 0.0
        %8695 = vmatpush1.msra.mxu0 0.0
        %8696 = vmatprep.subr.mxu0 0.0
        %8697 = vmatpush1.msra.mxu0 0.0
        %8698 = vmatprep.subr.mxu0 0.0
        %8699 = vmatpush1.msra.mxu0 0.0
        %8700 = vmatprep.subr.mxu0 0.0
        %8701 = vmatpush1.msra.mxu0 0.0
        %8702 = vmatprep.subr.mxu0 0.0
        %8703 = vmatpush1.msra.mxu0 0.0
        %8704 = vmatprep.subr.mxu0 0.0
        %8705 = vmatpush1.msra.mxu0 0.0
        %8706 = vmatprep.subr.mxu0 0.0
        %8707 = vmatpush1.msra.mxu0 0.0
        %8708 = vmatprep.subr.mxu0 0.0
        %8709 = vmatpush1.msra.mxu0 0.0
        %8710 = vmatprep.subr.mxu0 0.0
        %8711 = vmatpush1.msra.mxu0 0.0
        %8712 = vmatprep.subr.mxu0 0.0
        %8713 = vmatpush1.msra.mxu0 0.0
        %8714 = vmatprep.subr.mxu0 0.0
        %8715 = vmatpush1.msra.mxu0 0.0
        %8716 = vmatprep.subr.mxu0 0.0
        %8717 = vmatpush1.msra.mxu0 0.0
        %8718 = vmatprep.subr.mxu0 0.0
        %8719 = vmatpush1.msra.mxu0 0.0
        %8720 = vmatprep.subr.mxu0 0.0
        %8721 = vmatpush1.msra.mxu0 %v8618
        %8722 = vmatprep.subr.mxu0 0.0
        %8723 = vmatpush2.msra.mxu0 0.0
        %8724 = vmatprep.subr.mxu0 0.0
        %8725 = vmatpush2.msra.mxu0 0.0
        %8726 = vmatprep.subr.mxu0 0.0
        %8727 = vmatpush2.msra.mxu0 0.0
        %8728 = vmatprep.subr.mxu0 0.0
        %8729 = vmatpush2.msra.mxu0 0.0
        %8730 = vmatprep.subr.mxu0 0.0
        %8731 = vmatpush2.msra.mxu0 0.0
        %8732 = vmatprep.subr.mxu0 0.0
        %8733 = vmatpush2.msra.mxu0 0.0
        %8734 = vmatprep.subr.mxu0 0.0
        %8735 = vmatpush2.msra.mxu0 0.0
        %8736 = vmatprep.subr.mxu0 0.0
        %8737 = vmatpush2.msra.mxu0 0.0
        %8738 = vmatprep.subr.mxu0 0.0
        %8739 = vmatpush2.msra.mxu0 0.0
        %8740 = vmatprep.subr.mxu0 0.0
        %8741 = vmatpush2.msra.mxu0 0.0
        %8742 = vmatprep.subr.mxu0 0.0
        %8743 = vmatpush2.msra.mxu0 0.0
        %8744 = vmatprep.subr.mxu0 0.0
        %8745 = vmatpush2.msra.mxu0 0.0
        %8746 = vmatprep.subr.mxu0 0.0
        %8747 = vmatpush2.msra.mxu0 0.0
        %8748 = vmatprep.subr.mxu0 0.0
        %8749 = vmatpush2.msra.mxu0 0.0
        %8750 = vmatprep.subr.mxu0 0.0
        %8751 = vmatpush2.msra.mxu0 0.0
        %8752 = vmatprep.subr.mxu0 0.0
        %8753 = vmatpush2.msra.mxu0 0.0
        %8754 = vmatprep.mubr.f32.mxu0 0.0
        %8755 = vmatmul.mubr.f32.gmra.mxu0 %v7491
        %v8756 = vpop.f32.mrf.mxu0
        %v8757 = vadd.f32 0.0, %v8756
        %v8758 = vpop.f32.mrf.mxu0
        %8759 = vdwg.mxu0
        %s8760 = scalar_lea.vmem [#allocation31], 576
        %v8761 = vld [vmem:[%s8760] sm:$0xff]
        %v8762 = vld [vmem:[%s8760 + $0x8] sm:$0xff]
        %v8763 = vld [vmem:[%s8760 + $0x10] sm:$0xff]
        %v8764 = vld [vmem:[%s8760 + $0x18] sm:$0xff]
        %v8765 = vld [vmem:[%s8760 + $0x20] sm:$0xff]
        %v8766 = vld [vmem:[%s8760 + $0x28] sm:$0xff]
        %v8767 = vld [vmem:[%s8760 + $0x30] sm:$0xff]
        %v8768 = vld [vmem:[%s8760 + $0x38] sm:$0xff]
        %s8769 = scalar_lea.vmem [#allocation31], 640
        %v8770 = vld [vmem:[%s8769] sm:$0xff]
        %v8771 = vld [vmem:[%s8769 + $0x8] sm:$0xff]
        %v8772 = vld [vmem:[%s8769 + $0x10] sm:$0xff]
        %v8773 = vld [vmem:[%s8769 + $0x18] sm:$0xff]
        %v8774 = vld [vmem:[%s8769 + $0x20] sm:$0xff]
        %v8775 = vld [vmem:[%s8769 + $0x28] sm:$0xff]
        %v8776 = vld [vmem:[%s8769 + $0x30] sm:$0xff]
        %v8777 = vld [vmem:[%s8769 + $0x38] sm:$0xff]
        %v8778 = vsel %vm1322, %v8614, 0
        %8780 = vmatprep.subr.mxu0 0.0
        %8781 = vmatpush1.msra.mxu0 0.0
        %8782 = vmatprep.subr.mxu0 0.0
        %8783 = vmatpush1.msra.mxu0 0.0
        %8784 = vmatprep.subr.mxu0 0.0
        %8785 = vmatpush1.msra.mxu0 0.0
        %8786 = vmatprep.subr.mxu0 0.0
        %8787 = vmatpush1.msra.mxu0 0.0
        %8788 = vmatprep.subr.mxu0 0.0
        %8789 = vmatpush1.msra.mxu0 0.0
        %8790 = vmatprep.subr.mxu0 0.0
        %8791 = vmatpush1.msra.mxu0 0.0
        %8792 = vmatprep.subr.mxu0 0.0
        %8793 = vmatpush1.msra.mxu0 0.0
        %8794 = vmatprep.subr.mxu0 0.0
        %8795 = vmatpush1.msra.mxu0 0.0
        %8796 = vmatprep.subr.mxu0 0.0
        %8797 = vmatpush1.msra.mxu0 %v8777
        %8798 = vmatprep.subr.mxu0 0.0
        %8799 = vmatpush1.msra.mxu0 %v8776
        %8800 = vmatprep.subr.mxu0 0.0
        %8801 = vmatpush1.msra.mxu0 %v8775
        %8802 = vmatprep.subr.mxu0 0.0
        %8803 = vmatpush1.msra.mxu0 %v8774
        %8804 = vmatprep.subr.mxu0 0.0
        %8805 = vmatpush1.msra.mxu0 %v8773
        %8806 = vmatprep.subr.mxu0 0.0
        %8807 = vmatpush1.msra.mxu0 %v8772
        %8808 = vmatprep.subr.mxu0 0.0
        %8809 = vmatpush1.msra.mxu0 %v8771
        %8810 = vmatprep.subr.mxu0 0.0
        %8811 = vmatpush1.msra.mxu0 %v8770
        %8812 = vmatprep.subr.mxu0 0.0
        %8813 = vmatpush2.msra.mxu0 0.0
        %8814 = vmatprep.subr.mxu0 0.0
        %8815 = vmatpush2.msra.mxu0 0.0
        %8816 = vmatprep.subr.mxu0 0.0
        %8817 = vmatpush2.msra.mxu0 0.0
        %8818 = vmatprep.subr.mxu0 0.0
        %8819 = vmatpush2.msra.mxu0 0.0
        %8820 = vmatprep.subr.mxu0 0.0
        %8821 = vmatpush2.msra.mxu0 0.0
        %8822 = vmatprep.subr.mxu0 0.0
        %8823 = vmatpush2.msra.mxu0 0.0
        %8824 = vmatprep.subr.mxu0 0.0
        %8825 = vmatpush2.msra.mxu0 0.0
        %8826 = vmatprep.subr.mxu0 0.0
        %8827 = vmatpush2.msra.mxu0 0.0
        %8828 = vmatprep.subr.mxu0 0.0
        %8829 = vmatpush2.msra.mxu0 0.0
        %8830 = vmatprep.subr.mxu0 0.0
        %8831 = vmatpush2.msra.mxu0 0.0
        %8832 = vmatprep.subr.mxu0 0.0
        %8833 = vmatpush2.msra.mxu0 0.0
        %8834 = vmatprep.subr.mxu0 0.0
        %8835 = vmatpush2.msra.mxu0 0.0
        %8836 = vmatprep.subr.mxu0 0.0
        %8837 = vmatpush2.msra.mxu0 0.0
        %8838 = vmatprep.subr.mxu0 0.0
        %8839 = vmatpush2.msra.mxu0 0.0
        %8840 = vmatprep.subr.mxu0 0.0
        %8841 = vmatpush2.msra.mxu0 0.0
        %8842 = vmatprep.subr.mxu0 0.0
        %8843 = vmatpush2.msra.mxu0 0.0
        %8844 = vmatprep.mubr.f32.mxu0 0.0
        %8845 = vmatmul.mubr.f32.gmra.mxu0 %v8778
        %v8846 = vpop.f32.mrf.mxu0
        %v8847 = vadd.f32 0.0, %v8846
        %v8848 = vpop.f32.mrf.mxu0
        %8849 = vdwg.mxu0
        %v8851 = vsel %vm1322, %v8687, 0
        %8853 = vmatprep.subr.mxu0 0.0
        %8854 = vmatpush1.msra.mxu0 0.0
        %8855 = vmatprep.subr.mxu0 0.0
        %8856 = vmatpush1.msra.mxu0 0.0
        %8857 = vmatprep.subr.mxu0 0.0
        %8858 = vmatpush1.msra.mxu0 0.0
        %8859 = vmatprep.subr.mxu0 0.0
        %8860 = vmatpush1.msra.mxu0 0.0
        %8861 = vmatprep.subr.mxu0 0.0
        %8862 = vmatpush1.msra.mxu0 0.0
        %8863 = vmatprep.subr.mxu0 0.0
        %8864 = vmatpush1.msra.mxu0 0.0
        %8865 = vmatprep.subr.mxu0 0.0
        %8866 = vmatpush1.msra.mxu0 0.0
        %8867 = vmatprep.subr.mxu0 0.0
        %8868 = vmatpush1.msra.mxu0 0.0
        %8869 = vmatprep.subr.mxu0 0.0
        %8870 = vmatpush1.msra.mxu0 %v8768
        %8871 = vmatprep.subr.mxu0 0.0
        %8872 = vmatpush1.msra.mxu0 %v8767
        %8873 = vmatprep.subr.mxu0 0.0
        %8874 = vmatpush1.msra.mxu0 %v8766
        %8875 = vmatprep.subr.mxu0 0.0
        %8876 = vmatpush1.msra.mxu0 %v8765
        %8877 = vmatprep.subr.mxu0 0.0
        %8878 = vmatpush1.msra.mxu0 %v8764
        %8879 = vmatprep.subr.mxu0 0.0
        %8880 = vmatpush1.msra.mxu0 %v8763
        %8881 = vmatprep.subr.mxu0 0.0
        %8882 = vmatpush1.msra.mxu0 %v8762
        %8883 = vmatprep.subr.mxu0 0.0
        %8884 = vmatpush1.msra.mxu0 %v8761
        %8885 = vmatprep.subr.mxu0 0.0
        %8886 = vmatpush2.msra.mxu0 0.0
        %8887 = vmatprep.subr.mxu0 0.0
        %8888 = vmatpush2.msra.mxu0 0.0
        %8889 = vmatprep.subr.mxu0 0.0
        %8890 = vmatpush2.msra.mxu0 0.0
        %8891 = vmatprep.subr.mxu0 0.0
        %8892 = vmatpush2.msra.mxu0 0.0
        %8893 = vmatprep.subr.mxu0 0.0
        %8894 = vmatpush2.msra.mxu0 0.0
        %8895 = vmatprep.subr.mxu0 0.0
        %8896 = vmatpush2.msra.mxu0 0.0
        %8897 = vmatprep.subr.mxu0 0.0
        %8898 = vmatpush2.msra.mxu0 0.0
        %8899 = vmatprep.subr.mxu0 0.0
        %8900 = vmatpush2.msra.mxu0 0.0
        %8901 = vmatprep.subr.mxu0 0.0
        %8902 = vmatpush2.msra.mxu0 0.0
        %8903 = vmatprep.subr.mxu0 0.0
        %8904 = vmatpush2.msra.mxu0 0.0
        %8905 = vmatprep.subr.mxu0 0.0
        %8906 = vmatpush2.msra.mxu0 0.0
        %8907 = vmatprep.subr.mxu0 0.0
        %8908 = vmatpush2.msra.mxu0 0.0
        %8909 = vmatprep.subr.mxu0 0.0
        %8910 = vmatpush2.msra.mxu0 0.0
        %8911 = vmatprep.subr.mxu0 0.0
        %8912 = vmatpush2.msra.mxu0 0.0
        %8913 = vmatprep.subr.mxu0 0.0
        %8914 = vmatpush2.msra.mxu0 0.0
        %8915 = vmatprep.subr.mxu0 0.0
        %8916 = vmatpush2.msra.mxu0 0.0
        %8917 = vmatprep.mubr.f32.mxu0 0.0
        %8918 = vmatmul.mubr.f32.gmra.mxu0 %v8851
        %v8919 = vpop.f32.mrf.mxu0
        %v8920 = vadd.f32 %v8847, %v8919
        %v8921 = vpop.f32.mrf.mxu0
        %8922 = vdwg.mxu0
        %s8923 = scalar_lea.vmem [#allocation31], 704
        %v8924 = vld [vmem:[%s8923] sm:$0xff]
        %v8925 = vld [vmem:[%s8923 + $0x8] sm:$0xff]
        %v8926 = vld [vmem:[%s8923 + $0x10] sm:$0xff]
        %v8927 = vld [vmem:[%s8923 + $0x18] sm:$0xff]
        %v8928 = vld [vmem:[%s8923 + $0x20] sm:$0xff]
        %v8929 = vld [vmem:[%s8923 + $0x28] sm:$0xff]
        %v8930 = vld [vmem:[%s8923 + $0x30] sm:$0xff]
        %v8931 = vld [vmem:[%s8923 + $0x38] sm:$0xff]
        %v8933 = vsel %vm1322, %v8757, 0
        %8935 = vmatprep.subr.mxu0 0.0
        %8936 = vmatpush1.msra.mxu0 0.0
        %8937 = vmatprep.subr.mxu0 0.0
        %8938 = vmatpush1.msra.mxu0 0.0
        %8939 = vmatprep.subr.mxu0 0.0
        %8940 = vmatpush1.msra.mxu0 0.0
        %8941 = vmatprep.subr.mxu0 0.0
        %8942 = vmatpush1.msra.mxu0 0.0
        %8943 = vmatprep.subr.mxu0 0.0
        %8944 = vmatpush1.msra.mxu0 0.0
        %8945 = vmatprep.subr.mxu0 0.0
        %8946 = vmatpush1.msra.mxu0 0.0
        %8947 = vmatprep.subr.mxu0 0.0
        %8948 = vmatpush1.msra.mxu0 0.0
        %8949 = vmatprep.subr.mxu0 0.0
        %8950 = vmatpush1.msra.mxu0 0.0
        %8951 = vmatprep.subr.mxu0 0.0
        %8952 = vmatpush1.msra.mxu0 %v8931
        %8953 = vmatprep.subr.mxu0 0.0
        %8954 = vmatpush1.msra.mxu0 %v8930
        %8955 = vmatprep.subr.mxu0 0.0
        %8956 = vmatpush1.msra.mxu0 %v8929
        %8957 = vmatprep.subr.mxu0 0.0
        %8958 = vmatpush1.msra.mxu0 %v8928
        %8959 = vmatprep.subr.mxu0 0.0
        %8960 = vmatpush1.msra.mxu0 %v8927
        %8961 = vmatprep.subr.mxu0 0.0
        %8962 = vmatpush1.msra.mxu0 %v8926
        %8963 = vmatprep.subr.mxu0 0.0
        %8964 = vmatpush1.msra.mxu0 %v8925
        %8965 = vmatprep.subr.mxu0 0.0
        %8966 = vmatpush1.msra.mxu0 %v8924
        %8967 = vmatprep.subr.mxu0 0.0
        %8968 = vmatpush2.msra.mxu0 0.0
        %8969 = vmatprep.subr.mxu0 0.0
        %8970 = vmatpush2.msra.mxu0 0.0
        %8971 = vmatprep.subr.mxu0 0.0
        %8972 = vmatpush2.msra.mxu0 0.0
        %8973 = vmatprep.subr.mxu0 0.0
        %8974 = vmatpush2.msra.mxu0 0.0
        %8975 = vmatprep.subr.mxu0 0.0
        %8976 = vmatpush2.msra.mxu0 0.0
        %8977 = vmatprep.subr.mxu0 0.0
        %8978 = vmatpush2.msra.mxu0 0.0
        %8979 = vmatprep.subr.mxu0 0.0
        %8980 = vmatpush2.msra.mxu0 0.0
        %8981 = vmatprep.subr.mxu0 0.0
        %8982 = vmatpush2.msra.mxu0 0.0
        %8983 = vmatprep.subr.mxu0 0.0
        %8984 = vmatpush2.msra.mxu0 0.0
        %8985 = vmatprep.subr.mxu0 0.0
        %8986 = vmatpush2.msra.mxu0 0.0
        %8987 = vmatprep.subr.mxu0 0.0
        %8988 = vmatpush2.msra.mxu0 0.0
        %8989 = vmatprep.subr.mxu0 0.0
        %8990 = vmatpush2.msra.mxu0 0.0
        %8991 = vmatprep.subr.mxu0 0.0
        %8992 = vmatpush2.msra.mxu0 0.0
        %8993 = vmatprep.subr.mxu0 0.0
        %8994 = vmatpush2.msra.mxu0 0.0
        %8995 = vmatprep.subr.mxu0 0.0
        %8996 = vmatpush2.msra.mxu0 0.0
        %8997 = vmatprep.subr.mxu0 0.0
        %8998 = vmatpush2.msra.mxu0 0.0
        %8999 = vmatprep.mubr.f32.mxu0 0.0
        %9000 = vmatmul.mubr.f32.gmra.mxu0 %v8933
        %v9001 = vpop.f32.mrf.mxu0
        %v9002 = vadd.f32 0.0, %v9001
        %v9003 = vpop.f32.mrf.mxu0
        %9004 = vdwg.mxu0
        %v9005 = vadd.f32 %v8920, %v9002
        %v9007 = vlaneseq
        %v9008 = vshrl.u32 %v9007, 7
        %v9009 = vsub.s32 0, %v9008
        %v9010 = vrot.slane %v8616, %v9009
        %v9012 = vadd.f32 %v9005, %v9010
        %v9013 = vadd.f32 %v9012, %v8214
        %v9014 = vmax.f32 %v9013, 0.0
        %v9015 = vld [vmem:[%s25] sm:$0xff]
        %v9016 = vld [vmem:[%s25 + $0x8] sm:$0xff]
        %v9017 = vld [vmem:[%s25 + $0x10] sm:$0xff]
        %v9018 = vld [vmem:[%s25 + $0x18] sm:$0xff]
        %v9019 = vld [vmem:[%s25 + $0x20] sm:$0xff]
        %v9020 = vld [vmem:[%s25 + $0x28] sm:$0xff]
        %v9021 = vld [vmem:[%s25 + $0x30] sm:$0xff]
        %v9022 = vld [vmem:[%s25 + $0x38] sm:$0xff]
        %v9023 = vld [vmem:[%s25 + $0x40] sm:$0xff]
        %v9024 = vld [vmem:[%s25 + $0x48] sm:$0xff]
        %v9025 = vld [vmem:[%s25 + $0x50] sm:$0xff]
        %v9026 = vld [vmem:[%s25 + $0x58] sm:$0xff]
        %v9027 = vld [vmem:[%s25 + $0x60] sm:$0xff]
        %v9028 = vld [vmem:[%s25 + $0x68] sm:$0xff]
        %v9029 = vld [vmem:[%s25 + $0x70] sm:$0xff]
        %v9030 = vld [vmem:[%s25 + $0x78] sm:$0xff]
        %s9031 = scalar_lea.vmem %s25, 128
        %v9032 = vld [vmem:[%s9031] sm:$0xff]
        %v9033 = vld [vmem:[%s9031 + $0x8] sm:$0xff]
        %v9034 = vld [vmem:[%s9031 + $0x10] sm:$0xff]
        %v9035 = vld [vmem:[%s9031 + $0x18] sm:$0xff]
        %v9036 = vld [vmem:[%s9031 + $0x20] sm:$0xff]
        %v9037 = vld [vmem:[%s9031 + $0x28] sm:$0xff]
        %v9038 = vld [vmem:[%s9031 + $0x30] sm:$0xff]
        %v9039 = vld [vmem:[%s9031 + $0x38] sm:$0xff]
        %v9040 = vld [vmem:[%s9031 + $0x40] sm:$0xff]
        %v9041 = vld [vmem:[%s9031 + $0x48] sm:$0xff]
        %v9042 = vld [vmem:[%s9031 + $0x50] sm:$0xff]
        %v9043 = vld [vmem:[%s9031 + $0x58] sm:$0xff]
        %v9044 = vld [vmem:[%s9031 + $0x60] sm:$0xff]
        %v9045 = vld [vmem:[%s9031 + $0x68] sm:$0xff]
        %v9046 = vld [vmem:[%s9031 + $0x70] sm:$0xff]
        %v9047 = vld [vmem:[%s9031 + $0x78] sm:$0xff]
        %v9049 = vrot.slane %v9014, 1
        %v9050 = vsel %vm1322, %v9049, 0
        %9052 = vmatprep.subr.mxu0 0.0
        %9053 = vmatpush1.msra.mxu0 0.0
        %9054 = vmatprep.subr.mxu0 0.0
        %9055 = vmatpush1.msra.mxu0 0.0
        %9056 = vmatprep.subr.mxu0 0.0
        %9057 = vmatpush1.msra.mxu0 0.0
        %9058 = vmatprep.subr.mxu0 0.0
        %9059 = vmatpush1.msra.mxu0 0.0
        %9060 = vmatprep.subr.mxu0 0.0
        %9061 = vmatpush1.msra.mxu0 0.0
        %9062 = vmatprep.subr.mxu0 0.0
        %9063 = vmatpush1.msra.mxu0 0.0
        %9064 = vmatprep.subr.mxu0 0.0
        %9065 = vmatpush1.msra.mxu0 0.0
        %9066 = vmatprep.subr.mxu0 0.0
        %9067 = vmatpush1.msra.mxu0 0.0
        %9068 = vmatprep.subr.mxu0 %v9047
        %9069 = vmatpush1.msra.mxu0 %v9046
        %9070 = vmatprep.subr.mxu0 %v9045
        %9071 = vmatpush1.msra.mxu0 %v9044
        %9072 = vmatprep.subr.mxu0 %v9043
        %9073 = vmatpush1.msra.mxu0 %v9042
        %9074 = vmatprep.subr.mxu0 %v9041
        %9075 = vmatpush1.msra.mxu0 %v9040
        %9076 = vmatprep.subr.mxu0 %v9039
        %9077 = vmatpush1.msra.mxu0 %v9038
        %9078 = vmatprep.subr.mxu0 %v9037
        %9079 = vmatpush1.msra.mxu0 %v9036
        %9080 = vmatprep.subr.mxu0 %v9035
        %9081 = vmatpush1.msra.mxu0 %v9034
        %9082 = vmatprep.subr.mxu0 %v9033
        %9083 = vmatpush1.msra.mxu0 %v9032
        %9084 = vmatprep.subr.mxu0 0.0
        %9085 = vmatpush2.msra.mxu0 0.0
        %9086 = vmatprep.subr.mxu0 0.0
        %9087 = vmatpush2.msra.mxu0 0.0
        %9088 = vmatprep.subr.mxu0 0.0
        %9089 = vmatpush2.msra.mxu0 0.0
        %9090 = vmatprep.subr.mxu0 0.0
        %9091 = vmatpush2.msra.mxu0 0.0
        %9092 = vmatprep.subr.mxu0 0.0
        %9093 = vmatpush2.msra.mxu0 0.0
        %9094 = vmatprep.subr.mxu0 0.0
        %9095 = vmatpush2.msra.mxu0 0.0
        %9096 = vmatprep.subr.mxu0 0.0
        %9097 = vmatpush2.msra.mxu0 0.0
        %9098 = vmatprep.subr.mxu0 0.0
        %9099 = vmatpush2.msra.mxu0 0.0
        %9100 = vmatprep.subr.mxu0 0.0
        %9101 = vmatpush2.msra.mxu0 0.0
        %9102 = vmatprep.subr.mxu0 0.0
        %9103 = vmatpush2.msra.mxu0 0.0
        %9104 = vmatprep.subr.mxu0 0.0
        %9105 = vmatpush2.msra.mxu0 0.0
        %9106 = vmatprep.subr.mxu0 0.0
        %9107 = vmatpush2.msra.mxu0 0.0
        %9108 = vmatprep.subr.mxu0 0.0
        %9109 = vmatpush2.msra.mxu0 0.0
        %9110 = vmatprep.subr.mxu0 0.0
        %9111 = vmatpush2.msra.mxu0 0.0
        %9112 = vmatprep.subr.mxu0 0.0
        %9113 = vmatpush2.msra.mxu0 0.0
        %9114 = vmatprep.subr.mxu0 0.0
        %9115 = vmatpush2.msra.mxu0 0.0
        %9116 = vmatprep.mubr.f32.mxu0 0.0
        %9117 = vmatmul.mubr.f32.gmra.mxu0 %v9050
        %v9118 = vpop.f32.mrf.mxu0
        %v9119 = vadd.f32 0.0, %v9118
        %v9120 = vpop.f32.mrf.mxu0
        %v9121 = vadd.f32 0.0, %v9120
        %9122 = vdwg.mxu0
        %v9123 = vsel %vm1322, %v9014, 0
        %9125 = vmatprep.subr.mxu0 0.0
        %9126 = vmatpush1.msra.mxu0 0.0
        %9127 = vmatprep.subr.mxu0 0.0
        %9128 = vmatpush1.msra.mxu0 0.0
        %9129 = vmatprep.subr.mxu0 0.0
        %9130 = vmatpush1.msra.mxu0 0.0
        %9131 = vmatprep.subr.mxu0 0.0
        %9132 = vmatpush1.msra.mxu0 0.0
        %9133 = vmatprep.subr.mxu0 0.0
        %9134 = vmatpush1.msra.mxu0 0.0
        %9135 = vmatprep.subr.mxu0 0.0
        %9136 = vmatpush1.msra.mxu0 0.0
        %9137 = vmatprep.subr.mxu0 0.0
        %9138 = vmatpush1.msra.mxu0 0.0
        %9139 = vmatprep.subr.mxu0 0.0
        %9140 = vmatpush1.msra.mxu0 0.0
        %9141 = vmatprep.subr.mxu0 %v9030
        %9142 = vmatpush1.msra.mxu0 %v9029
        %9143 = vmatprep.subr.mxu0 %v9028
        %9144 = vmatpush1.msra.mxu0 %v9027
        %9145 = vmatprep.subr.mxu0 %v9026
        %9146 = vmatpush1.msra.mxu0 %v9025
        %9147 = vmatprep.subr.mxu0 %v9024
        %9148 = vmatpush1.msra.mxu0 %v9023
        %9149 = vmatprep.subr.mxu0 %v9022
        %9150 = vmatpush1.msra.mxu0 %v9021
        %9151 = vmatprep.subr.mxu0 %v9020
        %9152 = vmatpush1.msra.mxu0 %v9019
        %9153 = vmatprep.subr.mxu0 %v9018
        %9154 = vmatpush1.msra.mxu0 %v9017
        %9155 = vmatprep.subr.mxu0 %v9016
        %9156 = vmatpush1.msra.mxu0 %v9015
        %9157 = vmatprep.subr.mxu0 0.0
        %9158 = vmatpush2.msra.mxu0 0.0
        %9159 = vmatprep.subr.mxu0 0.0
        %9160 = vmatpush2.msra.mxu0 0.0
        %9161 = vmatprep.subr.mxu0 0.0
        %9162 = vmatpush2.msra.mxu0 0.0
        %9163 = vmatprep.subr.mxu0 0.0
        %9164 = vmatpush2.msra.mxu0 0.0
        %9165 = vmatprep.subr.mxu0 0.0
        %9166 = vmatpush2.msra.mxu0 0.0
        %9167 = vmatprep.subr.mxu0 0.0
        %9168 = vmatpush2.msra.mxu0 0.0
        %9169 = vmatprep.subr.mxu0 0.0
        %9170 = vmatpush2.msra.mxu0 0.0
        %9171 = vmatprep.subr.mxu0 0.0
        %9172 = vmatpush2.msra.mxu0 0.0
        %9173 = vmatprep.subr.mxu0 0.0
        %9174 = vmatpush2.msra.mxu0 0.0
        %9175 = vmatprep.subr.mxu0 0.0
        %9176 = vmatpush2.msra.mxu0 0.0
        %9177 = vmatprep.subr.mxu0 0.0
        %9178 = vmatpush2.msra.mxu0 0.0
        %9179 = vmatprep.subr.mxu0 0.0
        %9180 = vmatpush2.msra.mxu0 0.0
        %9181 = vmatprep.subr.mxu0 0.0
        %9182 = vmatpush2.msra.mxu0 0.0
        %9183 = vmatprep.subr.mxu0 0.0
        %9184 = vmatpush2.msra.mxu0 0.0
        %9185 = vmatprep.subr.mxu0 0.0
        %9186 = vmatpush2.msra.mxu0 0.0
        %9187 = vmatprep.subr.mxu0 0.0
        %9188 = vmatpush2.msra.mxu0 0.0
        %9189 = vmatprep.mubr.f32.mxu0 0.0
        %9190 = vmatmul.mubr.f32.gmra.mxu0 %v9123
        %v9191 = vpop.f32.mrf.mxu0
        %v9192 = vadd.f32 %v9119, %v9191
        %v9193 = vpop.f32.mrf.mxu0
        %v9194 = vadd.f32 %v9121, %v9193
        %9195 = vdwg.mxu0
        %v9196 = vld [vmem:[%s26] sm:$0x3]
        %v9198 = vlaneseq
        %v9199 = vshrl.u32 %v9198, 7
        %v9200 = vsub.s32 0, %v9199
        %v9201 = vrot.slane %v9196, %v9200
        %v9202 = vlaneseq
        %v9203 = vshrl.u32 %v9202, 7
        %v9204 = vsub.s32 1, %v9203
        %v9205 = vrot.slane %v9196, %v9204
        %v9208 = vadd.f32 %v9192, %v9201
        %v9209 = vadd.f32 %v9194, %v9205
        %v9210 = vmax.f32 %v9208, 0.0
        %v9211 = vmax.f32 %v9209, 0.0
        %v9214 = vcombine.low %v9210, %v9211
        %v9216 = vunpack.c.l.s4 1966171168
        %v9217 = vunpack.c.0.s8 %v9216
        %v9218 = vlaneseq
        %v9219 = vshrl.u32 %v9218, 7
        %v9220 = vsub.s32 %v9217, %v9219
        %v9221 = vrot.slane %v9214, %v9220
        %v9223 = vunpack.c.l.s4 1966171168
        %v9224 = vunpack.c.0.s8 %v9223
        %v9225 = vlaneseq
        %v9226 = vshrl.u32 %v9225, 7
        %v9227 = vsub.s32 %v9224, %v9226
        %v9228 = vrot.slane %v9221, %v9227
        %v9230 = vlaneseq
        %vm9231 = vcmp.ge.s32.totalorder %v9230, 0
        %vm9232 = vcmp.lt.s32.totalorder %v9230, 256
        %vm9233 = vmand %vm9231, %vm9232
        %9234 = vst.msk [vmem:[%s1117] sm:$0x3] %vm9233, %v9228
        %p9235 = scmp.lt.s32.totalorder %s49, 1
        %s9236 = scalar_select %p9235, %s49, 1
        %s9237 = smul.addr %s9236, 2
        %s9238 = scalar_lea.vmem %s27, %s9237
        // Predicated region
        $region213: #{image_forward.1} parent=127 // pred_check
          %p9239 = pneg %p639
        $region214: #{image_forward.1} parent=127 // pred_check_branch
          %9241 = sbr.rel (%p9239) target = $region216
        $region215: #{image_forward.1} parent=127 // pred_region
          _
        $region216: #{image_forward.1} parent=127 // pred_fallthru
          _
      $region128: #{image_forward.1} parent=5 // pred_fallthru
        _
      %p9242 = scmp.le.s32.totalorder 2, %s44
      // Predicated region
      $region217: #{image_forward.1} parent=5 // pred_check
        %p9243 = pneg %p9242
      $region218: #{image_forward.1} parent=5 // pred_check_branch
        %9245 = sbr.rel (%p9243) target = $region220
      $region219: #{image_forward.1} parent=5 // pred_region
        %s9246 = ssub.s32 %s44, 2
        // Predicated region
        $region221: #{image_forward.1} parent=219 // pred_check
          %p9247 = pneg %p645
        $region222: #{image_forward.1} parent=219 // pred_check_branch
          %9249 = sbr.rel (%p9247) target = $region224
        $region223: #{image_forward.1} parent=219 // pred_region
          %p9250 = scmp.lt.s32.totalorder %s50, 1
          %s9251 = scalar_select %p9250, %s50, 1
          %s9252 = smul.addr %s9251, 2
          %s9253 = scalar_lea.vmem %s27, %s9252
        $region224: #{image_forward.1} parent=219 // pred_fallthru
          _
      $region220: #{image_forward.1} parent=5 // pred_fallthru
        _
    $region6: #{image_forward.1} parent=1 // loop_footer
      %s48 = sadd.s32 1, %s44
    $region7: #{image_forward.1} parent=1 // loop_footer_branch
      %43 = sbr.rel target = $region3
    $region8: #{image_forward.1} parent=1 // loop_exit
      _
    %9254 = vsyncpa [#allocation3], 1
    %s9255 = scalar_lea.sflag [#allocation3], 1
    %9256 = vsyncpa %s9255, 1
    %9257 = vsyncpa [#allocation5], 1
    %9258 = vsyncpa [#allocation8], 1
    %9259 = vsyncpa [#allocation11], 1
    %9260 = vsyncpa [#allocation14], 1
    %9261 = vsyncpa [#allocation17], 1
    %9262 = vsyncpa [#allocation20], 1
    %9263 = vsyncpa [#allocation23], 1
    %9264 = vsyncpa [#allocation26], 1
    %9265 = vsyncpa [#allocation29], 1
    %9266 = vsyncpa [#allocation32], 1

</llo_original>
